<compile_context>
chip_gen: v5e
topology: v5e:2x2
jax: 0.10.0
libtpu: 0.0.40
codegen_flags: <defaults>
</compile_context>

<pallas_src>
import functools

import jax
import jax.numpy as jnp
import numpy as np
from jax.experimental import pallas as pl
from jax.experimental.pallas import tpu as pltpu


def hybrid_attention_kernel(
    x_q_ref, x_kv_ref, mask_ref, w_xq_ref, w_xkv_ref, wos_ref, woc_ref, out_ref,
    *, n_self, n_cross, head_dim, dot_dtype, approx_recip):
  """One (Bt, Sq) activation tile per grid step: fused projections + grouped attention."""
  f32 = jnp.float32
  bt, sq, hidden = x_q_ref.shape
  skv = x_kv_ref.shape[1]
  ds, dc = n_self * head_dim, n_cross * head_dim

  xq = x_q_ref[...].reshape(bt * sq, hidden)       # dot_dtype
  xkv = x_kv_ref[...].reshape(bt * skv, hidden)
  mask = mask_ref[...].astype(f32)                 # (bt, sq, skv), broadcast over heads

  # Fused projections: one MXU pass per activation stream.
  #   pq columns : [ q_self (ds) | q_cross (dc) | k_self (ds) | v_self (ds) ]
  #   pkv columns: [ k_cross (dc) | v_cross (dc) ]
  pq = jnp.dot(xq, w_xq_ref[...], preferred_element_type=f32)     # (bt*sq, hidden + 2*ds)
  pkv = jnp.dot(xkv, w_xkv_ref[...], preferred_element_type=f32)  # (bt*skv, 2*dc)

  def to_heads(x, h, s):  # (bt*s, h*D) f32 -> (bt*h, s, D) dot_dtype
    return (x.reshape(bt, s, h, head_dim).astype(dot_dtype)
            .transpose(0, 2, 1, 3).reshape(bt * h, s, head_dim))

  def group_attn(q_g, k_g, v_g, wo_ref, h):
    """(bt*h,sq,D) x (bt*h,skv_g,D) -> this group's contribution to y: (bt*sq, hidden) f32."""
    skv_g = k_g.shape[1]
    s = jnp.einsum('gqd,gkd->gqk', q_g, k_g, preferred_element_type=f32)
    s = s.reshape(bt, h, sq, skv_g) + mask[:, None]          # scale already folded into Wq
    s = s - jnp.max(s, axis=-1, keepdims=True)
    p = jnp.exp(s)                                           # f32 softmax math
    p = p * pl.reciprocal(jnp.sum(p, axis=-1, keepdims=True), approx=approx_recip)
    o = jnp.einsum('gqk,gkd->gqd', p.reshape(bt * h, sq, skv_g).astype(dot_dtype),
                   v_g, preferred_element_type=f32)          # (bt*h, sq, D)
    o = (o.astype(dot_dtype).reshape(bt, h, sq, head_dim)
         .transpose(0, 2, 1, 3).reshape(bt * sq, h * head_dim))
    return jnp.dot(o, wo_ref[...], preferred_element_type=f32)

  y = (group_attn(to_heads(pq[:, :ds], n_self, sq),
                  to_heads(pq[:, hidden:hidden + ds], n_self, sq),
                  to_heads(pq[:, hidden + ds:], n_self, sq),
                  wos_ref, n_self)
       + group_attn(to_heads(pq[:, ds:hidden], n_cross, sq),
                    to_heads(pkv[:, :dc], n_cross, skv),
                    to_heads(pkv[:, dc:], n_cross, skv),
                    woc_ref, n_cross))
  out_ref[...] = y.reshape(bt, sq, hidden).astype(out_ref.dtype)


def _prep_params(params, *, n_total, n_self, self_index_start, head_dim, dot_dtype):
  """Host-side weight prep: fuse projections, permute/scale Q heads, merge o_proj."""
  hidden = n_total * head_dim
  i0, i1 = self_index_start, self_index_start + n_self
  head_order = list(range(i0, i1)) + [h for h in range(n_total) if not (i0 <= h < i1)]
  self_heads, cross_heads = head_order[:n_self], head_order[n_self:]
  scale = head_dim ** (-0.5)
  f32 = jnp.float32
  ds = n_self * head_dim

  def cols(w, heads_):  # gather head column-blocks of a (hidden, hidden) weight
    w3 = w.astype(f32).reshape(hidden, n_total, head_dim)
    return jnp.take(w3, jnp.asarray(heads_), axis=1).reshape(hidden, len(heads_) * head_dim)

  # Fused xq-side weight: [Wq (permuted to [self|cross], pre-scaled) | Wk_self | Wv_self].
  w_xq = jnp.concatenate(
      [scale * cols(params["wq"], head_order),
       cols(params["wks"], self_heads),
       cols(params["wvs"], self_heads)], axis=1).astype(dot_dtype)
  # Fused xkv-side weight: [Wk_cross | Wv_cross] (cross-head columns only).
  w_xkv = jnp.concatenate(
      [cols(params["wkc"], cross_heads),
       cols(params["wvc"], cross_heads)], axis=1).astype(dot_dtype)

  # Merged o_proj. The module applies o_proj to outputs in CONCAT order (self heads first,
  # then cross heads), so the row split is simply [:ds] / [ds:].
  wo = 0.5 * (params["wos"].astype(f32) + params["woc"].astype(f32))
  return w_xq, w_xkv, wo[:ds].astype(dot_dtype), wo[ds:].astype(dot_dtype)


def _pick_block_batch(B, Sq, target_m=256, cap_m=4096):
  """Smallest divisor of B giving an MXU M-dim >= target (capped), else the largest that fits."""
  divisors = [d for d in range(1, B + 1) if B % d == 0]
  good = [d for d in divisors if target_m <= d * Sq <= cap_m]
  if good:
    return good[0]
  under = [d for d in divisors if d * Sq <= cap_m]
  return under[-1] if under else 1


def hybrid_attention(x_q, x_kv, mask, params, *, n_total, n_self, self_index_start,
                     dot_dtype=jnp.bfloat16, approx_softmax_recip=None):
  """mask: (B, Sq, Skv) additive mask, broadcast over heads (the module adds the same mask
  to both the self and the cross scores, which requires Sq == Skv for a full mask)."""
  B, Sq, hidden = x_q.shape
  Skv = x_kv.shape[1]
  assert hidden % n_total == 0
  head_dim = hidden // n_total
  n_cross = n_total - n_self
  assert n_self >= 1 and n_cross >= 1
  assert 0 <= self_index_start and self_index_start + n_self <= n_total, (
      "self heads must form a contiguous in-range block")
  assert mask.shape == (B, Sq, Skv) and Sq == Skv, (
      "module adds one mask to self (Sq x Sq) and cross (Sq x Skv) scores -> needs Sq == Skv")
  ds, dc = n_self * head_dim, n_cross * head_dim

  w_xq, w_xkv, wo_s, wo_c = _prep_params(
      params, n_total=n_total, n_self=n_self, self_index_start=self_index_start,
      head_dim=head_dim, dot_dtype=dot_dtype)

  is_f32 = jnp.dtype(dot_dtype) == jnp.dtype(jnp.float32)
  xq_in = x_q.astype(dot_dtype)                 # halves activation DMA on the bf16 path
  xkv_in = x_kv.astype(dot_dtype)
  mask_in = mask.astype(jnp.float32 if is_f32 else dot_dtype)   # upcast in-kernel
  if approx_softmax_recip is None:
    approx_softmax_recip = not is_f32           # accuracy-driven default, overridable

  bt = _pick_block_batch(B, Sq)
  grid = (B // bt,)

  kernel = functools.partial(
      hybrid_attention_kernel, n_self=n_self, n_cross=n_cross, head_dim=head_dim,
      dot_dtype=dot_dtype, approx_recip=approx_softmax_recip)

  # --- Rough per-step VMEM budget + generation-aware scoped limit. ---
  itm = jnp.dtype(dot_dtype).itemsize
  out_itm = jnp.dtype(x_q.dtype).itemsize
  w_bytes = sum(int(w.size) for w in (w_xq, w_xkv, wo_s, wo_c)) * itm
  act_bytes = 2 * bt * (Sq * hidden * itm + Skv * hidden * itm
                        + Sq * Skv * mask_in.dtype.itemsize + Sq * hidden * out_itm)
  inter_bytes = 4 * bt * (Sq * (hidden + 2 * ds) + Skv * 2 * dc
                          + 3 * n_total * Sq * max(Sq, Skv) + 4 * Sq * hidden)
  try:
    vmem_cap = int(pltpu.get_tpu_info().vmem_capacity_bytes)
  except Exception:
    vmem_cap = 64 * 2 ** 20                     # conservative: v7x has the smallest VMEM

  def run(single_buffer_weights):
    est = w_bytes * (1 if single_buffer_weights else 2) + act_bytes + inter_bytes
    # Always set the limit explicitly (never rely on v5e's 16 MiB / v6e's 32 MiB default)
    # and never exceed the physical capacity of this chip generation.
    vmem_limit = int(min(max(2 * est, 32 * 2 ** 20), vmem_cap * 7 // 8))

    def wspec(shape):
      # Constant index_map: the same weight block is reused every grid step.
      if single_buffer_weights:
        return pl.BlockSpec(shape, lambda b: (0, 0),
                            pipeline_mode=pl.Buffered(buffer_count=1))
      return pl.BlockSpec(shape, lambda b: (0, 0))

    out = pl.pallas_call(
        kernel,
        out_shape=jax.ShapeDtypeStruct((B, Sq, hidden), x_q.dtype),
        grid=grid,
        in_specs=[
            pl.BlockSpec((bt, Sq, hidden), lambda b: (b, 0, 0)),   # x_q
            pl.BlockSpec((bt, Skv, hidden), lambda b: (b, 0, 0)),  # x_kv
            pl.BlockSpec((bt, Sq, Skv), lambda b: (b, 0, 0)),      # additive mask
            wspec((hidden, hidden + 2 * ds)),                      # fused xq-side weights
            wspec((hidden, 2 * dc)),                               # fused xkv-side weights
            wspec((ds, hidden)),                                   # merged o_proj rows (self)
            wspec((dc, hidden)),                                   # merged o_proj rows (cross)
        ],
        out_specs=pl.BlockSpec((bt, Sq, hidden), lambda b: (b, 0, 0)),
        compiler_params=pltpu.CompilerParams(
            dimension_semantics=("parallel",),
            vmem_limit_bytes=vmem_limit),
    )(xq_in, xkv_in, mask_in, w_xq, w_xkv, wo_s, wo_c)
    return jax.block_until_ready(out)

  try:
    return run(single_buffer_weights=True)
  except Exception:
    # TODO(synk): fallback for jax versions that reject pl.Buffered(1) on pallas_call specs.
    return run(single_buffer_weights=False)


def reference(x_q, x_kv, mask, params, *, n_total, n_self, self_index_start):
  """Pure-JAX port of the PyTorch forward (rotary=None, dropout=identity)."""
  B, Sq, hidden = x_q.shape
  D = hidden // n_total
  scale = D ** (-0.5)

  def proj(x, w):
    return jnp.einsum("bsh,hk->bsk", x, w)

  def heads(x):
    b, s, _ = x.shape
    return x.reshape(b, s, n_total, D).transpose(0, 2, 1, 3)

  q = heads(proj(x_q, params["wq"]))
  ks = heads(proj(x_q, params["wks"]))
  vs = heads(proj(x_q, params["wvs"]))
  kc = heads(proj(x_kv, params["wkc"]))
  vc = heads(proj(x_kv, params["wvc"]))

  i0, i1 = self_index_start, self_index_start + n_self
  q_self, k_s, v_s = q[:, i0:i1], ks[:, i0:i1], vs[:, i0:i1]
  q_cross = jnp.concatenate([q[:, :i0], q[:, i1:]], axis=1)
  k_c = jnp.concatenate([kc[:, :i0], kc[:, i1:]], axis=1)
  v_c = jnp.concatenate([vc[:, :i0], vc[:, i1:]], axis=1)

  def attn(qh, kh, vh):
    w = jnp.einsum("bhqd,bhkd->bhqk", qh, kh) * scale + mask[:, None]
    w = jax.nn.softmax(w, axis=-1)
    return jnp.einsum("bhqk,bhkd->bhqd", w, vh)

  out = jnp.concatenate([attn(q_self, k_s, v_s), attn(q_cross, k_c, v_c)], axis=1)
  out_flat = out.transpose(0, 2, 1, 3).reshape(B, Sq, hidden)
  return 0.5 * (out_flat @ params["wos"] + out_flat @ params["woc"])


if __name__ == "__main__":
  # Full-f32 matmuls for the reference and the f32 kernel path (tight comparison).
  jax.config.update("jax_default_matmul_precision", "highest")

  key = jax.random.PRNGKey(0)
  B, Sq, Skv = 2, 8, 8            # Sq == Skv: the module adds one mask to both score shapes
  hidden, n_total, n_self, mirror = 32, 4, 2, True
  self_index_start = (n_total - n_self) if mirror else 0

  keys = jax.random.split(key, 9)

  def mk_w(k):
    return (0.05 * jax.random.normal(k, (hidden, hidden))).astype(jnp.float32)

  wo = mk_w(keys[5])  # o_proj_self / o_proj_cross are deepcopies of the same orig o_proj
  params = dict(wq=mk_w(keys[0]), wks=mk_w(keys[1]), wvs=mk_w(keys[2]),
                wkc=mk_w(keys[3]), wvc=mk_w(keys[4]), wos=wo, woc=wo)

  x_q = jax.random.normal(keys[6], (B, Sq, hidden), jnp.float32)
  x_kv = jax.random.normal(keys[7], (B, Skv, hidden), jnp.float32)
  mask = (0.5 * jax.random.normal(keys[8], (B, Sq, Skv))).astype(jnp.float32)

  ref = reference(x_q, x_kv, mask, params, n_total=n_total, n_self=n_self,
                  self_index_start=self_index_start)

  # Exact-math path (f32 MXU operands): validates fusion / permutation / o_proj merge.
  out_f32 = hybrid_attention(x_q, x_kv, mask, params, n_total=n_total, n_self=n_self,
                             self_index_start=self_index_start, dot_dtype=jnp.float32)
  out_f32 = jax.block_until_ready(out_f32)
  np.testing.assert_allclose(np.asarray(out_f32), np.asarray(ref), rtol=5e-3, atol=1e-4)

  # bf16-MXU fast path: bf16 operands, f32 accumulation, f32 softmax math.
  out_bf16 = hybrid_attention(x_q, x_kv, mask, params, n_total=n_total, n_self=n_self,
                              self_index_start=self_index_start, dot_dtype=jnp.bfloat16)
  out_bf16 = jax.block_until_ready(out_bf16)
  np.testing.assert_allclose(np.asarray(out_bf16), np.asarray(ref), rtol=5e-2, atol=5e-3)

  print("KERNEL_OK")
</pallas_src>

<mosaic_0001>
module attributes {stable_mosaic.version = 11 : i64} {
  func.func @hybrid_attention_kernel(%arg0: i32, %arg1: memref<2x8x32xf32, #tpu.memory_space<vmem>>, %arg2: memref<2x8x32xf32, #tpu.memory_space<vmem>>, %arg3: memref<2x8x8xf32, #tpu.memory_space<vmem>>, %arg4: memref<32x64xf32, #tpu.memory_space<vmem>>, %arg5: memref<32x32xf32, #tpu.memory_space<vmem>>, %arg6: memref<16x32xf32, #tpu.memory_space<vmem>>, %arg7: memref<16x32xf32, #tpu.memory_space<vmem>>, %arg8: memref<2x8x32xf32, #tpu.memory_space<vmem>>) attributes {dimension_semantics = [#tpu.dimension_semantics<parallel>], iteration_bounds = array<i64: 1>, scalar_prefetch = 0 : i64, scratch_operands = 0 : i64, tpu.core_type = #tpu.core_type<tc>, window_params = [{transform_indices = @transform_0, window_bounds = array<i64: 2, 8, 32>}, {transform_indices = @transform_1, window_bounds = array<i64: 2, 8, 32>}, {transform_indices = @transform_2, window_bounds = array<i64: 2, 8, 8>}, {pipeline_mode = #tpu.pipeline_mode<synchronous>, transform_indices = @transform_3, window_bounds = array<i64: 32, 64>}, {pipeline_mode = #tpu.pipeline_mode<synchronous>, transform_indices = @transform_4, window_bounds = array<i64: 32, 32>}, {pipeline_mode = #tpu.pipeline_mode<synchronous>, transform_indices = @transform_5, window_bounds = array<i64: 16, 32>}, {pipeline_mode = #tpu.pipeline_mode<synchronous>, transform_indices = @transform_6, window_bounds = array<i64: 16, 32>}, {transform_indices = @transform_7, window_bounds = array<i64: 2, 8, 32>}]} {
    %c0 = arith.constant 0 : index
    %c0_0 = arith.constant 0 : index
    %c0_1 = arith.constant 0 : index
    %0 = vector.load %arg1[%c0, %c0_0, %c0_1] : memref<2x8x32xf32, #tpu.memory_space<vmem>>, vector<2x8x32xf32>
    %1 = vector.shape_cast %0 : vector<2x8x32xf32> to vector<16x32xf32>
    %c0_2 = arith.constant 0 : index
    %c0_3 = arith.constant 0 : index
    %c0_4 = arith.constant 0 : index
    %2 = vector.load %arg2[%c0_2, %c0_3, %c0_4] : memref<2x8x32xf32, #tpu.memory_space<vmem>>, vector<2x8x32xf32>
    %3 = vector.shape_cast %2 : vector<2x8x32xf32> to vector<16x32xf32>
    %c0_5 = arith.constant 0 : index
    %c0_6 = arith.constant 0 : index
    %c0_7 = arith.constant 0 : index
    %4 = vector.load %arg3[%c0_5, %c0_6, %c0_7] : memref<2x8x8xf32, #tpu.memory_space<vmem>>, vector<2x8x8xf32>
    %c0_8 = arith.constant 0 : index
    %c0_9 = arith.constant 0 : index
    %5 = vector.load %arg4[%c0_8, %c0_9] : memref<32x64xf32, #tpu.memory_space<vmem>>, vector<32x64xf32>
    %cst = arith.constant dense<0.000000e+00> : vector<16x64xf32>
    %6 = tpu.matmul %1, %5, %cst {dimension_numbers = #tpu.dot_dimension_numbers<[1], [0], [0], [1], [0, 0, 1, 1], [], []>, precision = #tpu.contract_precision<fp32>} : vector<16x32xf32>, vector<32x64xf32>, vector<16x64xf32> -> vector<16x64xf32>
    %c0_10 = arith.constant 0 : index
    %c0_11 = arith.constant 0 : index
    %7 = vector.load %arg5[%c0_10, %c0_11] : memref<32x32xf32, #tpu.memory_space<vmem>>, vector<32x32xf32>
    %cst_12 = arith.constant dense<0.000000e+00> : vector<16x32xf32>
    %8 = tpu.matmul %3, %7, %cst_12 {dimension_numbers = #tpu.dot_dimension_numbers<[1], [0], [0], [1], [0, 0, 1, 1], [], []>, precision = #tpu.contract_precision<fp32>} : vector<16x32xf32>, vector<32x32xf32>, vector<16x32xf32> -> vector<16x32xf32>
    %9 = vector.extract_strided_slice %6 {offsets = [0, 0], sizes = [16, 16], strides = [1, 1]} : vector<16x64xf32> to vector<16x16xf32>
    %10 = vector.shape_cast %9 : vector<16x16xf32> to vector<2x8x2x8xf32>
    %11 = tpu.transpose %10, [0, 2, 1, 3] : vector<2x8x2x8xf32> -> vector<2x2x8x8xf32>
    %12 = vector.shape_cast %11 : vector<2x2x8x8xf32> to vector<4x8x8xf32>
    %13 = vector.extract_strided_slice %6 {offsets = [0, 32], sizes = [16, 16], strides = [1, 1]} : vector<16x64xf32> to vector<16x16xf32>
    %14 = vector.shape_cast %13 : vector<16x16xf32> to vector<2x8x2x8xf32>
    %15 = tpu.transpose %14, [0, 2, 1, 3] : vector<2x8x2x8xf32> -> vector<2x2x8x8xf32>
    %16 = vector.shape_cast %15 : vector<2x2x8x8xf32> to vector<4x8x8xf32>
    %17 = vector.extract_strided_slice %6 {offsets = [0, 48], sizes = [16, 16], strides = [1, 1]} : vector<16x64xf32> to vector<16x16xf32>
    %18 = vector.shape_cast %17 : vector<16x16xf32> to vector<2x8x2x8xf32>
    %19 = tpu.transpose %18, [0, 2, 1, 3] : vector<2x8x2x8xf32> -> vector<2x2x8x8xf32>
    %20 = vector.shape_cast %19 : vector<2x2x8x8xf32> to vector<4x8x8xf32>
    "tpu.trace_start"() <{level = 10 : i32, message = "gqd,gkd->gqk"}> : () -> ()
    %cst_13 = arith.constant dense<0.000000e+00> : vector<4x8x8xf32>
    %21 = tpu.matmul %12, %16, %cst_13 {dimension_numbers = #tpu.dot_dimension_numbers<[2], [2], [1], [1], [0, 0, 0, 1, 1, 1], [0], [0]>, precision = #tpu.contract_precision<fp32>} : vector<4x8x8xf32>, vector<4x8x8xf32>, vector<4x8x8xf32> -> vector<4x8x8xf32>
    "tpu.trace_stop"() : () -> ()
    %22 = vector.shape_cast %21 : vector<4x8x8xf32> to vector<2x2x8x8xf32>
    %23 = vector.shape_cast %4 : vector<2x8x8xf32> to vector<2x1x8x8xf32>
    %24 = vector.broadcast %23 : vector<2x1x8x8xf32> to vector<2x2x8x8xf32>
    %25 = arith.addf %22, %24 : vector<2x2x8x8xf32>
    %cst_14 = arith.constant dense<0xFF800000> : vector<2x2x8xf32>
    %26 = vector.multi_reduction <maximumf>, %25, %cst_14 [3] : vector<2x2x8x8xf32> to vector<2x2x8xf32>
    %27 = vector.shape_cast %26 : vector<2x2x8xf32> to vector<2x2x8x1xf32>
    %28 = vector.broadcast %27 : vector<2x2x8x1xf32> to vector<2x2x8x8xf32>
    %29 = arith.subf %25, %28 : vector<2x2x8x8xf32>
    %30 = math.exp %29 : vector<2x2x8x8xf32>
    %cst_15 = arith.constant dense<0.000000e+00> : vector<2x2x8xf32>
    %31 = vector.multi_reduction <add>, %30, %cst_15 [3] : vector<2x2x8x8xf32> to vector<2x2x8xf32>
    %32 = vector.shape_cast %31 : vector<2x2x8xf32> to vector<2x2x8x1xf32>
    %33 = tpu.reciprocal %32 : vector<2x2x8x1xf32> -> vector<2x2x8x1xf32>
    %34 = vector.broadcast %33 : vector<2x2x8x1xf32> to vector<2x2x8x8xf32>
    %35 = arith.mulf %30, %34 : vector<2x2x8x8xf32>
    %36 = vector.shape_cast %35 : vector<2x2x8x8xf32> to vector<4x8x8xf32>
    "tpu.trace_start"() <{level = 10 : i32, message = "gqk,gkd->gqd"}> : () -> ()
    %cst_16 = arith.constant dense<0.000000e+00> : vector<4x8x8xf32>
    %37 = tpu.matmul %36, %20, %cst_16 {dimension_numbers = #tpu.dot_dimension_numbers<[2], [1], [1], [2], [0, 0, 0, 1, 1, 2], [0], [0]>, precision = #tpu.contract_precision<fp32>} : vector<4x8x8xf32>, vector<4x8x8xf32>, vector<4x8x8xf32> -> vector<4x8x8xf32>
    "tpu.trace_stop"() : () -> ()
    %38 = vector.shape_cast %37 : vector<4x8x8xf32> to vector<2x2x8x8xf32>
    %39 = tpu.transpose %38, [0, 2, 1, 3] : vector<2x2x8x8xf32> -> vector<2x8x2x8xf32>
    %40 = vector.shape_cast %39 : vector<2x8x2x8xf32> to vector<16x16xf32>
    %c0_17 = arith.constant 0 : index
    %c0_18 = arith.constant 0 : index
    %41 = vector.load %arg6[%c0_17, %c0_18] : memref<16x32xf32, #tpu.memory_space<vmem>>, vector<16x32xf32>
    %cst_19 = arith.constant dense<0.000000e+00> : vector<16x32xf32>
    %42 = tpu.matmul %40, %41, %cst_19 {dimension_numbers = #tpu.dot_dimension_numbers<[1], [0], [0], [1], [0, 0, 1, 1], [], []>, precision = #tpu.contract_precision<fp32>} : vector<16x16xf32>, vector<16x32xf32>, vector<16x32xf32> -> vector<16x32xf32>
    %43 = vector.extract_strided_slice %6 {offsets = [0, 16], sizes = [16, 16], strides = [1, 1]} : vector<16x64xf32> to vector<16x16xf32>
    %44 = vector.shape_cast %43 : vector<16x16xf32> to vector<2x8x2x8xf32>
    %45 = tpu.transpose %44, [0, 2, 1, 3] : vector<2x8x2x8xf32> -> vector<2x2x8x8xf32>
    %46 = vector.shape_cast %45 : vector<2x2x8x8xf32> to vector<4x8x8xf32>
    %47 = vector.extract_strided_slice %8 {offsets = [0, 0], sizes = [16, 16], strides = [1, 1]} : vector<16x32xf32> to vector<16x16xf32>
    %48 = vector.shape_cast %47 : vector<16x16xf32> to vector<2x8x2x8xf32>
    %49 = tpu.transpose %48, [0, 2, 1, 3] : vector<2x8x2x8xf32> -> vector<2x2x8x8xf32>
    %50 = vector.shape_cast %49 : vector<2x2x8x8xf32> to vector<4x8x8xf32>
    %51 = vector.extract_strided_slice %8 {offsets = [0, 16], sizes = [16, 16], strides = [1, 1]} : vector<16x32xf32> to vector<16x16xf32>
    %52 = vector.shape_cast %51 : vector<16x16xf32> to vector<2x8x2x8xf32>
    %53 = tpu.transpose %52, [0, 2, 1, 3] : vector<2x8x2x8xf32> -> vector<2x2x8x8xf32>
    %54 = vector.shape_cast %53 : vector<2x2x8x8xf32> to vector<4x8x8xf32>
    "tpu.trace_start"() <{level = 10 : i32, message = "gqd,gkd->gqk"}> : () -> ()
    %cst_20 = arith.constant dense<0.000000e+00> : vector<4x8x8xf32>
    %55 = tpu.matmul %46, %50, %cst_20 {dimension_numbers = #tpu.dot_dimension_numbers<[2], [2], [1], [1], [0, 0, 0, 1, 1, 1], [0], [0]>, precision = #tpu.contract_precision<fp32>} : vector<4x8x8xf32>, vector<4x8x8xf32>, vector<4x8x8xf32> -> vector<4x8x8xf32>
    "tpu.trace_stop"() : () -> ()
    %56 = vector.shape_cast %55 : vector<4x8x8xf32> to vector<2x2x8x8xf32>
    %57 = vector.shape_cast %4 : vector<2x8x8xf32> to vector<2x1x8x8xf32>
    %58 = vector.broadcast %57 : vector<2x1x8x8xf32> to vector<2x2x8x8xf32>
    %59 = arith.addf %56, %58 : vector<2x2x8x8xf32>
    %cst_21 = arith.constant dense<0xFF800000> : vector<2x2x8xf32>
    %60 = vector.multi_reduction <maximumf>, %59, %cst_21 [3] : vector<2x2x8x8xf32> to vector<2x2x8xf32>
    %61 = vector.shape_cast %60 : vector<2x2x8xf32> to vector<2x2x8x1xf32>
    %62 = vector.broadcast %61 : vector<2x2x8x1xf32> to vector<2x2x8x8xf32>
    %63 = arith.subf %59, %62 : vector<2x2x8x8xf32>
    %64 = math.exp %63 : vector<2x2x8x8xf32>
    %cst_22 = arith.constant dense<0.000000e+00> : vector<2x2x8xf32>
    %65 = vector.multi_reduction <add>, %64, %cst_22 [3] : vector<2x2x8x8xf32> to vector<2x2x8xf32>
    %66 = vector.shape_cast %65 : vector<2x2x8xf32> to vector<2x2x8x1xf32>
    %67 = tpu.reciprocal %66 : vector<2x2x8x1xf32> -> vector<2x2x8x1xf32>
    %68 = vector.broadcast %67 : vector<2x2x8x1xf32> to vector<2x2x8x8xf32>
    %69 = arith.mulf %64, %68 : vector<2x2x8x8xf32>
    %70 = vector.shape_cast %69 : vector<2x2x8x8xf32> to vector<4x8x8xf32>
    "tpu.trace_start"() <{level = 10 : i32, message = "gqk,gkd->gqd"}> : () -> ()
    %cst_23 = arith.constant dense<0.000000e+00> : vector<4x8x8xf32>
    %71 = tpu.matmul %70, %54, %cst_23 {dimension_numbers = #tpu.dot_dimension_numbers<[2], [1], [1], [2], [0, 0, 0, 1, 1, 2], [0], [0]>, precision = #tpu.contract_precision<fp32>} : vector<4x8x8xf32>, vector<4x8x8xf32>, vector<4x8x8xf32> -> vector<4x8x8xf32>
    "tpu.trace_stop"() : () -> ()
    %72 = vector.shape_cast %71 : vector<4x8x8xf32> to vector<2x2x8x8xf32>
    %73 = tpu.transpose %72, [0, 2, 1, 3] : vector<2x2x8x8xf32> -> vector<2x8x2x8xf32>
    %74 = vector.shape_cast %73 : vector<2x8x2x8xf32> to vector<16x16xf32>
    %c0_24 = arith.constant 0 : index
    %c0_25 = arith.constant 0 : index
    %75 = vector.load %arg7[%c0_24, %c0_25] : memref<16x32xf32, #tpu.memory_space<vmem>>, vector<16x32xf32>
    %cst_26 = arith.constant dense<0.000000e+00> : vector<16x32xf32>
    %76 = tpu.matmul %74, %75, %cst_26 {dimension_numbers = #tpu.dot_dimension_numbers<[1], [0], [0], [1], [0, 0, 1, 1], [], []>, precision = #tpu.contract_precision<fp32>} : vector<16x16xf32>, vector<16x32xf32>, vector<16x32xf32> -> vector<16x32xf32>
    %77 = arith.addf %42, %76 : vector<16x32xf32>
    %78 = vector.shape_cast %77 : vector<16x32xf32> to vector<2x8x32xf32>
    %c0_27 = arith.constant 0 : index
    %c0_28 = arith.constant 0 : index
    %c0_29 = arith.constant 0 : index
    %79 = vector.load %arg8[%c0_27, %c0_28, %c0_29] : memref<2x8x32xf32, #tpu.memory_space<vmem>>, vector<2x8x32xf32>
    tpu.vector_store %arg8[%c0_27, %c0_28, %c0_29], %78 {strides = array<i32>} : memref<2x8x32xf32, #tpu.memory_space<vmem>>, vector<2x8x32xf32>,
    return
  }
  func.func @transform_0(%arg0: i32) -> (i32, i32, i32) {
    %c0_i32 = arith.constant 0 : i32
    %c0_i32_0 = arith.constant 0 : i32
    %c0_i32_1 = arith.constant 0 : i32
    return %arg0, %c0_i32, %c0_i32_0 : i32, i32, i32
  }
  func.func @transform_1(%arg0: i32) -> (i32, i32, i32) {
    %c0_i32 = arith.constant 0 : i32
    %c0_i32_0 = arith.constant 0 : i32
    %c0_i32_1 = arith.constant 0 : i32
    return %arg0, %c0_i32, %c0_i32_0 : i32, i32, i32
  }
  func.func @transform_2(%arg0: i32) -> (i32, i32, i32) {
    %c0_i32 = arith.constant 0 : i32
    %c0_i32_0 = arith.constant 0 : i32
    %c0_i32_1 = arith.constant 0 : i32
    return %arg0, %c0_i32, %c0_i32_0 : i32, i32, i32
  }
  func.func @transform_3(%arg0: i32) -> (i32, i32) {
    %c0_i32 = arith.constant 0 : i32
    %c0_i32_0 = arith.constant 0 : i32
    %c0_i32_1 = arith.constant 0 : i32
    return %c0_i32, %c0_i32_0 : i32, i32
  }
  func.func @transform_4(%arg0: i32) -> (i32, i32) {
    %c0_i32 = arith.constant 0 : i32
    %c0_i32_0 = arith.constant 0 : i32
    %c0_i32_1 = arith.constant 0 : i32
    return %c0_i32, %c0_i32_0 : i32, i32
  }
  func.func @transform_5(%arg0: i32) -> (i32, i32) {
    %c0_i32 = arith.constant 0 : i32
    %c0_i32_0 = arith.constant 0 : i32
    %c0_i32_1 = arith.constant 0 : i32
    return %c0_i32, %c0_i32_0 : i32, i32
  }
  func.func @transform_6(%arg0: i32) -> (i32, i32) {
    %c0_i32 = arith.constant 0 : i32
    %c0_i32_0 = arith.constant 0 : i32
    %c0_i32_1 = arith.constant 0 : i32
    return %c0_i32, %c0_i32_0 : i32, i32
  }
  func.func @transform_7(%arg0: i32) -> (i32, i32, i32) {
    %c0_i32 = arith.constant 0 : i32
    %c0_i32_0 = arith.constant 0 : i32
    %c0_i32_1 = arith.constant 0 : i32
    return %arg0, %c0_i32, %c0_i32_0 : i32, i32, i32
  }
}

module attributes {stable_mosaic.version = 11 : i64} {
  func.func @hybrid_attention_kernel(%arg0: i32, %arg1: memref<2x8x32xf32, #tpu.memory_space<vmem>>, %arg2: memref<2x8x32xf32, #tpu.memory_space<vmem>>, %arg3: memref<2x8x8xf32, #tpu.memory_space<vmem>>, %arg4: memref<32x64xf32, #tpu.memory_space<vmem>>, %arg5: memref<32x32xf32, #tpu.memory_space<vmem>>, %arg6: memref<16x32xf32, #tpu.memory_space<vmem>>, %arg7: memref<16x32xf32, #tpu.memory_space<vmem>>, %arg8: memref<2x8x32xf32, #tpu.memory_space<vmem>>) attributes {dimension_semantics = [#tpu.dimension_semantics<parallel>], iteration_bounds = array<i64: 1>, scalar_prefetch = 0 : i64, scratch_operands = 0 : i64, tpu.core_type = #tpu.core_type<tc>, window_params = [{transform_indices = @transform_0, window_bounds = array<i64: 2, 8, 32>}, {transform_indices = @transform_1, window_bounds = array<i64: 2, 8, 32>}, {transform_indices = @transform_2, window_bounds = array<i64: 2, 8, 8>}, {pipeline_mode = #tpu.pipeline_mode<synchronous>, transform_indices = @transform_3, window_bounds = array<i64: 32, 64>}, {pipeline_mode = #tpu.pipeline_mode<synchronous>, transform_indices = @transform_4, window_bounds = array<i64: 32, 32>}, {pipeline_mode = #tpu.pipeline_mode<synchronous>, transform_indices = @transform_5, window_bounds = array<i64: 16, 32>}, {pipeline_mode = #tpu.pipeline_mode<synchronous>, transform_indices = @transform_6, window_bounds = array<i64: 16, 32>}, {transform_indices = @transform_7, window_bounds = array<i64: 2, 8, 32>}]} {
    %c0 = arith.constant 0 : index
    %c0_0 = arith.constant 0 : index
    %c0_1 = arith.constant 0 : index
    %0 = vector.load %arg1[%c0, %c0_0, %c0_1] : memref<2x8x32xf32, #tpu.memory_space<vmem>>, vector<2x8x32xf32>
    %1 = vector.shape_cast %0 : vector<2x8x32xf32> to vector<16x32xf32>
    %c0_2 = arith.constant 0 : index
    %c0_3 = arith.constant 0 : index
    %c0_4 = arith.constant 0 : index
    %2 = vector.load %arg2[%c0_2, %c0_3, %c0_4] : memref<2x8x32xf32, #tpu.memory_space<vmem>>, vector<2x8x32xf32>
    %3 = vector.shape_cast %2 : vector<2x8x32xf32> to vector<16x32xf32>
    %c0_5 = arith.constant 0 : index
    %c0_6 = arith.constant 0 : index
    %c0_7 = arith.constant 0 : index
    %4 = vector.load %arg3[%c0_5, %c0_6, %c0_7] : memref<2x8x8xf32, #tpu.memory_space<vmem>>, vector<2x8x8xf32>
    %c0_8 = arith.constant 0 : index
    %c0_9 = arith.constant 0 : index
    %5 = vector.load %arg4[%c0_8, %c0_9] : memref<32x64xf32, #tpu.memory_space<vmem>>, vector<32x64xf32>
    %cst = arith.constant dense<0.000000e+00> : vector<16x64xf32>
    %6 = tpu.matmul %1, %5, %cst {dimension_numbers = #tpu.dot_dimension_numbers<[1], [0], [0], [1], [0, 0, 1, 1], [], []>, precision = #tpu.contract_precision<fp32>} : vector<16x32xf32>, vector<32x64xf32>, vector<16x64xf32> -> vector<16x64xf32>
    %c0_10 = arith.constant 0 : index
    %c0_11 = arith.constant 0 : index
    %7 = vector.load %arg5[%c0_10, %c0_11] : memref<32x32xf32, #tpu.memory_space<vmem>>, vector<32x32xf32>
    %cst_12 = arith.constant dense<0.000000e+00> : vector<16x32xf32>
    %8 = tpu.matmul %3, %7, %cst_12 {dimension_numbers = #tpu.dot_dimension_numbers<[1], [0], [0], [1], [0, 0, 1, 1], [], []>, precision = #tpu.contract_precision<fp32>} : vector<16x32xf32>, vector<32x32xf32>, vector<16x32xf32> -> vector<16x32xf32>
    %9 = vector.extract_strided_slice %6 {offsets = [0, 0], sizes = [16, 16], strides = [1, 1]} : vector<16x64xf32> to vector<16x16xf32>
    %10 = vector.shape_cast %9 : vector<16x16xf32> to vector<2x8x2x8xf32>
    %11 = tpu.transpose %10, [0, 2, 1, 3] : vector<2x8x2x8xf32> -> vector<2x2x8x8xf32>
    %12 = vector.shape_cast %11 : vector<2x2x8x8xf32> to vector<4x8x8xf32>
    %13 = vector.extract_strided_slice %6 {offsets = [0, 32], sizes = [16, 16], strides = [1, 1]} : vector<16x64xf32> to vector<16x16xf32>
    %14 = vector.shape_cast %13 : vector<16x16xf32> to vector<2x8x2x8xf32>
    %15 = tpu.transpose %14, [0, 2, 1, 3] : vector<2x8x2x8xf32> -> vector<2x2x8x8xf32>
    %16 = vector.shape_cast %15 : vector<2x2x8x8xf32> to vector<4x8x8xf32>
    %17 = vector.extract_strided_slice %6 {offsets = [0, 48], sizes = [16, 16], strides = [1, 1]} : vector<16x64xf32> to vector<16x16xf32>
    %18 = vector.shape_cast %17 : vector<16x16xf32> to vector<2x8x2x8xf32>
    %19 = tpu.transpose %18, [0, 2, 1, 3] : vector<2x8x2x8xf32> -> vector<2x2x8x8xf32>
    %20 = vector.shape_cast %19 : vector<2x2x8x8xf32> to vector<4x8x8xf32>
    "tpu.trace_start"() <{level = 10 : i32, message = "gqd,gkd->gqk"}> : () -> ()
    %cst_13 = arith.constant dense<0.000000e+00> : vector<4x8x8xf32>
    %21 = tpu.matmul %12, %16, %cst_13 {dimension_numbers = #tpu.dot_dimension_numbers<[2], [2], [1], [1], [0, 0, 0, 1, 1, 1], [0], [0]>, precision = #tpu.contract_precision<fp32>} : vector<4x8x8xf32>, vector<4x8x8xf32>, vector<4x8x8xf32> -> vector<4x8x8xf32>
    "tpu.trace_stop"() : () -> ()
    %22 = vector.shape_cast %21 : vector<4x8x8xf32> to vector<2x2x8x8xf32>
    %23 = vector.shape_cast %4 : vector<2x8x8xf32> to vector<2x1x8x8xf32>
    %24 = vector.broadcast %23 : vector<2x1x8x8xf32> to vector<2x2x8x8xf32>
    %25 = arith.addf %22, %24 : vector<2x2x8x8xf32>
    %cst_14 = arith.constant dense<0xFF800000> : vector<2x2x8xf32>
    %26 = vector.multi_reduction <maximumf>, %25, %cst_14 [3] : vector<2x2x8x8xf32> to vector<2x2x8xf32>
    %27 = vector.shape_cast %26 : vector<2x2x8xf32> to vector<2x2x8x1xf32>
    %28 = vector.broadcast %27 : vector<2x2x8x1xf32> to vector<2x2x8x8xf32>
    %29 = arith.subf %25, %28 : vector<2x2x8x8xf32>
    %30 = math.exp %29 : vector<2x2x8x8xf32>
    %cst_15 = arith.constant dense<0.000000e+00> : vector<2x2x8xf32>
    %31 = vector.multi_reduction <add>, %30, %cst_15 [3] : vector<2x2x8x8xf32> to vector<2x2x8xf32>
    %32 = vector.shape_cast %31 : vector<2x2x8xf32> to vector<2x2x8x1xf32>
    %33 = tpu.reciprocal %32 : vector<2x2x8x1xf32> -> vector<2x2x8x1xf32>
    %34 = vector.broadcast %33 : vector<2x2x8x1xf32> to vector<2x2x8x8xf32>
    %35 = arith.mulf %30, %34 : vector<2x2x8x8xf32>
    %36 = vector.shape_cast %35 : vector<2x2x8x8xf32> to vector<4x8x8xf32>
    "tpu.trace_start"() <{level = 10 : i32, message = "gqk,gkd->gqd"}> : () -> ()
    %cst_16 = arith.constant dense<0.000000e+00> : vector<4x8x8xf32>
    %37 = tpu.matmul %36, %20, %cst_16 {dimension_numbers = #tpu.dot_dimension_numbers<[2], [1], [1], [2], [0, 0, 0, 1, 1, 2], [0], [0]>, precision = #tpu.contract_precision<fp32>} : vector<4x8x8xf32>, vector<4x8x8xf32>, vector<4x8x8xf32> -> vector<4x8x8xf32>
    "tpu.trace_stop"() : () -> ()
    %38 = vector.shape_cast %37 : vector<4x8x8xf32> to vector<2x2x8x8xf32>
    %39 = tpu.transpose %38, [0, 2, 1, 3] : vector<2x2x8x8xf32> -> vector<2x8x2x8xf32>
    %40 = vector.shape_cast %39 : vector<2x8x2x8xf32> to vector<16x16xf32>
    %c0_17 = arith.constant 0 : index
    %c0_18 = arith.constant 0 : index
    %41 = vector.load %arg6[%c0_17, %c0_18] : memref<16x32xf32, #tpu.memory_space<vmem>>, vector<16x32xf32>
    %cst_19 = arith.constant dense<0.000000e+00> : vector<16x32xf32>
    %42 = tpu.matmul %40, %41, %cst_19 {dimension_numbers = #tpu.dot_dimension_numbers<[1], [0], [0], [1], [0, 0, 1, 1], [], []>, precision = #tpu.contract_precision<fp32>} : vector<16x16xf32>, vector<16x32xf32>, vector<16x32xf32> -> vector<16x32xf32>
    %43 = vector.extract_strided_slice %6 {offsets = [0, 16], sizes = [16, 16], strides = [1, 1]} : vector<16x64xf32> to vector<16x16xf32>
    %44 = vector.shape_cast %43 : vector<16x16xf32> to vector<2x8x2x8xf32>
    %45 = tpu.transpose %44, [0, 2, 1, 3] : vector<2x8x2x8xf32> -> vector<2x2x8x8xf32>
    %46 = vector.shape_cast %45 : vector<2x2x8x8xf32> to vector<4x8x8xf32>
    %47 = vector.extract_strided_slice %8 {offsets = [0, 0], sizes = [16, 16], strides = [1, 1]} : vector<16x32xf32> to vector<16x16xf32>
    %48 = vector.shape_cast %47 : vector<16x16xf32> to vector<2x8x2x8xf32>
    %49 = tpu.transpose %48, [0, 2, 1, 3] : vector<2x8x2x8xf32> -> vector<2x2x8x8xf32>
    %50 = vector.shape_cast %49 : vector<2x2x8x8xf32> to vector<4x8x8xf32>
    %51 = vector.extract_strided_slice %8 {offsets = [0, 16], sizes = [16, 16], strides = [1, 1]} : vector<16x32xf32> to vector<16x16xf32>
    %52 = vector.shape_cast %51 : vector<16x16xf32> to vector<2x8x2x8xf32>
    %53 = tpu.transpose %52, [0, 2, 1, 3] : vector<2x8x2x8xf32> -> vector<2x2x8x8xf32>
    %54 = vector.shape_cast %53 : vector<2x2x8x8xf32> to vector<4x8x8xf32>
    "tpu.trace_start"() <{level = 10 : i32, message = "gqd,gkd->gqk"}> : () -> ()
    %cst_20 = arith.constant dense<0.000000e+00> : vector<4x8x8xf32>
    %55 = tpu.matmul %46, %50, %cst_20 {dimension_numbers = #tpu.dot_dimension_numbers<[2], [2], [1], [1], [0, 0, 0, 1, 1, 1], [0], [0]>, precision = #tpu.contract_precision<fp32>} : vector<4x8x8xf32>, vector<4x8x8xf32>, vector<4x8x8xf32> -> vector<4x8x8xf32>
    "tpu.trace_stop"() : () -> ()
    %56 = vector.shape_cast %55 : vector<4x8x8xf32> to vector<2x2x8x8xf32>
    %57 = vector.shape_cast %4 : vector<2x8x8xf32> to vector<2x1x8x8xf32>
    %58 = vector.broadcast %57 : vector<2x1x8x8xf32> to vector<2x2x8x8xf32>
    %59 = arith.addf %56, %58 : vector<2x2x8x8xf32>
    %cst_21 = arith.constant dense<0xFF800000> : vector<2x2x8xf32>
    %60 = vector.multi_reduction <maximumf>, %59, %cst_21 [3] : vector<2x2x8x8xf32> to vector<2x2x8xf32>
    %61 = vector.shape_cast %60 : vector<2x2x8xf32> to vector<2x2x8x1xf32>
    %62 = vector.broadcast %61 : vector<2x2x8x1xf32> to vector<2x2x8x8xf32>
    %63 = arith.subf %59, %62 : vector<2x2x8x8xf32>
    %64 = math.exp %63 : vector<2x2x8x8xf32>
    %cst_22 = arith.constant dense<0.000000e+00> : vector<2x2x8xf32>
    %65 = vector.multi_reduction <add>, %64, %cst_22 [3] : vector<2x2x8x8xf32> to vector<2x2x8xf32>
    %66 = vector.shape_cast %65 : vector<2x2x8xf32> to vector<2x2x8x1xf32>
    %67 = tpu.reciprocal %66 : vector<2x2x8x1xf32> -> vector<2x2x8x1xf32>
    %68 = vector.broadcast %67 : vector<2x2x8x1xf32> to vector<2x2x8x8xf32>
    %69 = arith.mulf %64, %68 : vector<2x2x8x8xf32>
    %70 = vector.shape_cast %69 : vector<2x2x8x8xf32> to vector<4x8x8xf32>
    "tpu.trace_start"() <{level = 10 : i32, message = "gqk,gkd->gqd"}> : () -> ()
    %cst_23 = arith.constant dense<0.000000e+00> : vector<4x8x8xf32>
    %71 = tpu.matmul %70, %54, %cst_23 {dimension_numbers = #tpu.dot_dimension_numbers<[2], [1], [1], [2], [0, 0, 0, 1, 1, 2], [0], [0]>, precision = #tpu.contract_precision<fp32>} : vector<4x8x8xf32>, vector<4x8x8xf32>, vector<4x8x8xf32> -> vector<4x8x8xf32>
    "tpu.trace_stop"() : () -> ()
    %72 = vector.shape_cast %71 : vector<4x8x8xf32> to vector<2x2x8x8xf32>
    %73 = tpu.transpose %72, [0, 2, 1, 3] : vector<2x2x8x8xf32> -> vector<2x8x2x8xf32>
    %74 = vector.shape_cast %73 : vector<2x8x2x8xf32> to vector<16x16xf32>
    %c0_24 = arith.constant 0 : index
    %c0_25 = arith.constant 0 : index
    %75 = vector.load %arg7[%c0_24, %c0_25] : memref<16x32xf32, #tpu.memory_space<vmem>>, vector<16x32xf32>
    %cst_26 = arith.constant dense<0.000000e+00> : vector<16x32xf32>
    %76 = tpu.matmul %74, %75, %cst_26 {dimension_numbers = #tpu.dot_dimension_numbers<[1], [0], [0], [1], [0, 0, 1, 1], [], []>, precision = #tpu.contract_precision<fp32>} : vector<16x16xf32>, vector<16x32xf32>, vector<16x32xf32> -> vector<16x32xf32>
    %77 = arith.addf %42, %76 : vector<16x32xf32>
    %78 = vector.shape_cast %77 : vector<16x32xf32> to vector<2x8x32xf32>
    %c0_27 = arith.constant 0 : index
    %c0_28 = arith.constant 0 : index
    %c0_29 = arith.constant 0 : index
    %79 = vector.load %arg8[%c0_27, %c0_28, %c0_29] : memref<2x8x32xf32, #tpu.memory_space<vmem>>, vector<2x8x32xf32>
    tpu.vector_store %arg8[%c0_27, %c0_28, %c0_29], %78 {strides = array<i32>} : memref<2x8x32xf32, #tpu.memory_space<vmem>>, vector<2x8x32xf32>,
    return
  }
  func.func @transform_0(%arg0: i32) -> (i32, i32, i32) {
    %c0_i32 = arith.constant 0 : i32
    %c0_i32_0 = arith.constant 0 : i32
    %c0_i32_1 = arith.constant 0 : i32
    return %arg0, %c0_i32, %c0_i32_0 : i32, i32, i32
  }
  func.func @transform_1(%arg0: i32) -> (i32, i32, i32) {
    %c0_i32 = arith.constant 0 : i32
    %c0_i32_0 = arith.constant 0 : i32
    %c0_i32_1 = arith.constant 0 : i32
    return %arg0, %c0_i32, %c0_i32_0 : i32, i32, i32
  }
  func.func @transform_2(%arg0: i32) -> (i32, i32, i32) {
    %c0_i32 = arith.constant 0 : i32
    %c0_i32_0 = arith.constant 0 : i32
    %c0_i32_1 = arith.constant 0 : i32
    return %arg0, %c0_i32, %c0_i32_0 : i32, i32, i32
  }
  func.func @transform_3(%arg0: i32) -> (i32, i32) {
    %c0_i32 = arith.constant 0 : i32
    %c0_i32_0 = arith.constant 0 : i32
    %c0_i32_1 = arith.constant 0 : i32
    return %c0_i32, %c0_i32_0 : i32, i32
  }
  func.func @transform_4(%arg0: i32) -> (i32, i32) {
    %c0_i32 = arith.constant 0 : i32
    %c0_i32_0 = arith.constant 0 : i32
    %c0_i32_1 = arith.constant 0 : i32
    return %c0_i32, %c0_i32_0 : i32, i32
  }
  func.func @transform_5(%arg0: i32) -> (i32, i32) {
    %c0_i32 = arith.constant 0 : i32
    %c0_i32_0 = arith.constant 0 : i32
    %c0_i32_1 = arith.constant 0 : i32
    return %c0_i32, %c0_i32_0 : i32, i32
  }
  func.func @transform_6(%arg0: i32) -> (i32, i32) {
    %c0_i32 = arith.constant 0 : i32
    %c0_i32_0 = arith.constant 0 : i32
    %c0_i32_1 = arith.constant 0 : i32
    return %c0_i32, %c0_i32_0 : i32, i32
  }
  func.func @transform_7(%arg0: i32) -> (i32, i32, i32) {
    %c0_i32 = arith.constant 0 : i32
    %c0_i32_0 = arith.constant 0 : i32
    %c0_i32_1 = arith.constant 0 : i32
    return %arg0, %c0_i32, %c0_i32_0 : i32, i32, i32
  }
}

</mosaic_0001>

<llo_original>
// kernel: tpu_custom_call.1
$region0: #{tpu_custom_call.1}
  #allocation0 [shape = 'u32[]', space=smem, size = 0x4, offset = 0x4, fixed_abs, tag = 'smem constant byte address 0x4 - core index']
  #allocation1 [shape = 'u32[72,128]{1,0:T(1,128)}', space=vmem, size = 0x9000, scoped, tag = 'internal scratch']
  %s0 = inlined_call_operand.hbm [shape: f32[2,8,32], index: 0, kind: input, shape index: {}]
  %s1 = inlined_call_operand.hbm [shape: f32[2,8,32], index: 1, kind: input, shape index: {}]
  %s2 = inlined_call_operand.hbm [shape: f32[2,8,8], index: 2, kind: input, shape index: {}]
  %s3 = inlined_call_operand.hbm [shape: f32[32,64], index: 3, kind: input, shape index: {}]
  %s4 = inlined_call_operand.hbm [shape: f32[32,32], index: 4, kind: input, shape index: {}]
  %s5 = inlined_call_operand.hbm [shape: f32[16,32], index: 5, kind: input, shape index: {}]
  %s6 = inlined_call_operand.hbm [shape: f32[16,32], index: 6, kind: input, shape index: {}]
  %s7 = inlined_call_operand.hbm [shape: f32[2,8,32], index: 7, kind: output, shape index: {}]
  %s8 = sld [smem:[#allocation0]]
  $region66: #{tpu_custom_call.1} parent=0
    _
  %s10 = ssub.s32 1, %s8
  %s11 = scalar_select 0, %s10, %s8
  $region1: #{tpu_custom_call.1} parent=0
    #allocation2 [shape = 'u8[8192]{0}', space=vmem, size = 0x2000, scoped, tag = 'input window, operand 0, single buffered']
    #allocation3 [shape = 's32[1]{0}', space=sflag, size = 0x4, scoped, tag = 'scoped memory for tpu_custom_call.1']
    #allocation4 [shape = 's32[1]{0}', space=sflag, size = 0x4, scoped, tag = 'scoped memory for tpu_custom_call.1']
    #allocation5 [shape = 'u8[8192]{0}', space=vmem, size = 0x2000, scoped, tag = 'input window, operand 1, single buffered']
    #allocation6 [shape = 's32[1]{0}', space=sflag, size = 0x4, scoped, tag = 'scoped memory for tpu_custom_call.1']
    #allocation7 [shape = 'u8[8192]{0}', space=vmem, size = 0x2000, scoped, tag = 'input window, operand 2, single buffered']
    #allocation8 [shape = 'u8[16384]{0}', space=vmem, size = 0x4000, scoped, tag = 'input window, operand 3, single buffered']
    #allocation9 [shape = 's32[1]{0}', space=sflag, size = 0x4, scoped, tag = 'scoped memory for tpu_custom_call.1']
    #allocation10 [shape = 'u8[16384]{0}', space=vmem, size = 0x4000, scoped, tag = 'input window, operand 4, single buffered']
    #allocation11 [shape = 'u8[8192]{0}', space=vmem, size = 0x2000, scoped, tag = 'input window, operand 5, single buffered']
    #allocation12 [shape = 's32[1]{0}', space=sflag, size = 0x4, scoped, tag = 'scoped memory for tpu_custom_call.1']
    #allocation13 [shape = 'u8[8192]{0}', space=vmem, size = 0x2000, scoped, tag = 'input window, operand 6, single buffered']
    #allocation14 [shape = 'u8[8192]{0}', space=vmem, size = 0x2000, scoped, tag = 'output window, operand 0, single buffered']
    %12 = vsyncpa [#allocation3], 0
    %13 = vsyncpa [#allocation6], 0
    %14 = vsyncpa [#allocation9], 0
    %15 = vsyncpa [#allocation12], 0
    %16 = vsyncpa [#allocation4], 0
    // Predicated region
    $region2: #{tpu_custom_call.1} parent=1 // pred_check
      _
    $region3: #{tpu_custom_call.1} parent=1 // pred_check_branch
      %18 = sbr.rel (0) target = $region5
    $region4: #{tpu_custom_call.1} parent=1 // pred_region
      %20 = vsyncadd [#allocation3], 0
      %s21 = sshll.u32 %s0, 4
      %s22 = int_to_ptr.hbm [resolvable:$true] %s21
      %s23 = sshll.u32 [#allocation2], 4
      %s24 = int_to_ptr.vmem [resolvable:$true] %s23
      %29 = dma.hbm_to_vmem [thread:$0]  %s22, 256, %s24, [#allocation3], 128, 128, 8
    $region5: #{tpu_custom_call.1} parent=1 // pred_fallthru
      _
    // Predicated region
    $region6: #{tpu_custom_call.1} parent=1 // pred_check
      _
    $region7: #{tpu_custom_call.1} parent=1 // pred_check_branch
      %31 = sbr.rel (0) target = $region9
    $region8: #{tpu_custom_call.1} parent=1 // pred_region
      %33 = vsyncadd [#allocation6], 0
      %s34 = sshll.u32 %s1, 4
      %s35 = int_to_ptr.hbm [resolvable:$true] %s34
      %s36 = sshll.u32 [#allocation5], 4
      %s37 = int_to_ptr.vmem [resolvable:$true] %s36
      %42 = dma.hbm_to_vmem [thread:$0]  %s35, 256, %s37, [#allocation6], 128, 128, 8
    $region9: #{tpu_custom_call.1} parent=1 // pred_fallthru
      _
    // Predicated region
    $region10: #{tpu_custom_call.1} parent=1 // pred_check
      _
    $region11: #{tpu_custom_call.1} parent=1 // pred_check_branch
      %44 = sbr.rel (0) target = $region13
    $region12: #{tpu_custom_call.1} parent=1 // pred_region
      %46 = vsyncadd [#allocation6], 0
      %s47 = sshll.u32 %s2, 4
      %s48 = int_to_ptr.hbm [resolvable:$true] %s47
      %s49 = sshll.u32 [#allocation7], 4
      %s50 = int_to_ptr.vmem [resolvable:$true] %s49
      %55 = dma.hbm_to_vmem [thread:$0]  %s48, 256, %s50, [#allocation6], 128, 128, 8
    $region13: #{tpu_custom_call.1} parent=1 // pred_fallthru
      _
    // Predicated region
    $region14: #{tpu_custom_call.1} parent=1 // pred_check
      _
    $region15: #{tpu_custom_call.1} parent=1 // pred_check_branch
      %57 = sbr.rel (0) target = $region17
    $region16: #{tpu_custom_call.1} parent=1 // pred_region
      %59 = vsyncadd [#allocation9], 0
      %s60 = sshll.u32 %s3, 4
      %s61 = int_to_ptr.hbm [resolvable:$true] %s60
      %s62 = sshll.u32 [#allocation8], 4
      %s63 = int_to_ptr.vmem [resolvable:$true] %s62
      %68 = dma.hbm_to_vmem [thread:$0]  %s61, 512, %s63, [#allocation9], 128, 128, 8
    $region17: #{tpu_custom_call.1} parent=1 // pred_fallthru
      _
    // Predicated region
    $region18: #{tpu_custom_call.1} parent=1 // pred_check
      _
    $region19: #{tpu_custom_call.1} parent=1 // pred_check_branch
      %70 = sbr.rel (0) target = $region21
    $region20: #{tpu_custom_call.1} parent=1 // pred_region
      %72 = vsyncadd [#allocation9], 0
      %s73 = sshll.u32 %s4, 4
      %s74 = int_to_ptr.hbm [resolvable:$true] %s73
      %s75 = sshll.u32 [#allocation10], 4
      %s76 = int_to_ptr.vmem [resolvable:$true] %s75
      %81 = dma.hbm_to_vmem [thread:$0]  %s74, 512, %s76, [#allocation9], 128, 128, 8
    $region21: #{tpu_custom_call.1} parent=1 // pred_fallthru
      _
    // Predicated region
    $region22: #{tpu_custom_call.1} parent=1 // pred_check
      _
    $region23: #{tpu_custom_call.1} parent=1 // pred_check_branch
      %83 = sbr.rel (0) target = $region25
    $region24: #{tpu_custom_call.1} parent=1 // pred_region
      %85 = vsyncadd [#allocation12], 0
      %s86 = sshll.u32 %s5, 4
      %s87 = int_to_ptr.hbm [resolvable:$true] %s86
      %s88 = sshll.u32 [#allocation11], 4
      %s89 = int_to_ptr.vmem [resolvable:$true] %s88
      %94 = dma.hbm_to_vmem [thread:$0]  %s87, 256, %s89, [#allocation12], 128, 128, 8
    $region25: #{tpu_custom_call.1} parent=1 // pred_fallthru
      _
    // Predicated region
    $region26: #{tpu_custom_call.1} parent=1 // pred_check
      _
    $region27: #{tpu_custom_call.1} parent=1 // pred_check_branch
      %96 = sbr.rel (0) target = $region29
    $region28: #{tpu_custom_call.1} parent=1 // pred_region
      %98 = vsyncadd [#allocation12], 0
      %s99 = sshll.u32 %s6, 4
      %s100 = int_to_ptr.hbm [resolvable:$true] %s99
      %s101 = sshll.u32 [#allocation13], 4
      %s102 = int_to_ptr.vmem [resolvable:$true] %s101
      %107 = dma.hbm_to_vmem [thread:$0]  %s100, 256, %s102, [#allocation12], 128, 128, 8
    $region29: #{tpu_custom_call.1} parent=1 // pred_fallthru
      _
    // Predicated region
    $region30: #{tpu_custom_call.1} parent=1 // pred_check
      _
    $region31: #{tpu_custom_call.1} parent=1 // pred_check_branch
      %109 = sbr.rel (0) target = $region33
    $region32: #{tpu_custom_call.1} parent=1 // pred_region
      %111 = dma.done [#allocation3], 256
    $region33: #{tpu_custom_call.1} parent=1 // pred_fallthru
      _
    // Predicated region
    $region34: #{tpu_custom_call.1} parent=1 // pred_check
      _
    $region35: #{tpu_custom_call.1} parent=1 // pred_check_branch
      %113 = sbr.rel (0) target = $region37
    $region36: #{tpu_custom_call.1} parent=1 // pred_region
      %115 = dma.done [#allocation6], 256
    $region37: #{tpu_custom_call.1} parent=1 // pred_fallthru
      _
    // Predicated region
    $region38: #{tpu_custom_call.1} parent=1 // pred_check
      _
    $region39: #{tpu_custom_call.1} parent=1 // pred_check_branch
      %117 = sbr.rel (0) target = $region41
    $region40: #{tpu_custom_call.1} parent=1 // pred_region
      %119 = dma.done [#allocation6], 256
    $region41: #{tpu_custom_call.1} parent=1 // pred_fallthru
      _
    // Predicated region
    $region42: #{tpu_custom_call.1} parent=1 // pred_check
      _
    $region43: #{tpu_custom_call.1} parent=1 // pred_check_branch
      %121 = sbr.rel (0) target = $region45
    $region44: #{tpu_custom_call.1} parent=1 // pred_region
      %123 = dma.done [#allocation9], 512
    $region45: #{tpu_custom_call.1} parent=1 // pred_fallthru
      _
    // Predicated region
    $region46: #{tpu_custom_call.1} parent=1 // pred_check
      _
    $region47: #{tpu_custom_call.1} parent=1 // pred_check_branch
      %125 = sbr.rel (0) target = $region49
    $region48: #{tpu_custom_call.1} parent=1 // pred_region
      %127 = dma.done [#allocation9], 512
    $region49: #{tpu_custom_call.1} parent=1 // pred_fallthru
      _
    // Predicated region
    $region50: #{tpu_custom_call.1} parent=1 // pred_check
      _
    $region51: #{tpu_custom_call.1} parent=1 // pred_check_branch
      %129 = sbr.rel (0) target = $region53
    $region52: #{tpu_custom_call.1} parent=1 // pred_region
      %131 = dma.done [#allocation12], 256
    $region53: #{tpu_custom_call.1} parent=1 // pred_fallthru
      _
    // Predicated region
    $region54: #{tpu_custom_call.1} parent=1 // pred_check
      _
    $region55: #{tpu_custom_call.1} parent=1 // pred_check_branch
      %133 = sbr.rel (0) target = $region57
    $region56: #{tpu_custom_call.1} parent=1 // pred_region
      %135 = dma.done [#allocation12], 256
    $region57: #{tpu_custom_call.1} parent=1 // pred_fallthru
      _
    %v136 = vld [vmem:[#allocation2] sm:$0xff]
    %v137 = vld [vmem:[#allocation2 + $0x8] sm:$0xff]
    %v138 = vld [vmem:[#allocation5] sm:$0xff]
    %v139 = vld [vmem:[#allocation5 + $0x8] sm:$0xff]
    %v140 = vld [vmem:[#allocation7] sm:$0xff]
    %v141 = vld [vmem:[#allocation7 + $0x8] sm:$0xff]
    %v142 = vld [vmem:[#allocation8] sm:$0xff]
    %v143 = vld [vmem:[#allocation8 + $0x8] sm:$0xff]
    %v144 = vld [vmem:[#allocation8 + $0x10] sm:$0xff]
    %v145 = vld [vmem:[#allocation8 + $0x18] sm:$0xff]
    %vm146 = vcmask 261120
    %v148 = vsel %vm146, %v136, 0
    %v151 = vsel %vm146, %v137, 0
    %153 = vmatpush.msra.mxu0 0.0
    %154 = vmatpush.msra.mxu0 0.0
    %155 = vmatpush.msra.mxu0 0.0
    %156 = vmatpush.msra.mxu0 0.0
    %157 = vmatpush.msra.mxu0 0.0
    %158 = vmatpush.msra.mxu0 0.0
    %159 = vmatpush.msra.mxu0 0.0
    %160 = vmatpush.msra.mxu0 0.0
    %161 = vmatpush.msra.mxu0 0.0
    %162 = vmatpush.msra.mxu0 0.0
    %163 = vmatpush.msra.mxu0 0.0
    %164 = vmatpush.msra.mxu0 0.0
    %v165 = vand.u32 %v145, 4294901760
    %166 = vmatpush.msra.mxu0 %v165
    %v167 = vand.u32 %v144, 4294901760
    %168 = vmatpush.msra.mxu0 %v167
    %v169 = vand.u32 %v143, 4294901760
    %170 = vmatpush.msra.mxu0 %v169
    %v171 = vand.u32 %v142, 4294901760
    %172 = vmatpush.msra.mxu0 %v171
    %v173 = vand.u32 %v148, 4294901760
    %v174 = vsub.f32 %v148, %v173
    %v175 = vand.u32 %v174, 4294901760
    %v176 = vsub.f32 %v174, %v175
    %v177 = vand.u32 %v176, 4294901760
    %178 = vmatmul.f32.gmra.mxu0 %v177
    %v179 = vpop.f32.mrf.mxu0
    %v180 = vadd.f32 0.0, %v179
    %v181 = vand.u32 %v151, 4294901760
    %v182 = vsub.f32 %v151, %v181
    %v183 = vand.u32 %v182, 4294901760
    %v184 = vsub.f32 %v182, %v183
    %v185 = vand.u32 %v184, 4294901760
    %186 = vmatmul.f32.gmra.mxu0 %v185
    %v187 = vpop.f32.mrf.mxu0
    %v188 = vadd.f32 0.0, %v187
    %189 = vdwg.mxu0
    %190 = vmatpush.msra.mxu0 0.0
    %191 = vmatpush.msra.mxu0 0.0
    %192 = vmatpush.msra.mxu0 0.0
    %193 = vmatpush.msra.mxu0 0.0
    %194 = vmatpush.msra.mxu0 0.0
    %195 = vmatpush.msra.mxu0 0.0
    %196 = vmatpush.msra.mxu0 0.0
    %197 = vmatpush.msra.mxu0 0.0
    %198 = vmatpush.msra.mxu0 0.0
    %199 = vmatpush.msra.mxu0 0.0
    %200 = vmatpush.msra.mxu0 0.0
    %201 = vmatpush.msra.mxu0 0.0
    %v202 = vand.u32 %v145, 4294901760
    %v203 = vsub.f32 %v145, %v202
    %v204 = vand.u32 %v203, 4294901760
    %v205 = vsub.f32 %v203, %v204
    %v206 = vand.u32 %v205, 4294901760
    %207 = vmatpush.msra.mxu0 %v206
    %v208 = vand.u32 %v144, 4294901760
    %v209 = vsub.f32 %v144, %v208
    %v210 = vand.u32 %v209, 4294901760
    %v211 = vsub.f32 %v209, %v210
    %v212 = vand.u32 %v211, 4294901760
    %213 = vmatpush.msra.mxu0 %v212
    %v214 = vand.u32 %v143, 4294901760
    %v215 = vsub.f32 %v143, %v214
    %v216 = vand.u32 %v215, 4294901760
    %v217 = vsub.f32 %v215, %v216
    %v218 = vand.u32 %v217, 4294901760
    %219 = vmatpush.msra.mxu0 %v218
    %v220 = vand.u32 %v142, 4294901760
    %v221 = vsub.f32 %v142, %v220
    %v222 = vand.u32 %v221, 4294901760
    %v223 = vsub.f32 %v221, %v222
    %v224 = vand.u32 %v223, 4294901760
    %225 = vmatpush.msra.mxu0 %v224
    %v226 = vand.u32 %v148, 4294901760
    %227 = vmatmul.f32.gmra.mxu0 %v226
    %v228 = vpop.f32.mrf.mxu0
    %v229 = vadd.f32 %v180, %v228
    %v230 = vand.u32 %v151, 4294901760
    %231 = vmatmul.f32.gmra.mxu0 %v230
    %v232 = vpop.f32.mrf.mxu0
    %v233 = vadd.f32 %v188, %v232
    %234 = vdwg.mxu0
    %235 = vmatpush.msra.mxu0 0.0
    %236 = vmatpush.msra.mxu0 0.0
    %237 = vmatpush.msra.mxu0 0.0
    %238 = vmatpush.msra.mxu0 0.0
    %239 = vmatpush.msra.mxu0 0.0
    %240 = vmatpush.msra.mxu0 0.0
    %241 = vmatpush.msra.mxu0 0.0
    %242 = vmatpush.msra.mxu0 0.0
    %243 = vmatpush.msra.mxu0 0.0
    %244 = vmatpush.msra.mxu0 0.0
    %245 = vmatpush.msra.mxu0 0.0
    %246 = vmatpush.msra.mxu0 0.0
    %v247 = vand.u32 %v145, 4294901760
    %v248 = vsub.f32 %v145, %v247
    %249 = vmatpush.msra.mxu0 %v248
    %v250 = vand.u32 %v144, 4294901760
    %v251 = vsub.f32 %v144, %v250
    %252 = vmatpush.msra.mxu0 %v251
    %v253 = vand.u32 %v143, 4294901760
    %v254 = vsub.f32 %v143, %v253
    %255 = vmatpush.msra.mxu0 %v254
    %v256 = vand.u32 %v142, 4294901760
    %v257 = vsub.f32 %v142, %v256
    %258 = vmatpush.msra.mxu0 %v257
    %v259 = vand.u32 %v148, 4294901760
    %v260 = vsub.f32 %v148, %v259
    %261 = vmatmul.f32.gmra.mxu0 %v260
    %v262 = vpop.f32.mrf.mxu0
    %v263 = vadd.f32 %v229, %v262
    %v264 = vand.u32 %v151, 4294901760
    %v265 = vsub.f32 %v151, %v264
    %266 = vmatmul.f32.gmra.mxu0 %v265
    %v267 = vpop.f32.mrf.mxu0
    %v268 = vadd.f32 %v233, %v267
    %269 = vdwg.mxu0
    %270 = vmatpush.msra.mxu0 0.0
    %271 = vmatpush.msra.mxu0 0.0
    %272 = vmatpush.msra.mxu0 0.0
    %273 = vmatpush.msra.mxu0 0.0
    %274 = vmatpush.msra.mxu0 0.0
    %275 = vmatpush.msra.mxu0 0.0
    %276 = vmatpush.msra.mxu0 0.0
    %277 = vmatpush.msra.mxu0 0.0
    %278 = vmatpush.msra.mxu0 0.0
    %279 = vmatpush.msra.mxu0 0.0
    %280 = vmatpush.msra.mxu0 0.0
    %281 = vmatpush.msra.mxu0 0.0
    %v282 = vand.u32 %v145, 4294901760
    %283 = vmatpush.msra.mxu0 %v282
    %v284 = vand.u32 %v144, 4294901760
    %285 = vmatpush.msra.mxu0 %v284
    %v286 = vand.u32 %v143, 4294901760
    %287 = vmatpush.msra.mxu0 %v286
    %v288 = vand.u32 %v142, 4294901760
    %289 = vmatpush.msra.mxu0 %v288
    %v290 = vand.u32 %v148, 4294901760
    %v291 = vsub.f32 %v148, %v290
    %v292 = vand.u32 %v291, 4294901760
    %293 = vmatmul.f32.gmra.mxu0 %v292
    %v294 = vpop.f32.mrf.mxu0
    %v295 = vadd.f32 %v263, %v294
    %v296 = vand.u32 %v151, 4294901760
    %v297 = vsub.f32 %v151, %v296
    %v298 = vand.u32 %v297, 4294901760
    %299 = vmatmul.f32.gmra.mxu0 %v298
    %v300 = vpop.f32.mrf.mxu0
    %v301 = vadd.f32 %v268, %v300
    %302 = vdwg.mxu0
    %303 = vmatpush.msra.mxu0 0.0
    %304 = vmatpush.msra.mxu0 0.0
    %305 = vmatpush.msra.mxu0 0.0
    %306 = vmatpush.msra.mxu0 0.0
    %307 = vmatpush.msra.mxu0 0.0
    %308 = vmatpush.msra.mxu0 0.0
    %309 = vmatpush.msra.mxu0 0.0
    %310 = vmatpush.msra.mxu0 0.0
    %311 = vmatpush.msra.mxu0 0.0
    %312 = vmatpush.msra.mxu0 0.0
    %313 = vmatpush.msra.mxu0 0.0
    %314 = vmatpush.msra.mxu0 0.0
    %v315 = vand.u32 %v145, 4294901760
    %v316 = vsub.f32 %v145, %v315
    %v317 = vand.u32 %v316, 4294901760
    %318 = vmatpush.msra.mxu0 %v317
    %v319 = vand.u32 %v144, 4294901760
    %v320 = vsub.f32 %v144, %v319
    %v321 = vand.u32 %v320, 4294901760
    %322 = vmatpush.msra.mxu0 %v321
    %v323 = vand.u32 %v143, 4294901760
    %v324 = vsub.f32 %v143, %v323
    %v325 = vand.u32 %v324, 4294901760
    %326 = vmatpush.msra.mxu0 %v325
    %v327 = vand.u32 %v142, 4294901760
    %v328 = vsub.f32 %v142, %v327
    %v329 = vand.u32 %v328, 4294901760
    %330 = vmatpush.msra.mxu0 %v329
    %v331 = vand.u32 %v148, 4294901760
    %332 = vmatmul.f32.gmra.mxu0 %v331
    %v333 = vpop.f32.mrf.mxu0
    %v334 = vadd.f32 %v295, %v333
    %v335 = vand.u32 %v151, 4294901760
    %336 = vmatmul.f32.gmra.mxu0 %v335
    %v337 = vpop.f32.mrf.mxu0
    %v338 = vadd.f32 %v301, %v337
    %339 = vdwg.mxu0
    %340 = vmatpush.msra.mxu0 0.0
    %341 = vmatpush.msra.mxu0 0.0
    %342 = vmatpush.msra.mxu0 0.0
    %343 = vmatpush.msra.mxu0 0.0
    %344 = vmatpush.msra.mxu0 0.0
    %345 = vmatpush.msra.mxu0 0.0
    %346 = vmatpush.msra.mxu0 0.0
    %347 = vmatpush.msra.mxu0 0.0
    %348 = vmatpush.msra.mxu0 0.0
    %349 = vmatpush.msra.mxu0 0.0
    %350 = vmatpush.msra.mxu0 0.0
    %351 = vmatpush.msra.mxu0 0.0
    %v352 = vand.u32 %v145, 4294901760
    %353 = vmatpush.msra.mxu0 %v352
    %v354 = vand.u32 %v144, 4294901760
    %355 = vmatpush.msra.mxu0 %v354
    %v356 = vand.u32 %v143, 4294901760
    %357 = vmatpush.msra.mxu0 %v356
    %v358 = vand.u32 %v142, 4294901760
    %359 = vmatpush.msra.mxu0 %v358
    %v360 = vand.u32 %v148, 4294901760
    %361 = vmatmul.f32.gmra.mxu0 %v360
    %v362 = vpop.f32.mrf.mxu0
    %v363 = vadd.f32 %v334, %v362
    %v364 = vand.u32 %v151, 4294901760
    %365 = vmatmul.f32.gmra.mxu0 %v364
    %v366 = vpop.f32.mrf.mxu0
    %v367 = vadd.f32 %v338, %v366
    %368 = vdwg.mxu0
    %v369 = vld [vmem:[#allocation10] sm:$0xff]
    %v370 = vld [vmem:[#allocation10 + $0x8] sm:$0xff]
    %v371 = vld [vmem:[#allocation10 + $0x10] sm:$0xff]
    %v372 = vld [vmem:[#allocation10 + $0x18] sm:$0xff]
    %v374 = vsel %vm146, %v138, 0
    %v377 = vsel %vm146, %v139, 0
    %379 = vmatpush.msra.mxu0 0.0
    %380 = vmatpush.msra.mxu0 0.0
    %381 = vmatpush.msra.mxu0 0.0
    %382 = vmatpush.msra.mxu0 0.0
    %383 = vmatpush.msra.mxu0 0.0
    %384 = vmatpush.msra.mxu0 0.0
    %385 = vmatpush.msra.mxu0 0.0
    %386 = vmatpush.msra.mxu0 0.0
    %387 = vmatpush.msra.mxu0 0.0
    %388 = vmatpush.msra.mxu0 0.0
    %389 = vmatpush.msra.mxu0 0.0
    %390 = vmatpush.msra.mxu0 0.0
    %v391 = vand.u32 %v372, 4294901760
    %392 = vmatpush.msra.mxu0 %v391
    %v393 = vand.u32 %v371, 4294901760
    %394 = vmatpush.msra.mxu0 %v393
    %v395 = vand.u32 %v370, 4294901760
    %396 = vmatpush.msra.mxu0 %v395
    %v397 = vand.u32 %v369, 4294901760
    %398 = vmatpush.msra.mxu0 %v397
    %v399 = vand.u32 %v374, 4294901760
    %v400 = vsub.f32 %v374, %v399
    %v401 = vand.u32 %v400, 4294901760
    %v402 = vsub.f32 %v400, %v401
    %v403 = vand.u32 %v402, 4294901760
    %404 = vmatmul.f32.gmra.mxu0 %v403
    %v405 = vpop.f32.mrf.mxu0
    %v406 = vadd.f32 0.0, %v405
    %v407 = vand.u32 %v377, 4294901760
    %v408 = vsub.f32 %v377, %v407
    %v409 = vand.u32 %v408, 4294901760
    %v410 = vsub.f32 %v408, %v409
    %v411 = vand.u32 %v410, 4294901760
    %412 = vmatmul.f32.gmra.mxu0 %v411
    %v413 = vpop.f32.mrf.mxu0
    %v414 = vadd.f32 0.0, %v413
    %415 = vdwg.mxu0
    %416 = vmatpush.msra.mxu0 0.0
    %417 = vmatpush.msra.mxu0 0.0
    %418 = vmatpush.msra.mxu0 0.0
    %419 = vmatpush.msra.mxu0 0.0
    %420 = vmatpush.msra.mxu0 0.0
    %421 = vmatpush.msra.mxu0 0.0
    %422 = vmatpush.msra.mxu0 0.0
    %423 = vmatpush.msra.mxu0 0.0
    %424 = vmatpush.msra.mxu0 0.0
    %425 = vmatpush.msra.mxu0 0.0
    %426 = vmatpush.msra.mxu0 0.0
    %427 = vmatpush.msra.mxu0 0.0
    %v428 = vand.u32 %v372, 4294901760
    %v429 = vsub.f32 %v372, %v428
    %v430 = vand.u32 %v429, 4294901760
    %v431 = vsub.f32 %v429, %v430
    %v432 = vand.u32 %v431, 4294901760
    %433 = vmatpush.msra.mxu0 %v432
    %v434 = vand.u32 %v371, 4294901760
    %v435 = vsub.f32 %v371, %v434
    %v436 = vand.u32 %v435, 4294901760
    %v437 = vsub.f32 %v435, %v436
    %v438 = vand.u32 %v437, 4294901760
    %439 = vmatpush.msra.mxu0 %v438
    %v440 = vand.u32 %v370, 4294901760
    %v441 = vsub.f32 %v370, %v440
    %v442 = vand.u32 %v441, 4294901760
    %v443 = vsub.f32 %v441, %v442
    %v444 = vand.u32 %v443, 4294901760
    %445 = vmatpush.msra.mxu0 %v444
    %v446 = vand.u32 %v369, 4294901760
    %v447 = vsub.f32 %v369, %v446
    %v448 = vand.u32 %v447, 4294901760
    %v449 = vsub.f32 %v447, %v448
    %v450 = vand.u32 %v449, 4294901760
    %451 = vmatpush.msra.mxu0 %v450
    %v452 = vand.u32 %v374, 4294901760
    %453 = vmatmul.f32.gmra.mxu0 %v452
    %v454 = vpop.f32.mrf.mxu0
    %v455 = vadd.f32 %v406, %v454
    %v456 = vand.u32 %v377, 4294901760
    %457 = vmatmul.f32.gmra.mxu0 %v456
    %v458 = vpop.f32.mrf.mxu0
    %v459 = vadd.f32 %v414, %v458
    %460 = vdwg.mxu0
    %461 = vmatpush.msra.mxu0 0.0
    %462 = vmatpush.msra.mxu0 0.0
    %463 = vmatpush.msra.mxu0 0.0
    %464 = vmatpush.msra.mxu0 0.0
    %465 = vmatpush.msra.mxu0 0.0
    %466 = vmatpush.msra.mxu0 0.0
    %467 = vmatpush.msra.mxu0 0.0
    %468 = vmatpush.msra.mxu0 0.0
    %469 = vmatpush.msra.mxu0 0.0
    %470 = vmatpush.msra.mxu0 0.0
    %471 = vmatpush.msra.mxu0 0.0
    %472 = vmatpush.msra.mxu0 0.0
    %v473 = vand.u32 %v372, 4294901760
    %v474 = vsub.f32 %v372, %v473
    %475 = vmatpush.msra.mxu0 %v474
    %v476 = vand.u32 %v371, 4294901760
    %v477 = vsub.f32 %v371, %v476
    %478 = vmatpush.msra.mxu0 %v477
    %v479 = vand.u32 %v370, 4294901760
    %v480 = vsub.f32 %v370, %v479
    %481 = vmatpush.msra.mxu0 %v480
    %v482 = vand.u32 %v369, 4294901760
    %v483 = vsub.f32 %v369, %v482
    %484 = vmatpush.msra.mxu0 %v483
    %v485 = vand.u32 %v374, 4294901760
    %v486 = vsub.f32 %v374, %v485
    %487 = vmatmul.f32.gmra.mxu0 %v486
    %v488 = vpop.f32.mrf.mxu0
    %v489 = vadd.f32 %v455, %v488
    %v490 = vand.u32 %v377, 4294901760
    %v491 = vsub.f32 %v377, %v490
    %492 = vmatmul.f32.gmra.mxu0 %v491
    %v493 = vpop.f32.mrf.mxu0
    %v494 = vadd.f32 %v459, %v493
    %495 = vdwg.mxu0
    %496 = vmatpush.msra.mxu0 0.0
    %497 = vmatpush.msra.mxu0 0.0
    %498 = vmatpush.msra.mxu0 0.0
    %499 = vmatpush.msra.mxu0 0.0
    %500 = vmatpush.msra.mxu0 0.0
    %501 = vmatpush.msra.mxu0 0.0
    %502 = vmatpush.msra.mxu0 0.0
    %503 = vmatpush.msra.mxu0 0.0
    %504 = vmatpush.msra.mxu0 0.0
    %505 = vmatpush.msra.mxu0 0.0
    %506 = vmatpush.msra.mxu0 0.0
    %507 = vmatpush.msra.mxu0 0.0
    %v508 = vand.u32 %v372, 4294901760
    %509 = vmatpush.msra.mxu0 %v508
    %v510 = vand.u32 %v371, 4294901760
    %511 = vmatpush.msra.mxu0 %v510
    %v512 = vand.u32 %v370, 4294901760
    %513 = vmatpush.msra.mxu0 %v512
    %v514 = vand.u32 %v369, 4294901760
    %515 = vmatpush.msra.mxu0 %v514
    %v516 = vand.u32 %v374, 4294901760
    %v517 = vsub.f32 %v374, %v516
    %v518 = vand.u32 %v517, 4294901760
    %519 = vmatmul.f32.gmra.mxu0 %v518
    %v520 = vpop.f32.mrf.mxu0
    %v521 = vadd.f32 %v489, %v520
    %v522 = vand.u32 %v377, 4294901760
    %v523 = vsub.f32 %v377, %v522
    %v524 = vand.u32 %v523, 4294901760
    %525 = vmatmul.f32.gmra.mxu0 %v524
    %v526 = vpop.f32.mrf.mxu0
    %v527 = vadd.f32 %v494, %v526
    %528 = vdwg.mxu0
    %529 = vmatpush.msra.mxu0 0.0
    %530 = vmatpush.msra.mxu0 0.0
    %531 = vmatpush.msra.mxu0 0.0
    %532 = vmatpush.msra.mxu0 0.0
    %533 = vmatpush.msra.mxu0 0.0
    %534 = vmatpush.msra.mxu0 0.0
    %535 = vmatpush.msra.mxu0 0.0
    %536 = vmatpush.msra.mxu0 0.0
    %537 = vmatpush.msra.mxu0 0.0
    %538 = vmatpush.msra.mxu0 0.0
    %539 = vmatpush.msra.mxu0 0.0
    %540 = vmatpush.msra.mxu0 0.0
    %v541 = vand.u32 %v372, 4294901760
    %v542 = vsub.f32 %v372, %v541
    %v543 = vand.u32 %v542, 4294901760
    %544 = vmatpush.msra.mxu0 %v543
    %v545 = vand.u32 %v371, 4294901760
    %v546 = vsub.f32 %v371, %v545
    %v547 = vand.u32 %v546, 4294901760
    %548 = vmatpush.msra.mxu0 %v547
    %v549 = vand.u32 %v370, 4294901760
    %v550 = vsub.f32 %v370, %v549
    %v551 = vand.u32 %v550, 4294901760
    %552 = vmatpush.msra.mxu0 %v551
    %v553 = vand.u32 %v369, 4294901760
    %v554 = vsub.f32 %v369, %v553
    %v555 = vand.u32 %v554, 4294901760
    %556 = vmatpush.msra.mxu0 %v555
    %v557 = vand.u32 %v374, 4294901760
    %558 = vmatmul.f32.gmra.mxu0 %v557
    %v559 = vpop.f32.mrf.mxu0
    %v560 = vadd.f32 %v521, %v559
    %v561 = vand.u32 %v377, 4294901760
    %562 = vmatmul.f32.gmra.mxu0 %v561
    %v563 = vpop.f32.mrf.mxu0
    %v564 = vadd.f32 %v527, %v563
    %565 = vdwg.mxu0
    %566 = vmatpush.msra.mxu0 0.0
    %567 = vmatpush.msra.mxu0 0.0
    %568 = vmatpush.msra.mxu0 0.0
    %569 = vmatpush.msra.mxu0 0.0
    %570 = vmatpush.msra.mxu0 0.0
    %571 = vmatpush.msra.mxu0 0.0
    %572 = vmatpush.msra.mxu0 0.0
    %573 = vmatpush.msra.mxu0 0.0
    %574 = vmatpush.msra.mxu0 0.0
    %575 = vmatpush.msra.mxu0 0.0
    %576 = vmatpush.msra.mxu0 0.0
    %577 = vmatpush.msra.mxu0 0.0
    %v578 = vand.u32 %v372, 4294901760
    %579 = vmatpush.msra.mxu0 %v578
    %v580 = vand.u32 %v371, 4294901760
    %581 = vmatpush.msra.mxu0 %v580
    %v582 = vand.u32 %v370, 4294901760
    %583 = vmatpush.msra.mxu0 %v582
    %v584 = vand.u32 %v369, 4294901760
    %585 = vmatpush.msra.mxu0 %v584
    %v586 = vand.u32 %v374, 4294901760
    %587 = vmatmul.f32.gmra.mxu0 %v586
    %v588 = vpop.f32.mrf.mxu0
    %v589 = vadd.f32 %v560, %v588
    %v590 = vand.u32 %v377, 4294901760
    %591 = vmatmul.f32.gmra.mxu0 %v590
    %v592 = vpop.f32.mrf.mxu0
    %v593 = vadd.f32 %v564, %v592
    %594 = vdwg.mxu0
    %597 = vrot.lane.b32.xlu0 %v363, 120
    %v598 = vpop.permute.xlu0 %597
    %599 = vrot.lane.b32.xlu0 %v367, 120
    %v600 = vpop.permute.xlu0 %599
    %v603 = vrot.slane %v363, 4
    %vm604 = vcmask 1047556
    %v605 = vsel %vm604, 0.0, %v603
    %v607 = vunpack.c.l.s4 1983009808
    %v608 = vunpack.c.0.s8 %v607
    %v609 = vperm.slane %v363, %v608
    %v611 = vunpack.c.l.s4 1983009808
    %v612 = vunpack.c.0.s8 %v611
    %v613 = vperm.slane %v605, %v612
    %v614 = vrot.slane %v598, 4
    %v615 = vsel %vm604, 0.0, %v614
    %v617 = vunpack.c.l.s4 1983009808
    %v618 = vunpack.c.0.s8 %v617
    %v619 = vperm.slane %v598, %v618
    %v621 = vunpack.c.l.s4 1983009808
    %v622 = vunpack.c.0.s8 %v621
    %v623 = vperm.slane %v615, %v622
    %v624 = vrot.slane %v619, 4
    %v625 = vsel %vm604, %v624, %v609
    %v626 = vrot.slane %v609, 4
    %v627 = vsel %vm604, %v619, %v626
    %v629 = vunpack.c.l.s4 1934713408
    %v630 = vunpack.c.0.s8 %v629
    %v631 = vperm.slane %v625, %v630
    %v633 = vunpack.c.l.s4 1934713408
    %v634 = vunpack.c.0.s8 %v633
    %v635 = vperm.slane %v627, %v634
    %v636 = vrot.slane %v623, 4
    %v637 = vsel %vm604, %v636, %v613
    %v638 = vrot.slane %v613, 4
    %v639 = vsel %vm604, %v623, %v638
    %v641 = vunpack.c.l.s4 1934713408
    %v642 = vunpack.c.0.s8 %v641
    %v643 = vperm.slane %v637, %v642
    %v645 = vunpack.c.l.s4 1934713408
    %v646 = vunpack.c.0.s8 %v645
    %v647 = vperm.slane %v639, %v646
    %v648 = vrot.slane %v631, 4
    %v649 = vsel %vm604, 0.0, %v648
    %v650 = vrot.slane %v635, 4
    %v651 = vsel %vm604, 0.0, %v650
    %v652 = vrot.slane %v643, 4
    %v653 = vsel %vm604, 0.0, %v652
    %v654 = vrot.slane %v647, 4
    %v655 = vsel %vm604, 0.0, %v654
    %v656 = vrot.slane %v367, 4
    %v657 = vsel %vm604, 0.0, %v656
    %v659 = vunpack.c.l.s4 1983009808
    %v660 = vunpack.c.0.s8 %v659
    %v661 = vperm.slane %v367, %v660
    %v663 = vunpack.c.l.s4 1983009808
    %v664 = vunpack.c.0.s8 %v663
    %v665 = vperm.slane %v657, %v664
    %v666 = vrot.slane %v600, 4
    %v667 = vsel %vm604, 0.0, %v666
    %v669 = vunpack.c.l.s4 1983009808
    %v670 = vunpack.c.0.s8 %v669
    %v671 = vperm.slane %v600, %v670
    %v673 = vunpack.c.l.s4 1983009808
    %v674 = vunpack.c.0.s8 %v673
    %v675 = vperm.slane %v667, %v674
    %v676 = vrot.slane %v671, 4
    %v677 = vsel %vm604, %v676, %v661
    %v678 = vrot.slane %v661, 4
    %v679 = vsel %vm604, %v671, %v678
    %v681 = vunpack.c.l.s4 1934713408
    %v682 = vunpack.c.0.s8 %v681
    %v683 = vperm.slane %v677, %v682
    %v685 = vunpack.c.l.s4 1934713408
    %v686 = vunpack.c.0.s8 %v685
    %v687 = vperm.slane %v679, %v686
    %v688 = vrot.slane %v675, 4
    %v689 = vsel %vm604, %v688, %v665
    %v690 = vrot.slane %v665, 4
    %v691 = vsel %vm604, %v675, %v690
    %v693 = vunpack.c.l.s4 1934713408
    %v694 = vunpack.c.0.s8 %v693
    %v695 = vperm.slane %v689, %v694
    %v697 = vunpack.c.l.s4 1934713408
    %v698 = vunpack.c.0.s8 %v697
    %v699 = vperm.slane %v691, %v698
    %v700 = vrot.slane %v683, 4
    %v701 = vsel %vm604, 0.0, %v700
    %v702 = vrot.slane %v687, 4
    %v703 = vsel %vm604, 0.0, %v702
    %v704 = vrot.slane %v695, 4
    %v705 = vsel %vm604, 0.0, %v704
    %v706 = vrot.slane %v699, 4
    %v707 = vsel %vm604, 0.0, %v706
    %v708 = vsel %vm604, %v650, %v631
    %v710 = vunpack.c.l.s4 1983009808
    %v711 = vunpack.c.0.s8 %v710
    %v712 = vperm.slane %v708, %v711
    %v713 = vrot.slane %v651, 4
    %v714 = vsel %vm604, %v713, %v649
    %v716 = vunpack.c.l.s4 1983009808
    %v717 = vunpack.c.0.s8 %v716
    %v718 = vperm.slane %v714, %v717
    %v719 = vsel %vm604, %v654, %v643
    %v721 = vunpack.c.l.s4 1983009808
    %v722 = vunpack.c.0.s8 %v721
    %v723 = vperm.slane %v719, %v722
    %v724 = vrot.slane %v655, 4
    %v725 = vsel %vm604, %v724, %v653
    %v727 = vunpack.c.l.s4 1983009808
    %v728 = vunpack.c.0.s8 %v727
    %v729 = vperm.slane %v725, %v728
    %v730 = vrot.slane %v718, 4
    %v731 = vsel %vm604, %v730, %v712
    %v733 = vunpack.c.l.s4 1934713408
    %v734 = vunpack.c.0.s8 %v733
    %v735 = vperm.slane %v731, %v734
    %v736 = vrot.slane %v729, 4
    %v737 = vsel %vm604, %v736, %v723
    %v739 = vunpack.c.l.s4 1934713408
    %v740 = vunpack.c.0.s8 %v739
    %v741 = vperm.slane %v737, %v740
    %v742 = vrot.slane %v741, 4
    %v743 = vsel %vm604, %v742, %v735
    %v744 = vrot.slane %v735, 4
    %v745 = vsel %vm604, %v741, %v744
    %v746 = vsel %vm604, %v702, %v683
    %v748 = vunpack.c.l.s4 1983009808
    %v749 = vunpack.c.0.s8 %v748
    %v750 = vperm.slane %v746, %v749
    %v751 = vrot.slane %v703, 4
    %v752 = vsel %vm604, %v751, %v701
    %v754 = vunpack.c.l.s4 1983009808
    %v755 = vunpack.c.0.s8 %v754
    %v756 = vperm.slane %v752, %v755
    %v757 = vsel %vm604, %v706, %v695
    %v759 = vunpack.c.l.s4 1983009808
    %v760 = vunpack.c.0.s8 %v759
    %v761 = vperm.slane %v757, %v760
    %v762 = vrot.slane %v707, 4
    %v763 = vsel %vm604, %v762, %v705
    %v765 = vunpack.c.l.s4 1983009808
    %v766 = vunpack.c.0.s8 %v765
    %v767 = vperm.slane %v763, %v766
    %v768 = vrot.slane %v756, 4
    %v769 = vsel %vm604, %v768, %v750
    %v771 = vunpack.c.l.s4 1934713408
    %v772 = vunpack.c.0.s8 %v771
    %v773 = vperm.slane %v769, %v772
    %v774 = vrot.slane %v767, 4
    %v775 = vsel %vm604, %v774, %v761
    %v777 = vunpack.c.l.s4 1934713408
    %v778 = vunpack.c.0.s8 %v777
    %v779 = vperm.slane %v775, %v778
    %v780 = vrot.slane %v779, 4
    %v781 = vsel %vm604, %v780, %v773
    %v782 = vrot.slane %v773, 4
    %v783 = vsel %vm604, %v779, %v782
    %784 = vrot.lane.b32.xlu0 %v363, 96
    %v785 = vpop.permute.xlu0 %784
    %786 = vrot.lane.b32.xlu0 %v367, 96
    %v787 = vpop.permute.xlu0 %786
    %788 = vrot.lane.b32.xlu0 %v598, 96
    %v789 = vpop.permute.xlu0 %788
    %790 = vrot.lane.b32.xlu0 %v600, 96
    %v791 = vpop.permute.xlu0 %790
    %v796 = vrot.slane %v785, 4
    %v797 = vsel %vm604, 0.0, %v796
    %v799 = vunpack.c.l.s4 1983009808
    %v800 = vunpack.c.0.s8 %v799
    %v801 = vperm.slane %v785, %v800
    %v803 = vunpack.c.l.s4 1983009808
    %v804 = vunpack.c.0.s8 %v803
    %v805 = vperm.slane %v797, %v804
    %v806 = vrot.slane %v789, 4
    %v807 = vsel %vm604, 0.0, %v806
    %v809 = vunpack.c.l.s4 1983009808
    %v810 = vunpack.c.0.s8 %v809
    %v811 = vperm.slane %v789, %v810
    %v813 = vunpack.c.l.s4 1983009808
    %v814 = vunpack.c.0.s8 %v813
    %v815 = vperm.slane %v807, %v814
    %v816 = vrot.slane %v811, 4
    %v817 = vsel %vm604, %v816, %v801
    %v818 = vrot.slane %v801, 4
    %v819 = vsel %vm604, %v811, %v818
    %v821 = vunpack.c.l.s4 1934713408
    %v822 = vunpack.c.0.s8 %v821
    %v823 = vperm.slane %v817, %v822
    %v825 = vunpack.c.l.s4 1934713408
    %v826 = vunpack.c.0.s8 %v825
    %v827 = vperm.slane %v819, %v826
    %v828 = vrot.slane %v815, 4
    %v829 = vsel %vm604, %v828, %v805
    %v830 = vrot.slane %v805, 4
    %v831 = vsel %vm604, %v815, %v830
    %v833 = vunpack.c.l.s4 1934713408
    %v834 = vunpack.c.0.s8 %v833
    %v835 = vperm.slane %v829, %v834
    %v837 = vunpack.c.l.s4 1934713408
    %v838 = vunpack.c.0.s8 %v837
    %v839 = vperm.slane %v831, %v838
    %v840 = vrot.slane %v823, 4
    %v841 = vsel %vm604, 0.0, %v840
    %v842 = vrot.slane %v827, 4
    %v843 = vsel %vm604, 0.0, %v842
    %v844 = vrot.slane %v835, 4
    %v845 = vsel %vm604, 0.0, %v844
    %v846 = vrot.slane %v839, 4
    %v847 = vsel %vm604, 0.0, %v846
    %v848 = vrot.slane %v787, 4
    %v849 = vsel %vm604, 0.0, %v848
    %v851 = vunpack.c.l.s4 1983009808
    %v852 = vunpack.c.0.s8 %v851
    %v853 = vperm.slane %v787, %v852
    %v855 = vunpack.c.l.s4 1983009808
    %v856 = vunpack.c.0.s8 %v855
    %v857 = vperm.slane %v849, %v856
    %v858 = vrot.slane %v791, 4
    %v859 = vsel %vm604, 0.0, %v858
    %v861 = vunpack.c.l.s4 1983009808
    %v862 = vunpack.c.0.s8 %v861
    %v863 = vperm.slane %v791, %v862
    %v865 = vunpack.c.l.s4 1983009808
    %v866 = vunpack.c.0.s8 %v865
    %v867 = vperm.slane %v859, %v866
    %v868 = vrot.slane %v863, 4
    %v869 = vsel %vm604, %v868, %v853
    %v870 = vrot.slane %v853, 4
    %v871 = vsel %vm604, %v863, %v870
    %v873 = vunpack.c.l.s4 1934713408
    %v874 = vunpack.c.0.s8 %v873
    %v875 = vperm.slane %v869, %v874
    %v877 = vunpack.c.l.s4 1934713408
    %v878 = vunpack.c.0.s8 %v877
    %v879 = vperm.slane %v871, %v878
    %v880 = vrot.slane %v867, 4
    %v881 = vsel %vm604, %v880, %v857
    %v882 = vrot.slane %v857, 4
    %v883 = vsel %vm604, %v867, %v882
    %v885 = vunpack.c.l.s4 1934713408
    %v886 = vunpack.c.0.s8 %v885
    %v887 = vperm.slane %v881, %v886
    %v889 = vunpack.c.l.s4 1934713408
    %v890 = vunpack.c.0.s8 %v889
    %v891 = vperm.slane %v883, %v890
    %v892 = vrot.slane %v875, 4
    %v893 = vsel %vm604, 0.0, %v892
    %v894 = vrot.slane %v879, 4
    %v895 = vsel %vm604, 0.0, %v894
    %v896 = vrot.slane %v887, 4
    %v897 = vsel %vm604, 0.0, %v896
    %v898 = vrot.slane %v891, 4
    %v899 = vsel %vm604, 0.0, %v898
    %v900 = vsel %vm604, %v842, %v823
    %v902 = vunpack.c.l.s4 1983009808
    %v903 = vunpack.c.0.s8 %v902
    %v904 = vperm.slane %v900, %v903
    %v905 = vrot.slane %v843, 4
    %v906 = vsel %vm604, %v905, %v841
    %v908 = vunpack.c.l.s4 1983009808
    %v909 = vunpack.c.0.s8 %v908
    %v910 = vperm.slane %v906, %v909
    %v911 = vsel %vm604, %v846, %v835
    %v913 = vunpack.c.l.s4 1983009808
    %v914 = vunpack.c.0.s8 %v913
    %v915 = vperm.slane %v911, %v914
    %v916 = vrot.slane %v847, 4
    %v917 = vsel %vm604, %v916, %v845
    %v919 = vunpack.c.l.s4 1983009808
    %v920 = vunpack.c.0.s8 %v919
    %v921 = vperm.slane %v917, %v920
    %v922 = vrot.slane %v910, 4
    %v923 = vsel %vm604, %v922, %v904
    %v925 = vunpack.c.l.s4 1934713408
    %v926 = vunpack.c.0.s8 %v925
    %v927 = vperm.slane %v923, %v926
    %v928 = vrot.slane %v921, 4
    %v929 = vsel %vm604, %v928, %v915
    %v931 = vunpack.c.l.s4 1934713408
    %v932 = vunpack.c.0.s8 %v931
    %v933 = vperm.slane %v929, %v932
    %v934 = vrot.slane %v933, 4
    %v935 = vsel %vm604, %v934, %v927
    %v936 = vrot.slane %v927, 4
    %v937 = vsel %vm604, %v933, %v936
    %v938 = vsel %vm604, %v894, %v875
    %v940 = vunpack.c.l.s4 1983009808
    %v941 = vunpack.c.0.s8 %v940
    %v942 = vperm.slane %v938, %v941
    %v943 = vrot.slane %v895, 4
    %v944 = vsel %vm604, %v943, %v893
    %v946 = vunpack.c.l.s4 1983009808
    %v947 = vunpack.c.0.s8 %v946
    %v948 = vperm.slane %v944, %v947
    %v949 = vsel %vm604, %v898, %v887
    %v951 = vunpack.c.l.s4 1983009808
    %v952 = vunpack.c.0.s8 %v951
    %v953 = vperm.slane %v949, %v952
    %v954 = vrot.slane %v899, 4
    %v955 = vsel %vm604, %v954, %v897
    %v957 = vunpack.c.l.s4 1983009808
    %v958 = vunpack.c.0.s8 %v957
    %v959 = vperm.slane %v955, %v958
    %v960 = vrot.slane %v948, 4
    %v961 = vsel %vm604, %v960, %v942
    %v963 = vunpack.c.l.s4 1934713408
    %v964 = vunpack.c.0.s8 %v963
    %v965 = vperm.slane %v961, %v964
    %v966 = vrot.slane %v959, 4
    %v967 = vsel %vm604, %v966, %v953
    %v969 = vunpack.c.l.s4 1934713408
    %v970 = vunpack.c.0.s8 %v969
    %v971 = vperm.slane %v967, %v970
    %v972 = vrot.slane %v971, 4
    %v973 = vsel %vm604, %v972, %v965
    %v974 = vrot.slane %v965, 4
    %v975 = vsel %vm604, %v971, %v974
    %976 = vrot.lane.b32.xlu0 %v363, 80
    %v977 = vpop.permute.xlu0 %976
    %978 = vrot.lane.b32.xlu0 %v367, 80
    %v979 = vpop.permute.xlu0 %978
    %980 = vrot.lane.b32.xlu0 %v598, 80
    %v981 = vpop.permute.xlu0 %980
    %982 = vrot.lane.b32.xlu0 %v600, 80
    %v983 = vpop.permute.xlu0 %982
    %v988 = vrot.slane %v977, 4
    %v989 = vsel %vm604, 0.0, %v988
    %v991 = vunpack.c.l.s4 1983009808
    %v992 = vunpack.c.0.s8 %v991
    %v993 = vperm.slane %v977, %v992
    %v995 = vunpack.c.l.s4 1983009808
    %v996 = vunpack.c.0.s8 %v995
    %v997 = vperm.slane %v989, %v996
    %v998 = vrot.slane %v981, 4
    %v999 = vsel %vm604, 0.0, %v998
    %v1001 = vunpack.c.l.s4 1983009808
    %v1002 = vunpack.c.0.s8 %v1001
    %v1003 = vperm.slane %v981, %v1002
    %v1005 = vunpack.c.l.s4 1983009808
    %v1006 = vunpack.c.0.s8 %v1005
    %v1007 = vperm.slane %v999, %v1006
    %v1008 = vrot.slane %v1003, 4
    %v1009 = vsel %vm604, %v1008, %v993
    %v1010 = vrot.slane %v993, 4
    %v1011 = vsel %vm604, %v1003, %v1010
    %v1013 = vunpack.c.l.s4 1934713408
    %v1014 = vunpack.c.0.s8 %v1013
    %v1015 = vperm.slane %v1009, %v1014
    %v1017 = vunpack.c.l.s4 1934713408
    %v1018 = vunpack.c.0.s8 %v1017
    %v1019 = vperm.slane %v1011, %v1018
    %v1020 = vrot.slane %v1007, 4
    %v1021 = vsel %vm604, %v1020, %v997
    %v1022 = vrot.slane %v997, 4
    %v1023 = vsel %vm604, %v1007, %v1022
    %v1025 = vunpack.c.l.s4 1934713408
    %v1026 = vunpack.c.0.s8 %v1025
    %v1027 = vperm.slane %v1021, %v1026
    %v1029 = vunpack.c.l.s4 1934713408
    %v1030 = vunpack.c.0.s8 %v1029
    %v1031 = vperm.slane %v1023, %v1030
    %v1032 = vrot.slane %v1015, 4
    %v1033 = vsel %vm604, 0.0, %v1032
    %v1034 = vrot.slane %v1019, 4
    %v1035 = vsel %vm604, 0.0, %v1034
    %v1036 = vrot.slane %v1027, 4
    %v1037 = vsel %vm604, 0.0, %v1036
    %v1038 = vrot.slane %v1031, 4
    %v1039 = vsel %vm604, 0.0, %v1038
    %v1040 = vrot.slane %v979, 4
    %v1041 = vsel %vm604, 0.0, %v1040
    %v1043 = vunpack.c.l.s4 1983009808
    %v1044 = vunpack.c.0.s8 %v1043
    %v1045 = vperm.slane %v979, %v1044
    %v1047 = vunpack.c.l.s4 1983009808
    %v1048 = vunpack.c.0.s8 %v1047
    %v1049 = vperm.slane %v1041, %v1048
    %v1050 = vrot.slane %v983, 4
    %v1051 = vsel %vm604, 0.0, %v1050
    %v1053 = vunpack.c.l.s4 1983009808
    %v1054 = vunpack.c.0.s8 %v1053
    %v1055 = vperm.slane %v983, %v1054
    %v1057 = vunpack.c.l.s4 1983009808
    %v1058 = vunpack.c.0.s8 %v1057
    %v1059 = vperm.slane %v1051, %v1058
    %v1060 = vrot.slane %v1055, 4
    %v1061 = vsel %vm604, %v1060, %v1045
    %v1062 = vrot.slane %v1045, 4
    %v1063 = vsel %vm604, %v1055, %v1062
    %v1065 = vunpack.c.l.s4 1934713408
    %v1066 = vunpack.c.0.s8 %v1065
    %v1067 = vperm.slane %v1061, %v1066
    %v1069 = vunpack.c.l.s4 1934713408
    %v1070 = vunpack.c.0.s8 %v1069
    %v1071 = vperm.slane %v1063, %v1070
    %v1072 = vrot.slane %v1059, 4
    %v1073 = vsel %vm604, %v1072, %v1049
    %v1074 = vrot.slane %v1049, 4
    %v1075 = vsel %vm604, %v1059, %v1074
    %v1077 = vunpack.c.l.s4 1934713408
    %v1078 = vunpack.c.0.s8 %v1077
    %v1079 = vperm.slane %v1073, %v1078
    %v1081 = vunpack.c.l.s4 1934713408
    %v1082 = vunpack.c.0.s8 %v1081
    %v1083 = vperm.slane %v1075, %v1082
    %v1084 = vrot.slane %v1067, 4
    %v1085 = vsel %vm604, 0.0, %v1084
    %v1086 = vrot.slane %v1071, 4
    %v1087 = vsel %vm604, 0.0, %v1086
    %v1088 = vrot.slane %v1079, 4
    %v1089 = vsel %vm604, 0.0, %v1088
    %v1090 = vrot.slane %v1083, 4
    %v1091 = vsel %vm604, 0.0, %v1090
    %v1092 = vsel %vm604, %v1034, %v1015
    %v1094 = vunpack.c.l.s4 1983009808
    %v1095 = vunpack.c.0.s8 %v1094
    %v1096 = vperm.slane %v1092, %v1095
    %v1097 = vrot.slane %v1035, 4
    %v1098 = vsel %vm604, %v1097, %v1033
    %v1100 = vunpack.c.l.s4 1983009808
    %v1101 = vunpack.c.0.s8 %v1100
    %v1102 = vperm.slane %v1098, %v1101
    %v1103 = vsel %vm604, %v1038, %v1027
    %v1105 = vunpack.c.l.s4 1983009808
    %v1106 = vunpack.c.0.s8 %v1105
    %v1107 = vperm.slane %v1103, %v1106
    %v1108 = vrot.slane %v1039, 4
    %v1109 = vsel %vm604, %v1108, %v1037
    %v1111 = vunpack.c.l.s4 1983009808
    %v1112 = vunpack.c.0.s8 %v1111
    %v1113 = vperm.slane %v1109, %v1112
    %v1114 = vrot.slane %v1102, 4
    %v1115 = vsel %vm604, %v1114, %v1096
    %v1117 = vunpack.c.l.s4 1934713408
    %v1118 = vunpack.c.0.s8 %v1117
    %v1119 = vperm.slane %v1115, %v1118
    %v1120 = vrot.slane %v1113, 4
    %v1121 = vsel %vm604, %v1120, %v1107
    %v1123 = vunpack.c.l.s4 1934713408
    %v1124 = vunpack.c.0.s8 %v1123
    %v1125 = vperm.slane %v1121, %v1124
    %v1126 = vrot.slane %v1125, 4
    %v1127 = vsel %vm604, %v1126, %v1119
    %v1128 = vrot.slane %v1119, 4
    %v1129 = vsel %vm604, %v1125, %v1128
    %v1130 = vsel %vm604, %v1086, %v1067
    %v1132 = vunpack.c.l.s4 1983009808
    %v1133 = vunpack.c.0.s8 %v1132
    %v1134 = vperm.slane %v1130, %v1133
    %v1135 = vrot.slane %v1087, 4
    %v1136 = vsel %vm604, %v1135, %v1085
    %v1138 = vunpack.c.l.s4 1983009808
    %v1139 = vunpack.c.0.s8 %v1138
    %v1140 = vperm.slane %v1136, %v1139
    %v1141 = vsel %vm604, %v1090, %v1079
    %v1143 = vunpack.c.l.s4 1983009808
    %v1144 = vunpack.c.0.s8 %v1143
    %v1145 = vperm.slane %v1141, %v1144
    %v1146 = vrot.slane %v1091, 4
    %v1147 = vsel %vm604, %v1146, %v1089
    %v1149 = vunpack.c.l.s4 1983009808
    %v1150 = vunpack.c.0.s8 %v1149
    %v1151 = vperm.slane %v1147, %v1150
    %v1152 = vrot.slane %v1140, 4
    %v1153 = vsel %vm604, %v1152, %v1134
    %v1155 = vunpack.c.l.s4 1934713408
    %v1156 = vunpack.c.0.s8 %v1155
    %v1157 = vperm.slane %v1153, %v1156
    %v1158 = vrot.slane %v1151, 4
    %v1159 = vsel %vm604, %v1158, %v1145
    %v1161 = vunpack.c.l.s4 1934713408
    %v1162 = vunpack.c.0.s8 %v1161
    %v1163 = vperm.slane %v1159, %v1162
    %v1164 = vrot.slane %v1163, 4
    %v1165 = vsel %vm604, %v1164, %v1157
    %v1166 = vrot.slane %v1157, 4
    %v1167 = vsel %vm604, %v1163, %v1166
    %vm1168 = vcmask 64512
    %v1170 = vsel %vm1168, %v743, 0
    %v1173 = vsel %vm1168, %v935, 0
    %1175 = vmatpush.xpose.msra.mxu0 0.0
    %1176 = vmatpush.xpose.msra.mxu0 0.0
    %1177 = vmatpush.xpose.msra.mxu0 0.0
    %1178 = vmatpush.xpose.msra.mxu0 0.0
    %1179 = vmatpush.xpose.msra.mxu0 0.0
    %1180 = vmatpush.xpose.msra.mxu0 0.0
    %1181 = vmatpush.xpose.msra.mxu0 0.0
    %1182 = vmatpush.xpose.msra.mxu0 0.0
    %1183 = vmatpush.xpose.msra.mxu0 0.0
    %1184 = vmatpush.xpose.msra.mxu0 0.0
    %1185 = vmatpush.xpose.msra.mxu0 0.0
    %1186 = vmatpush.xpose.msra.mxu0 0.0
    %1187 = vmatpush.xpose.msra.mxu0 0.0
    %1188 = vmatpush.xpose.msra.mxu0 0.0
    %1189 = vmatpush.xpose.msra.mxu0 0.0
    %v1190 = vand.u32 %v1173, 4294901760
    %1191 = vmatpush.xpose.msra.mxu0 %v1190
    %v1192 = vand.u32 %v1170, 4294901760
    %v1193 = vsub.f32 %v1170, %v1192
    %v1194 = vand.u32 %v1193, 4294901760
    %v1195 = vsub.f32 %v1193, %v1194
    %v1196 = vand.u32 %v1195, 4294901760
    %1197 = vmatmul.f32.gmra.mxu0 %v1196
    %v1198 = vpop.f32.mrf.mxu0
    %v1199 = vadd.f32 0.0, %v1198
    %1200 = vdwg.mxu0
    %1201 = vmatpush.xpose.msra.mxu0 0.0
    %1202 = vmatpush.xpose.msra.mxu0 0.0
    %1203 = vmatpush.xpose.msra.mxu0 0.0
    %1204 = vmatpush.xpose.msra.mxu0 0.0
    %1205 = vmatpush.xpose.msra.mxu0 0.0
    %1206 = vmatpush.xpose.msra.mxu0 0.0
    %1207 = vmatpush.xpose.msra.mxu0 0.0
    %1208 = vmatpush.xpose.msra.mxu0 0.0
    %1209 = vmatpush.xpose.msra.mxu0 0.0
    %1210 = vmatpush.xpose.msra.mxu0 0.0
    %1211 = vmatpush.xpose.msra.mxu0 0.0
    %1212 = vmatpush.xpose.msra.mxu0 0.0
    %1213 = vmatpush.xpose.msra.mxu0 0.0
    %1214 = vmatpush.xpose.msra.mxu0 0.0
    %1215 = vmatpush.xpose.msra.mxu0 0.0
    %v1216 = vand.u32 %v1173, 4294901760
    %v1217 = vsub.f32 %v1173, %v1216
    %v1218 = vand.u32 %v1217, 4294901760
    %v1219 = vsub.f32 %v1217, %v1218
    %v1220 = vand.u32 %v1219, 4294901760
    %1221 = vmatpush.xpose.msra.mxu0 %v1220
    %v1222 = vand.u32 %v1170, 4294901760
    %1223 = vmatmul.f32.gmra.mxu0 %v1222
    %v1224 = vpop.f32.mrf.mxu0
    %v1225 = vadd.f32 %v1199, %v1224
    %1226 = vdwg.mxu0
    %1227 = vmatpush.xpose.msra.mxu0 0.0
    %1228 = vmatpush.xpose.msra.mxu0 0.0
    %1229 = vmatpush.xpose.msra.mxu0 0.0
    %1230 = vmatpush.xpose.msra.mxu0 0.0
    %1231 = vmatpush.xpose.msra.mxu0 0.0
    %1232 = vmatpush.xpose.msra.mxu0 0.0
    %1233 = vmatpush.xpose.msra.mxu0 0.0
    %1234 = vmatpush.xpose.msra.mxu0 0.0
    %1235 = vmatpush.xpose.msra.mxu0 0.0
    %1236 = vmatpush.xpose.msra.mxu0 0.0
    %1237 = vmatpush.xpose.msra.mxu0 0.0
    %1238 = vmatpush.xpose.msra.mxu0 0.0
    %1239 = vmatpush.xpose.msra.mxu0 0.0
    %1240 = vmatpush.xpose.msra.mxu0 0.0
    %1241 = vmatpush.xpose.msra.mxu0 0.0
    %v1242 = vand.u32 %v1173, 4294901760
    %v1243 = vsub.f32 %v1173, %v1242
    %1244 = vmatpush.xpose.msra.mxu0 %v1243
    %v1245 = vand.u32 %v1170, 4294901760
    %v1246 = vsub.f32 %v1170, %v1245
    %1247 = vmatmul.f32.gmra.mxu0 %v1246
    %v1248 = vpop.f32.mrf.mxu0
    %v1249 = vadd.f32 %v1225, %v1248
    %1250 = vdwg.mxu0
    %1251 = vmatpush.xpose.msra.mxu0 0.0
    %1252 = vmatpush.xpose.msra.mxu0 0.0
    %1253 = vmatpush.xpose.msra.mxu0 0.0
    %1254 = vmatpush.xpose.msra.mxu0 0.0
    %1255 = vmatpush.xpose.msra.mxu0 0.0
    %1256 = vmatpush.xpose.msra.mxu0 0.0
    %1257 = vmatpush.xpose.msra.mxu0 0.0
    %1258 = vmatpush.xpose.msra.mxu0 0.0
    %1259 = vmatpush.xpose.msra.mxu0 0.0
    %1260 = vmatpush.xpose.msra.mxu0 0.0
    %1261 = vmatpush.xpose.msra.mxu0 0.0
    %1262 = vmatpush.xpose.msra.mxu0 0.0
    %1263 = vmatpush.xpose.msra.mxu0 0.0
    %1264 = vmatpush.xpose.msra.mxu0 0.0
    %1265 = vmatpush.xpose.msra.mxu0 0.0
    %v1266 = vand.u32 %v1173, 4294901760
    %1267 = vmatpush.xpose.msra.mxu0 %v1266
    %v1268 = vand.u32 %v1170, 4294901760
    %v1269 = vsub.f32 %v1170, %v1268
    %v1270 = vand.u32 %v1269, 4294901760
    %1271 = vmatmul.f32.gmra.mxu0 %v1270
    %v1272 = vpop.f32.mrf.mxu0
    %v1273 = vadd.f32 %v1249, %v1272
    %1274 = vdwg.mxu0
    %1275 = vmatpush.xpose.msra.mxu0 0.0
    %1276 = vmatpush.xpose.msra.mxu0 0.0
    %1277 = vmatpush.xpose.msra.mxu0 0.0
    %1278 = vmatpush.xpose.msra.mxu0 0.0
    %1279 = vmatpush.xpose.msra.mxu0 0.0
    %1280 = vmatpush.xpose.msra.mxu0 0.0
    %1281 = vmatpush.xpose.msra.mxu0 0.0
    %1282 = vmatpush.xpose.msra.mxu0 0.0
    %1283 = vmatpush.xpose.msra.mxu0 0.0
    %1284 = vmatpush.xpose.msra.mxu0 0.0
    %1285 = vmatpush.xpose.msra.mxu0 0.0
    %1286 = vmatpush.xpose.msra.mxu0 0.0
    %1287 = vmatpush.xpose.msra.mxu0 0.0
    %1288 = vmatpush.xpose.msra.mxu0 0.0
    %1289 = vmatpush.xpose.msra.mxu0 0.0
    %v1290 = vand.u32 %v1173, 4294901760
    %v1291 = vsub.f32 %v1173, %v1290
    %v1292 = vand.u32 %v1291, 4294901760
    %1293 = vmatpush.xpose.msra.mxu0 %v1292
    %v1294 = vand.u32 %v1170, 4294901760
    %1295 = vmatmul.f32.gmra.mxu0 %v1294
    %v1296 = vpop.f32.mrf.mxu0
    %v1297 = vadd.f32 %v1273, %v1296
    %1298 = vdwg.mxu0
    %1299 = vmatpush.xpose.msra.mxu0 0.0
    %1300 = vmatpush.xpose.msra.mxu0 0.0
    %1301 = vmatpush.xpose.msra.mxu0 0.0
    %1302 = vmatpush.xpose.msra.mxu0 0.0
    %1303 = vmatpush.xpose.msra.mxu0 0.0
    %1304 = vmatpush.xpose.msra.mxu0 0.0
    %1305 = vmatpush.xpose.msra.mxu0 0.0
    %1306 = vmatpush.xpose.msra.mxu0 0.0
    %1307 = vmatpush.xpose.msra.mxu0 0.0
    %1308 = vmatpush.xpose.msra.mxu0 0.0
    %1309 = vmatpush.xpose.msra.mxu0 0.0
    %1310 = vmatpush.xpose.msra.mxu0 0.0
    %1311 = vmatpush.xpose.msra.mxu0 0.0
    %1312 = vmatpush.xpose.msra.mxu0 0.0
    %1313 = vmatpush.xpose.msra.mxu0 0.0
    %v1314 = vand.u32 %v1173, 4294901760
    %1315 = vmatpush.xpose.msra.mxu0 %v1314
    %v1316 = vand.u32 %v1170, 4294901760
    %1317 = vmatmul.f32.gmra.mxu0 %v1316
    %v1318 = vpop.f32.mrf.mxu0
    %v1319 = vadd.f32 %v1297, %v1318
    %1320 = vdwg.mxu0
    %v1322 = vsel %vm1168, %v745, 0
    %v1325 = vsel %vm1168, %v937, 0
    %1327 = vmatpush.xpose.msra.mxu0 0.0
    %1328 = vmatpush.xpose.msra.mxu0 0.0
    %1329 = vmatpush.xpose.msra.mxu0 0.0
    %1330 = vmatpush.xpose.msra.mxu0 0.0
    %1331 = vmatpush.xpose.msra.mxu0 0.0
    %1332 = vmatpush.xpose.msra.mxu0 0.0
    %1333 = vmatpush.xpose.msra.mxu0 0.0
    %1334 = vmatpush.xpose.msra.mxu0 0.0
    %1335 = vmatpush.xpose.msra.mxu0 0.0
    %1336 = vmatpush.xpose.msra.mxu0 0.0
    %1337 = vmatpush.xpose.msra.mxu0 0.0
    %1338 = vmatpush.xpose.msra.mxu0 0.0
    %1339 = vmatpush.xpose.msra.mxu0 0.0
    %1340 = vmatpush.xpose.msra.mxu0 0.0
    %1341 = vmatpush.xpose.msra.mxu0 0.0
    %v1342 = vand.u32 %v1325, 4294901760
    %1343 = vmatpush.xpose.msra.mxu0 %v1342
    %v1344 = vand.u32 %v1322, 4294901760
    %v1345 = vsub.f32 %v1322, %v1344
    %v1346 = vand.u32 %v1345, 4294901760
    %v1347 = vsub.f32 %v1345, %v1346
    %v1348 = vand.u32 %v1347, 4294901760
    %1349 = vmatmul.f32.gmra.mxu0 %v1348
    %v1350 = vpop.f32.mrf.mxu0
    %v1351 = vadd.f32 0.0, %v1350
    %1352 = vdwg.mxu0
    %1353 = vmatpush.xpose.msra.mxu0 0.0
    %1354 = vmatpush.xpose.msra.mxu0 0.0
    %1355 = vmatpush.xpose.msra.mxu0 0.0
    %1356 = vmatpush.xpose.msra.mxu0 0.0
    %1357 = vmatpush.xpose.msra.mxu0 0.0
    %1358 = vmatpush.xpose.msra.mxu0 0.0
    %1359 = vmatpush.xpose.msra.mxu0 0.0
    %1360 = vmatpush.xpose.msra.mxu0 0.0
    %1361 = vmatpush.xpose.msra.mxu0 0.0
    %1362 = vmatpush.xpose.msra.mxu0 0.0
    %1363 = vmatpush.xpose.msra.mxu0 0.0
    %1364 = vmatpush.xpose.msra.mxu0 0.0
    %1365 = vmatpush.xpose.msra.mxu0 0.0
    %1366 = vmatpush.xpose.msra.mxu0 0.0
    %1367 = vmatpush.xpose.msra.mxu0 0.0
    %v1368 = vand.u32 %v1325, 4294901760
    %v1369 = vsub.f32 %v1325, %v1368
    %v1370 = vand.u32 %v1369, 4294901760
    %v1371 = vsub.f32 %v1369, %v1370
    %v1372 = vand.u32 %v1371, 4294901760
    %1373 = vmatpush.xpose.msra.mxu0 %v1372
    %v1374 = vand.u32 %v1322, 4294901760
    %1375 = vmatmul.f32.gmra.mxu0 %v1374
    %v1376 = vpop.f32.mrf.mxu0
    %v1377 = vadd.f32 %v1351, %v1376
    %1378 = vdwg.mxu0
    %1379 = vmatpush.xpose.msra.mxu0 0.0
    %1380 = vmatpush.xpose.msra.mxu0 0.0
    %1381 = vmatpush.xpose.msra.mxu0 0.0
    %1382 = vmatpush.xpose.msra.mxu0 0.0
    %1383 = vmatpush.xpose.msra.mxu0 0.0
    %1384 = vmatpush.xpose.msra.mxu0 0.0
    %1385 = vmatpush.xpose.msra.mxu0 0.0
    %1386 = vmatpush.xpose.msra.mxu0 0.0
    %1387 = vmatpush.xpose.msra.mxu0 0.0
    %1388 = vmatpush.xpose.msra.mxu0 0.0
    %1389 = vmatpush.xpose.msra.mxu0 0.0
    %1390 = vmatpush.xpose.msra.mxu0 0.0
    %1391 = vmatpush.xpose.msra.mxu0 0.0
    %1392 = vmatpush.xpose.msra.mxu0 0.0
    %1393 = vmatpush.xpose.msra.mxu0 0.0
    %v1394 = vand.u32 %v1325, 4294901760
    %v1395 = vsub.f32 %v1325, %v1394
    %1396 = vmatpush.xpose.msra.mxu0 %v1395
    %v1397 = vand.u32 %v1322, 4294901760
    %v1398 = vsub.f32 %v1322, %v1397
    %1399 = vmatmul.f32.gmra.mxu0 %v1398
    %v1400 = vpop.f32.mrf.mxu0
    %v1401 = vadd.f32 %v1377, %v1400
    %1402 = vdwg.mxu0
    %1403 = vmatpush.xpose.msra.mxu0 0.0
    %1404 = vmatpush.xpose.msra.mxu0 0.0
    %1405 = vmatpush.xpose.msra.mxu0 0.0
    %1406 = vmatpush.xpose.msra.mxu0 0.0
    %1407 = vmatpush.xpose.msra.mxu0 0.0
    %1408 = vmatpush.xpose.msra.mxu0 0.0
    %1409 = vmatpush.xpose.msra.mxu0 0.0
    %1410 = vmatpush.xpose.msra.mxu0 0.0
    %1411 = vmatpush.xpose.msra.mxu0 0.0
    %1412 = vmatpush.xpose.msra.mxu0 0.0
    %1413 = vmatpush.xpose.msra.mxu0 0.0
    %1414 = vmatpush.xpose.msra.mxu0 0.0
    %1415 = vmatpush.xpose.msra.mxu0 0.0
    %1416 = vmatpush.xpose.msra.mxu0 0.0
    %1417 = vmatpush.xpose.msra.mxu0 0.0
    %v1418 = vand.u32 %v1325, 4294901760
    %1419 = vmatpush.xpose.msra.mxu0 %v1418
    %v1420 = vand.u32 %v1322, 4294901760
    %v1421 = vsub.f32 %v1322, %v1420
    %v1422 = vand.u32 %v1421, 4294901760
    %1423 = vmatmul.f32.gmra.mxu0 %v1422
    %v1424 = vpop.f32.mrf.mxu0
    %v1425 = vadd.f32 %v1401, %v1424
    %1426 = vdwg.mxu0
    %1427 = vmatpush.xpose.msra.mxu0 0.0
    %1428 = vmatpush.xpose.msra.mxu0 0.0
    %1429 = vmatpush.xpose.msra.mxu0 0.0
    %1430 = vmatpush.xpose.msra.mxu0 0.0
    %1431 = vmatpush.xpose.msra.mxu0 0.0
    %1432 = vmatpush.xpose.msra.mxu0 0.0
    %1433 = vmatpush.xpose.msra.mxu0 0.0
    %1434 = vmatpush.xpose.msra.mxu0 0.0
    %1435 = vmatpush.xpose.msra.mxu0 0.0
    %1436 = vmatpush.xpose.msra.mxu0 0.0
    %1437 = vmatpush.xpose.msra.mxu0 0.0
    %1438 = vmatpush.xpose.msra.mxu0 0.0
    %1439 = vmatpush.xpose.msra.mxu0 0.0
    %1440 = vmatpush.xpose.msra.mxu0 0.0
    %1441 = vmatpush.xpose.msra.mxu0 0.0
    %v1442 = vand.u32 %v1325, 4294901760
    %v1443 = vsub.f32 %v1325, %v1442
    %v1444 = vand.u32 %v1443, 4294901760
    %1445 = vmatpush.xpose.msra.mxu0 %v1444
    %v1446 = vand.u32 %v1322, 4294901760
    %1447 = vmatmul.f32.gmra.mxu0 %v1446
    %v1448 = vpop.f32.mrf.mxu0
    %v1449 = vadd.f32 %v1425, %v1448
    %1450 = vdwg.mxu0
    %1451 = vmatpush.xpose.msra.mxu0 0.0
    %1452 = vmatpush.xpose.msra.mxu0 0.0
    %1453 = vmatpush.xpose.msra.mxu0 0.0
    %1454 = vmatpush.xpose.msra.mxu0 0.0
    %1455 = vmatpush.xpose.msra.mxu0 0.0
    %1456 = vmatpush.xpose.msra.mxu0 0.0
    %1457 = vmatpush.xpose.msra.mxu0 0.0
    %1458 = vmatpush.xpose.msra.mxu0 0.0
    %1459 = vmatpush.xpose.msra.mxu0 0.0
    %1460 = vmatpush.xpose.msra.mxu0 0.0
    %1461 = vmatpush.xpose.msra.mxu0 0.0
    %1462 = vmatpush.xpose.msra.mxu0 0.0
    %1463 = vmatpush.xpose.msra.mxu0 0.0
    %1464 = vmatpush.xpose.msra.mxu0 0.0
    %1465 = vmatpush.xpose.msra.mxu0 0.0
    %v1466 = vand.u32 %v1325, 4294901760
    %1467 = vmatpush.xpose.msra.mxu0 %v1466
    %v1468 = vand.u32 %v1322, 4294901760
    %1469 = vmatmul.f32.gmra.mxu0 %v1468
    %v1470 = vpop.f32.mrf.mxu0
    %v1471 = vadd.f32 %v1449, %v1470
    %1472 = vdwg.mxu0
    %v1474 = vsel %vm1168, %v781, 0
    %v1477 = vsel %vm1168, %v973, 0
    %1479 = vmatpush.xpose.msra.mxu0 0.0
    %1480 = vmatpush.xpose.msra.mxu0 0.0
    %1481 = vmatpush.xpose.msra.mxu0 0.0
    %1482 = vmatpush.xpose.msra.mxu0 0.0
    %1483 = vmatpush.xpose.msra.mxu0 0.0
    %1484 = vmatpush.xpose.msra.mxu0 0.0
    %1485 = vmatpush.xpose.msra.mxu0 0.0
    %1486 = vmatpush.xpose.msra.mxu0 0.0
    %1487 = vmatpush.xpose.msra.mxu0 0.0
    %1488 = vmatpush.xpose.msra.mxu0 0.0
    %1489 = vmatpush.xpose.msra.mxu0 0.0
    %1490 = vmatpush.xpose.msra.mxu0 0.0
    %1491 = vmatpush.xpose.msra.mxu0 0.0
    %1492 = vmatpush.xpose.msra.mxu0 0.0
    %1493 = vmatpush.xpose.msra.mxu0 0.0
    %v1494 = vand.u32 %v1477, 4294901760
    %1495 = vmatpush.xpose.msra.mxu0 %v1494
    %v1496 = vand.u32 %v1474, 4294901760
    %v1497 = vsub.f32 %v1474, %v1496
    %v1498 = vand.u32 %v1497, 4294901760
    %v1499 = vsub.f32 %v1497, %v1498
    %v1500 = vand.u32 %v1499, 4294901760
    %1501 = vmatmul.f32.gmra.mxu0 %v1500
    %v1502 = vpop.f32.mrf.mxu0
    %v1503 = vadd.f32 0.0, %v1502
    %1504 = vdwg.mxu0
    %1505 = vmatpush.xpose.msra.mxu0 0.0
    %1506 = vmatpush.xpose.msra.mxu0 0.0
    %1507 = vmatpush.xpose.msra.mxu0 0.0
    %1508 = vmatpush.xpose.msra.mxu0 0.0
    %1509 = vmatpush.xpose.msra.mxu0 0.0
    %1510 = vmatpush.xpose.msra.mxu0 0.0
    %1511 = vmatpush.xpose.msra.mxu0 0.0
    %1512 = vmatpush.xpose.msra.mxu0 0.0
    %1513 = vmatpush.xpose.msra.mxu0 0.0
    %1514 = vmatpush.xpose.msra.mxu0 0.0
    %1515 = vmatpush.xpose.msra.mxu0 0.0
    %1516 = vmatpush.xpose.msra.mxu0 0.0
    %1517 = vmatpush.xpose.msra.mxu0 0.0
    %1518 = vmatpush.xpose.msra.mxu0 0.0
    %1519 = vmatpush.xpose.msra.mxu0 0.0
    %v1520 = vand.u32 %v1477, 4294901760
    %v1521 = vsub.f32 %v1477, %v1520
    %v1522 = vand.u32 %v1521, 4294901760
    %v1523 = vsub.f32 %v1521, %v1522
    %v1524 = vand.u32 %v1523, 4294901760
    %1525 = vmatpush.xpose.msra.mxu0 %v1524
    %v1526 = vand.u32 %v1474, 4294901760
    %1527 = vmatmul.f32.gmra.mxu0 %v1526
    %v1528 = vpop.f32.mrf.mxu0
    %v1529 = vadd.f32 %v1503, %v1528
    %1530 = vdwg.mxu0
    %1531 = vmatpush.xpose.msra.mxu0 0.0
    %1532 = vmatpush.xpose.msra.mxu0 0.0
    %1533 = vmatpush.xpose.msra.mxu0 0.0
    %1534 = vmatpush.xpose.msra.mxu0 0.0
    %1535 = vmatpush.xpose.msra.mxu0 0.0
    %1536 = vmatpush.xpose.msra.mxu0 0.0
    %1537 = vmatpush.xpose.msra.mxu0 0.0
    %1538 = vmatpush.xpose.msra.mxu0 0.0
    %1539 = vmatpush.xpose.msra.mxu0 0.0
    %1540 = vmatpush.xpose.msra.mxu0 0.0
    %1541 = vmatpush.xpose.msra.mxu0 0.0
    %1542 = vmatpush.xpose.msra.mxu0 0.0
    %1543 = vmatpush.xpose.msra.mxu0 0.0
    %1544 = vmatpush.xpose.msra.mxu0 0.0
    %1545 = vmatpush.xpose.msra.mxu0 0.0
    %v1546 = vand.u32 %v1477, 4294901760
    %v1547 = vsub.f32 %v1477, %v1546
    %1548 = vmatpush.xpose.msra.mxu0 %v1547
    %v1549 = vand.u32 %v1474, 4294901760
    %v1550 = vsub.f32 %v1474, %v1549
    %1551 = vmatmul.f32.gmra.mxu0 %v1550
    %v1552 = vpop.f32.mrf.mxu0
    %v1553 = vadd.f32 %v1529, %v1552
    %1554 = vdwg.mxu0
    %1555 = vmatpush.xpose.msra.mxu0 0.0
    %1556 = vmatpush.xpose.msra.mxu0 0.0
    %1557 = vmatpush.xpose.msra.mxu0 0.0
    %1558 = vmatpush.xpose.msra.mxu0 0.0
    %1559 = vmatpush.xpose.msra.mxu0 0.0
    %1560 = vmatpush.xpose.msra.mxu0 0.0
    %1561 = vmatpush.xpose.msra.mxu0 0.0
    %1562 = vmatpush.xpose.msra.mxu0 0.0
    %1563 = vmatpush.xpose.msra.mxu0 0.0
    %1564 = vmatpush.xpose.msra.mxu0 0.0
    %1565 = vmatpush.xpose.msra.mxu0 0.0
    %1566 = vmatpush.xpose.msra.mxu0 0.0
    %1567 = vmatpush.xpose.msra.mxu0 0.0
    %1568 = vmatpush.xpose.msra.mxu0 0.0
    %1569 = vmatpush.xpose.msra.mxu0 0.0
    %v1570 = vand.u32 %v1477, 4294901760
    %1571 = vmatpush.xpose.msra.mxu0 %v1570
    %v1572 = vand.u32 %v1474, 4294901760
    %v1573 = vsub.f32 %v1474, %v1572
    %v1574 = vand.u32 %v1573, 4294901760
    %1575 = vmatmul.f32.gmra.mxu0 %v1574
    %v1576 = vpop.f32.mrf.mxu0
    %v1577 = vadd.f32 %v1553, %v1576
    %1578 = vdwg.mxu0
    %1579 = vmatpush.xpose.msra.mxu0 0.0
    %1580 = vmatpush.xpose.msra.mxu0 0.0
    %1581 = vmatpush.xpose.msra.mxu0 0.0
    %1582 = vmatpush.xpose.msra.mxu0 0.0
    %1583 = vmatpush.xpose.msra.mxu0 0.0
    %1584 = vmatpush.xpose.msra.mxu0 0.0
    %1585 = vmatpush.xpose.msra.mxu0 0.0
    %1586 = vmatpush.xpose.msra.mxu0 0.0
    %1587 = vmatpush.xpose.msra.mxu0 0.0
    %1588 = vmatpush.xpose.msra.mxu0 0.0
    %1589 = vmatpush.xpose.msra.mxu0 0.0
    %1590 = vmatpush.xpose.msra.mxu0 0.0
    %1591 = vmatpush.xpose.msra.mxu0 0.0
    %1592 = vmatpush.xpose.msra.mxu0 0.0
    %1593 = vmatpush.xpose.msra.mxu0 0.0
    %v1594 = vand.u32 %v1477, 4294901760
    %v1595 = vsub.f32 %v1477, %v1594
    %v1596 = vand.u32 %v1595, 4294901760
    %1597 = vmatpush.xpose.msra.mxu0 %v1596
    %v1598 = vand.u32 %v1474, 4294901760
    %1599 = vmatmul.f32.gmra.mxu0 %v1598
    %v1600 = vpop.f32.mrf.mxu0
    %v1601 = vadd.f32 %v1577, %v1600
    %1602 = vdwg.mxu0
    %1603 = vmatpush.xpose.msra.mxu0 0.0
    %1604 = vmatpush.xpose.msra.mxu0 0.0
    %1605 = vmatpush.xpose.msra.mxu0 0.0
    %1606 = vmatpush.xpose.msra.mxu0 0.0
    %1607 = vmatpush.xpose.msra.mxu0 0.0
    %1608 = vmatpush.xpose.msra.mxu0 0.0
    %1609 = vmatpush.xpose.msra.mxu0 0.0
    %1610 = vmatpush.xpose.msra.mxu0 0.0
    %1611 = vmatpush.xpose.msra.mxu0 0.0
    %1612 = vmatpush.xpose.msra.mxu0 0.0
    %1613 = vmatpush.xpose.msra.mxu0 0.0
    %1614 = vmatpush.xpose.msra.mxu0 0.0
    %1615 = vmatpush.xpose.msra.mxu0 0.0
    %1616 = vmatpush.xpose.msra.mxu0 0.0
    %1617 = vmatpush.xpose.msra.mxu0 0.0
    %v1618 = vand.u32 %v1477, 4294901760
    %1619 = vmatpush.xpose.msra.mxu0 %v1618
    %v1620 = vand.u32 %v1474, 4294901760
    %1621 = vmatmul.f32.gmra.mxu0 %v1620
    %v1622 = vpop.f32.mrf.mxu0
    %v1623 = vadd.f32 %v1601, %v1622
    %1624 = vdwg.mxu0
    %v1626 = vsel %vm1168, %v783, 0
    %v1629 = vsel %vm1168, %v975, 0
    %1631 = vmatpush.xpose.msra.mxu0 0.0
    %1632 = vmatpush.xpose.msra.mxu0 0.0
    %1633 = vmatpush.xpose.msra.mxu0 0.0
    %1634 = vmatpush.xpose.msra.mxu0 0.0
    %1635 = vmatpush.xpose.msra.mxu0 0.0
    %1636 = vmatpush.xpose.msra.mxu0 0.0
    %1637 = vmatpush.xpose.msra.mxu0 0.0
    %1638 = vmatpush.xpose.msra.mxu0 0.0
    %1639 = vmatpush.xpose.msra.mxu0 0.0
    %1640 = vmatpush.xpose.msra.mxu0 0.0
    %1641 = vmatpush.xpose.msra.mxu0 0.0
    %1642 = vmatpush.xpose.msra.mxu0 0.0
    %1643 = vmatpush.xpose.msra.mxu0 0.0
    %1644 = vmatpush.xpose.msra.mxu0 0.0
    %1645 = vmatpush.xpose.msra.mxu0 0.0
    %v1646 = vand.u32 %v1629, 4294901760
    %1647 = vmatpush.xpose.msra.mxu0 %v1646
    %v1648 = vand.u32 %v1626, 4294901760
    %v1649 = vsub.f32 %v1626, %v1648
    %v1650 = vand.u32 %v1649, 4294901760
    %v1651 = vsub.f32 %v1649, %v1650
    %v1652 = vand.u32 %v1651, 4294901760
    %1653 = vmatmul.f32.gmra.mxu0 %v1652
    %v1654 = vpop.f32.mrf.mxu0
    %v1655 = vadd.f32 0.0, %v1654
    %1656 = vdwg.mxu0
    %1657 = vmatpush.xpose.msra.mxu0 0.0
    %1658 = vmatpush.xpose.msra.mxu0 0.0
    %1659 = vmatpush.xpose.msra.mxu0 0.0
    %1660 = vmatpush.xpose.msra.mxu0 0.0
    %1661 = vmatpush.xpose.msra.mxu0 0.0
    %1662 = vmatpush.xpose.msra.mxu0 0.0
    %1663 = vmatpush.xpose.msra.mxu0 0.0
    %1664 = vmatpush.xpose.msra.mxu0 0.0
    %1665 = vmatpush.xpose.msra.mxu0 0.0
    %1666 = vmatpush.xpose.msra.mxu0 0.0
    %1667 = vmatpush.xpose.msra.mxu0 0.0
    %1668 = vmatpush.xpose.msra.mxu0 0.0
    %1669 = vmatpush.xpose.msra.mxu0 0.0
    %1670 = vmatpush.xpose.msra.mxu0 0.0
    %1671 = vmatpush.xpose.msra.mxu0 0.0
    %v1672 = vand.u32 %v1629, 4294901760
    %v1673 = vsub.f32 %v1629, %v1672
    %v1674 = vand.u32 %v1673, 4294901760
    %v1675 = vsub.f32 %v1673, %v1674
    %v1676 = vand.u32 %v1675, 4294901760
    %1677 = vmatpush.xpose.msra.mxu0 %v1676
    %v1678 = vand.u32 %v1626, 4294901760
    %1679 = vmatmul.f32.gmra.mxu0 %v1678
    %v1680 = vpop.f32.mrf.mxu0
    %v1681 = vadd.f32 %v1655, %v1680
    %1682 = vdwg.mxu0
    %1683 = vmatpush.xpose.msra.mxu0 0.0
    %1684 = vmatpush.xpose.msra.mxu0 0.0
    %1685 = vmatpush.xpose.msra.mxu0 0.0
    %1686 = vmatpush.xpose.msra.mxu0 0.0
    %1687 = vmatpush.xpose.msra.mxu0 0.0
    %1688 = vmatpush.xpose.msra.mxu0 0.0
    %1689 = vmatpush.xpose.msra.mxu0 0.0
    %1690 = vmatpush.xpose.msra.mxu0 0.0
    %1691 = vmatpush.xpose.msra.mxu0 0.0
    %1692 = vmatpush.xpose.msra.mxu0 0.0
    %1693 = vmatpush.xpose.msra.mxu0 0.0
    %1694 = vmatpush.xpose.msra.mxu0 0.0
    %1695 = vmatpush.xpose.msra.mxu0 0.0
    %1696 = vmatpush.xpose.msra.mxu0 0.0
    %1697 = vmatpush.xpose.msra.mxu0 0.0
    %v1698 = vand.u32 %v1629, 4294901760
    %v1699 = vsub.f32 %v1629, %v1698
    %1700 = vmatpush.xpose.msra.mxu0 %v1699
    %v1701 = vand.u32 %v1626, 4294901760
    %v1702 = vsub.f32 %v1626, %v1701
    %1703 = vmatmul.f32.gmra.mxu0 %v1702
    %v1704 = vpop.f32.mrf.mxu0
    %v1705 = vadd.f32 %v1681, %v1704
    %1706 = vdwg.mxu0
    %1707 = vmatpush.xpose.msra.mxu0 0.0
    %1708 = vmatpush.xpose.msra.mxu0 0.0
    %1709 = vmatpush.xpose.msra.mxu0 0.0
    %1710 = vmatpush.xpose.msra.mxu0 0.0
    %1711 = vmatpush.xpose.msra.mxu0 0.0
    %1712 = vmatpush.xpose.msra.mxu0 0.0
    %1713 = vmatpush.xpose.msra.mxu0 0.0
    %1714 = vmatpush.xpose.msra.mxu0 0.0
    %1715 = vmatpush.xpose.msra.mxu0 0.0
    %1716 = vmatpush.xpose.msra.mxu0 0.0
    %1717 = vmatpush.xpose.msra.mxu0 0.0
    %1718 = vmatpush.xpose.msra.mxu0 0.0
    %1719 = vmatpush.xpose.msra.mxu0 0.0
    %1720 = vmatpush.xpose.msra.mxu0 0.0
    %1721 = vmatpush.xpose.msra.mxu0 0.0
    %v1722 = vand.u32 %v1629, 4294901760
    %1723 = vmatpush.xpose.msra.mxu0 %v1722
    %v1724 = vand.u32 %v1626, 4294901760
    %v1725 = vsub.f32 %v1626, %v1724
    %v1726 = vand.u32 %v1725, 4294901760
    %1727 = vmatmul.f32.gmra.mxu0 %v1726
    %v1728 = vpop.f32.mrf.mxu0
    %v1729 = vadd.f32 %v1705, %v1728
    %1730 = vdwg.mxu0
    %1731 = vmatpush.xpose.msra.mxu0 0.0
    %1732 = vmatpush.xpose.msra.mxu0 0.0
    %1733 = vmatpush.xpose.msra.mxu0 0.0
    %1734 = vmatpush.xpose.msra.mxu0 0.0
    %1735 = vmatpush.xpose.msra.mxu0 0.0
    %1736 = vmatpush.xpose.msra.mxu0 0.0
    %1737 = vmatpush.xpose.msra.mxu0 0.0
    %1738 = vmatpush.xpose.msra.mxu0 0.0
    %1739 = vmatpush.xpose.msra.mxu0 0.0
    %1740 = vmatpush.xpose.msra.mxu0 0.0
    %1741 = vmatpush.xpose.msra.mxu0 0.0
    %1742 = vmatpush.xpose.msra.mxu0 0.0
    %1743 = vmatpush.xpose.msra.mxu0 0.0
    %1744 = vmatpush.xpose.msra.mxu0 0.0
    %1745 = vmatpush.xpose.msra.mxu0 0.0
    %v1746 = vand.u32 %v1629, 4294901760
    %v1747 = vsub.f32 %v1629, %v1746
    %v1748 = vand.u32 %v1747, 4294901760
    %1749 = vmatpush.xpose.msra.mxu0 %v1748
    %v1750 = vand.u32 %v1626, 4294901760
    %1751 = vmatmul.f32.gmra.mxu0 %v1750
    %v1752 = vpop.f32.mrf.mxu0
    %v1753 = vadd.f32 %v1729, %v1752
    %1754 = vdwg.mxu0
    %1755 = vmatpush.xpose.msra.mxu0 0.0
    %1756 = vmatpush.xpose.msra.mxu0 0.0
    %1757 = vmatpush.xpose.msra.mxu0 0.0
    %1758 = vmatpush.xpose.msra.mxu0 0.0
    %1759 = vmatpush.xpose.msra.mxu0 0.0
    %1760 = vmatpush.xpose.msra.mxu0 0.0
    %1761 = vmatpush.xpose.msra.mxu0 0.0
    %1762 = vmatpush.xpose.msra.mxu0 0.0
    %1763 = vmatpush.xpose.msra.mxu0 0.0
    %1764 = vmatpush.xpose.msra.mxu0 0.0
    %1765 = vmatpush.xpose.msra.mxu0 0.0
    %1766 = vmatpush.xpose.msra.mxu0 0.0
    %1767 = vmatpush.xpose.msra.mxu0 0.0
    %1768 = vmatpush.xpose.msra.mxu0 0.0
    %1769 = vmatpush.xpose.msra.mxu0 0.0
    %v1770 = vand.u32 %v1629, 4294901760
    %1771 = vmatpush.xpose.msra.mxu0 %v1770
    %v1772 = vand.u32 %v1626, 4294901760
    %1773 = vmatmul.f32.gmra.mxu0 %v1772
    %v1774 = vpop.f32.mrf.mxu0
    %v1775 = vadd.f32 %v1753, %v1774
    %1776 = vdwg.mxu0
    %v1777 = vadd.f32 %v1319, %v140
    %v1778 = vadd.f32 %v1471, %v140
    %v1779 = vadd.f32 %v1623, %v141
    %v1780 = vadd.f32 %v1775, %v141
    %v1781 = vsel %vm1168, %v1777, -inf
    %1782 = vmax.xlane.f32.xlu0 %v1781
    %v1783 = vpop.xlane.xlu0 %1782
    %v1784 = vsel %vm1168, %v1778, -inf
    %1785 = vmax.xlane.f32.xlu0 %v1784
    %v1786 = vpop.xlane.xlu0 %1785
    %v1787 = vsel %vm1168, %v1779, -inf
    %1788 = vmax.xlane.f32.xlu0 %v1787
    %v1789 = vpop.xlane.xlu0 %1788
    %v1790 = vsel %vm1168, %v1780, -inf
    %1791 = vmax.xlane.f32.xlu0 %v1790
    %v1792 = vpop.xlane.xlu0 %1791
    %v1793 = vsub.f32 %v1777, %v1783
    %v1794 = vsub.f32 %v1778, %v1786
    %v1795 = vsub.f32 %v1779, %v1789
    %v1796 = vsub.f32 %v1780, %v1792
    %v1797 = vmul.f32 %v1793, 1.442695
    %v1798 = vpow.pop %v1797
    %v1799 = vmul.f32 %v1794, 1.442695
    %v1800 = vpow.pop %v1799
    %v1801 = vmul.f32 %v1795, 1.442695
    %v1802 = vpow.pop %v1801
    %v1803 = vmul.f32 %v1796, 1.442695
    %v1804 = vpow.pop %v1803
    %v1805 = vsel %vm1168, %v1798, 0.0
    %1806 = vadd.xlane.f32.xlu0 %v1805
    %v1807 = vpop.xlane.xlu0 %1806
    %v1808 = vsel %vm1168, %v1800, 0.0
    %1809 = vadd.xlane.f32.xlu0 %v1808
    %v1810 = vpop.xlane.xlu0 %1809
    %v1811 = vsel %vm1168, %v1802, 0.0
    %1812 = vadd.xlane.f32.xlu0 %v1811
    %v1813 = vpop.xlane.xlu0 %1812
    %v1814 = vsel %vm1168, %v1804, 0.0
    %1815 = vadd.xlane.f32.xlu0 %v1814
    %v1816 = vpop.xlane.xlu0 %1815
    %v1817 = vrcp.pop %v1807
    %v1818 = vmul.f32 %v1807, %v1817
    %v1819 = vsub.f32 1.0, %v1818
    %v1820 = vmul.f32 %v1817, %v1819
    %v1821 = vadd.f32 %v1817, %v1820
    %vm1822 = vweird.f32 %v1807
    %vm1823 = vweird.f32 %v1817
    %vm1824 = vmor %vm1822, %vm1823
    %v1825 = vsel %vm1824, %v1817, %v1821
    %v1826 = vand.u32 2147483647, %v1807
    %vm1827 = vcmp.eq.f32.partialorder %v1826, 8.507059e+37
    %v1828 = vand.u32 %v1807, 2147483648
    %v1829 = vor.u32 1.1754944e-38, %v1828
    %v1830 = vsel %vm1827, %v1829, %v1825
    %v1831 = vrcp.pop %v1810
    %v1832 = vmul.f32 %v1810, %v1831
    %v1833 = vsub.f32 1.0, %v1832
    %v1834 = vmul.f32 %v1831, %v1833
    %v1835 = vadd.f32 %v1831, %v1834
    %vm1836 = vweird.f32 %v1810
    %vm1837 = vweird.f32 %v1831
    %vm1838 = vmor %vm1836, %vm1837
    %v1839 = vsel %vm1838, %v1831, %v1835
    %v1840 = vand.u32 2147483647, %v1810
    %vm1841 = vcmp.eq.f32.partialorder %v1840, 8.507059e+37
    %v1842 = vand.u32 %v1810, 2147483648
    %v1843 = vor.u32 1.1754944e-38, %v1842
    %v1844 = vsel %vm1841, %v1843, %v1839
    %v1845 = vrcp.pop %v1813
    %v1846 = vmul.f32 %v1813, %v1845
    %v1847 = vsub.f32 1.0, %v1846
    %v1848 = vmul.f32 %v1845, %v1847
    %v1849 = vadd.f32 %v1845, %v1848
    %vm1850 = vweird.f32 %v1813
    %vm1851 = vweird.f32 %v1845
    %vm1852 = vmor %vm1850, %vm1851
    %v1853 = vsel %vm1852, %v1845, %v1849
    %v1854 = vand.u32 2147483647, %v1813
    %vm1855 = vcmp.eq.f32.partialorder %v1854, 8.507059e+37
    %v1856 = vand.u32 %v1813, 2147483648
    %v1857 = vor.u32 1.1754944e-38, %v1856
    %v1858 = vsel %vm1855, %v1857, %v1853
    %v1859 = vrcp.pop %v1816
    %v1860 = vmul.f32 %v1816, %v1859
    %v1861 = vsub.f32 1.0, %v1860
    %v1862 = vmul.f32 %v1859, %v1861
    %v1863 = vadd.f32 %v1859, %v1862
    %vm1864 = vweird.f32 %v1816
    %vm1865 = vweird.f32 %v1859
    %vm1866 = vmor %vm1864, %vm1865
    %v1867 = vsel %vm1866, %v1859, %v1863
    %v1868 = vand.u32 2147483647, %v1816
    %vm1869 = vcmp.eq.f32.partialorder %v1868, 8.507059e+37
    %v1870 = vand.u32 %v1816, 2147483648
    %v1871 = vor.u32 1.1754944e-38, %v1870
    %v1872 = vsel %vm1869, %v1871, %v1867
    %v1873 = vmul.f32 %v1798, %v1830
    %v1874 = vmul.f32 %v1800, %v1844
    %v1875 = vmul.f32 %v1802, %v1858
    %v1876 = vmul.f32 %v1804, %v1872
    %v1878 = vsel %vm1168, %v1873, 0
    %1880 = vmatpush.msra.mxu0 0.0
    %1881 = vmatpush.msra.mxu0 0.0
    %1882 = vmatpush.msra.mxu0 0.0
    %1883 = vmatpush.msra.mxu0 0.0
    %1884 = vmatpush.msra.mxu0 0.0
    %1885 = vmatpush.msra.mxu0 0.0
    %1886 = vmatpush.msra.mxu0 0.0
    %1887 = vmatpush.msra.mxu0 0.0
    %1888 = vmatpush.msra.mxu0 0.0
    %1889 = vmatpush.msra.mxu0 0.0
    %1890 = vmatpush.msra.mxu0 0.0
    %1891 = vmatpush.msra.mxu0 0.0
    %1892 = vmatpush.msra.mxu0 0.0
    %1893 = vmatpush.msra.mxu0 0.0
    %1894 = vmatpush.msra.mxu0 0.0
    %v1895 = vand.u32 %v1127, 4294901760
    %1896 = vmatpush.msra.mxu0 %v1895
    %v1897 = vand.u32 %v1878, 4294901760
    %v1898 = vsub.f32 %v1878, %v1897
    %v1899 = vand.u32 %v1898, 4294901760
    %v1900 = vsub.f32 %v1898, %v1899
    %v1901 = vand.u32 %v1900, 4294901760
    %1902 = vmatmul.f32.gmra.mxu0 %v1901
    %v1903 = vpop.f32.mrf.mxu0
    %v1904 = vadd.f32 0.0, %v1903
    %1905 = vdwg.mxu0
    %1906 = vmatpush.msra.mxu0 0.0
    %1907 = vmatpush.msra.mxu0 0.0
    %1908 = vmatpush.msra.mxu0 0.0
    %1909 = vmatpush.msra.mxu0 0.0
    %1910 = vmatpush.msra.mxu0 0.0
    %1911 = vmatpush.msra.mxu0 0.0
    %1912 = vmatpush.msra.mxu0 0.0
    %1913 = vmatpush.msra.mxu0 0.0
    %1914 = vmatpush.msra.mxu0 0.0
    %1915 = vmatpush.msra.mxu0 0.0
    %1916 = vmatpush.msra.mxu0 0.0
    %1917 = vmatpush.msra.mxu0 0.0
    %1918 = vmatpush.msra.mxu0 0.0
    %1919 = vmatpush.msra.mxu0 0.0
    %1920 = vmatpush.msra.mxu0 0.0
    %v1921 = vand.u32 %v1127, 4294901760
    %v1922 = vsub.f32 %v1127, %v1921
    %v1923 = vand.u32 %v1922, 4294901760
    %v1924 = vsub.f32 %v1922, %v1923
    %v1925 = vand.u32 %v1924, 4294901760
    %1926 = vmatpush.msra.mxu0 %v1925
    %v1927 = vand.u32 %v1878, 4294901760
    %1928 = vmatmul.f32.gmra.mxu0 %v1927
    %v1929 = vpop.f32.mrf.mxu0
    %v1930 = vadd.f32 %v1904, %v1929
    %1931 = vdwg.mxu0
    %1932 = vmatpush.msra.mxu0 0.0
    %1933 = vmatpush.msra.mxu0 0.0
    %1934 = vmatpush.msra.mxu0 0.0
    %1935 = vmatpush.msra.mxu0 0.0
    %1936 = vmatpush.msra.mxu0 0.0
    %1937 = vmatpush.msra.mxu0 0.0
    %1938 = vmatpush.msra.mxu0 0.0
    %1939 = vmatpush.msra.mxu0 0.0
    %1940 = vmatpush.msra.mxu0 0.0
    %1941 = vmatpush.msra.mxu0 0.0
    %1942 = vmatpush.msra.mxu0 0.0
    %1943 = vmatpush.msra.mxu0 0.0
    %1944 = vmatpush.msra.mxu0 0.0
    %1945 = vmatpush.msra.mxu0 0.0
    %1946 = vmatpush.msra.mxu0 0.0
    %v1947 = vand.u32 %v1127, 4294901760
    %v1948 = vsub.f32 %v1127, %v1947
    %1949 = vmatpush.msra.mxu0 %v1948
    %v1950 = vand.u32 %v1878, 4294901760
    %v1951 = vsub.f32 %v1878, %v1950
    %1952 = vmatmul.f32.gmra.mxu0 %v1951
    %v1953 = vpop.f32.mrf.mxu0
    %v1954 = vadd.f32 %v1930, %v1953
    %1955 = vdwg.mxu0
    %1956 = vmatpush.msra.mxu0 0.0
    %1957 = vmatpush.msra.mxu0 0.0
    %1958 = vmatpush.msra.mxu0 0.0
    %1959 = vmatpush.msra.mxu0 0.0
    %1960 = vmatpush.msra.mxu0 0.0
    %1961 = vmatpush.msra.mxu0 0.0
    %1962 = vmatpush.msra.mxu0 0.0
    %1963 = vmatpush.msra.mxu0 0.0
    %1964 = vmatpush.msra.mxu0 0.0
    %1965 = vmatpush.msra.mxu0 0.0
    %1966 = vmatpush.msra.mxu0 0.0
    %1967 = vmatpush.msra.mxu0 0.0
    %1968 = vmatpush.msra.mxu0 0.0
    %1969 = vmatpush.msra.mxu0 0.0
    %1970 = vmatpush.msra.mxu0 0.0
    %v1971 = vand.u32 %v1127, 4294901760
    %1972 = vmatpush.msra.mxu0 %v1971
    %v1973 = vand.u32 %v1878, 4294901760
    %v1974 = vsub.f32 %v1878, %v1973
    %v1975 = vand.u32 %v1974, 4294901760
    %1976 = vmatmul.f32.gmra.mxu0 %v1975
    %v1977 = vpop.f32.mrf.mxu0
    %v1978 = vadd.f32 %v1954, %v1977
    %1979 = vdwg.mxu0
    %1980 = vmatpush.msra.mxu0 0.0
    %1981 = vmatpush.msra.mxu0 0.0
    %1982 = vmatpush.msra.mxu0 0.0
    %1983 = vmatpush.msra.mxu0 0.0
    %1984 = vmatpush.msra.mxu0 0.0
    %1985 = vmatpush.msra.mxu0 0.0
    %1986 = vmatpush.msra.mxu0 0.0
    %1987 = vmatpush.msra.mxu0 0.0
    %1988 = vmatpush.msra.mxu0 0.0
    %1989 = vmatpush.msra.mxu0 0.0
    %1990 = vmatpush.msra.mxu0 0.0
    %1991 = vmatpush.msra.mxu0 0.0
    %1992 = vmatpush.msra.mxu0 0.0
    %1993 = vmatpush.msra.mxu0 0.0
    %1994 = vmatpush.msra.mxu0 0.0
    %v1995 = vand.u32 %v1127, 4294901760
    %v1996 = vsub.f32 %v1127, %v1995
    %v1997 = vand.u32 %v1996, 4294901760
    %1998 = vmatpush.msra.mxu0 %v1997
    %v1999 = vand.u32 %v1878, 4294901760
    %2000 = vmatmul.f32.gmra.mxu0 %v1999
    %v2001 = vpop.f32.mrf.mxu0
    %v2002 = vadd.f32 %v1978, %v2001
    %2003 = vdwg.mxu0
    %2004 = vmatpush.msra.mxu0 0.0
    %2005 = vmatpush.msra.mxu0 0.0
    %2006 = vmatpush.msra.mxu0 0.0
    %2007 = vmatpush.msra.mxu0 0.0
    %2008 = vmatpush.msra.mxu0 0.0
    %2009 = vmatpush.msra.mxu0 0.0
    %2010 = vmatpush.msra.mxu0 0.0
    %2011 = vmatpush.msra.mxu0 0.0
    %2012 = vmatpush.msra.mxu0 0.0
    %2013 = vmatpush.msra.mxu0 0.0
    %2014 = vmatpush.msra.mxu0 0.0
    %2015 = vmatpush.msra.mxu0 0.0
    %2016 = vmatpush.msra.mxu0 0.0
    %2017 = vmatpush.msra.mxu0 0.0
    %2018 = vmatpush.msra.mxu0 0.0
    %v2019 = vand.u32 %v1127, 4294901760
    %2020 = vmatpush.msra.mxu0 %v2019
    %v2021 = vand.u32 %v1878, 4294901760
    %2022 = vmatmul.f32.gmra.mxu0 %v2021
    %v2023 = vpop.f32.mrf.mxu0
    %v2024 = vadd.f32 %v2002, %v2023
    %2025 = vdwg.mxu0
    %v2027 = vsel %vm1168, %v1874, 0
    %2029 = vmatpush.msra.mxu0 0.0
    %2030 = vmatpush.msra.mxu0 0.0
    %2031 = vmatpush.msra.mxu0 0.0
    %2032 = vmatpush.msra.mxu0 0.0
    %2033 = vmatpush.msra.mxu0 0.0
    %2034 = vmatpush.msra.mxu0 0.0
    %2035 = vmatpush.msra.mxu0 0.0
    %2036 = vmatpush.msra.mxu0 0.0
    %2037 = vmatpush.msra.mxu0 0.0
    %2038 = vmatpush.msra.mxu0 0.0
    %2039 = vmatpush.msra.mxu0 0.0
    %2040 = vmatpush.msra.mxu0 0.0
    %2041 = vmatpush.msra.mxu0 0.0
    %2042 = vmatpush.msra.mxu0 0.0
    %2043 = vmatpush.msra.mxu0 0.0
    %v2044 = vand.u32 %v1129, 4294901760
    %2045 = vmatpush.msra.mxu0 %v2044
    %v2046 = vand.u32 %v2027, 4294901760
    %v2047 = vsub.f32 %v2027, %v2046
    %v2048 = vand.u32 %v2047, 4294901760
    %v2049 = vsub.f32 %v2047, %v2048
    %v2050 = vand.u32 %v2049, 4294901760
    %2051 = vmatmul.f32.gmra.mxu0 %v2050
    %v2052 = vpop.f32.mrf.mxu0
    %v2053 = vadd.f32 0.0, %v2052
    %2054 = vdwg.mxu0
    %2055 = vmatpush.msra.mxu0 0.0
    %2056 = vmatpush.msra.mxu0 0.0
    %2057 = vmatpush.msra.mxu0 0.0
    %2058 = vmatpush.msra.mxu0 0.0
    %2059 = vmatpush.msra.mxu0 0.0
    %2060 = vmatpush.msra.mxu0 0.0
    %2061 = vmatpush.msra.mxu0 0.0
    %2062 = vmatpush.msra.mxu0 0.0
    %2063 = vmatpush.msra.mxu0 0.0
    %2064 = vmatpush.msra.mxu0 0.0
    %2065 = vmatpush.msra.mxu0 0.0
    %2066 = vmatpush.msra.mxu0 0.0
    %2067 = vmatpush.msra.mxu0 0.0
    %2068 = vmatpush.msra.mxu0 0.0
    %2069 = vmatpush.msra.mxu0 0.0
    %v2070 = vand.u32 %v1129, 4294901760
    %v2071 = vsub.f32 %v1129, %v2070
    %v2072 = vand.u32 %v2071, 4294901760
    %v2073 = vsub.f32 %v2071, %v2072
    %v2074 = vand.u32 %v2073, 4294901760
    %2075 = vmatpush.msra.mxu0 %v2074
    %v2076 = vand.u32 %v2027, 4294901760
    %2077 = vmatmul.f32.gmra.mxu0 %v2076
    %v2078 = vpop.f32.mrf.mxu0
    %v2079 = vadd.f32 %v2053, %v2078
    %2080 = vdwg.mxu0
    %2081 = vmatpush.msra.mxu0 0.0
    %2082 = vmatpush.msra.mxu0 0.0
    %2083 = vmatpush.msra.mxu0 0.0
    %2084 = vmatpush.msra.mxu0 0.0
    %2085 = vmatpush.msra.mxu0 0.0
    %2086 = vmatpush.msra.mxu0 0.0
    %2087 = vmatpush.msra.mxu0 0.0
    %2088 = vmatpush.msra.mxu0 0.0
    %2089 = vmatpush.msra.mxu0 0.0
    %2090 = vmatpush.msra.mxu0 0.0
    %2091 = vmatpush.msra.mxu0 0.0
    %2092 = vmatpush.msra.mxu0 0.0
    %2093 = vmatpush.msra.mxu0 0.0
    %2094 = vmatpush.msra.mxu0 0.0
    %2095 = vmatpush.msra.mxu0 0.0
    %v2096 = vand.u32 %v1129, 4294901760
    %v2097 = vsub.f32 %v1129, %v2096
    %2098 = vmatpush.msra.mxu0 %v2097
    %v2099 = vand.u32 %v2027, 4294901760
    %v2100 = vsub.f32 %v2027, %v2099
    %2101 = vmatmul.f32.gmra.mxu0 %v2100
    %v2102 = vpop.f32.mrf.mxu0
    %v2103 = vadd.f32 %v2079, %v2102
    %2104 = vdwg.mxu0
    %2105 = vmatpush.msra.mxu0 0.0
    %2106 = vmatpush.msra.mxu0 0.0
    %2107 = vmatpush.msra.mxu0 0.0
    %2108 = vmatpush.msra.mxu0 0.0
    %2109 = vmatpush.msra.mxu0 0.0
    %2110 = vmatpush.msra.mxu0 0.0
    %2111 = vmatpush.msra.mxu0 0.0
    %2112 = vmatpush.msra.mxu0 0.0
    %2113 = vmatpush.msra.mxu0 0.0
    %2114 = vmatpush.msra.mxu0 0.0
    %2115 = vmatpush.msra.mxu0 0.0
    %2116 = vmatpush.msra.mxu0 0.0
    %2117 = vmatpush.msra.mxu0 0.0
    %2118 = vmatpush.msra.mxu0 0.0
    %2119 = vmatpush.msra.mxu0 0.0
    %v2120 = vand.u32 %v1129, 4294901760
    %2121 = vmatpush.msra.mxu0 %v2120
    %v2122 = vand.u32 %v2027, 4294901760
    %v2123 = vsub.f32 %v2027, %v2122
    %v2124 = vand.u32 %v2123, 4294901760
    %2125 = vmatmul.f32.gmra.mxu0 %v2124
    %v2126 = vpop.f32.mrf.mxu0
    %v2127 = vadd.f32 %v2103, %v2126
    %2128 = vdwg.mxu0
    %2129 = vmatpush.msra.mxu0 0.0
    %2130 = vmatpush.msra.mxu0 0.0
    %2131 = vmatpush.msra.mxu0 0.0
    %2132 = vmatpush.msra.mxu0 0.0
    %2133 = vmatpush.msra.mxu0 0.0
    %2134 = vmatpush.msra.mxu0 0.0
    %2135 = vmatpush.msra.mxu0 0.0
    %2136 = vmatpush.msra.mxu0 0.0
    %2137 = vmatpush.msra.mxu0 0.0
    %2138 = vmatpush.msra.mxu0 0.0
    %2139 = vmatpush.msra.mxu0 0.0
    %2140 = vmatpush.msra.mxu0 0.0
    %2141 = vmatpush.msra.mxu0 0.0
    %2142 = vmatpush.msra.mxu0 0.0
    %2143 = vmatpush.msra.mxu0 0.0
    %v2144 = vand.u32 %v1129, 4294901760
    %v2145 = vsub.f32 %v1129, %v2144
    %v2146 = vand.u32 %v2145, 4294901760
    %2147 = vmatpush.msra.mxu0 %v2146
    %v2148 = vand.u32 %v2027, 4294901760
    %2149 = vmatmul.f32.gmra.mxu0 %v2148
    %v2150 = vpop.f32.mrf.mxu0
    %v2151 = vadd.f32 %v2127, %v2150
    %2152 = vdwg.mxu0
    %2153 = vmatpush.msra.mxu0 0.0
    %2154 = vmatpush.msra.mxu0 0.0
    %2155 = vmatpush.msra.mxu0 0.0
    %2156 = vmatpush.msra.mxu0 0.0
    %2157 = vmatpush.msra.mxu0 0.0
    %2158 = vmatpush.msra.mxu0 0.0
    %2159 = vmatpush.msra.mxu0 0.0
    %2160 = vmatpush.msra.mxu0 0.0
    %2161 = vmatpush.msra.mxu0 0.0
    %2162 = vmatpush.msra.mxu0 0.0
    %2163 = vmatpush.msra.mxu0 0.0
    %2164 = vmatpush.msra.mxu0 0.0
    %2165 = vmatpush.msra.mxu0 0.0
    %2166 = vmatpush.msra.mxu0 0.0
    %2167 = vmatpush.msra.mxu0 0.0
    %v2168 = vand.u32 %v1129, 4294901760
    %2169 = vmatpush.msra.mxu0 %v2168
    %v2170 = vand.u32 %v2027, 4294901760
    %2171 = vmatmul.f32.gmra.mxu0 %v2170
    %v2172 = vpop.f32.mrf.mxu0
    %v2173 = vadd.f32 %v2151, %v2172
    %2174 = vdwg.mxu0
    %v2176 = vsel %vm1168, %v1875, 0
    %2178 = vmatpush.msra.mxu0 0.0
    %2179 = vmatpush.msra.mxu0 0.0
    %2180 = vmatpush.msra.mxu0 0.0
    %2181 = vmatpush.msra.mxu0 0.0
    %2182 = vmatpush.msra.mxu0 0.0
    %2183 = vmatpush.msra.mxu0 0.0
    %2184 = vmatpush.msra.mxu0 0.0
    %2185 = vmatpush.msra.mxu0 0.0
    %2186 = vmatpush.msra.mxu0 0.0
    %2187 = vmatpush.msra.mxu0 0.0
    %2188 = vmatpush.msra.mxu0 0.0
    %2189 = vmatpush.msra.mxu0 0.0
    %2190 = vmatpush.msra.mxu0 0.0
    %2191 = vmatpush.msra.mxu0 0.0
    %2192 = vmatpush.msra.mxu0 0.0
    %v2193 = vand.u32 %v1165, 4294901760
    %2194 = vmatpush.msra.mxu0 %v2193
    %v2195 = vand.u32 %v2176, 4294901760
    %v2196 = vsub.f32 %v2176, %v2195
    %v2197 = vand.u32 %v2196, 4294901760
    %v2198 = vsub.f32 %v2196, %v2197
    %v2199 = vand.u32 %v2198, 4294901760
    %2200 = vmatmul.f32.gmra.mxu0 %v2199
    %v2201 = vpop.f32.mrf.mxu0
    %v2202 = vadd.f32 0.0, %v2201
    %2203 = vdwg.mxu0
    %2204 = vmatpush.msra.mxu0 0.0
    %2205 = vmatpush.msra.mxu0 0.0
    %2206 = vmatpush.msra.mxu0 0.0
    %2207 = vmatpush.msra.mxu0 0.0
    %2208 = vmatpush.msra.mxu0 0.0
    %2209 = vmatpush.msra.mxu0 0.0
    %2210 = vmatpush.msra.mxu0 0.0
    %2211 = vmatpush.msra.mxu0 0.0
    %2212 = vmatpush.msra.mxu0 0.0
    %2213 = vmatpush.msra.mxu0 0.0
    %2214 = vmatpush.msra.mxu0 0.0
    %2215 = vmatpush.msra.mxu0 0.0
    %2216 = vmatpush.msra.mxu0 0.0
    %2217 = vmatpush.msra.mxu0 0.0
    %2218 = vmatpush.msra.mxu0 0.0
    %v2219 = vand.u32 %v1165, 4294901760
    %v2220 = vsub.f32 %v1165, %v2219
    %v2221 = vand.u32 %v2220, 4294901760
    %v2222 = vsub.f32 %v2220, %v2221
    %v2223 = vand.u32 %v2222, 4294901760
    %2224 = vmatpush.msra.mxu0 %v2223
    %v2225 = vand.u32 %v2176, 4294901760
    %2226 = vmatmul.f32.gmra.mxu0 %v2225
    %v2227 = vpop.f32.mrf.mxu0
    %v2228 = vadd.f32 %v2202, %v2227
    %2229 = vdwg.mxu0
    %2230 = vmatpush.msra.mxu0 0.0
    %2231 = vmatpush.msra.mxu0 0.0
    %2232 = vmatpush.msra.mxu0 0.0
    %2233 = vmatpush.msra.mxu0 0.0
    %2234 = vmatpush.msra.mxu0 0.0
    %2235 = vmatpush.msra.mxu0 0.0
    %2236 = vmatpush.msra.mxu0 0.0
    %2237 = vmatpush.msra.mxu0 0.0
    %2238 = vmatpush.msra.mxu0 0.0
    %2239 = vmatpush.msra.mxu0 0.0
    %2240 = vmatpush.msra.mxu0 0.0
    %2241 = vmatpush.msra.mxu0 0.0
    %2242 = vmatpush.msra.mxu0 0.0
    %2243 = vmatpush.msra.mxu0 0.0
    %2244 = vmatpush.msra.mxu0 0.0
    %v2245 = vand.u32 %v1165, 4294901760
    %v2246 = vsub.f32 %v1165, %v2245
    %2247 = vmatpush.msra.mxu0 %v2246
    %v2248 = vand.u32 %v2176, 4294901760
    %v2249 = vsub.f32 %v2176, %v2248
    %2250 = vmatmul.f32.gmra.mxu0 %v2249
    %v2251 = vpop.f32.mrf.mxu0
    %v2252 = vadd.f32 %v2228, %v2251
    %2253 = vdwg.mxu0
    %2254 = vmatpush.msra.mxu0 0.0
    %2255 = vmatpush.msra.mxu0 0.0
    %2256 = vmatpush.msra.mxu0 0.0
    %2257 = vmatpush.msra.mxu0 0.0
    %2258 = vmatpush.msra.mxu0 0.0
    %2259 = vmatpush.msra.mxu0 0.0
    %2260 = vmatpush.msra.mxu0 0.0
    %2261 = vmatpush.msra.mxu0 0.0
    %2262 = vmatpush.msra.mxu0 0.0
    %2263 = vmatpush.msra.mxu0 0.0
    %2264 = vmatpush.msra.mxu0 0.0
    %2265 = vmatpush.msra.mxu0 0.0
    %2266 = vmatpush.msra.mxu0 0.0
    %2267 = vmatpush.msra.mxu0 0.0
    %2268 = vmatpush.msra.mxu0 0.0
    %v2269 = vand.u32 %v1165, 4294901760
    %2270 = vmatpush.msra.mxu0 %v2269
    %v2271 = vand.u32 %v2176, 4294901760
    %v2272 = vsub.f32 %v2176, %v2271
    %v2273 = vand.u32 %v2272, 4294901760
    %2274 = vmatmul.f32.gmra.mxu0 %v2273
    %v2275 = vpop.f32.mrf.mxu0
    %v2276 = vadd.f32 %v2252, %v2275
    %2277 = vdwg.mxu0
    %2278 = vmatpush.msra.mxu0 0.0
    %2279 = vmatpush.msra.mxu0 0.0
    %2280 = vmatpush.msra.mxu0 0.0
    %2281 = vmatpush.msra.mxu0 0.0
    %2282 = vmatpush.msra.mxu0 0.0
    %2283 = vmatpush.msra.mxu0 0.0
    %2284 = vmatpush.msra.mxu0 0.0
    %2285 = vmatpush.msra.mxu0 0.0
    %2286 = vmatpush.msra.mxu0 0.0
    %2287 = vmatpush.msra.mxu0 0.0
    %2288 = vmatpush.msra.mxu0 0.0
    %2289 = vmatpush.msra.mxu0 0.0
    %2290 = vmatpush.msra.mxu0 0.0
    %2291 = vmatpush.msra.mxu0 0.0
    %2292 = vmatpush.msra.mxu0 0.0
    %v2293 = vand.u32 %v1165, 4294901760
    %v2294 = vsub.f32 %v1165, %v2293
    %v2295 = vand.u32 %v2294, 4294901760
    %2296 = vmatpush.msra.mxu0 %v2295
    %v2297 = vand.u32 %v2176, 4294901760
    %2298 = vmatmul.f32.gmra.mxu0 %v2297
    %v2299 = vpop.f32.mrf.mxu0
    %v2300 = vadd.f32 %v2276, %v2299
    %2301 = vdwg.mxu0
    %2302 = vmatpush.msra.mxu0 0.0
    %2303 = vmatpush.msra.mxu0 0.0
    %2304 = vmatpush.msra.mxu0 0.0
    %2305 = vmatpush.msra.mxu0 0.0
    %2306 = vmatpush.msra.mxu0 0.0
    %2307 = vmatpush.msra.mxu0 0.0
    %2308 = vmatpush.msra.mxu0 0.0
    %2309 = vmatpush.msra.mxu0 0.0
    %2310 = vmatpush.msra.mxu0 0.0
    %2311 = vmatpush.msra.mxu0 0.0
    %2312 = vmatpush.msra.mxu0 0.0
    %2313 = vmatpush.msra.mxu0 0.0
    %2314 = vmatpush.msra.mxu0 0.0
    %2315 = vmatpush.msra.mxu0 0.0
    %2316 = vmatpush.msra.mxu0 0.0
    %v2317 = vand.u32 %v1165, 4294901760
    %2318 = vmatpush.msra.mxu0 %v2317
    %v2319 = vand.u32 %v2176, 4294901760
    %2320 = vmatmul.f32.gmra.mxu0 %v2319
    %v2321 = vpop.f32.mrf.mxu0
    %v2322 = vadd.f32 %v2300, %v2321
    %2323 = vdwg.mxu0
    %v2325 = vsel %vm1168, %v1876, 0
    %2327 = vmatpush.msra.mxu0 0.0
    %2328 = vmatpush.msra.mxu0 0.0
    %2329 = vmatpush.msra.mxu0 0.0
    %2330 = vmatpush.msra.mxu0 0.0
    %2331 = vmatpush.msra.mxu0 0.0
    %2332 = vmatpush.msra.mxu0 0.0
    %2333 = vmatpush.msra.mxu0 0.0
    %2334 = vmatpush.msra.mxu0 0.0
    %2335 = vmatpush.msra.mxu0 0.0
    %2336 = vmatpush.msra.mxu0 0.0
    %2337 = vmatpush.msra.mxu0 0.0
    %2338 = vmatpush.msra.mxu0 0.0
    %2339 = vmatpush.msra.mxu0 0.0
    %2340 = vmatpush.msra.mxu0 0.0
    %2341 = vmatpush.msra.mxu0 0.0
    %v2342 = vand.u32 %v1167, 4294901760
    %2343 = vmatpush.msra.mxu0 %v2342
    %v2344 = vand.u32 %v2325, 4294901760
    %v2345 = vsub.f32 %v2325, %v2344
    %v2346 = vand.u32 %v2345, 4294901760
    %v2347 = vsub.f32 %v2345, %v2346
    %v2348 = vand.u32 %v2347, 4294901760
    %2349 = vmatmul.f32.gmra.mxu0 %v2348
    %v2350 = vpop.f32.mrf.mxu0
    %v2351 = vadd.f32 0.0, %v2350
    %2352 = vdwg.mxu0
    %2353 = vmatpush.msra.mxu0 0.0
    %2354 = vmatpush.msra.mxu0 0.0
    %2355 = vmatpush.msra.mxu0 0.0
    %2356 = vmatpush.msra.mxu0 0.0
    %2357 = vmatpush.msra.mxu0 0.0
    %2358 = vmatpush.msra.mxu0 0.0
    %2359 = vmatpush.msra.mxu0 0.0
    %2360 = vmatpush.msra.mxu0 0.0
    %2361 = vmatpush.msra.mxu0 0.0
    %2362 = vmatpush.msra.mxu0 0.0
    %2363 = vmatpush.msra.mxu0 0.0
    %2364 = vmatpush.msra.mxu0 0.0
    %2365 = vmatpush.msra.mxu0 0.0
    %2366 = vmatpush.msra.mxu0 0.0
    %2367 = vmatpush.msra.mxu0 0.0
    %v2368 = vand.u32 %v1167, 4294901760
    %v2369 = vsub.f32 %v1167, %v2368
    %v2370 = vand.u32 %v2369, 4294901760
    %v2371 = vsub.f32 %v2369, %v2370
    %v2372 = vand.u32 %v2371, 4294901760
    %2373 = vmatpush.msra.mxu0 %v2372
    %v2374 = vand.u32 %v2325, 4294901760
    %2375 = vmatmul.f32.gmra.mxu0 %v2374
    %v2376 = vpop.f32.mrf.mxu0
    %v2377 = vadd.f32 %v2351, %v2376
    %2378 = vdwg.mxu0
    %2379 = vmatpush.msra.mxu0 0.0
    %2380 = vmatpush.msra.mxu0 0.0
    %2381 = vmatpush.msra.mxu0 0.0
    %2382 = vmatpush.msra.mxu0 0.0
    %2383 = vmatpush.msra.mxu0 0.0
    %2384 = vmatpush.msra.mxu0 0.0
    %2385 = vmatpush.msra.mxu0 0.0
    %2386 = vmatpush.msra.mxu0 0.0
    %2387 = vmatpush.msra.mxu0 0.0
    %2388 = vmatpush.msra.mxu0 0.0
    %2389 = vmatpush.msra.mxu0 0.0
    %2390 = vmatpush.msra.mxu0 0.0
    %2391 = vmatpush.msra.mxu0 0.0
    %2392 = vmatpush.msra.mxu0 0.0
    %2393 = vmatpush.msra.mxu0 0.0
    %v2394 = vand.u32 %v1167, 4294901760
    %v2395 = vsub.f32 %v1167, %v2394
    %2396 = vmatpush.msra.mxu0 %v2395
    %v2397 = vand.u32 %v2325, 4294901760
    %v2398 = vsub.f32 %v2325, %v2397
    %2399 = vmatmul.f32.gmra.mxu0 %v2398
    %v2400 = vpop.f32.mrf.mxu0
    %v2401 = vadd.f32 %v2377, %v2400
    %2402 = vdwg.mxu0
    %2403 = vmatpush.msra.mxu0 0.0
    %2404 = vmatpush.msra.mxu0 0.0
    %2405 = vmatpush.msra.mxu0 0.0
    %2406 = vmatpush.msra.mxu0 0.0
    %2407 = vmatpush.msra.mxu0 0.0
    %2408 = vmatpush.msra.mxu0 0.0
    %2409 = vmatpush.msra.mxu0 0.0
    %2410 = vmatpush.msra.mxu0 0.0
    %2411 = vmatpush.msra.mxu0 0.0
    %2412 = vmatpush.msra.mxu0 0.0
    %2413 = vmatpush.msra.mxu0 0.0
    %2414 = vmatpush.msra.mxu0 0.0
    %2415 = vmatpush.msra.mxu0 0.0
    %2416 = vmatpush.msra.mxu0 0.0
    %2417 = vmatpush.msra.mxu0 0.0
    %v2418 = vand.u32 %v1167, 4294901760
    %2419 = vmatpush.msra.mxu0 %v2418
    %v2420 = vand.u32 %v2325, 4294901760
    %v2421 = vsub.f32 %v2325, %v2420
    %v2422 = vand.u32 %v2421, 4294901760
    %2423 = vmatmul.f32.gmra.mxu0 %v2422
    %v2424 = vpop.f32.mrf.mxu0
    %v2425 = vadd.f32 %v2401, %v2424
    %2426 = vdwg.mxu0
    %2427 = vmatpush.msra.mxu0 0.0
    %2428 = vmatpush.msra.mxu0 0.0
    %2429 = vmatpush.msra.mxu0 0.0
    %2430 = vmatpush.msra.mxu0 0.0
    %2431 = vmatpush.msra.mxu0 0.0
    %2432 = vmatpush.msra.mxu0 0.0
    %2433 = vmatpush.msra.mxu0 0.0
    %2434 = vmatpush.msra.mxu0 0.0
    %2435 = vmatpush.msra.mxu0 0.0
    %2436 = vmatpush.msra.mxu0 0.0
    %2437 = vmatpush.msra.mxu0 0.0
    %2438 = vmatpush.msra.mxu0 0.0
    %2439 = vmatpush.msra.mxu0 0.0
    %2440 = vmatpush.msra.mxu0 0.0
    %2441 = vmatpush.msra.mxu0 0.0
    %v2442 = vand.u32 %v1167, 4294901760
    %v2443 = vsub.f32 %v1167, %v2442
    %v2444 = vand.u32 %v2443, 4294901760
    %2445 = vmatpush.msra.mxu0 %v2444
    %v2446 = vand.u32 %v2325, 4294901760
    %2447 = vmatmul.f32.gmra.mxu0 %v2446
    %v2448 = vpop.f32.mrf.mxu0
    %v2449 = vadd.f32 %v2425, %v2448
    %2450 = vdwg.mxu0
    %2451 = vmatpush.msra.mxu0 0.0
    %2452 = vmatpush.msra.mxu0 0.0
    %2453 = vmatpush.msra.mxu0 0.0
    %2454 = vmatpush.msra.mxu0 0.0
    %2455 = vmatpush.msra.mxu0 0.0
    %2456 = vmatpush.msra.mxu0 0.0
    %2457 = vmatpush.msra.mxu0 0.0
    %2458 = vmatpush.msra.mxu0 0.0
    %2459 = vmatpush.msra.mxu0 0.0
    %2460 = vmatpush.msra.mxu0 0.0
    %2461 = vmatpush.msra.mxu0 0.0
    %2462 = vmatpush.msra.mxu0 0.0
    %2463 = vmatpush.msra.mxu0 0.0
    %2464 = vmatpush.msra.mxu0 0.0
    %2465 = vmatpush.msra.mxu0 0.0
    %v2466 = vand.u32 %v1167, 4294901760
    %2467 = vmatpush.msra.mxu0 %v2466
    %v2468 = vand.u32 %v2325, 4294901760
    %2469 = vmatmul.f32.gmra.mxu0 %v2468
    %v2470 = vpop.f32.mrf.mxu0
    %v2471 = vadd.f32 %v2449, %v2470
    %2472 = vdwg.mxu0
    %v2473 = vrot.slane %v2024, 4
    %v2474 = vsel %vm604, 0.0, %v2473
    %v2476 = vunpack.c.l.s4 1983009808
    %v2477 = vunpack.c.0.s8 %v2476
    %v2478 = vperm.slane %v2024, %v2477
    %v2480 = vunpack.c.l.s4 1983009808
    %v2481 = vunpack.c.0.s8 %v2480
    %v2482 = vperm.slane %v2474, %v2481
    %v2483 = vrot.slane %v2173, 4
    %v2484 = vsel %vm604, 0.0, %v2483
    %v2486 = vunpack.c.l.s4 1983009808
    %v2487 = vunpack.c.0.s8 %v2486
    %v2488 = vperm.slane %v2173, %v2487
    %v2490 = vunpack.c.l.s4 1983009808
    %v2491 = vunpack.c.0.s8 %v2490
    %v2492 = vperm.slane %v2484, %v2491
    %v2493 = vrot.slane %v2488, 4
    %v2494 = vsel %vm604, %v2493, %v2478
    %v2495 = vrot.slane %v2478, 4
    %v2496 = vsel %vm604, %v2488, %v2495
    %v2498 = vunpack.c.l.s4 1934713408
    %v2499 = vunpack.c.0.s8 %v2498
    %v2500 = vperm.slane %v2494, %v2499
    %v2502 = vunpack.c.l.s4 1934713408
    %v2503 = vunpack.c.0.s8 %v2502
    %v2504 = vperm.slane %v2496, %v2503
    %v2505 = vrot.slane %v2492, 4
    %v2506 = vsel %vm604, %v2505, %v2482
    %v2507 = vrot.slane %v2482, 4
    %v2508 = vsel %vm604, %v2492, %v2507
    %v2510 = vunpack.c.l.s4 1934713408
    %v2511 = vunpack.c.0.s8 %v2510
    %v2512 = vperm.slane %v2506, %v2511
    %v2514 = vunpack.c.l.s4 1934713408
    %v2515 = vunpack.c.0.s8 %v2514
    %v2516 = vperm.slane %v2508, %v2515
    %v2517 = vrot.slane %v2500, 4
    %v2518 = vsel %vm604, 0.0, %v2517
    %v2519 = vrot.slane %v2504, 4
    %v2520 = vsel %vm604, 0.0, %v2519
    %v2521 = vrot.slane %v2512, 4
    %v2522 = vsel %vm604, 0.0, %v2521
    %v2523 = vrot.slane %v2516, 4
    %v2524 = vsel %vm604, 0.0, %v2523
    %v2525 = vrot.slane %v2322, 4
    %v2526 = vsel %vm604, 0.0, %v2525
    %v2528 = vunpack.c.l.s4 1983009808
    %v2529 = vunpack.c.0.s8 %v2528
    %v2530 = vperm.slane %v2322, %v2529
    %v2532 = vunpack.c.l.s4 1983009808
    %v2533 = vunpack.c.0.s8 %v2532
    %v2534 = vperm.slane %v2526, %v2533
    %v2535 = vrot.slane %v2471, 4
    %v2536 = vsel %vm604, 0.0, %v2535
    %v2538 = vunpack.c.l.s4 1983009808
    %v2539 = vunpack.c.0.s8 %v2538
    %v2540 = vperm.slane %v2471, %v2539
    %v2542 = vunpack.c.l.s4 1983009808
    %v2543 = vunpack.c.0.s8 %v2542
    %v2544 = vperm.slane %v2536, %v2543
    %v2545 = vrot.slane %v2540, 4
    %v2546 = vsel %vm604, %v2545, %v2530
    %v2547 = vrot.slane %v2530, 4
    %v2548 = vsel %vm604, %v2540, %v2547
    %v2550 = vunpack.c.l.s4 1934713408
    %v2551 = vunpack.c.0.s8 %v2550
    %v2552 = vperm.slane %v2546, %v2551
    %v2554 = vunpack.c.l.s4 1934713408
    %v2555 = vunpack.c.0.s8 %v2554
    %v2556 = vperm.slane %v2548, %v2555
    %v2557 = vrot.slane %v2544, 4
    %v2558 = vsel %vm604, %v2557, %v2534
    %v2559 = vrot.slane %v2534, 4
    %v2560 = vsel %vm604, %v2544, %v2559
    %v2562 = vunpack.c.l.s4 1934713408
    %v2563 = vunpack.c.0.s8 %v2562
    %v2564 = vperm.slane %v2558, %v2563
    %v2566 = vunpack.c.l.s4 1934713408
    %v2567 = vunpack.c.0.s8 %v2566
    %v2568 = vperm.slane %v2560, %v2567
    %v2569 = vrot.slane %v2552, 4
    %v2570 = vsel %vm604, 0.0, %v2569
    %v2571 = vrot.slane %v2556, 4
    %v2572 = vsel %vm604, 0.0, %v2571
    %v2573 = vrot.slane %v2564, 4
    %v2574 = vsel %vm604, 0.0, %v2573
    %v2575 = vrot.slane %v2568, 4
    %v2576 = vsel %vm604, 0.0, %v2575
    %v2577 = vsel %vm604, %v2519, %v2500
    %v2579 = vunpack.c.l.s4 1983009808
    %v2580 = vunpack.c.0.s8 %v2579
    %v2581 = vperm.slane %v2577, %v2580
    %v2582 = vrot.slane %v2520, 4
    %v2583 = vsel %vm604, %v2582, %v2518
    %v2585 = vunpack.c.l.s4 1983009808
    %v2586 = vunpack.c.0.s8 %v2585
    %v2587 = vperm.slane %v2583, %v2586
    %v2588 = vsel %vm604, %v2523, %v2512
    %v2590 = vunpack.c.l.s4 1983009808
    %v2591 = vunpack.c.0.s8 %v2590
    %v2592 = vperm.slane %v2588, %v2591
    %v2593 = vrot.slane %v2524, 4
    %v2594 = vsel %vm604, %v2593, %v2522
    %v2596 = vunpack.c.l.s4 1983009808
    %v2597 = vunpack.c.0.s8 %v2596
    %v2598 = vperm.slane %v2594, %v2597
    %v2599 = vrot.slane %v2587, 4
    %v2600 = vsel %vm604, %v2599, %v2581
    %v2602 = vunpack.c.l.s4 1934713408
    %v2603 = vunpack.c.0.s8 %v2602
    %v2604 = vperm.slane %v2600, %v2603
    %v2605 = vrot.slane %v2598, 4
    %v2606 = vsel %vm604, %v2605, %v2592
    %v2608 = vunpack.c.l.s4 1934713408
    %v2609 = vunpack.c.0.s8 %v2608
    %v2610 = vperm.slane %v2606, %v2609
    %v2611 = vrot.slane %v2610, 4
    %v2612 = vsel %vm604, %v2611, %v2604
    %v2613 = vrot.slane %v2604, 4
    %v2614 = vsel %vm604, %v2610, %v2613
    %v2615 = vsel %vm604, %v2571, %v2552
    %v2617 = vunpack.c.l.s4 1983009808
    %v2618 = vunpack.c.0.s8 %v2617
    %v2619 = vperm.slane %v2615, %v2618
    %v2620 = vrot.slane %v2572, 4
    %v2621 = vsel %vm604, %v2620, %v2570
    %v2623 = vunpack.c.l.s4 1983009808
    %v2624 = vunpack.c.0.s8 %v2623
    %v2625 = vperm.slane %v2621, %v2624
    %v2626 = vsel %vm604, %v2575, %v2564
    %v2628 = vunpack.c.l.s4 1983009808
    %v2629 = vunpack.c.0.s8 %v2628
    %v2630 = vperm.slane %v2626, %v2629
    %v2631 = vrot.slane %v2576, 4
    %v2632 = vsel %vm604, %v2631, %v2574
    %v2634 = vunpack.c.l.s4 1983009808
    %v2635 = vunpack.c.0.s8 %v2634
    %v2636 = vperm.slane %v2632, %v2635
    %v2637 = vrot.slane %v2625, 4
    %v2638 = vsel %vm604, %v2637, %v2619
    %v2640 = vunpack.c.l.s4 1934713408
    %v2641 = vunpack.c.0.s8 %v2640
    %v2642 = vperm.slane %v2638, %v2641
    %v2643 = vrot.slane %v2636, 4
    %v2644 = vsel %vm604, %v2643, %v2630
    %v2646 = vunpack.c.l.s4 1934713408
    %v2647 = vunpack.c.0.s8 %v2646
    %v2648 = vperm.slane %v2644, %v2647
    %v2649 = vrot.slane %v2648, 4
    %v2650 = vsel %vm604, %v2649, %v2642
    %v2651 = vrot.slane %v2642, 4
    %v2652 = vsel %vm604, %v2648, %v2651
    %2655 = vrot.lane.b32.xlu0 %v2614, 8
    %v2656 = vpop.permute.xlu0 %2655
    %2657 = vrot.lane.b32.xlu0 %v2652, 8
    %v2658 = vpop.permute.xlu0 %2657
    %v2661 = vsel %vm1168, %v2612, %v2656
    %v2662 = vsel %vm1168, %v2650, %v2658
    %v2663 = vld [vmem:[#allocation11] sm:$0xff]
    %v2664 = vld [vmem:[#allocation11 + $0x8] sm:$0xff]
    %2665 = vrot.lane.b32.xlu0 %v363, 112
    %v2666 = vpop.permute.xlu0 %2665
    %2667 = vrot.lane.b32.xlu0 %v367, 112
    %v2668 = vpop.permute.xlu0 %2667
    %2669 = vrot.lane.b32.xlu0 %v598, 112
    %v2670 = vpop.permute.xlu0 %2669
    %2671 = vrot.lane.b32.xlu0 %v600, 112
    %v2672 = vpop.permute.xlu0 %2671
    %v2677 = vrot.slane %v2666, 4
    %v2678 = vsel %vm604, 0.0, %v2677
    %v2680 = vunpack.c.l.s4 1983009808
    %v2681 = vunpack.c.0.s8 %v2680
    %v2682 = vperm.slane %v2666, %v2681
    %v2684 = vunpack.c.l.s4 1983009808
    %v2685 = vunpack.c.0.s8 %v2684
    %v2686 = vperm.slane %v2678, %v2685
    %v2687 = vrot.slane %v2670, 4
    %v2688 = vsel %vm604, 0.0, %v2687
    %v2690 = vunpack.c.l.s4 1983009808
    %v2691 = vunpack.c.0.s8 %v2690
    %v2692 = vperm.slane %v2670, %v2691
    %v2694 = vunpack.c.l.s4 1983009808
    %v2695 = vunpack.c.0.s8 %v2694
    %v2696 = vperm.slane %v2688, %v2695
    %v2697 = vrot.slane %v2692, 4
    %v2698 = vsel %vm604, %v2697, %v2682
    %v2699 = vrot.slane %v2682, 4
    %v2700 = vsel %vm604, %v2692, %v2699
    %v2702 = vunpack.c.l.s4 1934713408
    %v2703 = vunpack.c.0.s8 %v2702
    %v2704 = vperm.slane %v2698, %v2703
    %v2706 = vunpack.c.l.s4 1934713408
    %v2707 = vunpack.c.0.s8 %v2706
    %v2708 = vperm.slane %v2700, %v2707
    %v2709 = vrot.slane %v2696, 4
    %v2710 = vsel %vm604, %v2709, %v2686
    %v2711 = vrot.slane %v2686, 4
    %v2712 = vsel %vm604, %v2696, %v2711
    %v2714 = vunpack.c.l.s4 1934713408
    %v2715 = vunpack.c.0.s8 %v2714
    %v2716 = vperm.slane %v2710, %v2715
    %v2718 = vunpack.c.l.s4 1934713408
    %v2719 = vunpack.c.0.s8 %v2718
    %v2720 = vperm.slane %v2712, %v2719
    %v2721 = vrot.slane %v2704, 4
    %v2722 = vsel %vm604, 0.0, %v2721
    %v2723 = vrot.slane %v2708, 4
    %v2724 = vsel %vm604, 0.0, %v2723
    %v2725 = vrot.slane %v2716, 4
    %v2726 = vsel %vm604, 0.0, %v2725
    %v2727 = vrot.slane %v2720, 4
    %v2728 = vsel %vm604, 0.0, %v2727
    %v2729 = vrot.slane %v2668, 4
    %v2730 = vsel %vm604, 0.0, %v2729
    %v2732 = vunpack.c.l.s4 1983009808
    %v2733 = vunpack.c.0.s8 %v2732
    %v2734 = vperm.slane %v2668, %v2733
    %v2736 = vunpack.c.l.s4 1983009808
    %v2737 = vunpack.c.0.s8 %v2736
    %v2738 = vperm.slane %v2730, %v2737
    %v2739 = vrot.slane %v2672, 4
    %v2740 = vsel %vm604, 0.0, %v2739
    %v2742 = vunpack.c.l.s4 1983009808
    %v2743 = vunpack.c.0.s8 %v2742
    %v2744 = vperm.slane %v2672, %v2743
    %v2746 = vunpack.c.l.s4 1983009808
    %v2747 = vunpack.c.0.s8 %v2746
    %v2748 = vperm.slane %v2740, %v2747
    %v2749 = vrot.slane %v2744, 4
    %v2750 = vsel %vm604, %v2749, %v2734
    %v2751 = vrot.slane %v2734, 4
    %v2752 = vsel %vm604, %v2744, %v2751
    %v2754 = vunpack.c.l.s4 1934713408
    %v2755 = vunpack.c.0.s8 %v2754
    %v2756 = vperm.slane %v2750, %v2755
    %v2758 = vunpack.c.l.s4 1934713408
    %v2759 = vunpack.c.0.s8 %v2758
    %v2760 = vperm.slane %v2752, %v2759
    %v2761 = vrot.slane %v2748, 4
    %v2762 = vsel %vm604, %v2761, %v2738
    %v2763 = vrot.slane %v2738, 4
    %v2764 = vsel %vm604, %v2748, %v2763
    %v2766 = vunpack.c.l.s4 1934713408
    %v2767 = vunpack.c.0.s8 %v2766
    %v2768 = vperm.slane %v2762, %v2767
    %v2770 = vunpack.c.l.s4 1934713408
    %v2771 = vunpack.c.0.s8 %v2770
    %v2772 = vperm.slane %v2764, %v2771
    %v2773 = vrot.slane %v2756, 4
    %v2774 = vsel %vm604, 0.0, %v2773
    %v2775 = vrot.slane %v2760, 4
    %v2776 = vsel %vm604, 0.0, %v2775
    %v2777 = vrot.slane %v2768, 4
    %v2778 = vsel %vm604, 0.0, %v2777
    %v2779 = vrot.slane %v2772, 4
    %v2780 = vsel %vm604, 0.0, %v2779
    %v2781 = vsel %vm604, %v2723, %v2704
    %v2783 = vunpack.c.l.s4 1983009808
    %v2784 = vunpack.c.0.s8 %v2783
    %v2785 = vperm.slane %v2781, %v2784
    %v2786 = vrot.slane %v2724, 4
    %v2787 = vsel %vm604, %v2786, %v2722
    %v2789 = vunpack.c.l.s4 1983009808
    %v2790 = vunpack.c.0.s8 %v2789
    %v2791 = vperm.slane %v2787, %v2790
    %v2792 = vsel %vm604, %v2727, %v2716
    %v2794 = vunpack.c.l.s4 1983009808
    %v2795 = vunpack.c.0.s8 %v2794
    %v2796 = vperm.slane %v2792, %v2795
    %v2797 = vrot.slane %v2728, 4
    %v2798 = vsel %vm604, %v2797, %v2726
    %v2800 = vunpack.c.l.s4 1983009808
    %v2801 = vunpack.c.0.s8 %v2800
    %v2802 = vperm.slane %v2798, %v2801
    %v2803 = vrot.slane %v2791, 4
    %v2804 = vsel %vm604, %v2803, %v2785
    %v2806 = vunpack.c.l.s4 1934713408
    %v2807 = vunpack.c.0.s8 %v2806
    %v2808 = vperm.slane %v2804, %v2807
    %v2809 = vrot.slane %v2802, 4
    %v2810 = vsel %vm604, %v2809, %v2796
    %v2812 = vunpack.c.l.s4 1934713408
    %v2813 = vunpack.c.0.s8 %v2812
    %v2814 = vperm.slane %v2810, %v2813
    %v2815 = vrot.slane %v2814, 4
    %v2816 = vsel %vm604, %v2815, %v2808
    %v2817 = vrot.slane %v2808, 4
    %v2818 = vsel %vm604, %v2814, %v2817
    %v2819 = vsel %vm604, %v2775, %v2756
    %v2821 = vunpack.c.l.s4 1983009808
    %v2822 = vunpack.c.0.s8 %v2821
    %v2823 = vperm.slane %v2819, %v2822
    %v2824 = vrot.slane %v2776, 4
    %v2825 = vsel %vm604, %v2824, %v2774
    %v2827 = vunpack.c.l.s4 1983009808
    %v2828 = vunpack.c.0.s8 %v2827
    %v2829 = vperm.slane %v2825, %v2828
    %v2830 = vsel %vm604, %v2779, %v2768
    %v2832 = vunpack.c.l.s4 1983009808
    %v2833 = vunpack.c.0.s8 %v2832
    %v2834 = vperm.slane %v2830, %v2833
    %v2835 = vrot.slane %v2780, 4
    %v2836 = vsel %vm604, %v2835, %v2778
    %v2838 = vunpack.c.l.s4 1983009808
    %v2839 = vunpack.c.0.s8 %v2838
    %v2840 = vperm.slane %v2836, %v2839
    %v2841 = vrot.slane %v2829, 4
    %v2842 = vsel %vm604, %v2841, %v2823
    %v2844 = vunpack.c.l.s4 1934713408
    %v2845 = vunpack.c.0.s8 %v2844
    %v2846 = vperm.slane %v2842, %v2845
    %v2847 = vrot.slane %v2840, 4
    %v2848 = vsel %vm604, %v2847, %v2834
    %v2850 = vunpack.c.l.s4 1934713408
    %v2851 = vunpack.c.0.s8 %v2850
    %v2852 = vperm.slane %v2848, %v2851
    %v2853 = vrot.slane %v2852, 4
    %v2854 = vsel %vm604, %v2853, %v2846
    %v2855 = vrot.slane %v2846, 4
    %v2856 = vsel %vm604, %v2852, %v2855
    %2859 = vrot.lane.b32.xlu0 %v589, 120
    %v2860 = vpop.permute.xlu0 %2859
    %2861 = vrot.lane.b32.xlu0 %v593, 120
    %v2862 = vpop.permute.xlu0 %2861
    %v2865 = vrot.slane %v589, 4
    %v2866 = vsel %vm604, 0.0, %v2865
    %v2868 = vunpack.c.l.s4 1983009808
    %v2869 = vunpack.c.0.s8 %v2868
    %v2870 = vperm.slane %v589, %v2869
    %v2872 = vunpack.c.l.s4 1983009808
    %v2873 = vunpack.c.0.s8 %v2872
    %v2874 = vperm.slane %v2866, %v2873
    %v2875 = vrot.slane %v2860, 4
    %v2876 = vsel %vm604, 0.0, %v2875
    %v2878 = vunpack.c.l.s4 1983009808
    %v2879 = vunpack.c.0.s8 %v2878
    %v2880 = vperm.slane %v2860, %v2879
    %v2882 = vunpack.c.l.s4 1983009808
    %v2883 = vunpack.c.0.s8 %v2882
    %v2884 = vperm.slane %v2876, %v2883
    %v2885 = vrot.slane %v2880, 4
    %v2886 = vsel %vm604, %v2885, %v2870
    %v2887 = vrot.slane %v2870, 4
    %v2888 = vsel %vm604, %v2880, %v2887
    %v2890 = vunpack.c.l.s4 1934713408
    %v2891 = vunpack.c.0.s8 %v2890
    %v2892 = vperm.slane %v2886, %v2891
    %v2894 = vunpack.c.l.s4 1934713408
    %v2895 = vunpack.c.0.s8 %v2894
    %v2896 = vperm.slane %v2888, %v2895
    %v2897 = vrot.slane %v2884, 4
    %v2898 = vsel %vm604, %v2897, %v2874
    %v2899 = vrot.slane %v2874, 4
    %v2900 = vsel %vm604, %v2884, %v2899
    %v2902 = vunpack.c.l.s4 1934713408
    %v2903 = vunpack.c.0.s8 %v2902
    %v2904 = vperm.slane %v2898, %v2903
    %v2906 = vunpack.c.l.s4 1934713408
    %v2907 = vunpack.c.0.s8 %v2906
    %v2908 = vperm.slane %v2900, %v2907
    %v2909 = vrot.slane %v2892, 4
    %v2910 = vsel %vm604, 0.0, %v2909
    %v2911 = vrot.slane %v2896, 4
    %v2912 = vsel %vm604, 0.0, %v2911
    %v2913 = vrot.slane %v2904, 4
    %v2914 = vsel %vm604, 0.0, %v2913
    %v2915 = vrot.slane %v2908, 4
    %v2916 = vsel %vm604, 0.0, %v2915
    %v2917 = vrot.slane %v593, 4
    %v2918 = vsel %vm604, 0.0, %v2917
    %v2920 = vunpack.c.l.s4 1983009808
    %v2921 = vunpack.c.0.s8 %v2920
    %v2922 = vperm.slane %v593, %v2921
    %v2924 = vunpack.c.l.s4 1983009808
    %v2925 = vunpack.c.0.s8 %v2924
    %v2926 = vperm.slane %v2918, %v2925
    %v2927 = vrot.slane %v2862, 4
    %v2928 = vsel %vm604, 0.0, %v2927
    %v2930 = vunpack.c.l.s4 1983009808
    %v2931 = vunpack.c.0.s8 %v2930
    %v2932 = vperm.slane %v2862, %v2931
    %v2934 = vunpack.c.l.s4 1983009808
    %v2935 = vunpack.c.0.s8 %v2934
    %v2936 = vperm.slane %v2928, %v2935
    %v2937 = vrot.slane %v2932, 4
    %v2938 = vsel %vm604, %v2937, %v2922
    %v2939 = vrot.slane %v2922, 4
    %v2940 = vsel %vm604, %v2932, %v2939
    %v2942 = vunpack.c.l.s4 1934713408
    %v2943 = vunpack.c.0.s8 %v2942
    %v2944 = vperm.slane %v2938, %v2943
    %v2946 = vunpack.c.l.s4 1934713408
    %v2947 = vunpack.c.0.s8 %v2946
    %v2948 = vperm.slane %v2940, %v2947
    %v2949 = vrot.slane %v2936, 4
    %v2950 = vsel %vm604, %v2949, %v2926
    %v2951 = vrot.slane %v2926, 4
    %v2952 = vsel %vm604, %v2936, %v2951
    %v2954 = vunpack.c.l.s4 1934713408
    %v2955 = vunpack.c.0.s8 %v2954
    %v2956 = vperm.slane %v2950, %v2955
    %v2958 = vunpack.c.l.s4 1934713408
    %v2959 = vunpack.c.0.s8 %v2958
    %v2960 = vperm.slane %v2952, %v2959
    %v2961 = vrot.slane %v2944, 4
    %v2962 = vsel %vm604, 0.0, %v2961
    %v2963 = vrot.slane %v2948, 4
    %v2964 = vsel %vm604, 0.0, %v2963
    %v2965 = vrot.slane %v2956, 4
    %v2966 = vsel %vm604, 0.0, %v2965
    %v2967 = vrot.slane %v2960, 4
    %v2968 = vsel %vm604, 0.0, %v2967
    %v2969 = vsel %vm604, %v2911, %v2892
    %v2971 = vunpack.c.l.s4 1983009808
    %v2972 = vunpack.c.0.s8 %v2971
    %v2973 = vperm.slane %v2969, %v2972
    %v2974 = vrot.slane %v2912, 4
    %v2975 = vsel %vm604, %v2974, %v2910
    %v2977 = vunpack.c.l.s4 1983009808
    %v2978 = vunpack.c.0.s8 %v2977
    %v2979 = vperm.slane %v2975, %v2978
    %v2980 = vsel %vm604, %v2915, %v2904
    %v2982 = vunpack.c.l.s4 1983009808
    %v2983 = vunpack.c.0.s8 %v2982
    %v2984 = vperm.slane %v2980, %v2983
    %v2985 = vrot.slane %v2916, 4
    %v2986 = vsel %vm604, %v2985, %v2914
    %v2988 = vunpack.c.l.s4 1983009808
    %v2989 = vunpack.c.0.s8 %v2988
    %v2990 = vperm.slane %v2986, %v2989
    %v2991 = vrot.slane %v2979, 4
    %v2992 = vsel %vm604, %v2991, %v2973
    %v2994 = vunpack.c.l.s4 1934713408
    %v2995 = vunpack.c.0.s8 %v2994
    %v2996 = vperm.slane %v2992, %v2995
    %v2997 = vrot.slane %v2990, 4
    %v2998 = vsel %vm604, %v2997, %v2984
    %v3000 = vunpack.c.l.s4 1934713408
    %v3001 = vunpack.c.0.s8 %v3000
    %v3002 = vperm.slane %v2998, %v3001
    %v3003 = vrot.slane %v3002, 4
    %v3004 = vsel %vm604, %v3003, %v2996
    %v3005 = vrot.slane %v2996, 4
    %v3006 = vsel %vm604, %v3002, %v3005
    %v3007 = vsel %vm604, %v2963, %v2944
    %v3009 = vunpack.c.l.s4 1983009808
    %v3010 = vunpack.c.0.s8 %v3009
    %v3011 = vperm.slane %v3007, %v3010
    %v3012 = vrot.slane %v2964, 4
    %v3013 = vsel %vm604, %v3012, %v2962
    %v3015 = vunpack.c.l.s4 1983009808
    %v3016 = vunpack.c.0.s8 %v3015
    %v3017 = vperm.slane %v3013, %v3016
    %v3018 = vsel %vm604, %v2967, %v2956
    %v3020 = vunpack.c.l.s4 1983009808
    %v3021 = vunpack.c.0.s8 %v3020
    %v3022 = vperm.slane %v3018, %v3021
    %v3023 = vrot.slane %v2968, 4
    %v3024 = vsel %vm604, %v3023, %v2966
    %v3026 = vunpack.c.l.s4 1983009808
    %v3027 = vunpack.c.0.s8 %v3026
    %v3028 = vperm.slane %v3024, %v3027
    %v3029 = vrot.slane %v3017, 4
    %v3030 = vsel %vm604, %v3029, %v3011
    %v3032 = vunpack.c.l.s4 1934713408
    %v3033 = vunpack.c.0.s8 %v3032
    %v3034 = vperm.slane %v3030, %v3033
    %v3035 = vrot.slane %v3028, 4
    %v3036 = vsel %vm604, %v3035, %v3022
    %v3038 = vunpack.c.l.s4 1934713408
    %v3039 = vunpack.c.0.s8 %v3038
    %v3040 = vperm.slane %v3036, %v3039
    %v3041 = vrot.slane %v3040, 4
    %v3042 = vsel %vm604, %v3041, %v3034
    %v3043 = vrot.slane %v3034, 4
    %v3044 = vsel %vm604, %v3040, %v3043
    %3045 = vrot.lane.b32.xlu0 %v589, 112
    %v3046 = vpop.permute.xlu0 %3045
    %3047 = vrot.lane.b32.xlu0 %v593, 112
    %v3048 = vpop.permute.xlu0 %3047
    %3049 = vrot.lane.b32.xlu0 %v2860, 112
    %v3050 = vpop.permute.xlu0 %3049
    %3051 = vrot.lane.b32.xlu0 %v2862, 112
    %v3052 = vpop.permute.xlu0 %3051
    %v3057 = vrot.slane %v3046, 4
    %v3058 = vsel %vm604, 0.0, %v3057
    %v3060 = vunpack.c.l.s4 1983009808
    %v3061 = vunpack.c.0.s8 %v3060
    %v3062 = vperm.slane %v3046, %v3061
    %v3064 = vunpack.c.l.s4 1983009808
    %v3065 = vunpack.c.0.s8 %v3064
    %v3066 = vperm.slane %v3058, %v3065
    %v3067 = vrot.slane %v3050, 4
    %v3068 = vsel %vm604, 0.0, %v3067
    %v3070 = vunpack.c.l.s4 1983009808
    %v3071 = vunpack.c.0.s8 %v3070
    %v3072 = vperm.slane %v3050, %v3071
    %v3074 = vunpack.c.l.s4 1983009808
    %v3075 = vunpack.c.0.s8 %v3074
    %v3076 = vperm.slane %v3068, %v3075
    %v3077 = vrot.slane %v3072, 4
    %v3078 = vsel %vm604, %v3077, %v3062
    %v3079 = vrot.slane %v3062, 4
    %v3080 = vsel %vm604, %v3072, %v3079
    %v3082 = vunpack.c.l.s4 1934713408
    %v3083 = vunpack.c.0.s8 %v3082
    %v3084 = vperm.slane %v3078, %v3083
    %v3086 = vunpack.c.l.s4 1934713408
    %v3087 = vunpack.c.0.s8 %v3086
    %v3088 = vperm.slane %v3080, %v3087
    %v3089 = vrot.slane %v3076, 4
    %v3090 = vsel %vm604, %v3089, %v3066
    %v3091 = vrot.slane %v3066, 4
    %v3092 = vsel %vm604, %v3076, %v3091
    %v3094 = vunpack.c.l.s4 1934713408
    %v3095 = vunpack.c.0.s8 %v3094
    %v3096 = vperm.slane %v3090, %v3095
    %v3098 = vunpack.c.l.s4 1934713408
    %v3099 = vunpack.c.0.s8 %v3098
    %v3100 = vperm.slane %v3092, %v3099
    %v3101 = vrot.slane %v3084, 4
    %v3102 = vsel %vm604, 0.0, %v3101
    %v3103 = vrot.slane %v3088, 4
    %v3104 = vsel %vm604, 0.0, %v3103
    %v3105 = vrot.slane %v3096, 4
    %v3106 = vsel %vm604, 0.0, %v3105
    %v3107 = vrot.slane %v3100, 4
    %v3108 = vsel %vm604, 0.0, %v3107
    %v3109 = vrot.slane %v3048, 4
    %v3110 = vsel %vm604, 0.0, %v3109
    %v3112 = vunpack.c.l.s4 1983009808
    %v3113 = vunpack.c.0.s8 %v3112
    %v3114 = vperm.slane %v3048, %v3113
    %v3116 = vunpack.c.l.s4 1983009808
    %v3117 = vunpack.c.0.s8 %v3116
    %v3118 = vperm.slane %v3110, %v3117
    %v3119 = vrot.slane %v3052, 4
    %v3120 = vsel %vm604, 0.0, %v3119
    %v3122 = vunpack.c.l.s4 1983009808
    %v3123 = vunpack.c.0.s8 %v3122
    %v3124 = vperm.slane %v3052, %v3123
    %v3126 = vunpack.c.l.s4 1983009808
    %v3127 = vunpack.c.0.s8 %v3126
    %v3128 = vperm.slane %v3120, %v3127
    %v3129 = vrot.slane %v3124, 4
    %v3130 = vsel %vm604, %v3129, %v3114
    %v3131 = vrot.slane %v3114, 4
    %v3132 = vsel %vm604, %v3124, %v3131
    %v3134 = vunpack.c.l.s4 1934713408
    %v3135 = vunpack.c.0.s8 %v3134
    %v3136 = vperm.slane %v3130, %v3135
    %v3138 = vunpack.c.l.s4 1934713408
    %v3139 = vunpack.c.0.s8 %v3138
    %v3140 = vperm.slane %v3132, %v3139
    %v3141 = vrot.slane %v3128, 4
    %v3142 = vsel %vm604, %v3141, %v3118
    %v3143 = vrot.slane %v3118, 4
    %v3144 = vsel %vm604, %v3128, %v3143
    %v3146 = vunpack.c.l.s4 1934713408
    %v3147 = vunpack.c.0.s8 %v3146
    %v3148 = vperm.slane %v3142, %v3147
    %v3150 = vunpack.c.l.s4 1934713408
    %v3151 = vunpack.c.0.s8 %v3150
    %v3152 = vperm.slane %v3144, %v3151
    %v3153 = vrot.slane %v3136, 4
    %v3154 = vsel %vm604, 0.0, %v3153
    %v3155 = vrot.slane %v3140, 4
    %v3156 = vsel %vm604, 0.0, %v3155
    %v3157 = vrot.slane %v3148, 4
    %v3158 = vsel %vm604, 0.0, %v3157
    %v3159 = vrot.slane %v3152, 4
    %v3160 = vsel %vm604, 0.0, %v3159
    %v3161 = vsel %vm604, %v3103, %v3084
    %v3163 = vunpack.c.l.s4 1983009808
    %v3164 = vunpack.c.0.s8 %v3163
    %v3165 = vperm.slane %v3161, %v3164
    %v3166 = vrot.slane %v3104, 4
    %v3167 = vsel %vm604, %v3166, %v3102
    %v3169 = vunpack.c.l.s4 1983009808
    %v3170 = vunpack.c.0.s8 %v3169
    %v3171 = vperm.slane %v3167, %v3170
    %v3172 = vsel %vm604, %v3107, %v3096
    %v3174 = vunpack.c.l.s4 1983009808
    %v3175 = vunpack.c.0.s8 %v3174
    %v3176 = vperm.slane %v3172, %v3175
    %v3177 = vrot.slane %v3108, 4
    %v3178 = vsel %vm604, %v3177, %v3106
    %v3180 = vunpack.c.l.s4 1983009808
    %v3181 = vunpack.c.0.s8 %v3180
    %v3182 = vperm.slane %v3178, %v3181
    %v3183 = vrot.slane %v3171, 4
    %v3184 = vsel %vm604, %v3183, %v3165
    %v3186 = vunpack.c.l.s4 1934713408
    %v3187 = vunpack.c.0.s8 %v3186
    %v3188 = vperm.slane %v3184, %v3187
    %v3189 = vrot.slane %v3182, 4
    %v3190 = vsel %vm604, %v3189, %v3176
    %v3192 = vunpack.c.l.s4 1934713408
    %v3193 = vunpack.c.0.s8 %v3192
    %v3194 = vperm.slane %v3190, %v3193
    %v3195 = vrot.slane %v3194, 4
    %v3196 = vsel %vm604, %v3195, %v3188
    %v3197 = vrot.slane %v3188, 4
    %v3198 = vsel %vm604, %v3194, %v3197
    %v3199 = vsel %vm604, %v3155, %v3136
    %v3201 = vunpack.c.l.s4 1983009808
    %v3202 = vunpack.c.0.s8 %v3201
    %v3203 = vperm.slane %v3199, %v3202
    %v3204 = vrot.slane %v3156, 4
    %v3205 = vsel %vm604, %v3204, %v3154
    %v3207 = vunpack.c.l.s4 1983009808
    %v3208 = vunpack.c.0.s8 %v3207
    %v3209 = vperm.slane %v3205, %v3208
    %v3210 = vsel %vm604, %v3159, %v3148
    %v3212 = vunpack.c.l.s4 1983009808
    %v3213 = vunpack.c.0.s8 %v3212
    %v3214 = vperm.slane %v3210, %v3213
    %v3215 = vrot.slane %v3160, 4
    %v3216 = vsel %vm604, %v3215, %v3158
    %v3218 = vunpack.c.l.s4 1983009808
    %v3219 = vunpack.c.0.s8 %v3218
    %v3220 = vperm.slane %v3216, %v3219
    %v3221 = vrot.slane %v3209, 4
    %v3222 = vsel %vm604, %v3221, %v3203
    %v3224 = vunpack.c.l.s4 1934713408
    %v3225 = vunpack.c.0.s8 %v3224
    %v3226 = vperm.slane %v3222, %v3225
    %v3227 = vrot.slane %v3220, 4
    %v3228 = vsel %vm604, %v3227, %v3214
    %v3230 = vunpack.c.l.s4 1934713408
    %v3231 = vunpack.c.0.s8 %v3230
    %v3232 = vperm.slane %v3228, %v3231
    %v3233 = vrot.slane %v3232, 4
    %v3234 = vsel %vm604, %v3233, %v3226
    %v3235 = vrot.slane %v3226, 4
    %v3236 = vsel %vm604, %v3232, %v3235
    %v3238 = vsel %vm1168, %v2816, 0
    %v3241 = vsel %vm1168, %v3004, 0
    %3243 = vmatpush.xpose.msra.mxu0 0.0
    %3244 = vmatpush.xpose.msra.mxu0 0.0
    %3245 = vmatpush.xpose.msra.mxu0 0.0
    %3246 = vmatpush.xpose.msra.mxu0 0.0
    %3247 = vmatpush.xpose.msra.mxu0 0.0
    %3248 = vmatpush.xpose.msra.mxu0 0.0
    %3249 = vmatpush.xpose.msra.mxu0 0.0
    %3250 = vmatpush.xpose.msra.mxu0 0.0
    %3251 = vmatpush.xpose.msra.mxu0 0.0
    %3252 = vmatpush.xpose.msra.mxu0 0.0
    %3253 = vmatpush.xpose.msra.mxu0 0.0
    %3254 = vmatpush.xpose.msra.mxu0 0.0
    %3255 = vmatpush.xpose.msra.mxu0 0.0
    %3256 = vmatpush.xpose.msra.mxu0 0.0
    %3257 = vmatpush.xpose.msra.mxu0 0.0
    %v3258 = vand.u32 %v3241, 4294901760
    %3259 = vmatpush.xpose.msra.mxu0 %v3258
    %v3260 = vand.u32 %v3238, 4294901760
    %v3261 = vsub.f32 %v3238, %v3260
    %v3262 = vand.u32 %v3261, 4294901760
    %v3263 = vsub.f32 %v3261, %v3262
    %v3264 = vand.u32 %v3263, 4294901760
    %3265 = vmatmul.f32.gmra.mxu0 %v3264
    %v3266 = vpop.f32.mrf.mxu0
    %v3267 = vadd.f32 0.0, %v3266
    %3268 = vdwg.mxu0
    %3269 = vmatpush.xpose.msra.mxu0 0.0
    %3270 = vmatpush.xpose.msra.mxu0 0.0
    %3271 = vmatpush.xpose.msra.mxu0 0.0
    %3272 = vmatpush.xpose.msra.mxu0 0.0
    %3273 = vmatpush.xpose.msra.mxu0 0.0
    %3274 = vmatpush.xpose.msra.mxu0 0.0
    %3275 = vmatpush.xpose.msra.mxu0 0.0
    %3276 = vmatpush.xpose.msra.mxu0 0.0
    %3277 = vmatpush.xpose.msra.mxu0 0.0
    %3278 = vmatpush.xpose.msra.mxu0 0.0
    %3279 = vmatpush.xpose.msra.mxu0 0.0
    %3280 = vmatpush.xpose.msra.mxu0 0.0
    %3281 = vmatpush.xpose.msra.mxu0 0.0
    %3282 = vmatpush.xpose.msra.mxu0 0.0
    %3283 = vmatpush.xpose.msra.mxu0 0.0
    %v3284 = vand.u32 %v3241, 4294901760
    %v3285 = vsub.f32 %v3241, %v3284
    %v3286 = vand.u32 %v3285, 4294901760
    %v3287 = vsub.f32 %v3285, %v3286
    %v3288 = vand.u32 %v3287, 4294901760
    %3289 = vmatpush.xpose.msra.mxu0 %v3288
    %v3290 = vand.u32 %v3238, 4294901760
    %3291 = vmatmul.f32.gmra.mxu0 %v3290
    %v3292 = vpop.f32.mrf.mxu0
    %v3293 = vadd.f32 %v3267, %v3292
    %3294 = vdwg.mxu0
    %3295 = vmatpush.xpose.msra.mxu0 0.0
    %3296 = vmatpush.xpose.msra.mxu0 0.0
    %3297 = vmatpush.xpose.msra.mxu0 0.0
    %3298 = vmatpush.xpose.msra.mxu0 0.0
    %3299 = vmatpush.xpose.msra.mxu0 0.0
    %3300 = vmatpush.xpose.msra.mxu0 0.0
    %3301 = vmatpush.xpose.msra.mxu0 0.0
    %3302 = vmatpush.xpose.msra.mxu0 0.0
    %3303 = vmatpush.xpose.msra.mxu0 0.0
    %3304 = vmatpush.xpose.msra.mxu0 0.0
    %3305 = vmatpush.xpose.msra.mxu0 0.0
    %3306 = vmatpush.xpose.msra.mxu0 0.0
    %3307 = vmatpush.xpose.msra.mxu0 0.0
    %3308 = vmatpush.xpose.msra.mxu0 0.0
    %3309 = vmatpush.xpose.msra.mxu0 0.0
    %v3310 = vand.u32 %v3241, 4294901760
    %v3311 = vsub.f32 %v3241, %v3310
    %3312 = vmatpush.xpose.msra.mxu0 %v3311
    %v3313 = vand.u32 %v3238, 4294901760
    %v3314 = vsub.f32 %v3238, %v3313
    %3315 = vmatmul.f32.gmra.mxu0 %v3314
    %v3316 = vpop.f32.mrf.mxu0
    %v3317 = vadd.f32 %v3293, %v3316
    %3318 = vdwg.mxu0
    %3319 = vmatpush.xpose.msra.mxu0 0.0
    %3320 = vmatpush.xpose.msra.mxu0 0.0
    %3321 = vmatpush.xpose.msra.mxu0 0.0
    %3322 = vmatpush.xpose.msra.mxu0 0.0
    %3323 = vmatpush.xpose.msra.mxu0 0.0
    %3324 = vmatpush.xpose.msra.mxu0 0.0
    %3325 = vmatpush.xpose.msra.mxu0 0.0
    %3326 = vmatpush.xpose.msra.mxu0 0.0
    %3327 = vmatpush.xpose.msra.mxu0 0.0
    %3328 = vmatpush.xpose.msra.mxu0 0.0
    %3329 = vmatpush.xpose.msra.mxu0 0.0
    %3330 = vmatpush.xpose.msra.mxu0 0.0
    %3331 = vmatpush.xpose.msra.mxu0 0.0
    %3332 = vmatpush.xpose.msra.mxu0 0.0
    %3333 = vmatpush.xpose.msra.mxu0 0.0
    %v3334 = vand.u32 %v3241, 4294901760
    %3335 = vmatpush.xpose.msra.mxu0 %v3334
    %v3336 = vand.u32 %v3238, 4294901760
    %v3337 = vsub.f32 %v3238, %v3336
    %v3338 = vand.u32 %v3337, 4294901760
    %3339 = vmatmul.f32.gmra.mxu0 %v3338
    %v3340 = vpop.f32.mrf.mxu0
    %v3341 = vadd.f32 %v3317, %v3340
    %3342 = vdwg.mxu0
    %3343 = vmatpush.xpose.msra.mxu0 0.0
    %3344 = vmatpush.xpose.msra.mxu0 0.0
    %3345 = vmatpush.xpose.msra.mxu0 0.0
    %3346 = vmatpush.xpose.msra.mxu0 0.0
    %3347 = vmatpush.xpose.msra.mxu0 0.0
    %3348 = vmatpush.xpose.msra.mxu0 0.0
    %3349 = vmatpush.xpose.msra.mxu0 0.0
    %3350 = vmatpush.xpose.msra.mxu0 0.0
    %3351 = vmatpush.xpose.msra.mxu0 0.0
    %3352 = vmatpush.xpose.msra.mxu0 0.0
    %3353 = vmatpush.xpose.msra.mxu0 0.0
    %3354 = vmatpush.xpose.msra.mxu0 0.0
    %3355 = vmatpush.xpose.msra.mxu0 0.0
    %3356 = vmatpush.xpose.msra.mxu0 0.0
    %3357 = vmatpush.xpose.msra.mxu0 0.0
    %v3358 = vand.u32 %v3241, 4294901760
    %v3359 = vsub.f32 %v3241, %v3358
    %v3360 = vand.u32 %v3359, 4294901760
    %3361 = vmatpush.xpose.msra.mxu0 %v3360
    %v3362 = vand.u32 %v3238, 4294901760
    %3363 = vmatmul.f32.gmra.mxu0 %v3362
    %v3364 = vpop.f32.mrf.mxu0
    %v3365 = vadd.f32 %v3341, %v3364
    %3366 = vdwg.mxu0
    %3367 = vmatpush.xpose.msra.mxu0 0.0
    %3368 = vmatpush.xpose.msra.mxu0 0.0
    %3369 = vmatpush.xpose.msra.mxu0 0.0
    %3370 = vmatpush.xpose.msra.mxu0 0.0
    %3371 = vmatpush.xpose.msra.mxu0 0.0
    %3372 = vmatpush.xpose.msra.mxu0 0.0
    %3373 = vmatpush.xpose.msra.mxu0 0.0
    %3374 = vmatpush.xpose.msra.mxu0 0.0
    %3375 = vmatpush.xpose.msra.mxu0 0.0
    %3376 = vmatpush.xpose.msra.mxu0 0.0
    %3377 = vmatpush.xpose.msra.mxu0 0.0
    %3378 = vmatpush.xpose.msra.mxu0 0.0
    %3379 = vmatpush.xpose.msra.mxu0 0.0
    %3380 = vmatpush.xpose.msra.mxu0 0.0
    %3381 = vmatpush.xpose.msra.mxu0 0.0
    %v3382 = vand.u32 %v3241, 4294901760
    %3383 = vmatpush.xpose.msra.mxu0 %v3382
    %v3384 = vand.u32 %v3238, 4294901760
    %3385 = vmatmul.f32.gmra.mxu0 %v3384
    %v3386 = vpop.f32.mrf.mxu0
    %v3387 = vadd.f32 %v3365, %v3386
    %3388 = vdwg.mxu0
    %v3390 = vsel %vm1168, %v2818, 0
    %v3393 = vsel %vm1168, %v3006, 0
    %3395 = vmatpush.xpose.msra.mxu0 0.0
    %3396 = vmatpush.xpose.msra.mxu0 0.0
    %3397 = vmatpush.xpose.msra.mxu0 0.0
    %3398 = vmatpush.xpose.msra.mxu0 0.0
    %3399 = vmatpush.xpose.msra.mxu0 0.0
    %3400 = vmatpush.xpose.msra.mxu0 0.0
    %3401 = vmatpush.xpose.msra.mxu0 0.0
    %3402 = vmatpush.xpose.msra.mxu0 0.0
    %3403 = vmatpush.xpose.msra.mxu0 0.0
    %3404 = vmatpush.xpose.msra.mxu0 0.0
    %3405 = vmatpush.xpose.msra.mxu0 0.0
    %3406 = vmatpush.xpose.msra.mxu0 0.0
    %3407 = vmatpush.xpose.msra.mxu0 0.0
    %3408 = vmatpush.xpose.msra.mxu0 0.0
    %3409 = vmatpush.xpose.msra.mxu0 0.0
    %v3410 = vand.u32 %v3393, 4294901760
    %3411 = vmatpush.xpose.msra.mxu0 %v3410
    %v3412 = vand.u32 %v3390, 4294901760
    %v3413 = vsub.f32 %v3390, %v3412
    %v3414 = vand.u32 %v3413, 4294901760
    %v3415 = vsub.f32 %v3413, %v3414
    %v3416 = vand.u32 %v3415, 4294901760
    %3417 = vmatmul.f32.gmra.mxu0 %v3416
    %v3418 = vpop.f32.mrf.mxu0
    %v3419 = vadd.f32 0.0, %v3418
    %3420 = vdwg.mxu0
    %3421 = vmatpush.xpose.msra.mxu0 0.0
    %3422 = vmatpush.xpose.msra.mxu0 0.0
    %3423 = vmatpush.xpose.msra.mxu0 0.0
    %3424 = vmatpush.xpose.msra.mxu0 0.0
    %3425 = vmatpush.xpose.msra.mxu0 0.0
    %3426 = vmatpush.xpose.msra.mxu0 0.0
    %3427 = vmatpush.xpose.msra.mxu0 0.0
    %3428 = vmatpush.xpose.msra.mxu0 0.0
    %3429 = vmatpush.xpose.msra.mxu0 0.0
    %3430 = vmatpush.xpose.msra.mxu0 0.0
    %3431 = vmatpush.xpose.msra.mxu0 0.0
    %3432 = vmatpush.xpose.msra.mxu0 0.0
    %3433 = vmatpush.xpose.msra.mxu0 0.0
    %3434 = vmatpush.xpose.msra.mxu0 0.0
    %3435 = vmatpush.xpose.msra.mxu0 0.0
    %v3436 = vand.u32 %v3393, 4294901760
    %v3437 = vsub.f32 %v3393, %v3436
    %v3438 = vand.u32 %v3437, 4294901760
    %v3439 = vsub.f32 %v3437, %v3438
    %v3440 = vand.u32 %v3439, 4294901760
    %3441 = vmatpush.xpose.msra.mxu0 %v3440
    %v3442 = vand.u32 %v3390, 4294901760
    %3443 = vmatmul.f32.gmra.mxu0 %v3442
    %v3444 = vpop.f32.mrf.mxu0
    %v3445 = vadd.f32 %v3419, %v3444
    %3446 = vdwg.mxu0
    %3447 = vmatpush.xpose.msra.mxu0 0.0
    %3448 = vmatpush.xpose.msra.mxu0 0.0
    %3449 = vmatpush.xpose.msra.mxu0 0.0
    %3450 = vmatpush.xpose.msra.mxu0 0.0
    %3451 = vmatpush.xpose.msra.mxu0 0.0
    %3452 = vmatpush.xpose.msra.mxu0 0.0
    %3453 = vmatpush.xpose.msra.mxu0 0.0
    %3454 = vmatpush.xpose.msra.mxu0 0.0
    %3455 = vmatpush.xpose.msra.mxu0 0.0
    %3456 = vmatpush.xpose.msra.mxu0 0.0
    %3457 = vmatpush.xpose.msra.mxu0 0.0
    %3458 = vmatpush.xpose.msra.mxu0 0.0
    %3459 = vmatpush.xpose.msra.mxu0 0.0
    %3460 = vmatpush.xpose.msra.mxu0 0.0
    %3461 = vmatpush.xpose.msra.mxu0 0.0
    %v3462 = vand.u32 %v3393, 4294901760
    %v3463 = vsub.f32 %v3393, %v3462
    %3464 = vmatpush.xpose.msra.mxu0 %v3463
    %v3465 = vand.u32 %v3390, 4294901760
    %v3466 = vsub.f32 %v3390, %v3465
    %3467 = vmatmul.f32.gmra.mxu0 %v3466
    %v3468 = vpop.f32.mrf.mxu0
    %v3469 = vadd.f32 %v3445, %v3468
    %3470 = vdwg.mxu0
    %3471 = vmatpush.xpose.msra.mxu0 0.0
    %3472 = vmatpush.xpose.msra.mxu0 0.0
    %3473 = vmatpush.xpose.msra.mxu0 0.0
    %3474 = vmatpush.xpose.msra.mxu0 0.0
    %3475 = vmatpush.xpose.msra.mxu0 0.0
    %3476 = vmatpush.xpose.msra.mxu0 0.0
    %3477 = vmatpush.xpose.msra.mxu0 0.0
    %3478 = vmatpush.xpose.msra.mxu0 0.0
    %3479 = vmatpush.xpose.msra.mxu0 0.0
    %3480 = vmatpush.xpose.msra.mxu0 0.0
    %3481 = vmatpush.xpose.msra.mxu0 0.0
    %3482 = vmatpush.xpose.msra.mxu0 0.0
    %3483 = vmatpush.xpose.msra.mxu0 0.0
    %3484 = vmatpush.xpose.msra.mxu0 0.0
    %3485 = vmatpush.xpose.msra.mxu0 0.0
    %v3486 = vand.u32 %v3393, 4294901760
    %3487 = vmatpush.xpose.msra.mxu0 %v3486
    %v3488 = vand.u32 %v3390, 4294901760
    %v3489 = vsub.f32 %v3390, %v3488
    %v3490 = vand.u32 %v3489, 4294901760
    %3491 = vmatmul.f32.gmra.mxu0 %v3490
    %v3492 = vpop.f32.mrf.mxu0
    %v3493 = vadd.f32 %v3469, %v3492
    %3494 = vdwg.mxu0
    %3495 = vmatpush.xpose.msra.mxu0 0.0
    %3496 = vmatpush.xpose.msra.mxu0 0.0
    %3497 = vmatpush.xpose.msra.mxu0 0.0
    %3498 = vmatpush.xpose.msra.mxu0 0.0
    %3499 = vmatpush.xpose.msra.mxu0 0.0
    %3500 = vmatpush.xpose.msra.mxu0 0.0
    %3501 = vmatpush.xpose.msra.mxu0 0.0
    %3502 = vmatpush.xpose.msra.mxu0 0.0
    %3503 = vmatpush.xpose.msra.mxu0 0.0
    %3504 = vmatpush.xpose.msra.mxu0 0.0
    %3505 = vmatpush.xpose.msra.mxu0 0.0
    %3506 = vmatpush.xpose.msra.mxu0 0.0
    %3507 = vmatpush.xpose.msra.mxu0 0.0
    %3508 = vmatpush.xpose.msra.mxu0 0.0
    %3509 = vmatpush.xpose.msra.mxu0 0.0
    %v3510 = vand.u32 %v3393, 4294901760
    %v3511 = vsub.f32 %v3393, %v3510
    %v3512 = vand.u32 %v3511, 4294901760
    %3513 = vmatpush.xpose.msra.mxu0 %v3512
    %v3514 = vand.u32 %v3390, 4294901760
    %3515 = vmatmul.f32.gmra.mxu0 %v3514
    %v3516 = vpop.f32.mrf.mxu0
    %v3517 = vadd.f32 %v3493, %v3516
    %3518 = vdwg.mxu0
    %3519 = vmatpush.xpose.msra.mxu0 0.0
    %3520 = vmatpush.xpose.msra.mxu0 0.0
    %3521 = vmatpush.xpose.msra.mxu0 0.0
    %3522 = vmatpush.xpose.msra.mxu0 0.0
    %3523 = vmatpush.xpose.msra.mxu0 0.0
    %3524 = vmatpush.xpose.msra.mxu0 0.0
    %3525 = vmatpush.xpose.msra.mxu0 0.0
    %3526 = vmatpush.xpose.msra.mxu0 0.0
    %3527 = vmatpush.xpose.msra.mxu0 0.0
    %3528 = vmatpush.xpose.msra.mxu0 0.0
    %3529 = vmatpush.xpose.msra.mxu0 0.0
    %3530 = vmatpush.xpose.msra.mxu0 0.0
    %3531 = vmatpush.xpose.msra.mxu0 0.0
    %3532 = vmatpush.xpose.msra.mxu0 0.0
    %3533 = vmatpush.xpose.msra.mxu0 0.0
    %v3534 = vand.u32 %v3393, 4294901760
    %3535 = vmatpush.xpose.msra.mxu0 %v3534
    %v3536 = vand.u32 %v3390, 4294901760
    %3537 = vmatmul.f32.gmra.mxu0 %v3536
    %v3538 = vpop.f32.mrf.mxu0
    %v3539 = vadd.f32 %v3517, %v3538
    %3540 = vdwg.mxu0
    %v3542 = vsel %vm1168, %v2854, 0
    %v3545 = vsel %vm1168, %v3042, 0
    %3547 = vmatpush.xpose.msra.mxu0 0.0
    %3548 = vmatpush.xpose.msra.mxu0 0.0
    %3549 = vmatpush.xpose.msra.mxu0 0.0
    %3550 = vmatpush.xpose.msra.mxu0 0.0
    %3551 = vmatpush.xpose.msra.mxu0 0.0
    %3552 = vmatpush.xpose.msra.mxu0 0.0
    %3553 = vmatpush.xpose.msra.mxu0 0.0
    %3554 = vmatpush.xpose.msra.mxu0 0.0
    %3555 = vmatpush.xpose.msra.mxu0 0.0
    %3556 = vmatpush.xpose.msra.mxu0 0.0
    %3557 = vmatpush.xpose.msra.mxu0 0.0
    %3558 = vmatpush.xpose.msra.mxu0 0.0
    %3559 = vmatpush.xpose.msra.mxu0 0.0
    %3560 = vmatpush.xpose.msra.mxu0 0.0
    %3561 = vmatpush.xpose.msra.mxu0 0.0
    %v3562 = vand.u32 %v3545, 4294901760
    %3563 = vmatpush.xpose.msra.mxu0 %v3562
    %v3564 = vand.u32 %v3542, 4294901760
    %v3565 = vsub.f32 %v3542, %v3564
    %v3566 = vand.u32 %v3565, 4294901760
    %v3567 = vsub.f32 %v3565, %v3566
    %v3568 = vand.u32 %v3567, 4294901760
    %3569 = vmatmul.f32.gmra.mxu0 %v3568
    %v3570 = vpop.f32.mrf.mxu0
    %v3571 = vadd.f32 0.0, %v3570
    %3572 = vdwg.mxu0
    %3573 = vmatpush.xpose.msra.mxu0 0.0
    %3574 = vmatpush.xpose.msra.mxu0 0.0
    %3575 = vmatpush.xpose.msra.mxu0 0.0
    %3576 = vmatpush.xpose.msra.mxu0 0.0
    %3577 = vmatpush.xpose.msra.mxu0 0.0
    %3578 = vmatpush.xpose.msra.mxu0 0.0
    %3579 = vmatpush.xpose.msra.mxu0 0.0
    %3580 = vmatpush.xpose.msra.mxu0 0.0
    %3581 = vmatpush.xpose.msra.mxu0 0.0
    %3582 = vmatpush.xpose.msra.mxu0 0.0
    %3583 = vmatpush.xpose.msra.mxu0 0.0
    %3584 = vmatpush.xpose.msra.mxu0 0.0
    %3585 = vmatpush.xpose.msra.mxu0 0.0
    %3586 = vmatpush.xpose.msra.mxu0 0.0
    %3587 = vmatpush.xpose.msra.mxu0 0.0
    %v3588 = vand.u32 %v3545, 4294901760
    %v3589 = vsub.f32 %v3545, %v3588
    %v3590 = vand.u32 %v3589, 4294901760
    %v3591 = vsub.f32 %v3589, %v3590
    %v3592 = vand.u32 %v3591, 4294901760
    %3593 = vmatpush.xpose.msra.mxu0 %v3592
    %v3594 = vand.u32 %v3542, 4294901760
    %3595 = vmatmul.f32.gmra.mxu0 %v3594
    %v3596 = vpop.f32.mrf.mxu0
    %v3597 = vadd.f32 %v3571, %v3596
    %3598 = vdwg.mxu0
    %3599 = vmatpush.xpose.msra.mxu0 0.0
    %3600 = vmatpush.xpose.msra.mxu0 0.0
    %3601 = vmatpush.xpose.msra.mxu0 0.0
    %3602 = vmatpush.xpose.msra.mxu0 0.0
    %3603 = vmatpush.xpose.msra.mxu0 0.0
    %3604 = vmatpush.xpose.msra.mxu0 0.0
    %3605 = vmatpush.xpose.msra.mxu0 0.0
    %3606 = vmatpush.xpose.msra.mxu0 0.0
    %3607 = vmatpush.xpose.msra.mxu0 0.0
    %3608 = vmatpush.xpose.msra.mxu0 0.0
    %3609 = vmatpush.xpose.msra.mxu0 0.0
    %3610 = vmatpush.xpose.msra.mxu0 0.0
    %3611 = vmatpush.xpose.msra.mxu0 0.0
    %3612 = vmatpush.xpose.msra.mxu0 0.0
    %3613 = vmatpush.xpose.msra.mxu0 0.0
    %v3614 = vand.u32 %v3545, 4294901760
    %v3615 = vsub.f32 %v3545, %v3614
    %3616 = vmatpush.xpose.msra.mxu0 %v3615
    %v3617 = vand.u32 %v3542, 4294901760
    %v3618 = vsub.f32 %v3542, %v3617
    %3619 = vmatmul.f32.gmra.mxu0 %v3618
    %v3620 = vpop.f32.mrf.mxu0
    %v3621 = vadd.f32 %v3597, %v3620
    %3622 = vdwg.mxu0
    %3623 = vmatpush.xpose.msra.mxu0 0.0
    %3624 = vmatpush.xpose.msra.mxu0 0.0
    %3625 = vmatpush.xpose.msra.mxu0 0.0
    %3626 = vmatpush.xpose.msra.mxu0 0.0
    %3627 = vmatpush.xpose.msra.mxu0 0.0
    %3628 = vmatpush.xpose.msra.mxu0 0.0
    %3629 = vmatpush.xpose.msra.mxu0 0.0
    %3630 = vmatpush.xpose.msra.mxu0 0.0
    %3631 = vmatpush.xpose.msra.mxu0 0.0
    %3632 = vmatpush.xpose.msra.mxu0 0.0
    %3633 = vmatpush.xpose.msra.mxu0 0.0
    %3634 = vmatpush.xpose.msra.mxu0 0.0
    %3635 = vmatpush.xpose.msra.mxu0 0.0
    %3636 = vmatpush.xpose.msra.mxu0 0.0
    %3637 = vmatpush.xpose.msra.mxu0 0.0
    %v3638 = vand.u32 %v3545, 4294901760
    %3639 = vmatpush.xpose.msra.mxu0 %v3638
    %v3640 = vand.u32 %v3542, 4294901760
    %v3641 = vsub.f32 %v3542, %v3640
    %v3642 = vand.u32 %v3641, 4294901760
    %3643 = vmatmul.f32.gmra.mxu0 %v3642
    %v3644 = vpop.f32.mrf.mxu0
    %v3645 = vadd.f32 %v3621, %v3644
    %3646 = vdwg.mxu0
    %3647 = vmatpush.xpose.msra.mxu0 0.0
    %3648 = vmatpush.xpose.msra.mxu0 0.0
    %3649 = vmatpush.xpose.msra.mxu0 0.0
    %3650 = vmatpush.xpose.msra.mxu0 0.0
    %3651 = vmatpush.xpose.msra.mxu0 0.0
    %3652 = vmatpush.xpose.msra.mxu0 0.0
    %3653 = vmatpush.xpose.msra.mxu0 0.0
    %3654 = vmatpush.xpose.msra.mxu0 0.0
    %3655 = vmatpush.xpose.msra.mxu0 0.0
    %3656 = vmatpush.xpose.msra.mxu0 0.0
    %3657 = vmatpush.xpose.msra.mxu0 0.0
    %3658 = vmatpush.xpose.msra.mxu0 0.0
    %3659 = vmatpush.xpose.msra.mxu0 0.0
    %3660 = vmatpush.xpose.msra.mxu0 0.0
    %3661 = vmatpush.xpose.msra.mxu0 0.0
    %v3662 = vand.u32 %v3545, 4294901760
    %v3663 = vsub.f32 %v3545, %v3662
    %v3664 = vand.u32 %v3663, 4294901760
    %3665 = vmatpush.xpose.msra.mxu0 %v3664
    %v3666 = vand.u32 %v3542, 4294901760
    %3667 = vmatmul.f32.gmra.mxu0 %v3666
    %v3668 = vpop.f32.mrf.mxu0
    %v3669 = vadd.f32 %v3645, %v3668
    %3670 = vdwg.mxu0
    %3671 = vmatpush.xpose.msra.mxu0 0.0
    %3672 = vmatpush.xpose.msra.mxu0 0.0
    %3673 = vmatpush.xpose.msra.mxu0 0.0
    %3674 = vmatpush.xpose.msra.mxu0 0.0
    %3675 = vmatpush.xpose.msra.mxu0 0.0
    %3676 = vmatpush.xpose.msra.mxu0 0.0
    %3677 = vmatpush.xpose.msra.mxu0 0.0
    %3678 = vmatpush.xpose.msra.mxu0 0.0
    %3679 = vmatpush.xpose.msra.mxu0 0.0
    %3680 = vmatpush.xpose.msra.mxu0 0.0
    %3681 = vmatpush.xpose.msra.mxu0 0.0
    %3682 = vmatpush.xpose.msra.mxu0 0.0
    %3683 = vmatpush.xpose.msra.mxu0 0.0
    %3684 = vmatpush.xpose.msra.mxu0 0.0
    %3685 = vmatpush.xpose.msra.mxu0 0.0
    %v3686 = vand.u32 %v3545, 4294901760
    %3687 = vmatpush.xpose.msra.mxu0 %v3686
    %v3688 = vand.u32 %v3542, 4294901760
    %3689 = vmatmul.f32.gmra.mxu0 %v3688
    %v3690 = vpop.f32.mrf.mxu0
    %v3691 = vadd.f32 %v3669, %v3690
    %3692 = vdwg.mxu0
    %v3694 = vsel %vm1168, %v2856, 0
    %v3697 = vsel %vm1168, %v3044, 0
    %3699 = vmatpush.xpose.msra.mxu0 0.0
    %3700 = vmatpush.xpose.msra.mxu0 0.0
    %3701 = vmatpush.xpose.msra.mxu0 0.0
    %3702 = vmatpush.xpose.msra.mxu0 0.0
    %3703 = vmatpush.xpose.msra.mxu0 0.0
    %3704 = vmatpush.xpose.msra.mxu0 0.0
    %3705 = vmatpush.xpose.msra.mxu0 0.0
    %3706 = vmatpush.xpose.msra.mxu0 0.0
    %3707 = vmatpush.xpose.msra.mxu0 0.0
    %3708 = vmatpush.xpose.msra.mxu0 0.0
    %3709 = vmatpush.xpose.msra.mxu0 0.0
    %3710 = vmatpush.xpose.msra.mxu0 0.0
    %3711 = vmatpush.xpose.msra.mxu0 0.0
    %3712 = vmatpush.xpose.msra.mxu0 0.0
    %3713 = vmatpush.xpose.msra.mxu0 0.0
    %v3714 = vand.u32 %v3697, 4294901760
    %3715 = vmatpush.xpose.msra.mxu0 %v3714
    %v3716 = vand.u32 %v3694, 4294901760
    %v3717 = vsub.f32 %v3694, %v3716
    %v3718 = vand.u32 %v3717, 4294901760
    %v3719 = vsub.f32 %v3717, %v3718
    %v3720 = vand.u32 %v3719, 4294901760
    %3721 = vmatmul.f32.gmra.mxu0 %v3720
    %v3722 = vpop.f32.mrf.mxu0
    %v3723 = vadd.f32 0.0, %v3722
    %3724 = vdwg.mxu0
    %3725 = vmatpush.xpose.msra.mxu0 0.0
    %3726 = vmatpush.xpose.msra.mxu0 0.0
    %3727 = vmatpush.xpose.msra.mxu0 0.0
    %3728 = vmatpush.xpose.msra.mxu0 0.0
    %3729 = vmatpush.xpose.msra.mxu0 0.0
    %3730 = vmatpush.xpose.msra.mxu0 0.0
    %3731 = vmatpush.xpose.msra.mxu0 0.0
    %3732 = vmatpush.xpose.msra.mxu0 0.0
    %3733 = vmatpush.xpose.msra.mxu0 0.0
    %3734 = vmatpush.xpose.msra.mxu0 0.0
    %3735 = vmatpush.xpose.msra.mxu0 0.0
    %3736 = vmatpush.xpose.msra.mxu0 0.0
    %3737 = vmatpush.xpose.msra.mxu0 0.0
    %3738 = vmatpush.xpose.msra.mxu0 0.0
    %3739 = vmatpush.xpose.msra.mxu0 0.0
    %v3740 = vand.u32 %v3697, 4294901760
    %v3741 = vsub.f32 %v3697, %v3740
    %v3742 = vand.u32 %v3741, 4294901760
    %v3743 = vsub.f32 %v3741, %v3742
    %v3744 = vand.u32 %v3743, 4294901760
    %3745 = vmatpush.xpose.msra.mxu0 %v3744
    %v3746 = vand.u32 %v3694, 4294901760
    %3747 = vmatmul.f32.gmra.mxu0 %v3746
    %v3748 = vpop.f32.mrf.mxu0
    %v3749 = vadd.f32 %v3723, %v3748
    %3750 = vdwg.mxu0
    %3751 = vmatpush.xpose.msra.mxu0 0.0
    %3752 = vmatpush.xpose.msra.mxu0 0.0
    %3753 = vmatpush.xpose.msra.mxu0 0.0
    %3754 = vmatpush.xpose.msra.mxu0 0.0
    %3755 = vmatpush.xpose.msra.mxu0 0.0
    %3756 = vmatpush.xpose.msra.mxu0 0.0
    %3757 = vmatpush.xpose.msra.mxu0 0.0
    %3758 = vmatpush.xpose.msra.mxu0 0.0
    %3759 = vmatpush.xpose.msra.mxu0 0.0
    %3760 = vmatpush.xpose.msra.mxu0 0.0
    %3761 = vmatpush.xpose.msra.mxu0 0.0
    %3762 = vmatpush.xpose.msra.mxu0 0.0
    %3763 = vmatpush.xpose.msra.mxu0 0.0
    %3764 = vmatpush.xpose.msra.mxu0 0.0
    %3765 = vmatpush.xpose.msra.mxu0 0.0
    %v3766 = vand.u32 %v3697, 4294901760
    %v3767 = vsub.f32 %v3697, %v3766
    %3768 = vmatpush.xpose.msra.mxu0 %v3767
    %v3769 = vand.u32 %v3694, 4294901760
    %v3770 = vsub.f32 %v3694, %v3769
    %3771 = vmatmul.f32.gmra.mxu0 %v3770
    %v3772 = vpop.f32.mrf.mxu0
    %v3773 = vadd.f32 %v3749, %v3772
    %3774 = vdwg.mxu0
    %3775 = vmatpush.xpose.msra.mxu0 0.0
    %3776 = vmatpush.xpose.msra.mxu0 0.0
    %3777 = vmatpush.xpose.msra.mxu0 0.0
    %3778 = vmatpush.xpose.msra.mxu0 0.0
    %3779 = vmatpush.xpose.msra.mxu0 0.0
    %3780 = vmatpush.xpose.msra.mxu0 0.0
    %3781 = vmatpush.xpose.msra.mxu0 0.0
    %3782 = vmatpush.xpose.msra.mxu0 0.0
    %3783 = vmatpush.xpose.msra.mxu0 0.0
    %3784 = vmatpush.xpose.msra.mxu0 0.0
    %3785 = vmatpush.xpose.msra.mxu0 0.0
    %3786 = vmatpush.xpose.msra.mxu0 0.0
    %3787 = vmatpush.xpose.msra.mxu0 0.0
    %3788 = vmatpush.xpose.msra.mxu0 0.0
    %3789 = vmatpush.xpose.msra.mxu0 0.0
    %v3790 = vand.u32 %v3697, 4294901760
    %3791 = vmatpush.xpose.msra.mxu0 %v3790
    %v3792 = vand.u32 %v3694, 4294901760
    %v3793 = vsub.f32 %v3694, %v3792
    %v3794 = vand.u32 %v3793, 4294901760
    %3795 = vmatmul.f32.gmra.mxu0 %v3794
    %v3796 = vpop.f32.mrf.mxu0
    %v3797 = vadd.f32 %v3773, %v3796
    %3798 = vdwg.mxu0
    %3799 = vmatpush.xpose.msra.mxu0 0.0
    %3800 = vmatpush.xpose.msra.mxu0 0.0
    %3801 = vmatpush.xpose.msra.mxu0 0.0
    %3802 = vmatpush.xpose.msra.mxu0 0.0
    %3803 = vmatpush.xpose.msra.mxu0 0.0
    %3804 = vmatpush.xpose.msra.mxu0 0.0
    %3805 = vmatpush.xpose.msra.mxu0 0.0
    %3806 = vmatpush.xpose.msra.mxu0 0.0
    %3807 = vmatpush.xpose.msra.mxu0 0.0
    %3808 = vmatpush.xpose.msra.mxu0 0.0
    %3809 = vmatpush.xpose.msra.mxu0 0.0
    %3810 = vmatpush.xpose.msra.mxu0 0.0
    %3811 = vmatpush.xpose.msra.mxu0 0.0
    %3812 = vmatpush.xpose.msra.mxu0 0.0
    %3813 = vmatpush.xpose.msra.mxu0 0.0
    %v3814 = vand.u32 %v3697, 4294901760
    %v3815 = vsub.f32 %v3697, %v3814
    %v3816 = vand.u32 %v3815, 4294901760
    %3817 = vmatpush.xpose.msra.mxu0 %v3816
    %v3818 = vand.u32 %v3694, 4294901760
    %3819 = vmatmul.f32.gmra.mxu0 %v3818
    %v3820 = vpop.f32.mrf.mxu0
    %v3821 = vadd.f32 %v3797, %v3820
    %3822 = vdwg.mxu0
    %3823 = vmatpush.xpose.msra.mxu0 0.0
    %3824 = vmatpush.xpose.msra.mxu0 0.0
    %3825 = vmatpush.xpose.msra.mxu0 0.0
    %3826 = vmatpush.xpose.msra.mxu0 0.0
    %3827 = vmatpush.xpose.msra.mxu0 0.0
    %3828 = vmatpush.xpose.msra.mxu0 0.0
    %3829 = vmatpush.xpose.msra.mxu0 0.0
    %3830 = vmatpush.xpose.msra.mxu0 0.0
    %3831 = vmatpush.xpose.msra.mxu0 0.0
    %3832 = vmatpush.xpose.msra.mxu0 0.0
    %3833 = vmatpush.xpose.msra.mxu0 0.0
    %3834 = vmatpush.xpose.msra.mxu0 0.0
    %3835 = vmatpush.xpose.msra.mxu0 0.0
    %3836 = vmatpush.xpose.msra.mxu0 0.0
    %3837 = vmatpush.xpose.msra.mxu0 0.0
    %v3838 = vand.u32 %v3697, 4294901760
    %3839 = vmatpush.xpose.msra.mxu0 %v3838
    %v3840 = vand.u32 %v3694, 4294901760
    %3841 = vmatmul.f32.gmra.mxu0 %v3840
    %v3842 = vpop.f32.mrf.mxu0
    %v3843 = vadd.f32 %v3821, %v3842
    %3844 = vdwg.mxu0
    %v3845 = vadd.f32 %v3387, %v140
    %v3846 = vadd.f32 %v3539, %v140
    %v3847 = vadd.f32 %v3691, %v141
    %v3848 = vadd.f32 %v3843, %v141
    %v3849 = vsel %vm1168, %v3845, -inf
    %3850 = vmax.xlane.f32.xlu0 %v3849
    %v3851 = vpop.xlane.xlu0 %3850
    %v3852 = vsel %vm1168, %v3846, -inf
    %3853 = vmax.xlane.f32.xlu0 %v3852
    %v3854 = vpop.xlane.xlu0 %3853
    %v3855 = vsel %vm1168, %v3847, -inf
    %3856 = vmax.xlane.f32.xlu0 %v3855
    %v3857 = vpop.xlane.xlu0 %3856
    %v3858 = vsel %vm1168, %v3848, -inf
    %3859 = vmax.xlane.f32.xlu0 %v3858
    %v3860 = vpop.xlane.xlu0 %3859
    %v3861 = vsub.f32 %v3845, %v3851
    %v3862 = vsub.f32 %v3846, %v3854
    %v3863 = vsub.f32 %v3847, %v3857
    %v3864 = vsub.f32 %v3848, %v3860
    %v3865 = vmul.f32 %v3861, 1.442695
    %v3866 = vpow.pop %v3865
    %v3867 = vmul.f32 %v3862, 1.442695
    %v3868 = vpow.pop %v3867
    %v3869 = vmul.f32 %v3863, 1.442695
    %v3870 = vpow.pop %v3869
    %v3871 = vmul.f32 %v3864, 1.442695
    %v3872 = vpow.pop %v3871
    %v3873 = vsel %vm1168, %v3866, 0.0
    %3874 = vadd.xlane.f32.xlu0 %v3873
    %v3875 = vpop.xlane.xlu0 %3874
    %v3876 = vsel %vm1168, %v3868, 0.0
    %3877 = vadd.xlane.f32.xlu0 %v3876
    %v3878 = vpop.xlane.xlu0 %3877
    %v3879 = vsel %vm1168, %v3870, 0.0
    %3880 = vadd.xlane.f32.xlu0 %v3879
    %v3881 = vpop.xlane.xlu0 %3880
    %v3882 = vsel %vm1168, %v3872, 0.0
    %3883 = vadd.xlane.f32.xlu0 %v3882
    %v3884 = vpop.xlane.xlu0 %3883
    %v3885 = vrcp.pop %v3875
    %v3886 = vmul.f32 %v3875, %v3885
    %v3887 = vsub.f32 1.0, %v3886
    %v3888 = vmul.f32 %v3885, %v3887
    %v3889 = vadd.f32 %v3885, %v3888
    %vm3890 = vweird.f32 %v3875
    %vm3891 = vweird.f32 %v3885
    %vm3892 = vmor %vm3890, %vm3891
    %v3893 = vsel %vm3892, %v3885, %v3889
    %v3894 = vand.u32 2147483647, %v3875
    %vm3895 = vcmp.eq.f32.partialorder %v3894, 8.507059e+37
    %v3896 = vand.u32 %v3875, 2147483648
    %v3897 = vor.u32 1.1754944e-38, %v3896
    %v3898 = vsel %vm3895, %v3897, %v3893
    %v3899 = vrcp.pop %v3878
    %v3900 = vmul.f32 %v3878, %v3899
    %v3901 = vsub.f32 1.0, %v3900
    %v3902 = vmul.f32 %v3899, %v3901
    %v3903 = vadd.f32 %v3899, %v3902
    %vm3904 = vweird.f32 %v3878
    %vm3905 = vweird.f32 %v3899
    %vm3906 = vmor %vm3904, %vm3905
    %v3907 = vsel %vm3906, %v3899, %v3903
    %v3908 = vand.u32 2147483647, %v3878
    %vm3909 = vcmp.eq.f32.partialorder %v3908, 8.507059e+37
    %v3910 = vand.u32 %v3878, 2147483648
    %v3911 = vor.u32 1.1754944e-38, %v3910
    %v3912 = vsel %vm3909, %v3911, %v3907
    %v3913 = vrcp.pop %v3881
    %v3914 = vmul.f32 %v3881, %v3913
    %v3915 = vsub.f32 1.0, %v3914
    %v3916 = vmul.f32 %v3913, %v3915
    %v3917 = vadd.f32 %v3913, %v3916
    %vm3918 = vweird.f32 %v3881
    %vm3919 = vweird.f32 %v3913
    %vm3920 = vmor %vm3918, %vm3919
    %v3921 = vsel %vm3920, %v3913, %v3917
    %v3922 = vand.u32 2147483647, %v3881
    %vm3923 = vcmp.eq.f32.partialorder %v3922, 8.507059e+37
    %v3924 = vand.u32 %v3881, 2147483648
    %v3925 = vor.u32 1.1754944e-38, %v3924
    %v3926 = vsel %vm3923, %v3925, %v3921
    %v3927 = vrcp.pop %v3884
    %v3928 = vmul.f32 %v3884, %v3927
    %v3929 = vsub.f32 1.0, %v3928
    %v3930 = vmul.f32 %v3927, %v3929
    %v3931 = vadd.f32 %v3927, %v3930
    %vm3932 = vweird.f32 %v3884
    %vm3933 = vweird.f32 %v3927
    %vm3934 = vmor %vm3932, %vm3933
    %v3935 = vsel %vm3934, %v3927, %v3931
    %v3936 = vand.u32 2147483647, %v3884
    %vm3937 = vcmp.eq.f32.partialorder %v3936, 8.507059e+37
    %v3938 = vand.u32 %v3884, 2147483648
    %v3939 = vor.u32 1.1754944e-38, %v3938
    %v3940 = vsel %vm3937, %v3939, %v3935
    %v3941 = vmul.f32 %v3866, %v3898
    %v3942 = vmul.f32 %v3868, %v3912
    %v3943 = vmul.f32 %v3870, %v3926
    %v3944 = vmul.f32 %v3872, %v3940
    %v3946 = vsel %vm1168, %v3941, 0
    %3948 = vmatpush.msra.mxu0 0.0
    %3949 = vmatpush.msra.mxu0 0.0
    %3950 = vmatpush.msra.mxu0 0.0
    %3951 = vmatpush.msra.mxu0 0.0
    %3952 = vmatpush.msra.mxu0 0.0
    %3953 = vmatpush.msra.mxu0 0.0
    %3954 = vmatpush.msra.mxu0 0.0
    %3955 = vmatpush.msra.mxu0 0.0
    %3956 = vmatpush.msra.mxu0 0.0
    %3957 = vmatpush.msra.mxu0 0.0
    %3958 = vmatpush.msra.mxu0 0.0
    %3959 = vmatpush.msra.mxu0 0.0
    %3960 = vmatpush.msra.mxu0 0.0
    %3961 = vmatpush.msra.mxu0 0.0
    %3962 = vmatpush.msra.mxu0 0.0
    %v3963 = vand.u32 %v3196, 4294901760
    %3964 = vmatpush.msra.mxu0 %v3963
    %v3965 = vand.u32 %v3946, 4294901760
    %v3966 = vsub.f32 %v3946, %v3965
    %v3967 = vand.u32 %v3966, 4294901760
    %v3968 = vsub.f32 %v3966, %v3967
    %v3969 = vand.u32 %v3968, 4294901760
    %3970 = vmatmul.f32.gmra.mxu0 %v3969
    %v3971 = vpop.f32.mrf.mxu0
    %v3972 = vadd.f32 0.0, %v3971
    %3973 = vdwg.mxu0
    %3974 = vmatpush.msra.mxu0 0.0
    %3975 = vmatpush.msra.mxu0 0.0
    %3976 = vmatpush.msra.mxu0 0.0
    %3977 = vmatpush.msra.mxu0 0.0
    %3978 = vmatpush.msra.mxu0 0.0
    %3979 = vmatpush.msra.mxu0 0.0
    %3980 = vmatpush.msra.mxu0 0.0
    %3981 = vmatpush.msra.mxu0 0.0
    %3982 = vmatpush.msra.mxu0 0.0
    %3983 = vmatpush.msra.mxu0 0.0
    %3984 = vmatpush.msra.mxu0 0.0
    %3985 = vmatpush.msra.mxu0 0.0
    %3986 = vmatpush.msra.mxu0 0.0
    %3987 = vmatpush.msra.mxu0 0.0
    %3988 = vmatpush.msra.mxu0 0.0
    %v3989 = vand.u32 %v3196, 4294901760
    %v3990 = vsub.f32 %v3196, %v3989
    %v3991 = vand.u32 %v3990, 4294901760
    %v3992 = vsub.f32 %v3990, %v3991
    %v3993 = vand.u32 %v3992, 4294901760
    %3994 = vmatpush.msra.mxu0 %v3993
    %v3995 = vand.u32 %v3946, 4294901760
    %3996 = vmatmul.f32.gmra.mxu0 %v3995
    %v3997 = vpop.f32.mrf.mxu0
    %v3998 = vadd.f32 %v3972, %v3997
    %3999 = vdwg.mxu0
    %4000 = vmatpush.msra.mxu0 0.0
    %4001 = vmatpush.msra.mxu0 0.0
    %4002 = vmatpush.msra.mxu0 0.0
    %4003 = vmatpush.msra.mxu0 0.0
    %4004 = vmatpush.msra.mxu0 0.0
    %4005 = vmatpush.msra.mxu0 0.0
    %4006 = vmatpush.msra.mxu0 0.0
    %4007 = vmatpush.msra.mxu0 0.0
    %4008 = vmatpush.msra.mxu0 0.0
    %4009 = vmatpush.msra.mxu0 0.0
    %4010 = vmatpush.msra.mxu0 0.0
    %4011 = vmatpush.msra.mxu0 0.0
    %4012 = vmatpush.msra.mxu0 0.0
    %4013 = vmatpush.msra.mxu0 0.0
    %4014 = vmatpush.msra.mxu0 0.0
    %v4015 = vand.u32 %v3196, 4294901760
    %v4016 = vsub.f32 %v3196, %v4015
    %4017 = vmatpush.msra.mxu0 %v4016
    %v4018 = vand.u32 %v3946, 4294901760
    %v4019 = vsub.f32 %v3946, %v4018
    %4020 = vmatmul.f32.gmra.mxu0 %v4019
    %v4021 = vpop.f32.mrf.mxu0
    %v4022 = vadd.f32 %v3998, %v4021
    %4023 = vdwg.mxu0
    %4024 = vmatpush.msra.mxu0 0.0
    %4025 = vmatpush.msra.mxu0 0.0
    %4026 = vmatpush.msra.mxu0 0.0
    %4027 = vmatpush.msra.mxu0 0.0
    %4028 = vmatpush.msra.mxu0 0.0
    %4029 = vmatpush.msra.mxu0 0.0
    %4030 = vmatpush.msra.mxu0 0.0
    %4031 = vmatpush.msra.mxu0 0.0
    %4032 = vmatpush.msra.mxu0 0.0
    %4033 = vmatpush.msra.mxu0 0.0
    %4034 = vmatpush.msra.mxu0 0.0
    %4035 = vmatpush.msra.mxu0 0.0
    %4036 = vmatpush.msra.mxu0 0.0
    %4037 = vmatpush.msra.mxu0 0.0
    %4038 = vmatpush.msra.mxu0 0.0
    %v4039 = vand.u32 %v3196, 4294901760
    %4040 = vmatpush.msra.mxu0 %v4039
    %v4041 = vand.u32 %v3946, 4294901760
    %v4042 = vsub.f32 %v3946, %v4041
    %v4043 = vand.u32 %v4042, 4294901760
    %4044 = vmatmul.f32.gmra.mxu0 %v4043
    %v4045 = vpop.f32.mrf.mxu0
    %v4046 = vadd.f32 %v4022, %v4045
    %4047 = vdwg.mxu0
    %4048 = vmatpush.msra.mxu0 0.0
    %4049 = vmatpush.msra.mxu0 0.0
    %4050 = vmatpush.msra.mxu0 0.0
    %4051 = vmatpush.msra.mxu0 0.0
    %4052 = vmatpush.msra.mxu0 0.0
    %4053 = vmatpush.msra.mxu0 0.0
    %4054 = vmatpush.msra.mxu0 0.0
    %4055 = vmatpush.msra.mxu0 0.0
    %4056 = vmatpush.msra.mxu0 0.0
    %4057 = vmatpush.msra.mxu0 0.0
    %4058 = vmatpush.msra.mxu0 0.0
    %4059 = vmatpush.msra.mxu0 0.0
    %4060 = vmatpush.msra.mxu0 0.0
    %4061 = vmatpush.msra.mxu0 0.0
    %4062 = vmatpush.msra.mxu0 0.0
    %v4063 = vand.u32 %v3196, 4294901760
    %v4064 = vsub.f32 %v3196, %v4063
    %v4065 = vand.u32 %v4064, 4294901760
    %4066 = vmatpush.msra.mxu0 %v4065
    %v4067 = vand.u32 %v3946, 4294901760
    %4068 = vmatmul.f32.gmra.mxu0 %v4067
    %v4069 = vpop.f32.mrf.mxu0
    %v4070 = vadd.f32 %v4046, %v4069
    %4071 = vdwg.mxu0
    %4072 = vmatpush.msra.mxu0 0.0
    %4073 = vmatpush.msra.mxu0 0.0
    %4074 = vmatpush.msra.mxu0 0.0
    %4075 = vmatpush.msra.mxu0 0.0
    %4076 = vmatpush.msra.mxu0 0.0
    %4077 = vmatpush.msra.mxu0 0.0
    %4078 = vmatpush.msra.mxu0 0.0
    %4079 = vmatpush.msra.mxu0 0.0
    %4080 = vmatpush.msra.mxu0 0.0
    %4081 = vmatpush.msra.mxu0 0.0
    %4082 = vmatpush.msra.mxu0 0.0
    %4083 = vmatpush.msra.mxu0 0.0
    %4084 = vmatpush.msra.mxu0 0.0
    %4085 = vmatpush.msra.mxu0 0.0
    %4086 = vmatpush.msra.mxu0 0.0
    %v4087 = vand.u32 %v3196, 4294901760
    %4088 = vmatpush.msra.mxu0 %v4087
    %v4089 = vand.u32 %v3946, 4294901760
    %4090 = vmatmul.f32.gmra.mxu0 %v4089
    %v4091 = vpop.f32.mrf.mxu0
    %v4092 = vadd.f32 %v4070, %v4091
    %4093 = vdwg.mxu0
    %v4095 = vsel %vm1168, %v3942, 0
    %4097 = vmatpush.msra.mxu0 0.0
    %4098 = vmatpush.msra.mxu0 0.0
    %4099 = vmatpush.msra.mxu0 0.0
    %4100 = vmatpush.msra.mxu0 0.0
    %4101 = vmatpush.msra.mxu0 0.0
    %4102 = vmatpush.msra.mxu0 0.0
    %4103 = vmatpush.msra.mxu0 0.0
    %4104 = vmatpush.msra.mxu0 0.0
    %4105 = vmatpush.msra.mxu0 0.0
    %4106 = vmatpush.msra.mxu0 0.0
    %4107 = vmatpush.msra.mxu0 0.0
    %4108 = vmatpush.msra.mxu0 0.0
    %4109 = vmatpush.msra.mxu0 0.0
    %4110 = vmatpush.msra.mxu0 0.0
    %4111 = vmatpush.msra.mxu0 0.0
    %v4112 = vand.u32 %v3198, 4294901760
    %4113 = vmatpush.msra.mxu0 %v4112
    %v4114 = vand.u32 %v4095, 4294901760
    %v4115 = vsub.f32 %v4095, %v4114
    %v4116 = vand.u32 %v4115, 4294901760
    %v4117 = vsub.f32 %v4115, %v4116
    %v4118 = vand.u32 %v4117, 4294901760
    %4119 = vmatmul.f32.gmra.mxu0 %v4118
    %v4120 = vpop.f32.mrf.mxu0
    %v4121 = vadd.f32 0.0, %v4120
    %4122 = vdwg.mxu0
    %4123 = vmatpush.msra.mxu0 0.0
    %4124 = vmatpush.msra.mxu0 0.0
    %4125 = vmatpush.msra.mxu0 0.0
    %4126 = vmatpush.msra.mxu0 0.0
    %4127 = vmatpush.msra.mxu0 0.0
    %4128 = vmatpush.msra.mxu0 0.0
    %4129 = vmatpush.msra.mxu0 0.0
    %4130 = vmatpush.msra.mxu0 0.0
    %4131 = vmatpush.msra.mxu0 0.0
    %4132 = vmatpush.msra.mxu0 0.0
    %4133 = vmatpush.msra.mxu0 0.0
    %4134 = vmatpush.msra.mxu0 0.0
    %4135 = vmatpush.msra.mxu0 0.0
    %4136 = vmatpush.msra.mxu0 0.0
    %4137 = vmatpush.msra.mxu0 0.0
    %v4138 = vand.u32 %v3198, 4294901760
    %v4139 = vsub.f32 %v3198, %v4138
    %v4140 = vand.u32 %v4139, 4294901760
    %v4141 = vsub.f32 %v4139, %v4140
    %v4142 = vand.u32 %v4141, 4294901760
    %4143 = vmatpush.msra.mxu0 %v4142
    %v4144 = vand.u32 %v4095, 4294901760
    %4145 = vmatmul.f32.gmra.mxu0 %v4144
    %v4146 = vpop.f32.mrf.mxu0
    %v4147 = vadd.f32 %v4121, %v4146
    %4148 = vdwg.mxu0
    %4149 = vmatpush.msra.mxu0 0.0
    %4150 = vmatpush.msra.mxu0 0.0
    %4151 = vmatpush.msra.mxu0 0.0
    %4152 = vmatpush.msra.mxu0 0.0
    %4153 = vmatpush.msra.mxu0 0.0
    %4154 = vmatpush.msra.mxu0 0.0
    %4155 = vmatpush.msra.mxu0 0.0
    %4156 = vmatpush.msra.mxu0 0.0
    %4157 = vmatpush.msra.mxu0 0.0
    %4158 = vmatpush.msra.mxu0 0.0
    %4159 = vmatpush.msra.mxu0 0.0
    %4160 = vmatpush.msra.mxu0 0.0
    %4161 = vmatpush.msra.mxu0 0.0
    %4162 = vmatpush.msra.mxu0 0.0
    %4163 = vmatpush.msra.mxu0 0.0
    %v4164 = vand.u32 %v3198, 4294901760
    %v4165 = vsub.f32 %v3198, %v4164
    %4166 = vmatpush.msra.mxu0 %v4165
    %v4167 = vand.u32 %v4095, 4294901760
    %v4168 = vsub.f32 %v4095, %v4167
    %4169 = vmatmul.f32.gmra.mxu0 %v4168
    %v4170 = vpop.f32.mrf.mxu0
    %v4171 = vadd.f32 %v4147, %v4170
    %4172 = vdwg.mxu0
    %4173 = vmatpush.msra.mxu0 0.0
    %4174 = vmatpush.msra.mxu0 0.0
    %4175 = vmatpush.msra.mxu0 0.0
    %4176 = vmatpush.msra.mxu0 0.0
    %4177 = vmatpush.msra.mxu0 0.0
    %4178 = vmatpush.msra.mxu0 0.0
    %4179 = vmatpush.msra.mxu0 0.0
    %4180 = vmatpush.msra.mxu0 0.0
    %4181 = vmatpush.msra.mxu0 0.0
    %4182 = vmatpush.msra.mxu0 0.0
    %4183 = vmatpush.msra.mxu0 0.0
    %4184 = vmatpush.msra.mxu0 0.0
    %4185 = vmatpush.msra.mxu0 0.0
    %4186 = vmatpush.msra.mxu0 0.0
    %4187 = vmatpush.msra.mxu0 0.0
    %v4188 = vand.u32 %v3198, 4294901760
    %4189 = vmatpush.msra.mxu0 %v4188
    %v4190 = vand.u32 %v4095, 4294901760
    %v4191 = vsub.f32 %v4095, %v4190
    %v4192 = vand.u32 %v4191, 4294901760
    %4193 = vmatmul.f32.gmra.mxu0 %v4192
    %v4194 = vpop.f32.mrf.mxu0
    %v4195 = vadd.f32 %v4171, %v4194
    %4196 = vdwg.mxu0
    %4197 = vmatpush.msra.mxu0 0.0
    %4198 = vmatpush.msra.mxu0 0.0
    %4199 = vmatpush.msra.mxu0 0.0
    %4200 = vmatpush.msra.mxu0 0.0
    %4201 = vmatpush.msra.mxu0 0.0
    %4202 = vmatpush.msra.mxu0 0.0
    %4203 = vmatpush.msra.mxu0 0.0
    %4204 = vmatpush.msra.mxu0 0.0
    %4205 = vmatpush.msra.mxu0 0.0
    %4206 = vmatpush.msra.mxu0 0.0
    %4207 = vmatpush.msra.mxu0 0.0
    %4208 = vmatpush.msra.mxu0 0.0
    %4209 = vmatpush.msra.mxu0 0.0
    %4210 = vmatpush.msra.mxu0 0.0
    %4211 = vmatpush.msra.mxu0 0.0
    %v4212 = vand.u32 %v3198, 4294901760
    %v4213 = vsub.f32 %v3198, %v4212
    %v4214 = vand.u32 %v4213, 4294901760
    %4215 = vmatpush.msra.mxu0 %v4214
    %v4216 = vand.u32 %v4095, 4294901760
    %4217 = vmatmul.f32.gmra.mxu0 %v4216
    %v4218 = vpop.f32.mrf.mxu0
    %v4219 = vadd.f32 %v4195, %v4218
    %4220 = vdwg.mxu0
    %4221 = vmatpush.msra.mxu0 0.0
    %4222 = vmatpush.msra.mxu0 0.0
    %4223 = vmatpush.msra.mxu0 0.0
    %4224 = vmatpush.msra.mxu0 0.0
    %4225 = vmatpush.msra.mxu0 0.0
    %4226 = vmatpush.msra.mxu0 0.0
    %4227 = vmatpush.msra.mxu0 0.0
    %4228 = vmatpush.msra.mxu0 0.0
    %4229 = vmatpush.msra.mxu0 0.0
    %4230 = vmatpush.msra.mxu0 0.0
    %4231 = vmatpush.msra.mxu0 0.0
    %4232 = vmatpush.msra.mxu0 0.0
    %4233 = vmatpush.msra.mxu0 0.0
    %4234 = vmatpush.msra.mxu0 0.0
    %4235 = vmatpush.msra.mxu0 0.0
    %v4236 = vand.u32 %v3198, 4294901760
    %4237 = vmatpush.msra.mxu0 %v4236
    %v4238 = vand.u32 %v4095, 4294901760
    %4239 = vmatmul.f32.gmra.mxu0 %v4238
    %v4240 = vpop.f32.mrf.mxu0
    %v4241 = vadd.f32 %v4219, %v4240
    %4242 = vdwg.mxu0
    %v4244 = vsel %vm1168, %v3943, 0
    %4246 = vmatpush.msra.mxu0 0.0
    %4247 = vmatpush.msra.mxu0 0.0
    %4248 = vmatpush.msra.mxu0 0.0
    %4249 = vmatpush.msra.mxu0 0.0
    %4250 = vmatpush.msra.mxu0 0.0
    %4251 = vmatpush.msra.mxu0 0.0
    %4252 = vmatpush.msra.mxu0 0.0
    %4253 = vmatpush.msra.mxu0 0.0
    %4254 = vmatpush.msra.mxu0 0.0
    %4255 = vmatpush.msra.mxu0 0.0
    %4256 = vmatpush.msra.mxu0 0.0
    %4257 = vmatpush.msra.mxu0 0.0
    %4258 = vmatpush.msra.mxu0 0.0
    %4259 = vmatpush.msra.mxu0 0.0
    %4260 = vmatpush.msra.mxu0 0.0
    %v4261 = vand.u32 %v3234, 4294901760
    %4262 = vmatpush.msra.mxu0 %v4261
    %v4263 = vand.u32 %v4244, 4294901760
    %v4264 = vsub.f32 %v4244, %v4263
    %v4265 = vand.u32 %v4264, 4294901760
    %v4266 = vsub.f32 %v4264, %v4265
    %v4267 = vand.u32 %v4266, 4294901760
    %4268 = vmatmul.f32.gmra.mxu0 %v4267
    %v4269 = vpop.f32.mrf.mxu0
    %v4270 = vadd.f32 0.0, %v4269
    %4271 = vdwg.mxu0
    %4272 = vmatpush.msra.mxu0 0.0
    %4273 = vmatpush.msra.mxu0 0.0
    %4274 = vmatpush.msra.mxu0 0.0
    %4275 = vmatpush.msra.mxu0 0.0
    %4276 = vmatpush.msra.mxu0 0.0
    %4277 = vmatpush.msra.mxu0 0.0
    %4278 = vmatpush.msra.mxu0 0.0
    %4279 = vmatpush.msra.mxu0 0.0
    %4280 = vmatpush.msra.mxu0 0.0
    %4281 = vmatpush.msra.mxu0 0.0
    %4282 = vmatpush.msra.mxu0 0.0
    %4283 = vmatpush.msra.mxu0 0.0
    %4284 = vmatpush.msra.mxu0 0.0
    %4285 = vmatpush.msra.mxu0 0.0
    %4286 = vmatpush.msra.mxu0 0.0
    %v4287 = vand.u32 %v3234, 4294901760
    %v4288 = vsub.f32 %v3234, %v4287
    %v4289 = vand.u32 %v4288, 4294901760
    %v4290 = vsub.f32 %v4288, %v4289
    %v4291 = vand.u32 %v4290, 4294901760
    %4292 = vmatpush.msra.mxu0 %v4291
    %v4293 = vand.u32 %v4244, 4294901760
    %4294 = vmatmul.f32.gmra.mxu0 %v4293
    %v4295 = vpop.f32.mrf.mxu0
    %v4296 = vadd.f32 %v4270, %v4295
    %4297 = vdwg.mxu0
    %4298 = vmatpush.msra.mxu0 0.0
    %4299 = vmatpush.msra.mxu0 0.0
    %4300 = vmatpush.msra.mxu0 0.0
    %4301 = vmatpush.msra.mxu0 0.0
    %4302 = vmatpush.msra.mxu0 0.0
    %4303 = vmatpush.msra.mxu0 0.0
    %4304 = vmatpush.msra.mxu0 0.0
    %4305 = vmatpush.msra.mxu0 0.0
    %4306 = vmatpush.msra.mxu0 0.0
    %4307 = vmatpush.msra.mxu0 0.0
    %4308 = vmatpush.msra.mxu0 0.0
    %4309 = vmatpush.msra.mxu0 0.0
    %4310 = vmatpush.msra.mxu0 0.0
    %4311 = vmatpush.msra.mxu0 0.0
    %4312 = vmatpush.msra.mxu0 0.0
    %v4313 = vand.u32 %v3234, 4294901760
    %v4314 = vsub.f32 %v3234, %v4313
    %4315 = vmatpush.msra.mxu0 %v4314
    %v4316 = vand.u32 %v4244, 4294901760
    %v4317 = vsub.f32 %v4244, %v4316
    %4318 = vmatmul.f32.gmra.mxu0 %v4317
    %v4319 = vpop.f32.mrf.mxu0
    %v4320 = vadd.f32 %v4296, %v4319
    %4321 = vdwg.mxu0
    %4322 = vmatpush.msra.mxu0 0.0
    %4323 = vmatpush.msra.mxu0 0.0
    %4324 = vmatpush.msra.mxu0 0.0
    %4325 = vmatpush.msra.mxu0 0.0
    %4326 = vmatpush.msra.mxu0 0.0
    %4327 = vmatpush.msra.mxu0 0.0
    %4328 = vmatpush.msra.mxu0 0.0
    %4329 = vmatpush.msra.mxu0 0.0
    %4330 = vmatpush.msra.mxu0 0.0
    %4331 = vmatpush.msra.mxu0 0.0
    %4332 = vmatpush.msra.mxu0 0.0
    %4333 = vmatpush.msra.mxu0 0.0
    %4334 = vmatpush.msra.mxu0 0.0
    %4335 = vmatpush.msra.mxu0 0.0
    %4336 = vmatpush.msra.mxu0 0.0
    %v4337 = vand.u32 %v3234, 4294901760
    %4338 = vmatpush.msra.mxu0 %v4337
    %v4339 = vand.u32 %v4244, 4294901760
    %v4340 = vsub.f32 %v4244, %v4339
    %v4341 = vand.u32 %v4340, 4294901760
    %4342 = vmatmul.f32.gmra.mxu0 %v4341
    %v4343 = vpop.f32.mrf.mxu0
    %v4344 = vadd.f32 %v4320, %v4343
    %4345 = vdwg.mxu0
    %4346 = vmatpush.msra.mxu0 0.0
    %4347 = vmatpush.msra.mxu0 0.0
    %4348 = vmatpush.msra.mxu0 0.0
    %4349 = vmatpush.msra.mxu0 0.0
    %4350 = vmatpush.msra.mxu0 0.0
    %4351 = vmatpush.msra.mxu0 0.0
    %4352 = vmatpush.msra.mxu0 0.0
    %4353 = vmatpush.msra.mxu0 0.0
    %4354 = vmatpush.msra.mxu0 0.0
    %4355 = vmatpush.msra.mxu0 0.0
    %4356 = vmatpush.msra.mxu0 0.0
    %4357 = vmatpush.msra.mxu0 0.0
    %4358 = vmatpush.msra.mxu0 0.0
    %4359 = vmatpush.msra.mxu0 0.0
    %4360 = vmatpush.msra.mxu0 0.0
    %v4361 = vand.u32 %v3234, 4294901760
    %v4362 = vsub.f32 %v3234, %v4361
    %v4363 = vand.u32 %v4362, 4294901760
    %4364 = vmatpush.msra.mxu0 %v4363
    %v4365 = vand.u32 %v4244, 4294901760
    %4366 = vmatmul.f32.gmra.mxu0 %v4365
    %v4367 = vpop.f32.mrf.mxu0
    %v4368 = vadd.f32 %v4344, %v4367
    %4369 = vdwg.mxu0
    %4370 = vmatpush.msra.mxu0 0.0
    %4371 = vmatpush.msra.mxu0 0.0
    %4372 = vmatpush.msra.mxu0 0.0
    %4373 = vmatpush.msra.mxu0 0.0
    %4374 = vmatpush.msra.mxu0 0.0
    %4375 = vmatpush.msra.mxu0 0.0
    %4376 = vmatpush.msra.mxu0 0.0
    %4377 = vmatpush.msra.mxu0 0.0
    %4378 = vmatpush.msra.mxu0 0.0
    %4379 = vmatpush.msra.mxu0 0.0
    %4380 = vmatpush.msra.mxu0 0.0
    %4381 = vmatpush.msra.mxu0 0.0
    %4382 = vmatpush.msra.mxu0 0.0
    %4383 = vmatpush.msra.mxu0 0.0
    %4384 = vmatpush.msra.mxu0 0.0
    %v4385 = vand.u32 %v3234, 4294901760
    %4386 = vmatpush.msra.mxu0 %v4385
    %v4387 = vand.u32 %v4244, 4294901760
    %4388 = vmatmul.f32.gmra.mxu0 %v4387
    %v4389 = vpop.f32.mrf.mxu0
    %v4390 = vadd.f32 %v4368, %v4389
    %4391 = vdwg.mxu0
    %v4393 = vsel %vm1168, %v3944, 0
    %4395 = vmatpush.msra.mxu0 0.0
    %4396 = vmatpush.msra.mxu0 0.0
    %4397 = vmatpush.msra.mxu0 0.0
    %4398 = vmatpush.msra.mxu0 0.0
    %4399 = vmatpush.msra.mxu0 0.0
    %4400 = vmatpush.msra.mxu0 0.0
    %4401 = vmatpush.msra.mxu0 0.0
    %4402 = vmatpush.msra.mxu0 0.0
    %4403 = vmatpush.msra.mxu0 0.0
    %4404 = vmatpush.msra.mxu0 0.0
    %4405 = vmatpush.msra.mxu0 0.0
    %4406 = vmatpush.msra.mxu0 0.0
    %4407 = vmatpush.msra.mxu0 0.0
    %4408 = vmatpush.msra.mxu0 0.0
    %4409 = vmatpush.msra.mxu0 0.0
    %v4410 = vand.u32 %v3236, 4294901760
    %4411 = vmatpush.msra.mxu0 %v4410
    %v4412 = vand.u32 %v4393, 4294901760
    %v4413 = vsub.f32 %v4393, %v4412
    %v4414 = vand.u32 %v4413, 4294901760
    %v4415 = vsub.f32 %v4413, %v4414
    %v4416 = vand.u32 %v4415, 4294901760
    %4417 = vmatmul.f32.gmra.mxu0 %v4416
    %v4418 = vpop.f32.mrf.mxu0
    %v4419 = vadd.f32 0.0, %v4418
    %4420 = vdwg.mxu0
    %4421 = vmatpush.msra.mxu0 0.0
    %4422 = vmatpush.msra.mxu0 0.0
    %4423 = vmatpush.msra.mxu0 0.0
    %4424 = vmatpush.msra.mxu0 0.0
    %4425 = vmatpush.msra.mxu0 0.0
    %4426 = vmatpush.msra.mxu0 0.0
    %4427 = vmatpush.msra.mxu0 0.0
    %4428 = vmatpush.msra.mxu0 0.0
    %4429 = vmatpush.msra.mxu0 0.0
    %4430 = vmatpush.msra.mxu0 0.0
    %4431 = vmatpush.msra.mxu0 0.0
    %4432 = vmatpush.msra.mxu0 0.0
    %4433 = vmatpush.msra.mxu0 0.0
    %4434 = vmatpush.msra.mxu0 0.0
    %4435 = vmatpush.msra.mxu0 0.0
    %v4436 = vand.u32 %v3236, 4294901760
    %v4437 = vsub.f32 %v3236, %v4436
    %v4438 = vand.u32 %v4437, 4294901760
    %v4439 = vsub.f32 %v4437, %v4438
    %v4440 = vand.u32 %v4439, 4294901760
    %4441 = vmatpush.msra.mxu0 %v4440
    %v4442 = vand.u32 %v4393, 4294901760
    %4443 = vmatmul.f32.gmra.mxu0 %v4442
    %v4444 = vpop.f32.mrf.mxu0
    %v4445 = vadd.f32 %v4419, %v4444
    %4446 = vdwg.mxu0
    %4447 = vmatpush.msra.mxu0 0.0
    %4448 = vmatpush.msra.mxu0 0.0
    %4449 = vmatpush.msra.mxu0 0.0
    %4450 = vmatpush.msra.mxu0 0.0
    %4451 = vmatpush.msra.mxu0 0.0
    %4452 = vmatpush.msra.mxu0 0.0
    %4453 = vmatpush.msra.mxu0 0.0
    %4454 = vmatpush.msra.mxu0 0.0
    %4455 = vmatpush.msra.mxu0 0.0
    %4456 = vmatpush.msra.mxu0 0.0
    %4457 = vmatpush.msra.mxu0 0.0
    %4458 = vmatpush.msra.mxu0 0.0
    %4459 = vmatpush.msra.mxu0 0.0
    %4460 = vmatpush.msra.mxu0 0.0
    %4461 = vmatpush.msra.mxu0 0.0
    %v4462 = vand.u32 %v3236, 4294901760
    %v4463 = vsub.f32 %v3236, %v4462
    %4464 = vmatpush.msra.mxu0 %v4463
    %v4465 = vand.u32 %v4393, 4294901760
    %v4466 = vsub.f32 %v4393, %v4465
    %4467 = vmatmul.f32.gmra.mxu0 %v4466
    %v4468 = vpop.f32.mrf.mxu0
    %v4469 = vadd.f32 %v4445, %v4468
    %4470 = vdwg.mxu0
    %4471 = vmatpush.msra.mxu0 0.0
    %4472 = vmatpush.msra.mxu0 0.0
    %4473 = vmatpush.msra.mxu0 0.0
    %4474 = vmatpush.msra.mxu0 0.0
    %4475 = vmatpush.msra.mxu0 0.0
    %4476 = vmatpush.msra.mxu0 0.0
    %4477 = vmatpush.msra.mxu0 0.0
    %4478 = vmatpush.msra.mxu0 0.0
    %4479 = vmatpush.msra.mxu0 0.0
    %4480 = vmatpush.msra.mxu0 0.0
    %4481 = vmatpush.msra.mxu0 0.0
    %4482 = vmatpush.msra.mxu0 0.0
    %4483 = vmatpush.msra.mxu0 0.0
    %4484 = vmatpush.msra.mxu0 0.0
    %4485 = vmatpush.msra.mxu0 0.0
    %v4486 = vand.u32 %v3236, 4294901760
    %4487 = vmatpush.msra.mxu0 %v4486
    %v4488 = vand.u32 %v4393, 4294901760
    %v4489 = vsub.f32 %v4393, %v4488
    %v4490 = vand.u32 %v4489, 4294901760
    %4491 = vmatmul.f32.gmra.mxu0 %v4490
    %v4492 = vpop.f32.mrf.mxu0
    %v4493 = vadd.f32 %v4469, %v4492
    %4494 = vdwg.mxu0
    %4495 = vmatpush.msra.mxu0 0.0
    %4496 = vmatpush.msra.mxu0 0.0
    %4497 = vmatpush.msra.mxu0 0.0
    %4498 = vmatpush.msra.mxu0 0.0
    %4499 = vmatpush.msra.mxu0 0.0
    %4500 = vmatpush.msra.mxu0 0.0
    %4501 = vmatpush.msra.mxu0 0.0
    %4502 = vmatpush.msra.mxu0 0.0
    %4503 = vmatpush.msra.mxu0 0.0
    %4504 = vmatpush.msra.mxu0 0.0
    %4505 = vmatpush.msra.mxu0 0.0
    %4506 = vmatpush.msra.mxu0 0.0
    %4507 = vmatpush.msra.mxu0 0.0
    %4508 = vmatpush.msra.mxu0 0.0
    %4509 = vmatpush.msra.mxu0 0.0
    %v4510 = vand.u32 %v3236, 4294901760
    %v4511 = vsub.f32 %v3236, %v4510
    %v4512 = vand.u32 %v4511, 4294901760
    %4513 = vmatpush.msra.mxu0 %v4512
    %v4514 = vand.u32 %v4393, 4294901760
    %4515 = vmatmul.f32.gmra.mxu0 %v4514
    %v4516 = vpop.f32.mrf.mxu0
    %v4517 = vadd.f32 %v4493, %v4516
    %4518 = vdwg.mxu0
    %4519 = vmatpush.msra.mxu0 0.0
    %4520 = vmatpush.msra.mxu0 0.0
    %4521 = vmatpush.msra.mxu0 0.0
    %4522 = vmatpush.msra.mxu0 0.0
    %4523 = vmatpush.msra.mxu0 0.0
    %4524 = vmatpush.msra.mxu0 0.0
    %4525 = vmatpush.msra.mxu0 0.0
    %4526 = vmatpush.msra.mxu0 0.0
    %4527 = vmatpush.msra.mxu0 0.0
    %4528 = vmatpush.msra.mxu0 0.0
    %4529 = vmatpush.msra.mxu0 0.0
    %4530 = vmatpush.msra.mxu0 0.0
    %4531 = vmatpush.msra.mxu0 0.0
    %4532 = vmatpush.msra.mxu0 0.0
    %4533 = vmatpush.msra.mxu0 0.0
    %v4534 = vand.u32 %v3236, 4294901760
    %4535 = vmatpush.msra.mxu0 %v4534
    %v4536 = vand.u32 %v4393, 4294901760
    %4537 = vmatmul.f32.gmra.mxu0 %v4536
    %v4538 = vpop.f32.mrf.mxu0
    %v4539 = vadd.f32 %v4517, %v4538
    %4540 = vdwg.mxu0
    %v4541 = vrot.slane %v4092, 4
    %v4542 = vsel %vm604, 0.0, %v4541
    %v4544 = vunpack.c.l.s4 1983009808
    %v4545 = vunpack.c.0.s8 %v4544
    %v4546 = vperm.slane %v4092, %v4545
    %v4548 = vunpack.c.l.s4 1983009808
    %v4549 = vunpack.c.0.s8 %v4548
    %v4550 = vperm.slane %v4542, %v4549
    %v4551 = vrot.slane %v4241, 4
    %v4552 = vsel %vm604, 0.0, %v4551
    %v4554 = vunpack.c.l.s4 1983009808
    %v4555 = vunpack.c.0.s8 %v4554
    %v4556 = vperm.slane %v4241, %v4555
    %v4558 = vunpack.c.l.s4 1983009808
    %v4559 = vunpack.c.0.s8 %v4558
    %v4560 = vperm.slane %v4552, %v4559
    %v4561 = vrot.slane %v4556, 4
    %v4562 = vsel %vm604, %v4561, %v4546
    %v4563 = vrot.slane %v4546, 4
    %v4564 = vsel %vm604, %v4556, %v4563
    %v4566 = vunpack.c.l.s4 1934713408
    %v4567 = vunpack.c.0.s8 %v4566
    %v4568 = vperm.slane %v4562, %v4567
    %v4570 = vunpack.c.l.s4 1934713408
    %v4571 = vunpack.c.0.s8 %v4570
    %v4572 = vperm.slane %v4564, %v4571
    %v4573 = vrot.slane %v4560, 4
    %v4574 = vsel %vm604, %v4573, %v4550
    %v4575 = vrot.slane %v4550, 4
    %v4576 = vsel %vm604, %v4560, %v4575
    %v4578 = vunpack.c.l.s4 1934713408
    %v4579 = vunpack.c.0.s8 %v4578
    %v4580 = vperm.slane %v4574, %v4579
    %v4582 = vunpack.c.l.s4 1934713408
    %v4583 = vunpack.c.0.s8 %v4582
    %v4584 = vperm.slane %v4576, %v4583
    %v4585 = vrot.slane %v4568, 4
    %v4586 = vsel %vm604, 0.0, %v4585
    %v4587 = vrot.slane %v4572, 4
    %v4588 = vsel %vm604, 0.0, %v4587
    %v4589 = vrot.slane %v4580, 4
    %v4590 = vsel %vm604, 0.0, %v4589
    %v4591 = vrot.slane %v4584, 4
    %v4592 = vsel %vm604, 0.0, %v4591
    %v4593 = vrot.slane %v4390, 4
    %v4594 = vsel %vm604, 0.0, %v4593
    %v4596 = vunpack.c.l.s4 1983009808
    %v4597 = vunpack.c.0.s8 %v4596
    %v4598 = vperm.slane %v4390, %v4597
    %v4600 = vunpack.c.l.s4 1983009808
    %v4601 = vunpack.c.0.s8 %v4600
    %v4602 = vperm.slane %v4594, %v4601
    %v4603 = vrot.slane %v4539, 4
    %v4604 = vsel %vm604, 0.0, %v4603
    %v4606 = vunpack.c.l.s4 1983009808
    %v4607 = vunpack.c.0.s8 %v4606
    %v4608 = vperm.slane %v4539, %v4607
    %v4610 = vunpack.c.l.s4 1983009808
    %v4611 = vunpack.c.0.s8 %v4610
    %v4612 = vperm.slane %v4604, %v4611
    %v4613 = vrot.slane %v4608, 4
    %v4614 = vsel %vm604, %v4613, %v4598
    %v4615 = vrot.slane %v4598, 4
    %v4616 = vsel %vm604, %v4608, %v4615
    %v4618 = vunpack.c.l.s4 1934713408
    %v4619 = vunpack.c.0.s8 %v4618
    %v4620 = vperm.slane %v4614, %v4619
    %v4622 = vunpack.c.l.s4 1934713408
    %v4623 = vunpack.c.0.s8 %v4622
    %v4624 = vperm.slane %v4616, %v4623
    %v4625 = vrot.slane %v4612, 4
    %v4626 = vsel %vm604, %v4625, %v4602
    %v4627 = vrot.slane %v4602, 4
    %v4628 = vsel %vm604, %v4612, %v4627
    %v4630 = vunpack.c.l.s4 1934713408
    %v4631 = vunpack.c.0.s8 %v4630
    %v4632 = vperm.slane %v4626, %v4631
    %v4634 = vunpack.c.l.s4 1934713408
    %v4635 = vunpack.c.0.s8 %v4634
    %v4636 = vperm.slane %v4628, %v4635
    %v4637 = vrot.slane %v4620, 4
    %v4638 = vsel %vm604, 0.0, %v4637
    %v4639 = vrot.slane %v4624, 4
    %v4640 = vsel %vm604, 0.0, %v4639
    %v4641 = vrot.slane %v4632, 4
    %v4642 = vsel %vm604, 0.0, %v4641
    %v4643 = vrot.slane %v4636, 4
    %v4644 = vsel %vm604, 0.0, %v4643
    %v4645 = vsel %vm604, %v4587, %v4568
    %v4647 = vunpack.c.l.s4 1983009808
    %v4648 = vunpack.c.0.s8 %v4647
    %v4649 = vperm.slane %v4645, %v4648
    %v4650 = vrot.slane %v4588, 4
    %v4651 = vsel %vm604, %v4650, %v4586
    %v4653 = vunpack.c.l.s4 1983009808
    %v4654 = vunpack.c.0.s8 %v4653
    %v4655 = vperm.slane %v4651, %v4654
    %v4656 = vsel %vm604, %v4591, %v4580
    %v4658 = vunpack.c.l.s4 1983009808
    %v4659 = vunpack.c.0.s8 %v4658
    %v4660 = vperm.slane %v4656, %v4659
    %v4661 = vrot.slane %v4592, 4
    %v4662 = vsel %vm604, %v4661, %v4590
    %v4664 = vunpack.c.l.s4 1983009808
    %v4665 = vunpack.c.0.s8 %v4664
    %v4666 = vperm.slane %v4662, %v4665
    %v4667 = vrot.slane %v4655, 4
    %v4668 = vsel %vm604, %v4667, %v4649
    %v4670 = vunpack.c.l.s4 1934713408
    %v4671 = vunpack.c.0.s8 %v4670
    %v4672 = vperm.slane %v4668, %v4671
    %v4673 = vrot.slane %v4666, 4
    %v4674 = vsel %vm604, %v4673, %v4660
    %v4676 = vunpack.c.l.s4 1934713408
    %v4677 = vunpack.c.0.s8 %v4676
    %v4678 = vperm.slane %v4674, %v4677
    %v4679 = vrot.slane %v4678, 4
    %v4680 = vsel %vm604, %v4679, %v4672
    %v4681 = vrot.slane %v4672, 4
    %v4682 = vsel %vm604, %v4678, %v4681
    %v4683 = vsel %vm604, %v4639, %v4620
    %v4685 = vunpack.c.l.s4 1983009808
    %v4686 = vunpack.c.0.s8 %v4685
    %v4687 = vperm.slane %v4683, %v4686
    %v4688 = vrot.slane %v4640, 4
    %v4689 = vsel %vm604, %v4688, %v4638
    %v4691 = vunpack.c.l.s4 1983009808
    %v4692 = vunpack.c.0.s8 %v4691
    %v4693 = vperm.slane %v4689, %v4692
    %v4694 = vsel %vm604, %v4643, %v4632
    %v4696 = vunpack.c.l.s4 1983009808
    %v4697 = vunpack.c.0.s8 %v4696
    %v4698 = vperm.slane %v4694, %v4697
    %v4699 = vrot.slane %v4644, 4
    %v4700 = vsel %vm604, %v4699, %v4642
    %v4702 = vunpack.c.l.s4 1983009808
    %v4703 = vunpack.c.0.s8 %v4702
    %v4704 = vperm.slane %v4700, %v4703
    %v4705 = vrot.slane %v4693, 4
    %v4706 = vsel %vm604, %v4705, %v4687
    %v4708 = vunpack.c.l.s4 1934713408
    %v4709 = vunpack.c.0.s8 %v4708
    %v4710 = vperm.slane %v4706, %v4709
    %v4711 = vrot.slane %v4704, 4
    %v4712 = vsel %vm604, %v4711, %v4698
    %v4714 = vunpack.c.l.s4 1934713408
    %v4715 = vunpack.c.0.s8 %v4714
    %v4716 = vperm.slane %v4712, %v4715
    %v4717 = vrot.slane %v4716, 4
    %v4718 = vsel %vm604, %v4717, %v4710
    %v4719 = vrot.slane %v4710, 4
    %v4720 = vsel %vm604, %v4716, %v4719
    %4723 = vrot.lane.b32.xlu0 %v4682, 8
    %v4724 = vpop.permute.xlu0 %4723
    %4725 = vrot.lane.b32.xlu0 %v4720, 8
    %v4726 = vpop.permute.xlu0 %4725
    %v4729 = vsel %vm1168, %v4680, %v4724
    %v4730 = vsel %vm1168, %v4718, %v4726
    %v4731 = vld [vmem:[#allocation13] sm:$0xff]
    %v4732 = vld [vmem:[#allocation13 + $0x8] sm:$0xff]
    %vm4733 = vcmask 130048
    %v4735 = vsel %vm4733, %v4729, 0
    %v4738 = vsel %vm4733, %v4730, 0
    %4740 = vmatpush.msra.mxu0 0.0
    %4741 = vmatpush.msra.mxu0 0.0
    %4742 = vmatpush.msra.mxu0 0.0
    %4743 = vmatpush.msra.mxu0 0.0
    %4744 = vmatpush.msra.mxu0 0.0
    %4745 = vmatpush.msra.mxu0 0.0
    %4746 = vmatpush.msra.mxu0 0.0
    %4747 = vmatpush.msra.mxu0 0.0
    %4748 = vmatpush.msra.mxu0 0.0
    %4749 = vmatpush.msra.mxu0 0.0
    %4750 = vmatpush.msra.mxu0 0.0
    %4751 = vmatpush.msra.mxu0 0.0
    %4752 = vmatpush.msra.mxu0 0.0
    %4753 = vmatpush.msra.mxu0 0.0
    %v4754 = vand.u32 %v4732, 4294901760
    %4755 = vmatpush.msra.mxu0 %v4754
    %v4756 = vand.u32 %v4731, 4294901760
    %4757 = vmatpush.msra.mxu0 %v4756
    %v4758 = vand.u32 %v4735, 4294901760
    %v4759 = vsub.f32 %v4735, %v4758
    %v4760 = vand.u32 %v4759, 4294901760
    %v4761 = vsub.f32 %v4759, %v4760
    %v4762 = vand.u32 %v4761, 4294901760
    %4763 = vmatmul.f32.gmra.mxu0 %v4762
    %v4764 = vpop.f32.mrf.mxu0
    %v4765 = vadd.f32 0.0, %v4764
    %v4766 = vand.u32 %v4738, 4294901760
    %v4767 = vsub.f32 %v4738, %v4766
    %v4768 = vand.u32 %v4767, 4294901760
    %v4769 = vsub.f32 %v4767, %v4768
    %v4770 = vand.u32 %v4769, 4294901760
    %4771 = vmatmul.f32.gmra.mxu0 %v4770
    %v4772 = vpop.f32.mrf.mxu0
    %v4773 = vadd.f32 0.0, %v4772
    %4774 = vdwg.mxu0
    %4775 = vmatpush.msra.mxu0 0.0
    %4776 = vmatpush.msra.mxu0 0.0
    %4777 = vmatpush.msra.mxu0 0.0
    %4778 = vmatpush.msra.mxu0 0.0
    %4779 = vmatpush.msra.mxu0 0.0
    %4780 = vmatpush.msra.mxu0 0.0
    %4781 = vmatpush.msra.mxu0 0.0
    %4782 = vmatpush.msra.mxu0 0.0
    %4783 = vmatpush.msra.mxu0 0.0
    %4784 = vmatpush.msra.mxu0 0.0
    %4785 = vmatpush.msra.mxu0 0.0
    %4786 = vmatpush.msra.mxu0 0.0
    %4787 = vmatpush.msra.mxu0 0.0
    %4788 = vmatpush.msra.mxu0 0.0
    %v4789 = vand.u32 %v4732, 4294901760
    %v4790 = vsub.f32 %v4732, %v4789
    %v4791 = vand.u32 %v4790, 4294901760
    %v4792 = vsub.f32 %v4790, %v4791
    %v4793 = vand.u32 %v4792, 4294901760
    %4794 = vmatpush.msra.mxu0 %v4793
    %v4795 = vand.u32 %v4731, 4294901760
    %v4796 = vsub.f32 %v4731, %v4795
    %v4797 = vand.u32 %v4796, 4294901760
    %v4798 = vsub.f32 %v4796, %v4797
    %v4799 = vand.u32 %v4798, 4294901760
    %4800 = vmatpush.msra.mxu0 %v4799
    %v4801 = vand.u32 %v4735, 4294901760
    %4802 = vmatmul.f32.gmra.mxu0 %v4801
    %v4803 = vpop.f32.mrf.mxu0
    %v4804 = vadd.f32 %v4765, %v4803
    %v4805 = vand.u32 %v4738, 4294901760
    %4806 = vmatmul.f32.gmra.mxu0 %v4805
    %v4807 = vpop.f32.mrf.mxu0
    %v4808 = vadd.f32 %v4773, %v4807
    %4809 = vdwg.mxu0
    %4810 = vmatpush.msra.mxu0 0.0
    %4811 = vmatpush.msra.mxu0 0.0
    %4812 = vmatpush.msra.mxu0 0.0
    %4813 = vmatpush.msra.mxu0 0.0
    %4814 = vmatpush.msra.mxu0 0.0
    %4815 = vmatpush.msra.mxu0 0.0
    %4816 = vmatpush.msra.mxu0 0.0
    %4817 = vmatpush.msra.mxu0 0.0
    %4818 = vmatpush.msra.mxu0 0.0
    %4819 = vmatpush.msra.mxu0 0.0
    %4820 = vmatpush.msra.mxu0 0.0
    %4821 = vmatpush.msra.mxu0 0.0
    %4822 = vmatpush.msra.mxu0 0.0
    %4823 = vmatpush.msra.mxu0 0.0
    %v4824 = vand.u32 %v4732, 4294901760
    %v4825 = vsub.f32 %v4732, %v4824
    %4826 = vmatpush.msra.mxu0 %v4825
    %v4827 = vand.u32 %v4731, 4294901760
    %v4828 = vsub.f32 %v4731, %v4827
    %4829 = vmatpush.msra.mxu0 %v4828
    %v4830 = vand.u32 %v4735, 4294901760
    %v4831 = vsub.f32 %v4735, %v4830
    %4832 = vmatmul.f32.gmra.mxu0 %v4831
    %v4833 = vpop.f32.mrf.mxu0
    %v4834 = vadd.f32 %v4804, %v4833
    %v4835 = vand.u32 %v4738, 4294901760
    %v4836 = vsub.f32 %v4738, %v4835
    %4837 = vmatmul.f32.gmra.mxu0 %v4836
    %v4838 = vpop.f32.mrf.mxu0
    %v4839 = vadd.f32 %v4808, %v4838
    %4840 = vdwg.mxu0
    %4841 = vmatpush.msra.mxu0 0.0
    %4842 = vmatpush.msra.mxu0 0.0
    %4843 = vmatpush.msra.mxu0 0.0
    %4844 = vmatpush.msra.mxu0 0.0
    %4845 = vmatpush.msra.mxu0 0.0
    %4846 = vmatpush.msra.mxu0 0.0
    %4847 = vmatpush.msra.mxu0 0.0
    %4848 = vmatpush.msra.mxu0 0.0
    %4849 = vmatpush.msra.mxu0 0.0
    %4850 = vmatpush.msra.mxu0 0.0
    %4851 = vmatpush.msra.mxu0 0.0
    %4852 = vmatpush.msra.mxu0 0.0
    %4853 = vmatpush.msra.mxu0 0.0
    %4854 = vmatpush.msra.mxu0 0.0
    %v4855 = vand.u32 %v4732, 4294901760
    %4856 = vmatpush.msra.mxu0 %v4855
    %v4857 = vand.u32 %v4731, 4294901760
    %4858 = vmatpush.msra.mxu0 %v4857
    %v4859 = vand.u32 %v4735, 4294901760
    %v4860 = vsub.f32 %v4735, %v4859
    %v4861 = vand.u32 %v4860, 4294901760
    %4862 = vmatmul.f32.gmra.mxu0 %v4861
    %v4863 = vpop.f32.mrf.mxu0
    %v4864 = vadd.f32 %v4834, %v4863
    %v4865 = vand.u32 %v4738, 4294901760
    %v4866 = vsub.f32 %v4738, %v4865
    %v4867 = vand.u32 %v4866, 4294901760
    %4868 = vmatmul.f32.gmra.mxu0 %v4867
    %v4869 = vpop.f32.mrf.mxu0
    %v4870 = vadd.f32 %v4839, %v4869
    %4871 = vdwg.mxu0
    %4872 = vmatpush.msra.mxu0 0.0
    %4873 = vmatpush.msra.mxu0 0.0
    %4874 = vmatpush.msra.mxu0 0.0
    %4875 = vmatpush.msra.mxu0 0.0
    %4876 = vmatpush.msra.mxu0 0.0
    %4877 = vmatpush.msra.mxu0 0.0
    %4878 = vmatpush.msra.mxu0 0.0
    %4879 = vmatpush.msra.mxu0 0.0
    %4880 = vmatpush.msra.mxu0 0.0
    %4881 = vmatpush.msra.mxu0 0.0
    %4882 = vmatpush.msra.mxu0 0.0
    %4883 = vmatpush.msra.mxu0 0.0
    %4884 = vmatpush.msra.mxu0 0.0
    %4885 = vmatpush.msra.mxu0 0.0
    %v4886 = vand.u32 %v4732, 4294901760
    %v4887 = vsub.f32 %v4732, %v4886
    %v4888 = vand.u32 %v4887, 4294901760
    %4889 = vmatpush.msra.mxu0 %v4888
    %v4890 = vand.u32 %v4731, 4294901760
    %v4891 = vsub.f32 %v4731, %v4890
    %v4892 = vand.u32 %v4891, 4294901760
    %4893 = vmatpush.msra.mxu0 %v4892
    %v4894 = vand.u32 %v4735, 4294901760
    %4895 = vmatmul.f32.gmra.mxu0 %v4894
    %v4896 = vpop.f32.mrf.mxu0
    %v4897 = vadd.f32 %v4864, %v4896
    %v4898 = vand.u32 %v4738, 4294901760
    %4899 = vmatmul.f32.gmra.mxu0 %v4898
    %v4900 = vpop.f32.mrf.mxu0
    %v4901 = vadd.f32 %v4870, %v4900
    %4902 = vdwg.mxu0
    %4903 = vmatpush.msra.mxu0 0.0
    %4904 = vmatpush.msra.mxu0 0.0
    %4905 = vmatpush.msra.mxu0 0.0
    %4906 = vmatpush.msra.mxu0 0.0
    %4907 = vmatpush.msra.mxu0 0.0
    %4908 = vmatpush.msra.mxu0 0.0
    %4909 = vmatpush.msra.mxu0 0.0
    %4910 = vmatpush.msra.mxu0 0.0
    %4911 = vmatpush.msra.mxu0 0.0
    %4912 = vmatpush.msra.mxu0 0.0
    %4913 = vmatpush.msra.mxu0 0.0
    %4914 = vmatpush.msra.mxu0 0.0
    %4915 = vmatpush.msra.mxu0 0.0
    %4916 = vmatpush.msra.mxu0 0.0
    %v4917 = vand.u32 %v4732, 4294901760
    %4918 = vmatpush.msra.mxu0 %v4917
    %v4919 = vand.u32 %v4731, 4294901760
    %4920 = vmatpush.msra.mxu0 %v4919
    %v4921 = vand.u32 %v4735, 4294901760
    %4922 = vmatmul.f32.gmra.mxu0 %v4921
    %v4923 = vpop.f32.mrf.mxu0
    %v4924 = vadd.f32 %v4897, %v4923
    %v4925 = vand.u32 %v4738, 4294901760
    %4926 = vmatmul.f32.gmra.mxu0 %v4925
    %v4927 = vpop.f32.mrf.mxu0
    %v4928 = vadd.f32 %v4901, %v4927
    %4929 = vdwg.mxu0
    %v4931 = vsel %vm4733, %v2661, 0
    %v4934 = vsel %vm4733, %v2662, 0
    %4936 = vmatpush.msra.mxu0 0.0
    %4937 = vmatpush.msra.mxu0 0.0
    %4938 = vmatpush.msra.mxu0 0.0
    %4939 = vmatpush.msra.mxu0 0.0
    %4940 = vmatpush.msra.mxu0 0.0
    %4941 = vmatpush.msra.mxu0 0.0
    %4942 = vmatpush.msra.mxu0 0.0
    %4943 = vmatpush.msra.mxu0 0.0
    %4944 = vmatpush.msra.mxu0 0.0
    %4945 = vmatpush.msra.mxu0 0.0
    %4946 = vmatpush.msra.mxu0 0.0
    %4947 = vmatpush.msra.mxu0 0.0
    %4948 = vmatpush.msra.mxu0 0.0
    %4949 = vmatpush.msra.mxu0 0.0
    %v4950 = vand.u32 %v2664, 4294901760
    %4951 = vmatpush.msra.mxu0 %v4950
    %v4952 = vand.u32 %v2663, 4294901760
    %4953 = vmatpush.msra.mxu0 %v4952
    %v4954 = vand.u32 %v4931, 4294901760
    %v4955 = vsub.f32 %v4931, %v4954
    %v4956 = vand.u32 %v4955, 4294901760
    %v4957 = vsub.f32 %v4955, %v4956
    %v4958 = vand.u32 %v4957, 4294901760
    %4959 = vmatmul.f32.gmra.mxu0 %v4958
    %v4960 = vpop.f32.mrf.mxu0
    %v4961 = vadd.f32 %v4924, %v4960
    %v4962 = vand.u32 %v4934, 4294901760
    %v4963 = vsub.f32 %v4934, %v4962
    %v4964 = vand.u32 %v4963, 4294901760
    %v4965 = vsub.f32 %v4963, %v4964
    %v4966 = vand.u32 %v4965, 4294901760
    %4967 = vmatmul.f32.gmra.mxu0 %v4966
    %v4968 = vpop.f32.mrf.mxu0
    %v4969 = vadd.f32 %v4928, %v4968
    %4970 = vdwg.mxu0
    %4971 = vmatpush.msra.mxu0 0.0
    %4972 = vmatpush.msra.mxu0 0.0
    %4973 = vmatpush.msra.mxu0 0.0
    %4974 = vmatpush.msra.mxu0 0.0
    %4975 = vmatpush.msra.mxu0 0.0
    %4976 = vmatpush.msra.mxu0 0.0
    %4977 = vmatpush.msra.mxu0 0.0
    %4978 = vmatpush.msra.mxu0 0.0
    %4979 = vmatpush.msra.mxu0 0.0
    %4980 = vmatpush.msra.mxu0 0.0
    %4981 = vmatpush.msra.mxu0 0.0
    %4982 = vmatpush.msra.mxu0 0.0
    %4983 = vmatpush.msra.mxu0 0.0
    %4984 = vmatpush.msra.mxu0 0.0
    %v4985 = vand.u32 %v2664, 4294901760
    %v4986 = vsub.f32 %v2664, %v4985
    %v4987 = vand.u32 %v4986, 4294901760
    %v4988 = vsub.f32 %v4986, %v4987
    %v4989 = vand.u32 %v4988, 4294901760
    %4990 = vmatpush.msra.mxu0 %v4989
    %v4991 = vand.u32 %v2663, 4294901760
    %v4992 = vsub.f32 %v2663, %v4991
    %v4993 = vand.u32 %v4992, 4294901760
    %v4994 = vsub.f32 %v4992, %v4993
    %v4995 = vand.u32 %v4994, 4294901760
    %4996 = vmatpush.msra.mxu0 %v4995
    %v4997 = vand.u32 %v4931, 4294901760
    %4998 = vmatmul.f32.gmra.mxu0 %v4997
    %v4999 = vpop.f32.mrf.mxu0
    %v5000 = vadd.f32 %v4961, %v4999
    %v5001 = vand.u32 %v4934, 4294901760
    %5002 = vmatmul.f32.gmra.mxu0 %v5001
    %v5003 = vpop.f32.mrf.mxu0
    %v5004 = vadd.f32 %v4969, %v5003
    %5005 = vdwg.mxu0
    %5006 = vmatpush.msra.mxu0 0.0
    %5007 = vmatpush.msra.mxu0 0.0
    %5008 = vmatpush.msra.mxu0 0.0
    %5009 = vmatpush.msra.mxu0 0.0
    %5010 = vmatpush.msra.mxu0 0.0
    %5011 = vmatpush.msra.mxu0 0.0
    %5012 = vmatpush.msra.mxu0 0.0
    %5013 = vmatpush.msra.mxu0 0.0
    %5014 = vmatpush.msra.mxu0 0.0
    %5015 = vmatpush.msra.mxu0 0.0
    %5016 = vmatpush.msra.mxu0 0.0
    %5017 = vmatpush.msra.mxu0 0.0
    %5018 = vmatpush.msra.mxu0 0.0
    %5019 = vmatpush.msra.mxu0 0.0
    %v5020 = vand.u32 %v2664, 4294901760
    %v5021 = vsub.f32 %v2664, %v5020
    %5022 = vmatpush.msra.mxu0 %v5021
    %v5023 = vand.u32 %v2663, 4294901760
    %v5024 = vsub.f32 %v2663, %v5023
    %5025 = vmatpush.msra.mxu0 %v5024
    %v5026 = vand.u32 %v4931, 4294901760
    %v5027 = vsub.f32 %v4931, %v5026
    %5028 = vmatmul.f32.gmra.mxu0 %v5027
    %v5029 = vpop.f32.mrf.mxu0
    %v5030 = vadd.f32 %v5000, %v5029
    %v5031 = vand.u32 %v4934, 4294901760
    %v5032 = vsub.f32 %v4934, %v5031
    %5033 = vmatmul.f32.gmra.mxu0 %v5032
    %v5034 = vpop.f32.mrf.mxu0
    %v5035 = vadd.f32 %v5004, %v5034
    %5036 = vdwg.mxu0
    %5037 = vmatpush.msra.mxu0 0.0
    %5038 = vmatpush.msra.mxu0 0.0
    %5039 = vmatpush.msra.mxu0 0.0
    %5040 = vmatpush.msra.mxu0 0.0
    %5041 = vmatpush.msra.mxu0 0.0
    %5042 = vmatpush.msra.mxu0 0.0
    %5043 = vmatpush.msra.mxu0 0.0
    %5044 = vmatpush.msra.mxu0 0.0
    %5045 = vmatpush.msra.mxu0 0.0
    %5046 = vmatpush.msra.mxu0 0.0
    %5047 = vmatpush.msra.mxu0 0.0
    %5048 = vmatpush.msra.mxu0 0.0
    %5049 = vmatpush.msra.mxu0 0.0
    %5050 = vmatpush.msra.mxu0 0.0
    %v5051 = vand.u32 %v2664, 4294901760
    %5052 = vmatpush.msra.mxu0 %v5051
    %v5053 = vand.u32 %v2663, 4294901760
    %5054 = vmatpush.msra.mxu0 %v5053
    %v5055 = vand.u32 %v4931, 4294901760
    %v5056 = vsub.f32 %v4931, %v5055
    %v5057 = vand.u32 %v5056, 4294901760
    %5058 = vmatmul.f32.gmra.mxu0 %v5057
    %v5059 = vpop.f32.mrf.mxu0
    %v5060 = vadd.f32 %v5030, %v5059
    %v5061 = vand.u32 %v4934, 4294901760
    %v5062 = vsub.f32 %v4934, %v5061
    %v5063 = vand.u32 %v5062, 4294901760
    %5064 = vmatmul.f32.gmra.mxu0 %v5063
    %v5065 = vpop.f32.mrf.mxu0
    %v5066 = vadd.f32 %v5035, %v5065
    %5067 = vdwg.mxu0
    %5068 = vmatpush.msra.mxu0 0.0
    %5069 = vmatpush.msra.mxu0 0.0
    %5070 = vmatpush.msra.mxu0 0.0
    %5071 = vmatpush.msra.mxu0 0.0
    %5072 = vmatpush.msra.mxu0 0.0
    %5073 = vmatpush.msra.mxu0 0.0
    %5074 = vmatpush.msra.mxu0 0.0
    %5075 = vmatpush.msra.mxu0 0.0
    %5076 = vmatpush.msra.mxu0 0.0
    %5077 = vmatpush.msra.mxu0 0.0
    %5078 = vmatpush.msra.mxu0 0.0
    %5079 = vmatpush.msra.mxu0 0.0
    %5080 = vmatpush.msra.mxu0 0.0
    %5081 = vmatpush.msra.mxu0 0.0
    %v5082 = vand.u32 %v2664, 4294901760
    %v5083 = vsub.f32 %v2664, %v5082
    %v5084 = vand.u32 %v5083, 4294901760
    %5085 = vmatpush.msra.mxu0 %v5084
    %v5086 = vand.u32 %v2663, 4294901760
    %v5087 = vsub.f32 %v2663, %v5086
    %v5088 = vand.u32 %v5087, 4294901760
    %5089 = vmatpush.msra.mxu0 %v5088
    %v5090 = vand.u32 %v4931, 4294901760
    %5091 = vmatmul.f32.gmra.mxu0 %v5090
    %v5092 = vpop.f32.mrf.mxu0
    %v5093 = vadd.f32 %v5060, %v5092
    %v5094 = vand.u32 %v4934, 4294901760
    %5095 = vmatmul.f32.gmra.mxu0 %v5094
    %v5096 = vpop.f32.mrf.mxu0
    %v5097 = vadd.f32 %v5066, %v5096
    %5098 = vdwg.mxu0
    %5099 = vmatpush.msra.mxu0 0.0
    %5100 = vmatpush.msra.mxu0 0.0
    %5101 = vmatpush.msra.mxu0 0.0
    %5102 = vmatpush.msra.mxu0 0.0
    %5103 = vmatpush.msra.mxu0 0.0
    %5104 = vmatpush.msra.mxu0 0.0
    %5105 = vmatpush.msra.mxu0 0.0
    %5106 = vmatpush.msra.mxu0 0.0
    %5107 = vmatpush.msra.mxu0 0.0
    %5108 = vmatpush.msra.mxu0 0.0
    %5109 = vmatpush.msra.mxu0 0.0
    %5110 = vmatpush.msra.mxu0 0.0
    %5111 = vmatpush.msra.mxu0 0.0
    %5112 = vmatpush.msra.mxu0 0.0
    %v5113 = vand.u32 %v2664, 4294901760
    %5114 = vmatpush.msra.mxu0 %v5113
    %v5115 = vand.u32 %v2663, 4294901760
    %5116 = vmatpush.msra.mxu0 %v5115
    %v5117 = vand.u32 %v4931, 4294901760
    %5118 = vmatmul.f32.gmra.mxu0 %v5117
    %v5119 = vpop.f32.mrf.mxu0
    %v5120 = vadd.f32 %v5093, %v5119
    %v5121 = vand.u32 %v4934, 4294901760
    %5122 = vmatmul.f32.gmra.mxu0 %v5121
    %v5123 = vpop.f32.mrf.mxu0
    %v5124 = vadd.f32 %v5097, %v5123
    %5125 = vdwg.mxu0
    %5126 = vst.msk [vmem:[#allocation14] sm:$0xff] %vm146, %v5120
    %5127 = vst.msk [vmem:[#allocation14 + $0x8] sm:$0xff] %vm146, %v5124
    // Predicated region
    $region58: #{tpu_custom_call.1} parent=1 // pred_check
      _
    $region59: #{tpu_custom_call.1} parent=1 // pred_check_branch
      %5129 = sbr.rel (0) target = $region61
    $region60: #{tpu_custom_call.1} parent=1 // pred_region
      %5131 = vsyncadd [#allocation4], 0
      %s5132 = sshll.u32 [#allocation14], 4
      %s5133 = int_to_ptr.vmem [resolvable:$true] %s5132
      %s5134 = sshll.u32 %s7, 4
      %s5135 = int_to_ptr.hbm [resolvable:$true] %s5134
      %5140 = dma.vmem_to_hbm [thread:$0]  %s5133, 256, %s5135, [#allocation4], 128, 128, 8
    $region61: #{tpu_custom_call.1} parent=1 // pred_fallthru
      _
    // Predicated region
    $region62: #{tpu_custom_call.1} parent=1 // pred_check
      _
    $region63: #{tpu_custom_call.1} parent=1 // pred_check_branch
      %5142 = sbr.rel (0) target = $region65
    $region64: #{tpu_custom_call.1} parent=1 // pred_region
      %5144 = dma.done [#allocation4], 256
    $region65: #{tpu_custom_call.1} parent=1 // pred_fallthru
      _
    %5145 = vsyncpa [#allocation3], 1
    %5146 = vsyncpa [#allocation6], 1
    %5147 = vsyncpa [#allocation9], 1
    %5148 = vsyncpa [#allocation12], 1
    %5149 = vsyncpa [#allocation4], 1

// kernel: tpu_custom_call.1
$region0: #{tpu_custom_call.1}
  #allocation0 [shape = 'u32[]', space=smem, size = 0x4, offset = 0x4, fixed_abs, tag = 'smem constant byte address 0x4 - core index']
  #allocation1 [shape = 'u32[72,128]{1,0:T(1,128)}', space=vmem, size = 0x9000, scoped, tag = 'internal scratch']
  %s0 = inlined_call_operand.hbm [shape: f32[2,8,32], index: 0, kind: input, shape index: {}]
  %s1 = inlined_call_operand.hbm [shape: f32[2,8,32], index: 1, kind: input, shape index: {}]
  %s2 = inlined_call_operand.hbm [shape: f32[2,8,8], index: 2, kind: input, shape index: {}]
  %s3 = inlined_call_operand.hbm [shape: f32[32,64], index: 3, kind: input, shape index: {}]
  %s4 = inlined_call_operand.hbm [shape: f32[32,32], index: 4, kind: input, shape index: {}]
  %s5 = inlined_call_operand.hbm [shape: f32[16,32], index: 5, kind: input, shape index: {}]
  %s6 = inlined_call_operand.hbm [shape: f32[16,32], index: 6, kind: input, shape index: {}]
  %s7 = inlined_call_operand.hbm [shape: f32[2,8,32], index: 7, kind: output, shape index: {}]
  %s8 = sld [smem:[#allocation0]]
  $region66: #{tpu_custom_call.1} parent=0
    _
  %s10 = ssub.s32 1, %s8
  %s11 = scalar_select 0, %s10, %s8
  $region1: #{tpu_custom_call.1} parent=0
    #allocation2 [shape = 'u8[8192]{0}', space=vmem, size = 0x2000, scoped, tag = 'input window, operand 0, single buffered']
    #allocation3 [shape = 's32[1]{0}', space=sflag, size = 0x4, scoped, tag = 'scoped memory for tpu_custom_call.1']
    #allocation4 [shape = 's32[1]{0}', space=sflag, size = 0x4, scoped, tag = 'scoped memory for tpu_custom_call.1']
    #allocation5 [shape = 'u8[8192]{0}', space=vmem, size = 0x2000, scoped, tag = 'input window, operand 1, single buffered']
    #allocation6 [shape = 's32[1]{0}', space=sflag, size = 0x4, scoped, tag = 'scoped memory for tpu_custom_call.1']
    #allocation7 [shape = 'u8[8192]{0}', space=vmem, size = 0x2000, scoped, tag = 'input window, operand 2, single buffered']
    #allocation8 [shape = 'u8[16384]{0}', space=vmem, size = 0x4000, scoped, tag = 'input window, operand 3, single buffered']
    #allocation9 [shape = 's32[1]{0}', space=sflag, size = 0x4, scoped, tag = 'scoped memory for tpu_custom_call.1']
    #allocation10 [shape = 'u8[16384]{0}', space=vmem, size = 0x4000, scoped, tag = 'input window, operand 4, single buffered']
    #allocation11 [shape = 'u8[8192]{0}', space=vmem, size = 0x2000, scoped, tag = 'input window, operand 5, single buffered']
    #allocation12 [shape = 's32[1]{0}', space=sflag, size = 0x4, scoped, tag = 'scoped memory for tpu_custom_call.1']
    #allocation13 [shape = 'u8[8192]{0}', space=vmem, size = 0x2000, scoped, tag = 'input window, operand 6, single buffered']
    #allocation14 [shape = 'u8[8192]{0}', space=vmem, size = 0x2000, scoped, tag = 'output window, operand 0, single buffered']
    %12 = vsyncpa [#allocation3], 0
    %13 = vsyncpa [#allocation6], 0
    %14 = vsyncpa [#allocation9], 0
    %15 = vsyncpa [#allocation12], 0
    %16 = vsyncpa [#allocation4], 0
    // Predicated region
    $region2: #{tpu_custom_call.1} parent=1 // pred_check
      _
    $region3: #{tpu_custom_call.1} parent=1 // pred_check_branch
      %18 = sbr.rel (0) target = $region5
    $region4: #{tpu_custom_call.1} parent=1 // pred_region
      %20 = vsyncadd [#allocation3], 0
      %s21 = sshll.u32 %s0, 4
      %s22 = int_to_ptr.hbm [resolvable:$true] %s21
      %s23 = sshll.u32 [#allocation2], 4
      %s24 = int_to_ptr.vmem [resolvable:$true] %s23
      %29 = dma.hbm_to_vmem [thread:$0]  %s22, 256, %s24, [#allocation3], 128, 128, 8
    $region5: #{tpu_custom_call.1} parent=1 // pred_fallthru
      _
    // Predicated region
    $region6: #{tpu_custom_call.1} parent=1 // pred_check
      _
    $region7: #{tpu_custom_call.1} parent=1 // pred_check_branch
      %31 = sbr.rel (0) target = $region9
    $region8: #{tpu_custom_call.1} parent=1 // pred_region
      %33 = vsyncadd [#allocation6], 0
      %s34 = sshll.u32 %s1, 4
      %s35 = int_to_ptr.hbm [resolvable:$true] %s34
      %s36 = sshll.u32 [#allocation5], 4
      %s37 = int_to_ptr.vmem [resolvable:$true] %s36
      %42 = dma.hbm_to_vmem [thread:$0]  %s35, 256, %s37, [#allocation6], 128, 128, 8
    $region9: #{tpu_custom_call.1} parent=1 // pred_fallthru
      _
    // Predicated region
    $region10: #{tpu_custom_call.1} parent=1 // pred_check
      _
    $region11: #{tpu_custom_call.1} parent=1 // pred_check_branch
      %44 = sbr.rel (0) target = $region13
    $region12: #{tpu_custom_call.1} parent=1 // pred_region
      %46 = vsyncadd [#allocation6], 0
      %s47 = sshll.u32 %s2, 4
      %s48 = int_to_ptr.hbm [resolvable:$true] %s47
      %s49 = sshll.u32 [#allocation7], 4
      %s50 = int_to_ptr.vmem [resolvable:$true] %s49
      %55 = dma.hbm_to_vmem [thread:$0]  %s48, 256, %s50, [#allocation6], 128, 128, 8
    $region13: #{tpu_custom_call.1} parent=1 // pred_fallthru
      _
    // Predicated region
    $region14: #{tpu_custom_call.1} parent=1 // pred_check
      _
    $region15: #{tpu_custom_call.1} parent=1 // pred_check_branch
      %57 = sbr.rel (0) target = $region17
    $region16: #{tpu_custom_call.1} parent=1 // pred_region
      %59 = vsyncadd [#allocation9], 0
      %s60 = sshll.u32 %s3, 4
      %s61 = int_to_ptr.hbm [resolvable:$true] %s60
      %s62 = sshll.u32 [#allocation8], 4
      %s63 = int_to_ptr.vmem [resolvable:$true] %s62
      %68 = dma.hbm_to_vmem [thread:$0]  %s61, 512, %s63, [#allocation9], 128, 128, 8
    $region17: #{tpu_custom_call.1} parent=1 // pred_fallthru
      _
    // Predicated region
    $region18: #{tpu_custom_call.1} parent=1 // pred_check
      _
    $region19: #{tpu_custom_call.1} parent=1 // pred_check_branch
      %70 = sbr.rel (0) target = $region21
    $region20: #{tpu_custom_call.1} parent=1 // pred_region
      %72 = vsyncadd [#allocation9], 0
      %s73 = sshll.u32 %s4, 4
      %s74 = int_to_ptr.hbm [resolvable:$true] %s73
      %s75 = sshll.u32 [#allocation10], 4
      %s76 = int_to_ptr.vmem [resolvable:$true] %s75
      %81 = dma.hbm_to_vmem [thread:$0]  %s74, 512, %s76, [#allocation9], 128, 128, 8
    $region21: #{tpu_custom_call.1} parent=1 // pred_fallthru
      _
    // Predicated region
    $region22: #{tpu_custom_call.1} parent=1 // pred_check
      _
    $region23: #{tpu_custom_call.1} parent=1 // pred_check_branch
      %83 = sbr.rel (0) target = $region25
    $region24: #{tpu_custom_call.1} parent=1 // pred_region
      %85 = vsyncadd [#allocation12], 0
      %s86 = sshll.u32 %s5, 4
      %s87 = int_to_ptr.hbm [resolvable:$true] %s86
      %s88 = sshll.u32 [#allocation11], 4
      %s89 = int_to_ptr.vmem [resolvable:$true] %s88
      %94 = dma.hbm_to_vmem [thread:$0]  %s87, 256, %s89, [#allocation12], 128, 128, 8
    $region25: #{tpu_custom_call.1} parent=1 // pred_fallthru
      _
    // Predicated region
    $region26: #{tpu_custom_call.1} parent=1 // pred_check
      _
    $region27: #{tpu_custom_call.1} parent=1 // pred_check_branch
      %96 = sbr.rel (0) target = $region29
    $region28: #{tpu_custom_call.1} parent=1 // pred_region
      %98 = vsyncadd [#allocation12], 0
      %s99 = sshll.u32 %s6, 4
      %s100 = int_to_ptr.hbm [resolvable:$true] %s99
      %s101 = sshll.u32 [#allocation13], 4
      %s102 = int_to_ptr.vmem [resolvable:$true] %s101
      %107 = dma.hbm_to_vmem [thread:$0]  %s100, 256, %s102, [#allocation12], 128, 128, 8
    $region29: #{tpu_custom_call.1} parent=1 // pred_fallthru
      _
    // Predicated region
    $region30: #{tpu_custom_call.1} parent=1 // pred_check
      _
    $region31: #{tpu_custom_call.1} parent=1 // pred_check_branch
      %109 = sbr.rel (0) target = $region33
    $region32: #{tpu_custom_call.1} parent=1 // pred_region
      %111 = dma.done [#allocation3], 256
    $region33: #{tpu_custom_call.1} parent=1 // pred_fallthru
      _
    // Predicated region
    $region34: #{tpu_custom_call.1} parent=1 // pred_check
      _
    $region35: #{tpu_custom_call.1} parent=1 // pred_check_branch
      %113 = sbr.rel (0) target = $region37
    $region36: #{tpu_custom_call.1} parent=1 // pred_region
      %115 = dma.done [#allocation6], 256
    $region37: #{tpu_custom_call.1} parent=1 // pred_fallthru
      _
    // Predicated region
    $region38: #{tpu_custom_call.1} parent=1 // pred_check
      _
    $region39: #{tpu_custom_call.1} parent=1 // pred_check_branch
      %117 = sbr.rel (0) target = $region41
    $region40: #{tpu_custom_call.1} parent=1 // pred_region
      %119 = dma.done [#allocation6], 256
    $region41: #{tpu_custom_call.1} parent=1 // pred_fallthru
      _
    // Predicated region
    $region42: #{tpu_custom_call.1} parent=1 // pred_check
      _
    $region43: #{tpu_custom_call.1} parent=1 // pred_check_branch
      %121 = sbr.rel (0) target = $region45
    $region44: #{tpu_custom_call.1} parent=1 // pred_region
      %123 = dma.done [#allocation9], 512
    $region45: #{tpu_custom_call.1} parent=1 // pred_fallthru
      _
    // Predicated region
    $region46: #{tpu_custom_call.1} parent=1 // pred_check
      _
    $region47: #{tpu_custom_call.1} parent=1 // pred_check_branch
      %125 = sbr.rel (0) target = $region49
    $region48: #{tpu_custom_call.1} parent=1 // pred_region
      %127 = dma.done [#allocation9], 512
    $region49: #{tpu_custom_call.1} parent=1 // pred_fallthru
      _
    // Predicated region
    $region50: #{tpu_custom_call.1} parent=1 // pred_check
      _
    $region51: #{tpu_custom_call.1} parent=1 // pred_check_branch
      %129 = sbr.rel (0) target = $region53
    $region52: #{tpu_custom_call.1} parent=1 // pred_region
      %131 = dma.done [#allocation12], 256
    $region53: #{tpu_custom_call.1} parent=1 // pred_fallthru
      _
    // Predicated region
    $region54: #{tpu_custom_call.1} parent=1 // pred_check
      _
    $region55: #{tpu_custom_call.1} parent=1 // pred_check_branch
      %133 = sbr.rel (0) target = $region57
    $region56: #{tpu_custom_call.1} parent=1 // pred_region
      %135 = dma.done [#allocation12], 256
    $region57: #{tpu_custom_call.1} parent=1 // pred_fallthru
      _
    %v136 = vld [vmem:[#allocation2] sm:$0xff]
    %v137 = vld [vmem:[#allocation2 + $0x8] sm:$0xff]
    %v138 = vld [vmem:[#allocation5] sm:$0xff]
    %v139 = vld [vmem:[#allocation5 + $0x8] sm:$0xff]
    %v140 = vld [vmem:[#allocation7] sm:$0xff]
    %v141 = vld [vmem:[#allocation7 + $0x8] sm:$0xff]
    %v142 = vld [vmem:[#allocation8] sm:$0xff]
    %v143 = vld [vmem:[#allocation8 + $0x8] sm:$0xff]
    %v144 = vld [vmem:[#allocation8 + $0x10] sm:$0xff]
    %v145 = vld [vmem:[#allocation8 + $0x18] sm:$0xff]
    %vm146 = vcmask 261120
    %v148 = vsel %vm146, %v136, 0
    %v151 = vsel %vm146, %v137, 0
    %153 = vmatpush.msra.mxu0 0.0
    %154 = vmatpush.msra.mxu0 0.0
    %155 = vmatpush.msra.mxu0 0.0
    %156 = vmatpush.msra.mxu0 0.0
    %157 = vmatpush.msra.mxu0 0.0
    %158 = vmatpush.msra.mxu0 0.0
    %159 = vmatpush.msra.mxu0 0.0
    %160 = vmatpush.msra.mxu0 0.0
    %161 = vmatpush.msra.mxu0 0.0
    %162 = vmatpush.msra.mxu0 0.0
    %163 = vmatpush.msra.mxu0 0.0
    %164 = vmatpush.msra.mxu0 0.0
    %v165 = vand.u32 %v145, 4294901760
    %166 = vmatpush.msra.mxu0 %v165
    %v167 = vand.u32 %v144, 4294901760
    %168 = vmatpush.msra.mxu0 %v167
    %v169 = vand.u32 %v143, 4294901760
    %170 = vmatpush.msra.mxu0 %v169
    %v171 = vand.u32 %v142, 4294901760
    %172 = vmatpush.msra.mxu0 %v171
    %v173 = vand.u32 %v148, 4294901760
    %v174 = vsub.f32 %v148, %v173
    %v175 = vand.u32 %v174, 4294901760
    %v176 = vsub.f32 %v174, %v175
    %v177 = vand.u32 %v176, 4294901760
    %178 = vmatmul.f32.gmra.mxu0 %v177
    %v179 = vpop.f32.mrf.mxu0
    %v180 = vadd.f32 0.0, %v179
    %v181 = vand.u32 %v151, 4294901760
    %v182 = vsub.f32 %v151, %v181
    %v183 = vand.u32 %v182, 4294901760
    %v184 = vsub.f32 %v182, %v183
    %v185 = vand.u32 %v184, 4294901760
    %186 = vmatmul.f32.gmra.mxu0 %v185
    %v187 = vpop.f32.mrf.mxu0
    %v188 = vadd.f32 0.0, %v187
    %189 = vdwg.mxu0
    %190 = vmatpush.msra.mxu0 0.0
    %191 = vmatpush.msra.mxu0 0.0
    %192 = vmatpush.msra.mxu0 0.0
    %193 = vmatpush.msra.mxu0 0.0
    %194 = vmatpush.msra.mxu0 0.0
    %195 = vmatpush.msra.mxu0 0.0
    %196 = vmatpush.msra.mxu0 0.0
    %197 = vmatpush.msra.mxu0 0.0
    %198 = vmatpush.msra.mxu0 0.0
    %199 = vmatpush.msra.mxu0 0.0
    %200 = vmatpush.msra.mxu0 0.0
    %201 = vmatpush.msra.mxu0 0.0
    %v202 = vand.u32 %v145, 4294901760
    %v203 = vsub.f32 %v145, %v202
    %v204 = vand.u32 %v203, 4294901760
    %v205 = vsub.f32 %v203, %v204
    %v206 = vand.u32 %v205, 4294901760
    %207 = vmatpush.msra.mxu0 %v206
    %v208 = vand.u32 %v144, 4294901760
    %v209 = vsub.f32 %v144, %v208
    %v210 = vand.u32 %v209, 4294901760
    %v211 = vsub.f32 %v209, %v210
    %v212 = vand.u32 %v211, 4294901760
    %213 = vmatpush.msra.mxu0 %v212
    %v214 = vand.u32 %v143, 4294901760
    %v215 = vsub.f32 %v143, %v214
    %v216 = vand.u32 %v215, 4294901760
    %v217 = vsub.f32 %v215, %v216
    %v218 = vand.u32 %v217, 4294901760
    %219 = vmatpush.msra.mxu0 %v218
    %v220 = vand.u32 %v142, 4294901760
    %v221 = vsub.f32 %v142, %v220
    %v222 = vand.u32 %v221, 4294901760
    %v223 = vsub.f32 %v221, %v222
    %v224 = vand.u32 %v223, 4294901760
    %225 = vmatpush.msra.mxu0 %v224
    %v226 = vand.u32 %v148, 4294901760
    %227 = vmatmul.f32.gmra.mxu0 %v226
    %v228 = vpop.f32.mrf.mxu0
    %v229 = vadd.f32 %v180, %v228
    %v230 = vand.u32 %v151, 4294901760
    %231 = vmatmul.f32.gmra.mxu0 %v230
    %v232 = vpop.f32.mrf.mxu0
    %v233 = vadd.f32 %v188, %v232
    %234 = vdwg.mxu0
    %235 = vmatpush.msra.mxu0 0.0
    %236 = vmatpush.msra.mxu0 0.0
    %237 = vmatpush.msra.mxu0 0.0
    %238 = vmatpush.msra.mxu0 0.0
    %239 = vmatpush.msra.mxu0 0.0
    %240 = vmatpush.msra.mxu0 0.0
    %241 = vmatpush.msra.mxu0 0.0
    %242 = vmatpush.msra.mxu0 0.0
    %243 = vmatpush.msra.mxu0 0.0
    %244 = vmatpush.msra.mxu0 0.0
    %245 = vmatpush.msra.mxu0 0.0
    %246 = vmatpush.msra.mxu0 0.0
    %v247 = vand.u32 %v145, 4294901760
    %v248 = vsub.f32 %v145, %v247
    %249 = vmatpush.msra.mxu0 %v248
    %v250 = vand.u32 %v144, 4294901760
    %v251 = vsub.f32 %v144, %v250
    %252 = vmatpush.msra.mxu0 %v251
    %v253 = vand.u32 %v143, 4294901760
    %v254 = vsub.f32 %v143, %v253
    %255 = vmatpush.msra.mxu0 %v254
    %v256 = vand.u32 %v142, 4294901760
    %v257 = vsub.f32 %v142, %v256
    %258 = vmatpush.msra.mxu0 %v257
    %v259 = vand.u32 %v148, 4294901760
    %v260 = vsub.f32 %v148, %v259
    %261 = vmatmul.f32.gmra.mxu0 %v260
    %v262 = vpop.f32.mrf.mxu0
    %v263 = vadd.f32 %v229, %v262
    %v264 = vand.u32 %v151, 4294901760
    %v265 = vsub.f32 %v151, %v264
    %266 = vmatmul.f32.gmra.mxu0 %v265
    %v267 = vpop.f32.mrf.mxu0
    %v268 = vadd.f32 %v233, %v267
    %269 = vdwg.mxu0
    %270 = vmatpush.msra.mxu0 0.0
    %271 = vmatpush.msra.mxu0 0.0
    %272 = vmatpush.msra.mxu0 0.0
    %273 = vmatpush.msra.mxu0 0.0
    %274 = vmatpush.msra.mxu0 0.0
    %275 = vmatpush.msra.mxu0 0.0
    %276 = vmatpush.msra.mxu0 0.0
    %277 = vmatpush.msra.mxu0 0.0
    %278 = vmatpush.msra.mxu0 0.0
    %279 = vmatpush.msra.mxu0 0.0
    %280 = vmatpush.msra.mxu0 0.0
    %281 = vmatpush.msra.mxu0 0.0
    %v282 = vand.u32 %v145, 4294901760
    %283 = vmatpush.msra.mxu0 %v282
    %v284 = vand.u32 %v144, 4294901760
    %285 = vmatpush.msra.mxu0 %v284
    %v286 = vand.u32 %v143, 4294901760
    %287 = vmatpush.msra.mxu0 %v286
    %v288 = vand.u32 %v142, 4294901760
    %289 = vmatpush.msra.mxu0 %v288
    %v290 = vand.u32 %v148, 4294901760
    %v291 = vsub.f32 %v148, %v290
    %v292 = vand.u32 %v291, 4294901760
    %293 = vmatmul.f32.gmra.mxu0 %v292
    %v294 = vpop.f32.mrf.mxu0
    %v295 = vadd.f32 %v263, %v294
    %v296 = vand.u32 %v151, 4294901760
    %v297 = vsub.f32 %v151, %v296
    %v298 = vand.u32 %v297, 4294901760
    %299 = vmatmul.f32.gmra.mxu0 %v298
    %v300 = vpop.f32.mrf.mxu0
    %v301 = vadd.f32 %v268, %v300
    %302 = vdwg.mxu0
    %303 = vmatpush.msra.mxu0 0.0
    %304 = vmatpush.msra.mxu0 0.0
    %305 = vmatpush.msra.mxu0 0.0
    %306 = vmatpush.msra.mxu0 0.0
    %307 = vmatpush.msra.mxu0 0.0
    %308 = vmatpush.msra.mxu0 0.0
    %309 = vmatpush.msra.mxu0 0.0
    %310 = vmatpush.msra.mxu0 0.0
    %311 = vmatpush.msra.mxu0 0.0
    %312 = vmatpush.msra.mxu0 0.0
    %313 = vmatpush.msra.mxu0 0.0
    %314 = vmatpush.msra.mxu0 0.0
    %v315 = vand.u32 %v145, 4294901760
    %v316 = vsub.f32 %v145, %v315
    %v317 = vand.u32 %v316, 4294901760
    %318 = vmatpush.msra.mxu0 %v317
    %v319 = vand.u32 %v144, 4294901760
    %v320 = vsub.f32 %v144, %v319
    %v321 = vand.u32 %v320, 4294901760
    %322 = vmatpush.msra.mxu0 %v321
    %v323 = vand.u32 %v143, 4294901760
    %v324 = vsub.f32 %v143, %v323
    %v325 = vand.u32 %v324, 4294901760
    %326 = vmatpush.msra.mxu0 %v325
    %v327 = vand.u32 %v142, 4294901760
    %v328 = vsub.f32 %v142, %v327
    %v329 = vand.u32 %v328, 4294901760
    %330 = vmatpush.msra.mxu0 %v329
    %v331 = vand.u32 %v148, 4294901760
    %332 = vmatmul.f32.gmra.mxu0 %v331
    %v333 = vpop.f32.mrf.mxu0
    %v334 = vadd.f32 %v295, %v333
    %v335 = vand.u32 %v151, 4294901760
    %336 = vmatmul.f32.gmra.mxu0 %v335
    %v337 = vpop.f32.mrf.mxu0
    %v338 = vadd.f32 %v301, %v337
    %339 = vdwg.mxu0
    %340 = vmatpush.msra.mxu0 0.0
    %341 = vmatpush.msra.mxu0 0.0
    %342 = vmatpush.msra.mxu0 0.0
    %343 = vmatpush.msra.mxu0 0.0
    %344 = vmatpush.msra.mxu0 0.0
    %345 = vmatpush.msra.mxu0 0.0
    %346 = vmatpush.msra.mxu0 0.0
    %347 = vmatpush.msra.mxu0 0.0
    %348 = vmatpush.msra.mxu0 0.0
    %349 = vmatpush.msra.mxu0 0.0
    %350 = vmatpush.msra.mxu0 0.0
    %351 = vmatpush.msra.mxu0 0.0
    %v352 = vand.u32 %v145, 4294901760
    %353 = vmatpush.msra.mxu0 %v352
    %v354 = vand.u32 %v144, 4294901760
    %355 = vmatpush.msra.mxu0 %v354
    %v356 = vand.u32 %v143, 4294901760
    %357 = vmatpush.msra.mxu0 %v356
    %v358 = vand.u32 %v142, 4294901760
    %359 = vmatpush.msra.mxu0 %v358
    %v360 = vand.u32 %v148, 4294901760
    %361 = vmatmul.f32.gmra.mxu0 %v360
    %v362 = vpop.f32.mrf.mxu0
    %v363 = vadd.f32 %v334, %v362
    %v364 = vand.u32 %v151, 4294901760
    %365 = vmatmul.f32.gmra.mxu0 %v364
    %v366 = vpop.f32.mrf.mxu0
    %v367 = vadd.f32 %v338, %v366
    %368 = vdwg.mxu0
    %v369 = vld [vmem:[#allocation10] sm:$0xff]
    %v370 = vld [vmem:[#allocation10 + $0x8] sm:$0xff]
    %v371 = vld [vmem:[#allocation10 + $0x10] sm:$0xff]
    %v372 = vld [vmem:[#allocation10 + $0x18] sm:$0xff]
    %v374 = vsel %vm146, %v138, 0
    %v377 = vsel %vm146, %v139, 0
    %379 = vmatpush.msra.mxu0 0.0
    %380 = vmatpush.msra.mxu0 0.0
    %381 = vmatpush.msra.mxu0 0.0
    %382 = vmatpush.msra.mxu0 0.0
    %383 = vmatpush.msra.mxu0 0.0
    %384 = vmatpush.msra.mxu0 0.0
    %385 = vmatpush.msra.mxu0 0.0
    %386 = vmatpush.msra.mxu0 0.0
    %387 = vmatpush.msra.mxu0 0.0
    %388 = vmatpush.msra.mxu0 0.0
    %389 = vmatpush.msra.mxu0 0.0
    %390 = vmatpush.msra.mxu0 0.0
    %v391 = vand.u32 %v372, 4294901760
    %392 = vmatpush.msra.mxu0 %v391
    %v393 = vand.u32 %v371, 4294901760
    %394 = vmatpush.msra.mxu0 %v393
    %v395 = vand.u32 %v370, 4294901760
    %396 = vmatpush.msra.mxu0 %v395
    %v397 = vand.u32 %v369, 4294901760
    %398 = vmatpush.msra.mxu0 %v397
    %v399 = vand.u32 %v374, 4294901760
    %v400 = vsub.f32 %v374, %v399
    %v401 = vand.u32 %v400, 4294901760
    %v402 = vsub.f32 %v400, %v401
    %v403 = vand.u32 %v402, 4294901760
    %404 = vmatmul.f32.gmra.mxu0 %v403
    %v405 = vpop.f32.mrf.mxu0
    %v406 = vadd.f32 0.0, %v405
    %v407 = vand.u32 %v377, 4294901760
    %v408 = vsub.f32 %v377, %v407
    %v409 = vand.u32 %v408, 4294901760
    %v410 = vsub.f32 %v408, %v409
    %v411 = vand.u32 %v410, 4294901760
    %412 = vmatmul.f32.gmra.mxu0 %v411
    %v413 = vpop.f32.mrf.mxu0
    %v414 = vadd.f32 0.0, %v413
    %415 = vdwg.mxu0
    %416 = vmatpush.msra.mxu0 0.0
    %417 = vmatpush.msra.mxu0 0.0
    %418 = vmatpush.msra.mxu0 0.0
    %419 = vmatpush.msra.mxu0 0.0
    %420 = vmatpush.msra.mxu0 0.0
    %421 = vmatpush.msra.mxu0 0.0
    %422 = vmatpush.msra.mxu0 0.0
    %423 = vmatpush.msra.mxu0 0.0
    %424 = vmatpush.msra.mxu0 0.0
    %425 = vmatpush.msra.mxu0 0.0
    %426 = vmatpush.msra.mxu0 0.0
    %427 = vmatpush.msra.mxu0 0.0
    %v428 = vand.u32 %v372, 4294901760
    %v429 = vsub.f32 %v372, %v428
    %v430 = vand.u32 %v429, 4294901760
    %v431 = vsub.f32 %v429, %v430
    %v432 = vand.u32 %v431, 4294901760
    %433 = vmatpush.msra.mxu0 %v432
    %v434 = vand.u32 %v371, 4294901760
    %v435 = vsub.f32 %v371, %v434
    %v436 = vand.u32 %v435, 4294901760
    %v437 = vsub.f32 %v435, %v436
    %v438 = vand.u32 %v437, 4294901760
    %439 = vmatpush.msra.mxu0 %v438
    %v440 = vand.u32 %v370, 4294901760
    %v441 = vsub.f32 %v370, %v440
    %v442 = vand.u32 %v441, 4294901760
    %v443 = vsub.f32 %v441, %v442
    %v444 = vand.u32 %v443, 4294901760
    %445 = vmatpush.msra.mxu0 %v444
    %v446 = vand.u32 %v369, 4294901760
    %v447 = vsub.f32 %v369, %v446
    %v448 = vand.u32 %v447, 4294901760
    %v449 = vsub.f32 %v447, %v448
    %v450 = vand.u32 %v449, 4294901760
    %451 = vmatpush.msra.mxu0 %v450
    %v452 = vand.u32 %v374, 4294901760
    %453 = vmatmul.f32.gmra.mxu0 %v452
    %v454 = vpop.f32.mrf.mxu0
    %v455 = vadd.f32 %v406, %v454
    %v456 = vand.u32 %v377, 4294901760
    %457 = vmatmul.f32.gmra.mxu0 %v456
    %v458 = vpop.f32.mrf.mxu0
    %v459 = vadd.f32 %v414, %v458
    %460 = vdwg.mxu0
    %461 = vmatpush.msra.mxu0 0.0
    %462 = vmatpush.msra.mxu0 0.0
    %463 = vmatpush.msra.mxu0 0.0
    %464 = vmatpush.msra.mxu0 0.0
    %465 = vmatpush.msra.mxu0 0.0
    %466 = vmatpush.msra.mxu0 0.0
    %467 = vmatpush.msra.mxu0 0.0
    %468 = vmatpush.msra.mxu0 0.0
    %469 = vmatpush.msra.mxu0 0.0
    %470 = vmatpush.msra.mxu0 0.0
    %471 = vmatpush.msra.mxu0 0.0
    %472 = vmatpush.msra.mxu0 0.0
    %v473 = vand.u32 %v372, 4294901760
    %v474 = vsub.f32 %v372, %v473
    %475 = vmatpush.msra.mxu0 %v474
    %v476 = vand.u32 %v371, 4294901760
    %v477 = vsub.f32 %v371, %v476
    %478 = vmatpush.msra.mxu0 %v477
    %v479 = vand.u32 %v370, 4294901760
    %v480 = vsub.f32 %v370, %v479
    %481 = vmatpush.msra.mxu0 %v480
    %v482 = vand.u32 %v369, 4294901760
    %v483 = vsub.f32 %v369, %v482
    %484 = vmatpush.msra.mxu0 %v483
    %v485 = vand.u32 %v374, 4294901760
    %v486 = vsub.f32 %v374, %v485
    %487 = vmatmul.f32.gmra.mxu0 %v486
    %v488 = vpop.f32.mrf.mxu0
    %v489 = vadd.f32 %v455, %v488
    %v490 = vand.u32 %v377, 4294901760
    %v491 = vsub.f32 %v377, %v490
    %492 = vmatmul.f32.gmra.mxu0 %v491
    %v493 = vpop.f32.mrf.mxu0
    %v494 = vadd.f32 %v459, %v493
    %495 = vdwg.mxu0
    %496 = vmatpush.msra.mxu0 0.0
    %497 = vmatpush.msra.mxu0 0.0
    %498 = vmatpush.msra.mxu0 0.0
    %499 = vmatpush.msra.mxu0 0.0
    %500 = vmatpush.msra.mxu0 0.0
    %501 = vmatpush.msra.mxu0 0.0
    %502 = vmatpush.msra.mxu0 0.0
    %503 = vmatpush.msra.mxu0 0.0
    %504 = vmatpush.msra.mxu0 0.0
    %505 = vmatpush.msra.mxu0 0.0
    %506 = vmatpush.msra.mxu0 0.0
    %507 = vmatpush.msra.mxu0 0.0
    %v508 = vand.u32 %v372, 4294901760
    %509 = vmatpush.msra.mxu0 %v508
    %v510 = vand.u32 %v371, 4294901760
    %511 = vmatpush.msra.mxu0 %v510
    %v512 = vand.u32 %v370, 4294901760
    %513 = vmatpush.msra.mxu0 %v512
    %v514 = vand.u32 %v369, 4294901760
    %515 = vmatpush.msra.mxu0 %v514
    %v516 = vand.u32 %v374, 4294901760
    %v517 = vsub.f32 %v374, %v516
    %v518 = vand.u32 %v517, 4294901760
    %519 = vmatmul.f32.gmra.mxu0 %v518
    %v520 = vpop.f32.mrf.mxu0
    %v521 = vadd.f32 %v489, %v520
    %v522 = vand.u32 %v377, 4294901760
    %v523 = vsub.f32 %v377, %v522
    %v524 = vand.u32 %v523, 4294901760
    %525 = vmatmul.f32.gmra.mxu0 %v524
    %v526 = vpop.f32.mrf.mxu0
    %v527 = vadd.f32 %v494, %v526
    %528 = vdwg.mxu0
    %529 = vmatpush.msra.mxu0 0.0
    %530 = vmatpush.msra.mxu0 0.0
    %531 = vmatpush.msra.mxu0 0.0
    %532 = vmatpush.msra.mxu0 0.0
    %533 = vmatpush.msra.mxu0 0.0
    %534 = vmatpush.msra.mxu0 0.0
    %535 = vmatpush.msra.mxu0 0.0
    %536 = vmatpush.msra.mxu0 0.0
    %537 = vmatpush.msra.mxu0 0.0
    %538 = vmatpush.msra.mxu0 0.0
    %539 = vmatpush.msra.mxu0 0.0
    %540 = vmatpush.msra.mxu0 0.0
    %v541 = vand.u32 %v372, 4294901760
    %v542 = vsub.f32 %v372, %v541
    %v543 = vand.u32 %v542, 4294901760
    %544 = vmatpush.msra.mxu0 %v543
    %v545 = vand.u32 %v371, 4294901760
    %v546 = vsub.f32 %v371, %v545
    %v547 = vand.u32 %v546, 4294901760
    %548 = vmatpush.msra.mxu0 %v547
    %v549 = vand.u32 %v370, 4294901760
    %v550 = vsub.f32 %v370, %v549
    %v551 = vand.u32 %v550, 4294901760
    %552 = vmatpush.msra.mxu0 %v551
    %v553 = vand.u32 %v369, 4294901760
    %v554 = vsub.f32 %v369, %v553
    %v555 = vand.u32 %v554, 4294901760
    %556 = vmatpush.msra.mxu0 %v555
    %v557 = vand.u32 %v374, 4294901760
    %558 = vmatmul.f32.gmra.mxu0 %v557
    %v559 = vpop.f32.mrf.mxu0
    %v560 = vadd.f32 %v521, %v559
    %v561 = vand.u32 %v377, 4294901760
    %562 = vmatmul.f32.gmra.mxu0 %v561
    %v563 = vpop.f32.mrf.mxu0
    %v564 = vadd.f32 %v527, %v563
    %565 = vdwg.mxu0
    %566 = vmatpush.msra.mxu0 0.0
    %567 = vmatpush.msra.mxu0 0.0
    %568 = vmatpush.msra.mxu0 0.0
    %569 = vmatpush.msra.mxu0 0.0
    %570 = vmatpush.msra.mxu0 0.0
    %571 = vmatpush.msra.mxu0 0.0
    %572 = vmatpush.msra.mxu0 0.0
    %573 = vmatpush.msra.mxu0 0.0
    %574 = vmatpush.msra.mxu0 0.0
    %575 = vmatpush.msra.mxu0 0.0
    %576 = vmatpush.msra.mxu0 0.0
    %577 = vmatpush.msra.mxu0 0.0
    %v578 = vand.u32 %v372, 4294901760
    %579 = vmatpush.msra.mxu0 %v578
    %v580 = vand.u32 %v371, 4294901760
    %581 = vmatpush.msra.mxu0 %v580
    %v582 = vand.u32 %v370, 4294901760
    %583 = vmatpush.msra.mxu0 %v582
    %v584 = vand.u32 %v369, 4294901760
    %585 = vmatpush.msra.mxu0 %v584
    %v586 = vand.u32 %v374, 4294901760
    %587 = vmatmul.f32.gmra.mxu0 %v586
    %v588 = vpop.f32.mrf.mxu0
    %v589 = vadd.f32 %v560, %v588
    %v590 = vand.u32 %v377, 4294901760
    %591 = vmatmul.f32.gmra.mxu0 %v590
    %v592 = vpop.f32.mrf.mxu0
    %v593 = vadd.f32 %v564, %v592
    %594 = vdwg.mxu0
    %597 = vrot.lane.b32.xlu0 %v363, 120
    %v598 = vpop.permute.xlu0 %597
    %599 = vrot.lane.b32.xlu0 %v367, 120
    %v600 = vpop.permute.xlu0 %599
    %v603 = vrot.slane %v363, 4
    %vm604 = vcmask 1047556
    %v605 = vsel %vm604, 0.0, %v603
    %v607 = vunpack.c.l.s4 1983009808
    %v608 = vunpack.c.0.s8 %v607
    %v609 = vperm.slane %v363, %v608
    %v611 = vunpack.c.l.s4 1983009808
    %v612 = vunpack.c.0.s8 %v611
    %v613 = vperm.slane %v605, %v612
    %v614 = vrot.slane %v598, 4
    %v615 = vsel %vm604, 0.0, %v614
    %v617 = vunpack.c.l.s4 1983009808
    %v618 = vunpack.c.0.s8 %v617
    %v619 = vperm.slane %v598, %v618
    %v621 = vunpack.c.l.s4 1983009808
    %v622 = vunpack.c.0.s8 %v621
    %v623 = vperm.slane %v615, %v622
    %v624 = vrot.slane %v619, 4
    %v625 = vsel %vm604, %v624, %v609
    %v626 = vrot.slane %v609, 4
    %v627 = vsel %vm604, %v619, %v626
    %v629 = vunpack.c.l.s4 1934713408
    %v630 = vunpack.c.0.s8 %v629
    %v631 = vperm.slane %v625, %v630
    %v633 = vunpack.c.l.s4 1934713408
    %v634 = vunpack.c.0.s8 %v633
    %v635 = vperm.slane %v627, %v634
    %v636 = vrot.slane %v623, 4
    %v637 = vsel %vm604, %v636, %v613
    %v638 = vrot.slane %v613, 4
    %v639 = vsel %vm604, %v623, %v638
    %v641 = vunpack.c.l.s4 1934713408
    %v642 = vunpack.c.0.s8 %v641
    %v643 = vperm.slane %v637, %v642
    %v645 = vunpack.c.l.s4 1934713408
    %v646 = vunpack.c.0.s8 %v645
    %v647 = vperm.slane %v639, %v646
    %v648 = vrot.slane %v631, 4
    %v649 = vsel %vm604, 0.0, %v648
    %v650 = vrot.slane %v635, 4
    %v651 = vsel %vm604, 0.0, %v650
    %v652 = vrot.slane %v643, 4
    %v653 = vsel %vm604, 0.0, %v652
    %v654 = vrot.slane %v647, 4
    %v655 = vsel %vm604, 0.0, %v654
    %v656 = vrot.slane %v367, 4
    %v657 = vsel %vm604, 0.0, %v656
    %v659 = vunpack.c.l.s4 1983009808
    %v660 = vunpack.c.0.s8 %v659
    %v661 = vperm.slane %v367, %v660
    %v663 = vunpack.c.l.s4 1983009808
    %v664 = vunpack.c.0.s8 %v663
    %v665 = vperm.slane %v657, %v664
    %v666 = vrot.slane %v600, 4
    %v667 = vsel %vm604, 0.0, %v666
    %v669 = vunpack.c.l.s4 1983009808
    %v670 = vunpack.c.0.s8 %v669
    %v671 = vperm.slane %v600, %v670
    %v673 = vunpack.c.l.s4 1983009808
    %v674 = vunpack.c.0.s8 %v673
    %v675 = vperm.slane %v667, %v674
    %v676 = vrot.slane %v671, 4
    %v677 = vsel %vm604, %v676, %v661
    %v678 = vrot.slane %v661, 4
    %v679 = vsel %vm604, %v671, %v678
    %v681 = vunpack.c.l.s4 1934713408
    %v682 = vunpack.c.0.s8 %v681
    %v683 = vperm.slane %v677, %v682
    %v685 = vunpack.c.l.s4 1934713408
    %v686 = vunpack.c.0.s8 %v685
    %v687 = vperm.slane %v679, %v686
    %v688 = vrot.slane %v675, 4
    %v689 = vsel %vm604, %v688, %v665
    %v690 = vrot.slane %v665, 4
    %v691 = vsel %vm604, %v675, %v690
    %v693 = vunpack.c.l.s4 1934713408
    %v694 = vunpack.c.0.s8 %v693
    %v695 = vperm.slane %v689, %v694
    %v697 = vunpack.c.l.s4 1934713408
    %v698 = vunpack.c.0.s8 %v697
    %v699 = vperm.slane %v691, %v698
    %v700 = vrot.slane %v683, 4
    %v701 = vsel %vm604, 0.0, %v700
    %v702 = vrot.slane %v687, 4
    %v703 = vsel %vm604, 0.0, %v702
    %v704 = vrot.slane %v695, 4
    %v705 = vsel %vm604, 0.0, %v704
    %v706 = vrot.slane %v699, 4
    %v707 = vsel %vm604, 0.0, %v706
    %v708 = vsel %vm604, %v650, %v631
    %v710 = vunpack.c.l.s4 1983009808
    %v711 = vunpack.c.0.s8 %v710
    %v712 = vperm.slane %v708, %v711
    %v713 = vrot.slane %v651, 4
    %v714 = vsel %vm604, %v713, %v649
    %v716 = vunpack.c.l.s4 1983009808
    %v717 = vunpack.c.0.s8 %v716
    %v718 = vperm.slane %v714, %v717
    %v719 = vsel %vm604, %v654, %v643
    %v721 = vunpack.c.l.s4 1983009808
    %v722 = vunpack.c.0.s8 %v721
    %v723 = vperm.slane %v719, %v722
    %v724 = vrot.slane %v655, 4
    %v725 = vsel %vm604, %v724, %v653
    %v727 = vunpack.c.l.s4 1983009808
    %v728 = vunpack.c.0.s8 %v727
    %v729 = vperm.slane %v725, %v728
    %v730 = vrot.slane %v718, 4
    %v731 = vsel %vm604, %v730, %v712
    %v733 = vunpack.c.l.s4 1934713408
    %v734 = vunpack.c.0.s8 %v733
    %v735 = vperm.slane %v731, %v734
    %v736 = vrot.slane %v729, 4
    %v737 = vsel %vm604, %v736, %v723
    %v739 = vunpack.c.l.s4 1934713408
    %v740 = vunpack.c.0.s8 %v739
    %v741 = vperm.slane %v737, %v740
    %v742 = vrot.slane %v741, 4
    %v743 = vsel %vm604, %v742, %v735
    %v744 = vrot.slane %v735, 4
    %v745 = vsel %vm604, %v741, %v744
    %v746 = vsel %vm604, %v702, %v683
    %v748 = vunpack.c.l.s4 1983009808
    %v749 = vunpack.c.0.s8 %v748
    %v750 = vperm.slane %v746, %v749
    %v751 = vrot.slane %v703, 4
    %v752 = vsel %vm604, %v751, %v701
    %v754 = vunpack.c.l.s4 1983009808
    %v755 = vunpack.c.0.s8 %v754
    %v756 = vperm.slane %v752, %v755
    %v757 = vsel %vm604, %v706, %v695
    %v759 = vunpack.c.l.s4 1983009808
    %v760 = vunpack.c.0.s8 %v759
    %v761 = vperm.slane %v757, %v760
    %v762 = vrot.slane %v707, 4
    %v763 = vsel %vm604, %v762, %v705
    %v765 = vunpack.c.l.s4 1983009808
    %v766 = vunpack.c.0.s8 %v765
    %v767 = vperm.slane %v763, %v766
    %v768 = vrot.slane %v756, 4
    %v769 = vsel %vm604, %v768, %v750
    %v771 = vunpack.c.l.s4 1934713408
    %v772 = vunpack.c.0.s8 %v771
    %v773 = vperm.slane %v769, %v772
    %v774 = vrot.slane %v767, 4
    %v775 = vsel %vm604, %v774, %v761
    %v777 = vunpack.c.l.s4 1934713408
    %v778 = vunpack.c.0.s8 %v777
    %v779 = vperm.slane %v775, %v778
    %v780 = vrot.slane %v779, 4
    %v781 = vsel %vm604, %v780, %v773
    %v782 = vrot.slane %v773, 4
    %v783 = vsel %vm604, %v779, %v782
    %784 = vrot.lane.b32.xlu0 %v363, 96
    %v785 = vpop.permute.xlu0 %784
    %786 = vrot.lane.b32.xlu0 %v367, 96
    %v787 = vpop.permute.xlu0 %786
    %788 = vrot.lane.b32.xlu0 %v598, 96
    %v789 = vpop.permute.xlu0 %788
    %790 = vrot.lane.b32.xlu0 %v600, 96
    %v791 = vpop.permute.xlu0 %790
    %v796 = vrot.slane %v785, 4
    %v797 = vsel %vm604, 0.0, %v796
    %v799 = vunpack.c.l.s4 1983009808
    %v800 = vunpack.c.0.s8 %v799
    %v801 = vperm.slane %v785, %v800
    %v803 = vunpack.c.l.s4 1983009808
    %v804 = vunpack.c.0.s8 %v803
    %v805 = vperm.slane %v797, %v804
    %v806 = vrot.slane %v789, 4
    %v807 = vsel %vm604, 0.0, %v806
    %v809 = vunpack.c.l.s4 1983009808
    %v810 = vunpack.c.0.s8 %v809
    %v811 = vperm.slane %v789, %v810
    %v813 = vunpack.c.l.s4 1983009808
    %v814 = vunpack.c.0.s8 %v813
    %v815 = vperm.slane %v807, %v814
    %v816 = vrot.slane %v811, 4
    %v817 = vsel %vm604, %v816, %v801
    %v818 = vrot.slane %v801, 4
    %v819 = vsel %vm604, %v811, %v818
    %v821 = vunpack.c.l.s4 1934713408
    %v822 = vunpack.c.0.s8 %v821
    %v823 = vperm.slane %v817, %v822
    %v825 = vunpack.c.l.s4 1934713408
    %v826 = vunpack.c.0.s8 %v825
    %v827 = vperm.slane %v819, %v826
    %v828 = vrot.slane %v815, 4
    %v829 = vsel %vm604, %v828, %v805
    %v830 = vrot.slane %v805, 4
    %v831 = vsel %vm604, %v815, %v830
    %v833 = vunpack.c.l.s4 1934713408
    %v834 = vunpack.c.0.s8 %v833
    %v835 = vperm.slane %v829, %v834
    %v837 = vunpack.c.l.s4 1934713408
    %v838 = vunpack.c.0.s8 %v837
    %v839 = vperm.slane %v831, %v838
    %v840 = vrot.slane %v823, 4
    %v841 = vsel %vm604, 0.0, %v840
    %v842 = vrot.slane %v827, 4
    %v843 = vsel %vm604, 0.0, %v842
    %v844 = vrot.slane %v835, 4
    %v845 = vsel %vm604, 0.0, %v844
    %v846 = vrot.slane %v839, 4
    %v847 = vsel %vm604, 0.0, %v846
    %v848 = vrot.slane %v787, 4
    %v849 = vsel %vm604, 0.0, %v848
    %v851 = vunpack.c.l.s4 1983009808
    %v852 = vunpack.c.0.s8 %v851
    %v853 = vperm.slane %v787, %v852
    %v855 = vunpack.c.l.s4 1983009808
    %v856 = vunpack.c.0.s8 %v855
    %v857 = vperm.slane %v849, %v856
    %v858 = vrot.slane %v791, 4
    %v859 = vsel %vm604, 0.0, %v858
    %v861 = vunpack.c.l.s4 1983009808
    %v862 = vunpack.c.0.s8 %v861
    %v863 = vperm.slane %v791, %v862
    %v865 = vunpack.c.l.s4 1983009808
    %v866 = vunpack.c.0.s8 %v865
    %v867 = vperm.slane %v859, %v866
    %v868 = vrot.slane %v863, 4
    %v869 = vsel %vm604, %v868, %v853
    %v870 = vrot.slane %v853, 4
    %v871 = vsel %vm604, %v863, %v870
    %v873 = vunpack.c.l.s4 1934713408
    %v874 = vunpack.c.0.s8 %v873
    %v875 = vperm.slane %v869, %v874
    %v877 = vunpack.c.l.s4 1934713408
    %v878 = vunpack.c.0.s8 %v877
    %v879 = vperm.slane %v871, %v878
    %v880 = vrot.slane %v867, 4
    %v881 = vsel %vm604, %v880, %v857
    %v882 = vrot.slane %v857, 4
    %v883 = vsel %vm604, %v867, %v882
    %v885 = vunpack.c.l.s4 1934713408
    %v886 = vunpack.c.0.s8 %v885
    %v887 = vperm.slane %v881, %v886
    %v889 = vunpack.c.l.s4 1934713408
    %v890 = vunpack.c.0.s8 %v889
    %v891 = vperm.slane %v883, %v890
    %v892 = vrot.slane %v875, 4
    %v893 = vsel %vm604, 0.0, %v892
    %v894 = vrot.slane %v879, 4
    %v895 = vsel %vm604, 0.0, %v894
    %v896 = vrot.slane %v887, 4
    %v897 = vsel %vm604, 0.0, %v896
    %v898 = vrot.slane %v891, 4
    %v899 = vsel %vm604, 0.0, %v898
    %v900 = vsel %vm604, %v842, %v823
    %v902 = vunpack.c.l.s4 1983009808
    %v903 = vunpack.c.0.s8 %v902
    %v904 = vperm.slane %v900, %v903
    %v905 = vrot.slane %v843, 4
    %v906 = vsel %vm604, %v905, %v841
    %v908 = vunpack.c.l.s4 1983009808
    %v909 = vunpack.c.0.s8 %v908
    %v910 = vperm.slane %v906, %v909
    %v911 = vsel %vm604, %v846, %v835
    %v913 = vunpack.c.l.s4 1983009808
    %v914 = vunpack.c.0.s8 %v913
    %v915 = vperm.slane %v911, %v914
    %v916 = vrot.slane %v847, 4
    %v917 = vsel %vm604, %v916, %v845
    %v919 = vunpack.c.l.s4 1983009808
    %v920 = vunpack.c.0.s8 %v919
    %v921 = vperm.slane %v917, %v920
    %v922 = vrot.slane %v910, 4
    %v923 = vsel %vm604, %v922, %v904
    %v925 = vunpack.c.l.s4 1934713408
    %v926 = vunpack.c.0.s8 %v925
    %v927 = vperm.slane %v923, %v926
    %v928 = vrot.slane %v921, 4
    %v929 = vsel %vm604, %v928, %v915
    %v931 = vunpack.c.l.s4 1934713408
    %v932 = vunpack.c.0.s8 %v931
    %v933 = vperm.slane %v929, %v932
    %v934 = vrot.slane %v933, 4
    %v935 = vsel %vm604, %v934, %v927
    %v936 = vrot.slane %v927, 4
    %v937 = vsel %vm604, %v933, %v936
    %v938 = vsel %vm604, %v894, %v875
    %v940 = vunpack.c.l.s4 1983009808
    %v941 = vunpack.c.0.s8 %v940
    %v942 = vperm.slane %v938, %v941
    %v943 = vrot.slane %v895, 4
    %v944 = vsel %vm604, %v943, %v893
    %v946 = vunpack.c.l.s4 1983009808
    %v947 = vunpack.c.0.s8 %v946
    %v948 = vperm.slane %v944, %v947
    %v949 = vsel %vm604, %v898, %v887
    %v951 = vunpack.c.l.s4 1983009808
    %v952 = vunpack.c.0.s8 %v951
    %v953 = vperm.slane %v949, %v952
    %v954 = vrot.slane %v899, 4
    %v955 = vsel %vm604, %v954, %v897
    %v957 = vunpack.c.l.s4 1983009808
    %v958 = vunpack.c.0.s8 %v957
    %v959 = vperm.slane %v955, %v958
    %v960 = vrot.slane %v948, 4
    %v961 = vsel %vm604, %v960, %v942
    %v963 = vunpack.c.l.s4 1934713408
    %v964 = vunpack.c.0.s8 %v963
    %v965 = vperm.slane %v961, %v964
    %v966 = vrot.slane %v959, 4
    %v967 = vsel %vm604, %v966, %v953
    %v969 = vunpack.c.l.s4 1934713408
    %v970 = vunpack.c.0.s8 %v969
    %v971 = vperm.slane %v967, %v970
    %v972 = vrot.slane %v971, 4
    %v973 = vsel %vm604, %v972, %v965
    %v974 = vrot.slane %v965, 4
    %v975 = vsel %vm604, %v971, %v974
    %976 = vrot.lane.b32.xlu0 %v363, 80
    %v977 = vpop.permute.xlu0 %976
    %978 = vrot.lane.b32.xlu0 %v367, 80
    %v979 = vpop.permute.xlu0 %978
    %980 = vrot.lane.b32.xlu0 %v598, 80
    %v981 = vpop.permute.xlu0 %980
    %982 = vrot.lane.b32.xlu0 %v600, 80
    %v983 = vpop.permute.xlu0 %982
    %v988 = vrot.slane %v977, 4
    %v989 = vsel %vm604, 0.0, %v988
    %v991 = vunpack.c.l.s4 1983009808
    %v992 = vunpack.c.0.s8 %v991
    %v993 = vperm.slane %v977, %v992
    %v995 = vunpack.c.l.s4 1983009808
    %v996 = vunpack.c.0.s8 %v995
    %v997 = vperm.slane %v989, %v996
    %v998 = vrot.slane %v981, 4
    %v999 = vsel %vm604, 0.0, %v998
    %v1001 = vunpack.c.l.s4 1983009808
    %v1002 = vunpack.c.0.s8 %v1001
    %v1003 = vperm.slane %v981, %v1002
    %v1005 = vunpack.c.l.s4 1983009808
    %v1006 = vunpack.c.0.s8 %v1005
    %v1007 = vperm.slane %v999, %v1006
    %v1008 = vrot.slane %v1003, 4
    %v1009 = vsel %vm604, %v1008, %v993
    %v1010 = vrot.slane %v993, 4
    %v1011 = vsel %vm604, %v1003, %v1010
    %v1013 = vunpack.c.l.s4 1934713408
    %v1014 = vunpack.c.0.s8 %v1013
    %v1015 = vperm.slane %v1009, %v1014
    %v1017 = vunpack.c.l.s4 1934713408
    %v1018 = vunpack.c.0.s8 %v1017
    %v1019 = vperm.slane %v1011, %v1018
    %v1020 = vrot.slane %v1007, 4
    %v1021 = vsel %vm604, %v1020, %v997
    %v1022 = vrot.slane %v997, 4
    %v1023 = vsel %vm604, %v1007, %v1022
    %v1025 = vunpack.c.l.s4 1934713408
    %v1026 = vunpack.c.0.s8 %v1025
    %v1027 = vperm.slane %v1021, %v1026
    %v1029 = vunpack.c.l.s4 1934713408
    %v1030 = vunpack.c.0.s8 %v1029
    %v1031 = vperm.slane %v1023, %v1030
    %v1032 = vrot.slane %v1015, 4
    %v1033 = vsel %vm604, 0.0, %v1032
    %v1034 = vrot.slane %v1019, 4
    %v1035 = vsel %vm604, 0.0, %v1034
    %v1036 = vrot.slane %v1027, 4
    %v1037 = vsel %vm604, 0.0, %v1036
    %v1038 = vrot.slane %v1031, 4
    %v1039 = vsel %vm604, 0.0, %v1038
    %v1040 = vrot.slane %v979, 4
    %v1041 = vsel %vm604, 0.0, %v1040
    %v1043 = vunpack.c.l.s4 1983009808
    %v1044 = vunpack.c.0.s8 %v1043
    %v1045 = vperm.slane %v979, %v1044
    %v1047 = vunpack.c.l.s4 1983009808
    %v1048 = vunpack.c.0.s8 %v1047
    %v1049 = vperm.slane %v1041, %v1048
    %v1050 = vrot.slane %v983, 4
    %v1051 = vsel %vm604, 0.0, %v1050
    %v1053 = vunpack.c.l.s4 1983009808
    %v1054 = vunpack.c.0.s8 %v1053
    %v1055 = vperm.slane %v983, %v1054
    %v1057 = vunpack.c.l.s4 1983009808
    %v1058 = vunpack.c.0.s8 %v1057
    %v1059 = vperm.slane %v1051, %v1058
    %v1060 = vrot.slane %v1055, 4
    %v1061 = vsel %vm604, %v1060, %v1045
    %v1062 = vrot.slane %v1045, 4
    %v1063 = vsel %vm604, %v1055, %v1062
    %v1065 = vunpack.c.l.s4 1934713408
    %v1066 = vunpack.c.0.s8 %v1065
    %v1067 = vperm.slane %v1061, %v1066
    %v1069 = vunpack.c.l.s4 1934713408
    %v1070 = vunpack.c.0.s8 %v1069
    %v1071 = vperm.slane %v1063, %v1070
    %v1072 = vrot.slane %v1059, 4
    %v1073 = vsel %vm604, %v1072, %v1049
    %v1074 = vrot.slane %v1049, 4
    %v1075 = vsel %vm604, %v1059, %v1074
    %v1077 = vunpack.c.l.s4 1934713408
    %v1078 = vunpack.c.0.s8 %v1077
    %v1079 = vperm.slane %v1073, %v1078
    %v1081 = vunpack.c.l.s4 1934713408
    %v1082 = vunpack.c.0.s8 %v1081
    %v1083 = vperm.slane %v1075, %v1082
    %v1084 = vrot.slane %v1067, 4
    %v1085 = vsel %vm604, 0.0, %v1084
    %v1086 = vrot.slane %v1071, 4
    %v1087 = vsel %vm604, 0.0, %v1086
    %v1088 = vrot.slane %v1079, 4
    %v1089 = vsel %vm604, 0.0, %v1088
    %v1090 = vrot.slane %v1083, 4
    %v1091 = vsel %vm604, 0.0, %v1090
    %v1092 = vsel %vm604, %v1034, %v1015
    %v1094 = vunpack.c.l.s4 1983009808
    %v1095 = vunpack.c.0.s8 %v1094
    %v1096 = vperm.slane %v1092, %v1095
    %v1097 = vrot.slane %v1035, 4
    %v1098 = vsel %vm604, %v1097, %v1033
    %v1100 = vunpack.c.l.s4 1983009808
    %v1101 = vunpack.c.0.s8 %v1100
    %v1102 = vperm.slane %v1098, %v1101
    %v1103 = vsel %vm604, %v1038, %v1027
    %v1105 = vunpack.c.l.s4 1983009808
    %v1106 = vunpack.c.0.s8 %v1105
    %v1107 = vperm.slane %v1103, %v1106
    %v1108 = vrot.slane %v1039, 4
    %v1109 = vsel %vm604, %v1108, %v1037
    %v1111 = vunpack.c.l.s4 1983009808
    %v1112 = vunpack.c.0.s8 %v1111
    %v1113 = vperm.slane %v1109, %v1112
    %v1114 = vrot.slane %v1102, 4
    %v1115 = vsel %vm604, %v1114, %v1096
    %v1117 = vunpack.c.l.s4 1934713408
    %v1118 = vunpack.c.0.s8 %v1117
    %v1119 = vperm.slane %v1115, %v1118
    %v1120 = vrot.slane %v1113, 4
    %v1121 = vsel %vm604, %v1120, %v1107
    %v1123 = vunpack.c.l.s4 1934713408
    %v1124 = vunpack.c.0.s8 %v1123
    %v1125 = vperm.slane %v1121, %v1124
    %v1126 = vrot.slane %v1125, 4
    %v1127 = vsel %vm604, %v1126, %v1119
    %v1128 = vrot.slane %v1119, 4
    %v1129 = vsel %vm604, %v1125, %v1128
    %v1130 = vsel %vm604, %v1086, %v1067
    %v1132 = vunpack.c.l.s4 1983009808
    %v1133 = vunpack.c.0.s8 %v1132
    %v1134 = vperm.slane %v1130, %v1133
    %v1135 = vrot.slane %v1087, 4
    %v1136 = vsel %vm604, %v1135, %v1085
    %v1138 = vunpack.c.l.s4 1983009808
    %v1139 = vunpack.c.0.s8 %v1138
    %v1140 = vperm.slane %v1136, %v1139
    %v1141 = vsel %vm604, %v1090, %v1079
    %v1143 = vunpack.c.l.s4 1983009808
    %v1144 = vunpack.c.0.s8 %v1143
    %v1145 = vperm.slane %v1141, %v1144
    %v1146 = vrot.slane %v1091, 4
    %v1147 = vsel %vm604, %v1146, %v1089
    %v1149 = vunpack.c.l.s4 1983009808
    %v1150 = vunpack.c.0.s8 %v1149
    %v1151 = vperm.slane %v1147, %v1150
    %v1152 = vrot.slane %v1140, 4
    %v1153 = vsel %vm604, %v1152, %v1134
    %v1155 = vunpack.c.l.s4 1934713408
    %v1156 = vunpack.c.0.s8 %v1155
    %v1157 = vperm.slane %v1153, %v1156
    %v1158 = vrot.slane %v1151, 4
    %v1159 = vsel %vm604, %v1158, %v1145
    %v1161 = vunpack.c.l.s4 1934713408
    %v1162 = vunpack.c.0.s8 %v1161
    %v1163 = vperm.slane %v1159, %v1162
    %v1164 = vrot.slane %v1163, 4
    %v1165 = vsel %vm604, %v1164, %v1157
    %v1166 = vrot.slane %v1157, 4
    %v1167 = vsel %vm604, %v1163, %v1166
    %vm1168 = vcmask 64512
    %v1170 = vsel %vm1168, %v743, 0
    %v1173 = vsel %vm1168, %v935, 0
    %1175 = vmatpush.xpose.msra.mxu0 0.0
    %1176 = vmatpush.xpose.msra.mxu0 0.0
    %1177 = vmatpush.xpose.msra.mxu0 0.0
    %1178 = vmatpush.xpose.msra.mxu0 0.0
    %1179 = vmatpush.xpose.msra.mxu0 0.0
    %1180 = vmatpush.xpose.msra.mxu0 0.0
    %1181 = vmatpush.xpose.msra.mxu0 0.0
    %1182 = vmatpush.xpose.msra.mxu0 0.0
    %1183 = vmatpush.xpose.msra.mxu0 0.0
    %1184 = vmatpush.xpose.msra.mxu0 0.0
    %1185 = vmatpush.xpose.msra.mxu0 0.0
    %1186 = vmatpush.xpose.msra.mxu0 0.0
    %1187 = vmatpush.xpose.msra.mxu0 0.0
    %1188 = vmatpush.xpose.msra.mxu0 0.0
    %1189 = vmatpush.xpose.msra.mxu0 0.0
    %v1190 = vand.u32 %v1173, 4294901760
    %1191 = vmatpush.xpose.msra.mxu0 %v1190
    %v1192 = vand.u32 %v1170, 4294901760
    %v1193 = vsub.f32 %v1170, %v1192
    %v1194 = vand.u32 %v1193, 4294901760
    %v1195 = vsub.f32 %v1193, %v1194
    %v1196 = vand.u32 %v1195, 4294901760
    %1197 = vmatmul.f32.gmra.mxu0 %v1196
    %v1198 = vpop.f32.mrf.mxu0
    %v1199 = vadd.f32 0.0, %v1198
    %1200 = vdwg.mxu0
    %1201 = vmatpush.xpose.msra.mxu0 0.0
    %1202 = vmatpush.xpose.msra.mxu0 0.0
    %1203 = vmatpush.xpose.msra.mxu0 0.0
    %1204 = vmatpush.xpose.msra.mxu0 0.0
    %1205 = vmatpush.xpose.msra.mxu0 0.0
    %1206 = vmatpush.xpose.msra.mxu0 0.0
    %1207 = vmatpush.xpose.msra.mxu0 0.0
    %1208 = vmatpush.xpose.msra.mxu0 0.0
    %1209 = vmatpush.xpose.msra.mxu0 0.0
    %1210 = vmatpush.xpose.msra.mxu0 0.0
    %1211 = vmatpush.xpose.msra.mxu0 0.0
    %1212 = vmatpush.xpose.msra.mxu0 0.0
    %1213 = vmatpush.xpose.msra.mxu0 0.0
    %1214 = vmatpush.xpose.msra.mxu0 0.0
    %1215 = vmatpush.xpose.msra.mxu0 0.0
    %v1216 = vand.u32 %v1173, 4294901760
    %v1217 = vsub.f32 %v1173, %v1216
    %v1218 = vand.u32 %v1217, 4294901760
    %v1219 = vsub.f32 %v1217, %v1218
    %v1220 = vand.u32 %v1219, 4294901760
    %1221 = vmatpush.xpose.msra.mxu0 %v1220
    %v1222 = vand.u32 %v1170, 4294901760
    %1223 = vmatmul.f32.gmra.mxu0 %v1222
    %v1224 = vpop.f32.mrf.mxu0
    %v1225 = vadd.f32 %v1199, %v1224
    %1226 = vdwg.mxu0
    %1227 = vmatpush.xpose.msra.mxu0 0.0
    %1228 = vmatpush.xpose.msra.mxu0 0.0
    %1229 = vmatpush.xpose.msra.mxu0 0.0
    %1230 = vmatpush.xpose.msra.mxu0 0.0
    %1231 = vmatpush.xpose.msra.mxu0 0.0
    %1232 = vmatpush.xpose.msra.mxu0 0.0
    %1233 = vmatpush.xpose.msra.mxu0 0.0
    %1234 = vmatpush.xpose.msra.mxu0 0.0
    %1235 = vmatpush.xpose.msra.mxu0 0.0
    %1236 = vmatpush.xpose.msra.mxu0 0.0
    %1237 = vmatpush.xpose.msra.mxu0 0.0
    %1238 = vmatpush.xpose.msra.mxu0 0.0
    %1239 = vmatpush.xpose.msra.mxu0 0.0
    %1240 = vmatpush.xpose.msra.mxu0 0.0
    %1241 = vmatpush.xpose.msra.mxu0 0.0
    %v1242 = vand.u32 %v1173, 4294901760
    %v1243 = vsub.f32 %v1173, %v1242
    %1244 = vmatpush.xpose.msra.mxu0 %v1243
    %v1245 = vand.u32 %v1170, 4294901760
    %v1246 = vsub.f32 %v1170, %v1245
    %1247 = vmatmul.f32.gmra.mxu0 %v1246
    %v1248 = vpop.f32.mrf.mxu0
    %v1249 = vadd.f32 %v1225, %v1248
    %1250 = vdwg.mxu0
    %1251 = vmatpush.xpose.msra.mxu0 0.0
    %1252 = vmatpush.xpose.msra.mxu0 0.0
    %1253 = vmatpush.xpose.msra.mxu0 0.0
    %1254 = vmatpush.xpose.msra.mxu0 0.0
    %1255 = vmatpush.xpose.msra.mxu0 0.0
    %1256 = vmatpush.xpose.msra.mxu0 0.0
    %1257 = vmatpush.xpose.msra.mxu0 0.0
    %1258 = vmatpush.xpose.msra.mxu0 0.0
    %1259 = vmatpush.xpose.msra.mxu0 0.0
    %1260 = vmatpush.xpose.msra.mxu0 0.0
    %1261 = vmatpush.xpose.msra.mxu0 0.0
    %1262 = vmatpush.xpose.msra.mxu0 0.0
    %1263 = vmatpush.xpose.msra.mxu0 0.0
    %1264 = vmatpush.xpose.msra.mxu0 0.0
    %1265 = vmatpush.xpose.msra.mxu0 0.0
    %v1266 = vand.u32 %v1173, 4294901760
    %1267 = vmatpush.xpose.msra.mxu0 %v1266
    %v1268 = vand.u32 %v1170, 4294901760
    %v1269 = vsub.f32 %v1170, %v1268
    %v1270 = vand.u32 %v1269, 4294901760
    %1271 = vmatmul.f32.gmra.mxu0 %v1270
    %v1272 = vpop.f32.mrf.mxu0
    %v1273 = vadd.f32 %v1249, %v1272
    %1274 = vdwg.mxu0
    %1275 = vmatpush.xpose.msra.mxu0 0.0
    %1276 = vmatpush.xpose.msra.mxu0 0.0
    %1277 = vmatpush.xpose.msra.mxu0 0.0
    %1278 = vmatpush.xpose.msra.mxu0 0.0
    %1279 = vmatpush.xpose.msra.mxu0 0.0
    %1280 = vmatpush.xpose.msra.mxu0 0.0
    %1281 = vmatpush.xpose.msra.mxu0 0.0
    %1282 = vmatpush.xpose.msra.mxu0 0.0
    %1283 = vmatpush.xpose.msra.mxu0 0.0
    %1284 = vmatpush.xpose.msra.mxu0 0.0
    %1285 = vmatpush.xpose.msra.mxu0 0.0
    %1286 = vmatpush.xpose.msra.mxu0 0.0
    %1287 = vmatpush.xpose.msra.mxu0 0.0
    %1288 = vmatpush.xpose.msra.mxu0 0.0
    %1289 = vmatpush.xpose.msra.mxu0 0.0
    %v1290 = vand.u32 %v1173, 4294901760
    %v1291 = vsub.f32 %v1173, %v1290
    %v1292 = vand.u32 %v1291, 4294901760
    %1293 = vmatpush.xpose.msra.mxu0 %v1292
    %v1294 = vand.u32 %v1170, 4294901760
    %1295 = vmatmul.f32.gmra.mxu0 %v1294
    %v1296 = vpop.f32.mrf.mxu0
    %v1297 = vadd.f32 %v1273, %v1296
    %1298 = vdwg.mxu0
    %1299 = vmatpush.xpose.msra.mxu0 0.0
    %1300 = vmatpush.xpose.msra.mxu0 0.0
    %1301 = vmatpush.xpose.msra.mxu0 0.0
    %1302 = vmatpush.xpose.msra.mxu0 0.0
    %1303 = vmatpush.xpose.msra.mxu0 0.0
    %1304 = vmatpush.xpose.msra.mxu0 0.0
    %1305 = vmatpush.xpose.msra.mxu0 0.0
    %1306 = vmatpush.xpose.msra.mxu0 0.0
    %1307 = vmatpush.xpose.msra.mxu0 0.0
    %1308 = vmatpush.xpose.msra.mxu0 0.0
    %1309 = vmatpush.xpose.msra.mxu0 0.0
    %1310 = vmatpush.xpose.msra.mxu0 0.0
    %1311 = vmatpush.xpose.msra.mxu0 0.0
    %1312 = vmatpush.xpose.msra.mxu0 0.0
    %1313 = vmatpush.xpose.msra.mxu0 0.0
    %v1314 = vand.u32 %v1173, 4294901760
    %1315 = vmatpush.xpose.msra.mxu0 %v1314
    %v1316 = vand.u32 %v1170, 4294901760
    %1317 = vmatmul.f32.gmra.mxu0 %v1316
    %v1318 = vpop.f32.mrf.mxu0
    %v1319 = vadd.f32 %v1297, %v1318
    %1320 = vdwg.mxu0
    %v1322 = vsel %vm1168, %v745, 0
    %v1325 = vsel %vm1168, %v937, 0
    %1327 = vmatpush.xpose.msra.mxu0 0.0
    %1328 = vmatpush.xpose.msra.mxu0 0.0
    %1329 = vmatpush.xpose.msra.mxu0 0.0
    %1330 = vmatpush.xpose.msra.mxu0 0.0
    %1331 = vmatpush.xpose.msra.mxu0 0.0
    %1332 = vmatpush.xpose.msra.mxu0 0.0
    %1333 = vmatpush.xpose.msra.mxu0 0.0
    %1334 = vmatpush.xpose.msra.mxu0 0.0
    %1335 = vmatpush.xpose.msra.mxu0 0.0
    %1336 = vmatpush.xpose.msra.mxu0 0.0
    %1337 = vmatpush.xpose.msra.mxu0 0.0
    %1338 = vmatpush.xpose.msra.mxu0 0.0
    %1339 = vmatpush.xpose.msra.mxu0 0.0
    %1340 = vmatpush.xpose.msra.mxu0 0.0
    %1341 = vmatpush.xpose.msra.mxu0 0.0
    %v1342 = vand.u32 %v1325, 4294901760
    %1343 = vmatpush.xpose.msra.mxu0 %v1342
    %v1344 = vand.u32 %v1322, 4294901760
    %v1345 = vsub.f32 %v1322, %v1344
    %v1346 = vand.u32 %v1345, 4294901760
    %v1347 = vsub.f32 %v1345, %v1346
    %v1348 = vand.u32 %v1347, 4294901760
    %1349 = vmatmul.f32.gmra.mxu0 %v1348
    %v1350 = vpop.f32.mrf.mxu0
    %v1351 = vadd.f32 0.0, %v1350
    %1352 = vdwg.mxu0
    %1353 = vmatpush.xpose.msra.mxu0 0.0
    %1354 = vmatpush.xpose.msra.mxu0 0.0
    %1355 = vmatpush.xpose.msra.mxu0 0.0
    %1356 = vmatpush.xpose.msra.mxu0 0.0
    %1357 = vmatpush.xpose.msra.mxu0 0.0
    %1358 = vmatpush.xpose.msra.mxu0 0.0
    %1359 = vmatpush.xpose.msra.mxu0 0.0
    %1360 = vmatpush.xpose.msra.mxu0 0.0
    %1361 = vmatpush.xpose.msra.mxu0 0.0
    %1362 = vmatpush.xpose.msra.mxu0 0.0
    %1363 = vmatpush.xpose.msra.mxu0 0.0
    %1364 = vmatpush.xpose.msra.mxu0 0.0
    %1365 = vmatpush.xpose.msra.mxu0 0.0
    %1366 = vmatpush.xpose.msra.mxu0 0.0
    %1367 = vmatpush.xpose.msra.mxu0 0.0
    %v1368 = vand.u32 %v1325, 4294901760
    %v1369 = vsub.f32 %v1325, %v1368
    %v1370 = vand.u32 %v1369, 4294901760
    %v1371 = vsub.f32 %v1369, %v1370
    %v1372 = vand.u32 %v1371, 4294901760
    %1373 = vmatpush.xpose.msra.mxu0 %v1372
    %v1374 = vand.u32 %v1322, 4294901760
    %1375 = vmatmul.f32.gmra.mxu0 %v1374
    %v1376 = vpop.f32.mrf.mxu0
    %v1377 = vadd.f32 %v1351, %v1376
    %1378 = vdwg.mxu0
    %1379 = vmatpush.xpose.msra.mxu0 0.0
    %1380 = vmatpush.xpose.msra.mxu0 0.0
    %1381 = vmatpush.xpose.msra.mxu0 0.0
    %1382 = vmatpush.xpose.msra.mxu0 0.0
    %1383 = vmatpush.xpose.msra.mxu0 0.0
    %1384 = vmatpush.xpose.msra.mxu0 0.0
    %1385 = vmatpush.xpose.msra.mxu0 0.0
    %1386 = vmatpush.xpose.msra.mxu0 0.0
    %1387 = vmatpush.xpose.msra.mxu0 0.0
    %1388 = vmatpush.xpose.msra.mxu0 0.0
    %1389 = vmatpush.xpose.msra.mxu0 0.0
    %1390 = vmatpush.xpose.msra.mxu0 0.0
    %1391 = vmatpush.xpose.msra.mxu0 0.0
    %1392 = vmatpush.xpose.msra.mxu0 0.0
    %1393 = vmatpush.xpose.msra.mxu0 0.0
    %v1394 = vand.u32 %v1325, 4294901760
    %v1395 = vsub.f32 %v1325, %v1394
    %1396 = vmatpush.xpose.msra.mxu0 %v1395
    %v1397 = vand.u32 %v1322, 4294901760
    %v1398 = vsub.f32 %v1322, %v1397
    %1399 = vmatmul.f32.gmra.mxu0 %v1398
    %v1400 = vpop.f32.mrf.mxu0
    %v1401 = vadd.f32 %v1377, %v1400
    %1402 = vdwg.mxu0
    %1403 = vmatpush.xpose.msra.mxu0 0.0
    %1404 = vmatpush.xpose.msra.mxu0 0.0
    %1405 = vmatpush.xpose.msra.mxu0 0.0
    %1406 = vmatpush.xpose.msra.mxu0 0.0
    %1407 = vmatpush.xpose.msra.mxu0 0.0
    %1408 = vmatpush.xpose.msra.mxu0 0.0
    %1409 = vmatpush.xpose.msra.mxu0 0.0
    %1410 = vmatpush.xpose.msra.mxu0 0.0
    %1411 = vmatpush.xpose.msra.mxu0 0.0
    %1412 = vmatpush.xpose.msra.mxu0 0.0
    %1413 = vmatpush.xpose.msra.mxu0 0.0
    %1414 = vmatpush.xpose.msra.mxu0 0.0
    %1415 = vmatpush.xpose.msra.mxu0 0.0
    %1416 = vmatpush.xpose.msra.mxu0 0.0
    %1417 = vmatpush.xpose.msra.mxu0 0.0
    %v1418 = vand.u32 %v1325, 4294901760
    %1419 = vmatpush.xpose.msra.mxu0 %v1418
    %v1420 = vand.u32 %v1322, 4294901760
    %v1421 = vsub.f32 %v1322, %v1420
    %v1422 = vand.u32 %v1421, 4294901760
    %1423 = vmatmul.f32.gmra.mxu0 %v1422
    %v1424 = vpop.f32.mrf.mxu0
    %v1425 = vadd.f32 %v1401, %v1424
    %1426 = vdwg.mxu0
    %1427 = vmatpush.xpose.msra.mxu0 0.0
    %1428 = vmatpush.xpose.msra.mxu0 0.0
    %1429 = vmatpush.xpose.msra.mxu0 0.0
    %1430 = vmatpush.xpose.msra.mxu0 0.0
    %1431 = vmatpush.xpose.msra.mxu0 0.0
    %1432 = vmatpush.xpose.msra.mxu0 0.0
    %1433 = vmatpush.xpose.msra.mxu0 0.0
    %1434 = vmatpush.xpose.msra.mxu0 0.0
    %1435 = vmatpush.xpose.msra.mxu0 0.0
    %1436 = vmatpush.xpose.msra.mxu0 0.0
    %1437 = vmatpush.xpose.msra.mxu0 0.0
    %1438 = vmatpush.xpose.msra.mxu0 0.0
    %1439 = vmatpush.xpose.msra.mxu0 0.0
    %1440 = vmatpush.xpose.msra.mxu0 0.0
    %1441 = vmatpush.xpose.msra.mxu0 0.0
    %v1442 = vand.u32 %v1325, 4294901760
    %v1443 = vsub.f32 %v1325, %v1442
    %v1444 = vand.u32 %v1443, 4294901760
    %1445 = vmatpush.xpose.msra.mxu0 %v1444
    %v1446 = vand.u32 %v1322, 4294901760
    %1447 = vmatmul.f32.gmra.mxu0 %v1446
    %v1448 = vpop.f32.mrf.mxu0
    %v1449 = vadd.f32 %v1425, %v1448
    %1450 = vdwg.mxu0
    %1451 = vmatpush.xpose.msra.mxu0 0.0
    %1452 = vmatpush.xpose.msra.mxu0 0.0
    %1453 = vmatpush.xpose.msra.mxu0 0.0
    %1454 = vmatpush.xpose.msra.mxu0 0.0
    %1455 = vmatpush.xpose.msra.mxu0 0.0
    %1456 = vmatpush.xpose.msra.mxu0 0.0
    %1457 = vmatpush.xpose.msra.mxu0 0.0
    %1458 = vmatpush.xpose.msra.mxu0 0.0
    %1459 = vmatpush.xpose.msra.mxu0 0.0
    %1460 = vmatpush.xpose.msra.mxu0 0.0
    %1461 = vmatpush.xpose.msra.mxu0 0.0
    %1462 = vmatpush.xpose.msra.mxu0 0.0
    %1463 = vmatpush.xpose.msra.mxu0 0.0
    %1464 = vmatpush.xpose.msra.mxu0 0.0
    %1465 = vmatpush.xpose.msra.mxu0 0.0
    %v1466 = vand.u32 %v1325, 4294901760
    %1467 = vmatpush.xpose.msra.mxu0 %v1466
    %v1468 = vand.u32 %v1322, 4294901760
    %1469 = vmatmul.f32.gmra.mxu0 %v1468
    %v1470 = vpop.f32.mrf.mxu0
    %v1471 = vadd.f32 %v1449, %v1470
    %1472 = vdwg.mxu0
    %v1474 = vsel %vm1168, %v781, 0
    %v1477 = vsel %vm1168, %v973, 0
    %1479 = vmatpush.xpose.msra.mxu0 0.0
    %1480 = vmatpush.xpose.msra.mxu0 0.0
    %1481 = vmatpush.xpose.msra.mxu0 0.0
    %1482 = vmatpush.xpose.msra.mxu0 0.0
    %1483 = vmatpush.xpose.msra.mxu0 0.0
    %1484 = vmatpush.xpose.msra.mxu0 0.0
    %1485 = vmatpush.xpose.msra.mxu0 0.0
    %1486 = vmatpush.xpose.msra.mxu0 0.0
    %1487 = vmatpush.xpose.msra.mxu0 0.0
    %1488 = vmatpush.xpose.msra.mxu0 0.0
    %1489 = vmatpush.xpose.msra.mxu0 0.0
    %1490 = vmatpush.xpose.msra.mxu0 0.0
    %1491 = vmatpush.xpose.msra.mxu0 0.0
    %1492 = vmatpush.xpose.msra.mxu0 0.0
    %1493 = vmatpush.xpose.msra.mxu0 0.0
    %v1494 = vand.u32 %v1477, 4294901760
    %1495 = vmatpush.xpose.msra.mxu0 %v1494
    %v1496 = vand.u32 %v1474, 4294901760
    %v1497 = vsub.f32 %v1474, %v1496
    %v1498 = vand.u32 %v1497, 4294901760
    %v1499 = vsub.f32 %v1497, %v1498
    %v1500 = vand.u32 %v1499, 4294901760
    %1501 = vmatmul.f32.gmra.mxu0 %v1500
    %v1502 = vpop.f32.mrf.mxu0
    %v1503 = vadd.f32 0.0, %v1502
    %1504 = vdwg.mxu0
    %1505 = vmatpush.xpose.msra.mxu0 0.0
    %1506 = vmatpush.xpose.msra.mxu0 0.0
    %1507 = vmatpush.xpose.msra.mxu0 0.0
    %1508 = vmatpush.xpose.msra.mxu0 0.0
    %1509 = vmatpush.xpose.msra.mxu0 0.0
    %1510 = vmatpush.xpose.msra.mxu0 0.0
    %1511 = vmatpush.xpose.msra.mxu0 0.0
    %1512 = vmatpush.xpose.msra.mxu0 0.0
    %1513 = vmatpush.xpose.msra.mxu0 0.0
    %1514 = vmatpush.xpose.msra.mxu0 0.0
    %1515 = vmatpush.xpose.msra.mxu0 0.0
    %1516 = vmatpush.xpose.msra.mxu0 0.0
    %1517 = vmatpush.xpose.msra.mxu0 0.0
    %1518 = vmatpush.xpose.msra.mxu0 0.0
    %1519 = vmatpush.xpose.msra.mxu0 0.0
    %v1520 = vand.u32 %v1477, 4294901760
    %v1521 = vsub.f32 %v1477, %v1520
    %v1522 = vand.u32 %v1521, 4294901760
    %v1523 = vsub.f32 %v1521, %v1522
    %v1524 = vand.u32 %v1523, 4294901760
    %1525 = vmatpush.xpose.msra.mxu0 %v1524
    %v1526 = vand.u32 %v1474, 4294901760
    %1527 = vmatmul.f32.gmra.mxu0 %v1526
    %v1528 = vpop.f32.mrf.mxu0
    %v1529 = vadd.f32 %v1503, %v1528
    %1530 = vdwg.mxu0
    %1531 = vmatpush.xpose.msra.mxu0 0.0
    %1532 = vmatpush.xpose.msra.mxu0 0.0
    %1533 = vmatpush.xpose.msra.mxu0 0.0
    %1534 = vmatpush.xpose.msra.mxu0 0.0
    %1535 = vmatpush.xpose.msra.mxu0 0.0
    %1536 = vmatpush.xpose.msra.mxu0 0.0
    %1537 = vmatpush.xpose.msra.mxu0 0.0
    %1538 = vmatpush.xpose.msra.mxu0 0.0
    %1539 = vmatpush.xpose.msra.mxu0 0.0
    %1540 = vmatpush.xpose.msra.mxu0 0.0
    %1541 = vmatpush.xpose.msra.mxu0 0.0
    %1542 = vmatpush.xpose.msra.mxu0 0.0
    %1543 = vmatpush.xpose.msra.mxu0 0.0
    %1544 = vmatpush.xpose.msra.mxu0 0.0
    %1545 = vmatpush.xpose.msra.mxu0 0.0
    %v1546 = vand.u32 %v1477, 4294901760
    %v1547 = vsub.f32 %v1477, %v1546
    %1548 = vmatpush.xpose.msra.mxu0 %v1547
    %v1549 = vand.u32 %v1474, 4294901760
    %v1550 = vsub.f32 %v1474, %v1549
    %1551 = vmatmul.f32.gmra.mxu0 %v1550
    %v1552 = vpop.f32.mrf.mxu0
    %v1553 = vadd.f32 %v1529, %v1552
    %1554 = vdwg.mxu0
    %1555 = vmatpush.xpose.msra.mxu0 0.0
    %1556 = vmatpush.xpose.msra.mxu0 0.0
    %1557 = vmatpush.xpose.msra.mxu0 0.0
    %1558 = vmatpush.xpose.msra.mxu0 0.0
    %1559 = vmatpush.xpose.msra.mxu0 0.0
    %1560 = vmatpush.xpose.msra.mxu0 0.0
    %1561 = vmatpush.xpose.msra.mxu0 0.0
    %1562 = vmatpush.xpose.msra.mxu0 0.0
    %1563 = vmatpush.xpose.msra.mxu0 0.0
    %1564 = vmatpush.xpose.msra.mxu0 0.0
    %1565 = vmatpush.xpose.msra.mxu0 0.0
    %1566 = vmatpush.xpose.msra.mxu0 0.0
    %1567 = vmatpush.xpose.msra.mxu0 0.0
    %1568 = vmatpush.xpose.msra.mxu0 0.0
    %1569 = vmatpush.xpose.msra.mxu0 0.0
    %v1570 = vand.u32 %v1477, 4294901760
    %1571 = vmatpush.xpose.msra.mxu0 %v1570
    %v1572 = vand.u32 %v1474, 4294901760
    %v1573 = vsub.f32 %v1474, %v1572
    %v1574 = vand.u32 %v1573, 4294901760
    %1575 = vmatmul.f32.gmra.mxu0 %v1574
    %v1576 = vpop.f32.mrf.mxu0
    %v1577 = vadd.f32 %v1553, %v1576
    %1578 = vdwg.mxu0
    %1579 = vmatpush.xpose.msra.mxu0 0.0
    %1580 = vmatpush.xpose.msra.mxu0 0.0
    %1581 = vmatpush.xpose.msra.mxu0 0.0
    %1582 = vmatpush.xpose.msra.mxu0 0.0
    %1583 = vmatpush.xpose.msra.mxu0 0.0
    %1584 = vmatpush.xpose.msra.mxu0 0.0
    %1585 = vmatpush.xpose.msra.mxu0 0.0
    %1586 = vmatpush.xpose.msra.mxu0 0.0
    %1587 = vmatpush.xpose.msra.mxu0 0.0
    %1588 = vmatpush.xpose.msra.mxu0 0.0
    %1589 = vmatpush.xpose.msra.mxu0 0.0
    %1590 = vmatpush.xpose.msra.mxu0 0.0
    %1591 = vmatpush.xpose.msra.mxu0 0.0
    %1592 = vmatpush.xpose.msra.mxu0 0.0
    %1593 = vmatpush.xpose.msra.mxu0 0.0
    %v1594 = vand.u32 %v1477, 4294901760
    %v1595 = vsub.f32 %v1477, %v1594
    %v1596 = vand.u32 %v1595, 4294901760
    %1597 = vmatpush.xpose.msra.mxu0 %v1596
    %v1598 = vand.u32 %v1474, 4294901760
    %1599 = vmatmul.f32.gmra.mxu0 %v1598
    %v1600 = vpop.f32.mrf.mxu0
    %v1601 = vadd.f32 %v1577, %v1600
    %1602 = vdwg.mxu0
    %1603 = vmatpush.xpose.msra.mxu0 0.0
    %1604 = vmatpush.xpose.msra.mxu0 0.0
    %1605 = vmatpush.xpose.msra.mxu0 0.0
    %1606 = vmatpush.xpose.msra.mxu0 0.0
    %1607 = vmatpush.xpose.msra.mxu0 0.0
    %1608 = vmatpush.xpose.msra.mxu0 0.0
    %1609 = vmatpush.xpose.msra.mxu0 0.0
    %1610 = vmatpush.xpose.msra.mxu0 0.0
    %1611 = vmatpush.xpose.msra.mxu0 0.0
    %1612 = vmatpush.xpose.msra.mxu0 0.0
    %1613 = vmatpush.xpose.msra.mxu0 0.0
    %1614 = vmatpush.xpose.msra.mxu0 0.0
    %1615 = vmatpush.xpose.msra.mxu0 0.0
    %1616 = vmatpush.xpose.msra.mxu0 0.0
    %1617 = vmatpush.xpose.msra.mxu0 0.0
    %v1618 = vand.u32 %v1477, 4294901760
    %1619 = vmatpush.xpose.msra.mxu0 %v1618
    %v1620 = vand.u32 %v1474, 4294901760
    %1621 = vmatmul.f32.gmra.mxu0 %v1620
    %v1622 = vpop.f32.mrf.mxu0
    %v1623 = vadd.f32 %v1601, %v1622
    %1624 = vdwg.mxu0
    %v1626 = vsel %vm1168, %v783, 0
    %v1629 = vsel %vm1168, %v975, 0
    %1631 = vmatpush.xpose.msra.mxu0 0.0
    %1632 = vmatpush.xpose.msra.mxu0 0.0
    %1633 = vmatpush.xpose.msra.mxu0 0.0
    %1634 = vmatpush.xpose.msra.mxu0 0.0
    %1635 = vmatpush.xpose.msra.mxu0 0.0
    %1636 = vmatpush.xpose.msra.mxu0 0.0
    %1637 = vmatpush.xpose.msra.mxu0 0.0
    %1638 = vmatpush.xpose.msra.mxu0 0.0
    %1639 = vmatpush.xpose.msra.mxu0 0.0
    %1640 = vmatpush.xpose.msra.mxu0 0.0
    %1641 = vmatpush.xpose.msra.mxu0 0.0
    %1642 = vmatpush.xpose.msra.mxu0 0.0
    %1643 = vmatpush.xpose.msra.mxu0 0.0
    %1644 = vmatpush.xpose.msra.mxu0 0.0
    %1645 = vmatpush.xpose.msra.mxu0 0.0
    %v1646 = vand.u32 %v1629, 4294901760
    %1647 = vmatpush.xpose.msra.mxu0 %v1646
    %v1648 = vand.u32 %v1626, 4294901760
    %v1649 = vsub.f32 %v1626, %v1648
    %v1650 = vand.u32 %v1649, 4294901760
    %v1651 = vsub.f32 %v1649, %v1650
    %v1652 = vand.u32 %v1651, 4294901760
    %1653 = vmatmul.f32.gmra.mxu0 %v1652
    %v1654 = vpop.f32.mrf.mxu0
    %v1655 = vadd.f32 0.0, %v1654
    %1656 = vdwg.mxu0
    %1657 = vmatpush.xpose.msra.mxu0 0.0
    %1658 = vmatpush.xpose.msra.mxu0 0.0
    %1659 = vmatpush.xpose.msra.mxu0 0.0
    %1660 = vmatpush.xpose.msra.mxu0 0.0
    %1661 = vmatpush.xpose.msra.mxu0 0.0
    %1662 = vmatpush.xpose.msra.mxu0 0.0
    %1663 = vmatpush.xpose.msra.mxu0 0.0
    %1664 = vmatpush.xpose.msra.mxu0 0.0
    %1665 = vmatpush.xpose.msra.mxu0 0.0
    %1666 = vmatpush.xpose.msra.mxu0 0.0
    %1667 = vmatpush.xpose.msra.mxu0 0.0
    %1668 = vmatpush.xpose.msra.mxu0 0.0
    %1669 = vmatpush.xpose.msra.mxu0 0.0
    %1670 = vmatpush.xpose.msra.mxu0 0.0
    %1671 = vmatpush.xpose.msra.mxu0 0.0
    %v1672 = vand.u32 %v1629, 4294901760
    %v1673 = vsub.f32 %v1629, %v1672
    %v1674 = vand.u32 %v1673, 4294901760
    %v1675 = vsub.f32 %v1673, %v1674
    %v1676 = vand.u32 %v1675, 4294901760
    %1677 = vmatpush.xpose.msra.mxu0 %v1676
    %v1678 = vand.u32 %v1626, 4294901760
    %1679 = vmatmul.f32.gmra.mxu0 %v1678
    %v1680 = vpop.f32.mrf.mxu0
    %v1681 = vadd.f32 %v1655, %v1680
    %1682 = vdwg.mxu0
    %1683 = vmatpush.xpose.msra.mxu0 0.0
    %1684 = vmatpush.xpose.msra.mxu0 0.0
    %1685 = vmatpush.xpose.msra.mxu0 0.0
    %1686 = vmatpush.xpose.msra.mxu0 0.0
    %1687 = vmatpush.xpose.msra.mxu0 0.0
    %1688 = vmatpush.xpose.msra.mxu0 0.0
    %1689 = vmatpush.xpose.msra.mxu0 0.0
    %1690 = vmatpush.xpose.msra.mxu0 0.0
    %1691 = vmatpush.xpose.msra.mxu0 0.0
    %1692 = vmatpush.xpose.msra.mxu0 0.0
    %1693 = vmatpush.xpose.msra.mxu0 0.0
    %1694 = vmatpush.xpose.msra.mxu0 0.0
    %1695 = vmatpush.xpose.msra.mxu0 0.0
    %1696 = vmatpush.xpose.msra.mxu0 0.0
    %1697 = vmatpush.xpose.msra.mxu0 0.0
    %v1698 = vand.u32 %v1629, 4294901760
    %v1699 = vsub.f32 %v1629, %v1698
    %1700 = vmatpush.xpose.msra.mxu0 %v1699
    %v1701 = vand.u32 %v1626, 4294901760
    %v1702 = vsub.f32 %v1626, %v1701
    %1703 = vmatmul.f32.gmra.mxu0 %v1702
    %v1704 = vpop.f32.mrf.mxu0
    %v1705 = vadd.f32 %v1681, %v1704
    %1706 = vdwg.mxu0
    %1707 = vmatpush.xpose.msra.mxu0 0.0
    %1708 = vmatpush.xpose.msra.mxu0 0.0
    %1709 = vmatpush.xpose.msra.mxu0 0.0
    %1710 = vmatpush.xpose.msra.mxu0 0.0
    %1711 = vmatpush.xpose.msra.mxu0 0.0
    %1712 = vmatpush.xpose.msra.mxu0 0.0
    %1713 = vmatpush.xpose.msra.mxu0 0.0
    %1714 = vmatpush.xpose.msra.mxu0 0.0
    %1715 = vmatpush.xpose.msra.mxu0 0.0
    %1716 = vmatpush.xpose.msra.mxu0 0.0
    %1717 = vmatpush.xpose.msra.mxu0 0.0
    %1718 = vmatpush.xpose.msra.mxu0 0.0
    %1719 = vmatpush.xpose.msra.mxu0 0.0
    %1720 = vmatpush.xpose.msra.mxu0 0.0
    %1721 = vmatpush.xpose.msra.mxu0 0.0
    %v1722 = vand.u32 %v1629, 4294901760
    %1723 = vmatpush.xpose.msra.mxu0 %v1722
    %v1724 = vand.u32 %v1626, 4294901760
    %v1725 = vsub.f32 %v1626, %v1724
    %v1726 = vand.u32 %v1725, 4294901760
    %1727 = vmatmul.f32.gmra.mxu0 %v1726
    %v1728 = vpop.f32.mrf.mxu0
    %v1729 = vadd.f32 %v1705, %v1728
    %1730 = vdwg.mxu0
    %1731 = vmatpush.xpose.msra.mxu0 0.0
    %1732 = vmatpush.xpose.msra.mxu0 0.0
    %1733 = vmatpush.xpose.msra.mxu0 0.0
    %1734 = vmatpush.xpose.msra.mxu0 0.0
    %1735 = vmatpush.xpose.msra.mxu0 0.0
    %1736 = vmatpush.xpose.msra.mxu0 0.0
    %1737 = vmatpush.xpose.msra.mxu0 0.0
    %1738 = vmatpush.xpose.msra.mxu0 0.0
    %1739 = vmatpush.xpose.msra.mxu0 0.0
    %1740 = vmatpush.xpose.msra.mxu0 0.0
    %1741 = vmatpush.xpose.msra.mxu0 0.0
    %1742 = vmatpush.xpose.msra.mxu0 0.0
    %1743 = vmatpush.xpose.msra.mxu0 0.0
    %1744 = vmatpush.xpose.msra.mxu0 0.0
    %1745 = vmatpush.xpose.msra.mxu0 0.0
    %v1746 = vand.u32 %v1629, 4294901760
    %v1747 = vsub.f32 %v1629, %v1746
    %v1748 = vand.u32 %v1747, 4294901760
    %1749 = vmatpush.xpose.msra.mxu0 %v1748
    %v1750 = vand.u32 %v1626, 4294901760
    %1751 = vmatmul.f32.gmra.mxu0 %v1750
    %v1752 = vpop.f32.mrf.mxu0
    %v1753 = vadd.f32 %v1729, %v1752
    %1754 = vdwg.mxu0
    %1755 = vmatpush.xpose.msra.mxu0 0.0
    %1756 = vmatpush.xpose.msra.mxu0 0.0
    %1757 = vmatpush.xpose.msra.mxu0 0.0
    %1758 = vmatpush.xpose.msra.mxu0 0.0
    %1759 = vmatpush.xpose.msra.mxu0 0.0
    %1760 = vmatpush.xpose.msra.mxu0 0.0
    %1761 = vmatpush.xpose.msra.mxu0 0.0
    %1762 = vmatpush.xpose.msra.mxu0 0.0
    %1763 = vmatpush.xpose.msra.mxu0 0.0
    %1764 = vmatpush.xpose.msra.mxu0 0.0
    %1765 = vmatpush.xpose.msra.mxu0 0.0
    %1766 = vmatpush.xpose.msra.mxu0 0.0
    %1767 = vmatpush.xpose.msra.mxu0 0.0
    %1768 = vmatpush.xpose.msra.mxu0 0.0
    %1769 = vmatpush.xpose.msra.mxu0 0.0
    %v1770 = vand.u32 %v1629, 4294901760
    %1771 = vmatpush.xpose.msra.mxu0 %v1770
    %v1772 = vand.u32 %v1626, 4294901760
    %1773 = vmatmul.f32.gmra.mxu0 %v1772
    %v1774 = vpop.f32.mrf.mxu0
    %v1775 = vadd.f32 %v1753, %v1774
    %1776 = vdwg.mxu0
    %v1777 = vadd.f32 %v1319, %v140
    %v1778 = vadd.f32 %v1471, %v140
    %v1779 = vadd.f32 %v1623, %v141
    %v1780 = vadd.f32 %v1775, %v141
    %v1781 = vsel %vm1168, %v1777, -inf
    %1782 = vmax.xlane.f32.xlu0 %v1781
    %v1783 = vpop.xlane.xlu0 %1782
    %v1784 = vsel %vm1168, %v1778, -inf
    %1785 = vmax.xlane.f32.xlu0 %v1784
    %v1786 = vpop.xlane.xlu0 %1785
    %v1787 = vsel %vm1168, %v1779, -inf
    %1788 = vmax.xlane.f32.xlu0 %v1787
    %v1789 = vpop.xlane.xlu0 %1788
    %v1790 = vsel %vm1168, %v1780, -inf
    %1791 = vmax.xlane.f32.xlu0 %v1790
    %v1792 = vpop.xlane.xlu0 %1791
    %v1793 = vsub.f32 %v1777, %v1783
    %v1794 = vsub.f32 %v1778, %v1786
    %v1795 = vsub.f32 %v1779, %v1789
    %v1796 = vsub.f32 %v1780, %v1792
    %v1797 = vmul.f32 %v1793, 1.442695
    %v1798 = vpow.pop %v1797
    %v1799 = vmul.f32 %v1794, 1.442695
    %v1800 = vpow.pop %v1799
    %v1801 = vmul.f32 %v1795, 1.442695
    %v1802 = vpow.pop %v1801
    %v1803 = vmul.f32 %v1796, 1.442695
    %v1804 = vpow.pop %v1803
    %v1805 = vsel %vm1168, %v1798, 0.0
    %1806 = vadd.xlane.f32.xlu0 %v1805
    %v1807 = vpop.xlane.xlu0 %1806
    %v1808 = vsel %vm1168, %v1800, 0.0
    %1809 = vadd.xlane.f32.xlu0 %v1808
    %v1810 = vpop.xlane.xlu0 %1809
    %v1811 = vsel %vm1168, %v1802, 0.0
    %1812 = vadd.xlane.f32.xlu0 %v1811
    %v1813 = vpop.xlane.xlu0 %1812
    %v1814 = vsel %vm1168, %v1804, 0.0
    %1815 = vadd.xlane.f32.xlu0 %v1814
    %v1816 = vpop.xlane.xlu0 %1815
    %v1817 = vrcp.pop %v1807
    %v1818 = vmul.f32 %v1807, %v1817
    %v1819 = vsub.f32 1.0, %v1818
    %v1820 = vmul.f32 %v1817, %v1819
    %v1821 = vadd.f32 %v1817, %v1820
    %vm1822 = vweird.f32 %v1807
    %vm1823 = vweird.f32 %v1817
    %vm1824 = vmor %vm1822, %vm1823
    %v1825 = vsel %vm1824, %v1817, %v1821
    %v1826 = vand.u32 2147483647, %v1807
    %vm1827 = vcmp.eq.f32.partialorder %v1826, 8.507059e+37
    %v1828 = vand.u32 %v1807, 2147483648
    %v1829 = vor.u32 1.1754944e-38, %v1828
    %v1830 = vsel %vm1827, %v1829, %v1825
    %v1831 = vrcp.pop %v1810
    %v1832 = vmul.f32 %v1810, %v1831
    %v1833 = vsub.f32 1.0, %v1832
    %v1834 = vmul.f32 %v1831, %v1833
    %v1835 = vadd.f32 %v1831, %v1834
    %vm1836 = vweird.f32 %v1810
    %vm1837 = vweird.f32 %v1831
    %vm1838 = vmor %vm1836, %vm1837
    %v1839 = vsel %vm1838, %v1831, %v1835
    %v1840 = vand.u32 2147483647, %v1810
    %vm1841 = vcmp.eq.f32.partialorder %v1840, 8.507059e+37
    %v1842 = vand.u32 %v1810, 2147483648
    %v1843 = vor.u32 1.1754944e-38, %v1842
    %v1844 = vsel %vm1841, %v1843, %v1839
    %v1845 = vrcp.pop %v1813
    %v1846 = vmul.f32 %v1813, %v1845
    %v1847 = vsub.f32 1.0, %v1846
    %v1848 = vmul.f32 %v1845, %v1847
    %v1849 = vadd.f32 %v1845, %v1848
    %vm1850 = vweird.f32 %v1813
    %vm1851 = vweird.f32 %v1845
    %vm1852 = vmor %vm1850, %vm1851
    %v1853 = vsel %vm1852, %v1845, %v1849
    %v1854 = vand.u32 2147483647, %v1813
    %vm1855 = vcmp.eq.f32.partialorder %v1854, 8.507059e+37
    %v1856 = vand.u32 %v1813, 2147483648
    %v1857 = vor.u32 1.1754944e-38, %v1856
    %v1858 = vsel %vm1855, %v1857, %v1853
    %v1859 = vrcp.pop %v1816
    %v1860 = vmul.f32 %v1816, %v1859
    %v1861 = vsub.f32 1.0, %v1860
    %v1862 = vmul.f32 %v1859, %v1861
    %v1863 = vadd.f32 %v1859, %v1862
    %vm1864 = vweird.f32 %v1816
    %vm1865 = vweird.f32 %v1859
    %vm1866 = vmor %vm1864, %vm1865
    %v1867 = vsel %vm1866, %v1859, %v1863
    %v1868 = vand.u32 2147483647, %v1816
    %vm1869 = vcmp.eq.f32.partialorder %v1868, 8.507059e+37
    %v1870 = vand.u32 %v1816, 2147483648
    %v1871 = vor.u32 1.1754944e-38, %v1870
    %v1872 = vsel %vm1869, %v1871, %v1867
    %v1873 = vmul.f32 %v1798, %v1830
    %v1874 = vmul.f32 %v1800, %v1844
    %v1875 = vmul.f32 %v1802, %v1858
    %v1876 = vmul.f32 %v1804, %v1872
    %v1878 = vsel %vm1168, %v1873, 0
    %1880 = vmatpush.msra.mxu0 0.0
    %1881 = vmatpush.msra.mxu0 0.0
    %1882 = vmatpush.msra.mxu0 0.0
    %1883 = vmatpush.msra.mxu0 0.0
    %1884 = vmatpush.msra.mxu0 0.0
    %1885 = vmatpush.msra.mxu0 0.0
    %1886 = vmatpush.msra.mxu0 0.0
    %1887 = vmatpush.msra.mxu0 0.0
    %1888 = vmatpush.msra.mxu0 0.0
    %1889 = vmatpush.msra.mxu0 0.0
    %1890 = vmatpush.msra.mxu0 0.0
    %1891 = vmatpush.msra.mxu0 0.0
    %1892 = vmatpush.msra.mxu0 0.0
    %1893 = vmatpush.msra.mxu0 0.0
    %1894 = vmatpush.msra.mxu0 0.0
    %v1895 = vand.u32 %v1127, 4294901760
    %1896 = vmatpush.msra.mxu0 %v1895
    %v1897 = vand.u32 %v1878, 4294901760
    %v1898 = vsub.f32 %v1878, %v1897
    %v1899 = vand.u32 %v1898, 4294901760
    %v1900 = vsub.f32 %v1898, %v1899
    %v1901 = vand.u32 %v1900, 4294901760
    %1902 = vmatmul.f32.gmra.mxu0 %v1901
    %v1903 = vpop.f32.mrf.mxu0
    %v1904 = vadd.f32 0.0, %v1903
    %1905 = vdwg.mxu0
    %1906 = vmatpush.msra.mxu0 0.0
    %1907 = vmatpush.msra.mxu0 0.0
    %1908 = vmatpush.msra.mxu0 0.0
    %1909 = vmatpush.msra.mxu0 0.0
    %1910 = vmatpush.msra.mxu0 0.0
    %1911 = vmatpush.msra.mxu0 0.0
    %1912 = vmatpush.msra.mxu0 0.0
    %1913 = vmatpush.msra.mxu0 0.0
    %1914 = vmatpush.msra.mxu0 0.0
    %1915 = vmatpush.msra.mxu0 0.0
    %1916 = vmatpush.msra.mxu0 0.0
    %1917 = vmatpush.msra.mxu0 0.0
    %1918 = vmatpush.msra.mxu0 0.0
    %1919 = vmatpush.msra.mxu0 0.0
    %1920 = vmatpush.msra.mxu0 0.0
    %v1921 = vand.u32 %v1127, 4294901760
    %v1922 = vsub.f32 %v1127, %v1921
    %v1923 = vand.u32 %v1922, 4294901760
    %v1924 = vsub.f32 %v1922, %v1923
    %v1925 = vand.u32 %v1924, 4294901760
    %1926 = vmatpush.msra.mxu0 %v1925
    %v1927 = vand.u32 %v1878, 4294901760
    %1928 = vmatmul.f32.gmra.mxu0 %v1927
    %v1929 = vpop.f32.mrf.mxu0
    %v1930 = vadd.f32 %v1904, %v1929
    %1931 = vdwg.mxu0
    %1932 = vmatpush.msra.mxu0 0.0
    %1933 = vmatpush.msra.mxu0 0.0
    %1934 = vmatpush.msra.mxu0 0.0
    %1935 = vmatpush.msra.mxu0 0.0
    %1936 = vmatpush.msra.mxu0 0.0
    %1937 = vmatpush.msra.mxu0 0.0
    %1938 = vmatpush.msra.mxu0 0.0
    %1939 = vmatpush.msra.mxu0 0.0
    %1940 = vmatpush.msra.mxu0 0.0
    %1941 = vmatpush.msra.mxu0 0.0
    %1942 = vmatpush.msra.mxu0 0.0
    %1943 = vmatpush.msra.mxu0 0.0
    %1944 = vmatpush.msra.mxu0 0.0
    %1945 = vmatpush.msra.mxu0 0.0
    %1946 = vmatpush.msra.mxu0 0.0
    %v1947 = vand.u32 %v1127, 4294901760
    %v1948 = vsub.f32 %v1127, %v1947
    %1949 = vmatpush.msra.mxu0 %v1948
    %v1950 = vand.u32 %v1878, 4294901760
    %v1951 = vsub.f32 %v1878, %v1950
    %1952 = vmatmul.f32.gmra.mxu0 %v1951
    %v1953 = vpop.f32.mrf.mxu0
    %v1954 = vadd.f32 %v1930, %v1953
    %1955 = vdwg.mxu0
    %1956 = vmatpush.msra.mxu0 0.0
    %1957 = vmatpush.msra.mxu0 0.0
    %1958 = vmatpush.msra.mxu0 0.0
    %1959 = vmatpush.msra.mxu0 0.0
    %1960 = vmatpush.msra.mxu0 0.0
    %1961 = vmatpush.msra.mxu0 0.0
    %1962 = vmatpush.msra.mxu0 0.0
    %1963 = vmatpush.msra.mxu0 0.0
    %1964 = vmatpush.msra.mxu0 0.0
    %1965 = vmatpush.msra.mxu0 0.0
    %1966 = vmatpush.msra.mxu0 0.0
    %1967 = vmatpush.msra.mxu0 0.0
    %1968 = vmatpush.msra.mxu0 0.0
    %1969 = vmatpush.msra.mxu0 0.0
    %1970 = vmatpush.msra.mxu0 0.0
    %v1971 = vand.u32 %v1127, 4294901760
    %1972 = vmatpush.msra.mxu0 %v1971
    %v1973 = vand.u32 %v1878, 4294901760
    %v1974 = vsub.f32 %v1878, %v1973
    %v1975 = vand.u32 %v1974, 4294901760
    %1976 = vmatmul.f32.gmra.mxu0 %v1975
    %v1977 = vpop.f32.mrf.mxu0
    %v1978 = vadd.f32 %v1954, %v1977
    %1979 = vdwg.mxu0
    %1980 = vmatpush.msra.mxu0 0.0
    %1981 = vmatpush.msra.mxu0 0.0
    %1982 = vmatpush.msra.mxu0 0.0
    %1983 = vmatpush.msra.mxu0 0.0
    %1984 = vmatpush.msra.mxu0 0.0
    %1985 = vmatpush.msra.mxu0 0.0
    %1986 = vmatpush.msra.mxu0 0.0
    %1987 = vmatpush.msra.mxu0 0.0
    %1988 = vmatpush.msra.mxu0 0.0
    %1989 = vmatpush.msra.mxu0 0.0
    %1990 = vmatpush.msra.mxu0 0.0
    %1991 = vmatpush.msra.mxu0 0.0
    %1992 = vmatpush.msra.mxu0 0.0
    %1993 = vmatpush.msra.mxu0 0.0
    %1994 = vmatpush.msra.mxu0 0.0
    %v1995 = vand.u32 %v1127, 4294901760
    %v1996 = vsub.f32 %v1127, %v1995
    %v1997 = vand.u32 %v1996, 4294901760
    %1998 = vmatpush.msra.mxu0 %v1997
    %v1999 = vand.u32 %v1878, 4294901760
    %2000 = vmatmul.f32.gmra.mxu0 %v1999
    %v2001 = vpop.f32.mrf.mxu0
    %v2002 = vadd.f32 %v1978, %v2001
    %2003 = vdwg.mxu0
    %2004 = vmatpush.msra.mxu0 0.0
    %2005 = vmatpush.msra.mxu0 0.0
    %2006 = vmatpush.msra.mxu0 0.0
    %2007 = vmatpush.msra.mxu0 0.0
    %2008 = vmatpush.msra.mxu0 0.0
    %2009 = vmatpush.msra.mxu0 0.0
    %2010 = vmatpush.msra.mxu0 0.0
    %2011 = vmatpush.msra.mxu0 0.0
    %2012 = vmatpush.msra.mxu0 0.0
    %2013 = vmatpush.msra.mxu0 0.0
    %2014 = vmatpush.msra.mxu0 0.0
    %2015 = vmatpush.msra.mxu0 0.0
    %2016 = vmatpush.msra.mxu0 0.0
    %2017 = vmatpush.msra.mxu0 0.0
    %2018 = vmatpush.msra.mxu0 0.0
    %v2019 = vand.u32 %v1127, 4294901760
    %2020 = vmatpush.msra.mxu0 %v2019
    %v2021 = vand.u32 %v1878, 4294901760
    %2022 = vmatmul.f32.gmra.mxu0 %v2021
    %v2023 = vpop.f32.mrf.mxu0
    %v2024 = vadd.f32 %v2002, %v2023
    %2025 = vdwg.mxu0
    %v2027 = vsel %vm1168, %v1874, 0
    %2029 = vmatpush.msra.mxu0 0.0
    %2030 = vmatpush.msra.mxu0 0.0
    %2031 = vmatpush.msra.mxu0 0.0
    %2032 = vmatpush.msra.mxu0 0.0
    %2033 = vmatpush.msra.mxu0 0.0
    %2034 = vmatpush.msra.mxu0 0.0
    %2035 = vmatpush.msra.mxu0 0.0
    %2036 = vmatpush.msra.mxu0 0.0
    %2037 = vmatpush.msra.mxu0 0.0
    %2038 = vmatpush.msra.mxu0 0.0
    %2039 = vmatpush.msra.mxu0 0.0
    %2040 = vmatpush.msra.mxu0 0.0
    %2041 = vmatpush.msra.mxu0 0.0
    %2042 = vmatpush.msra.mxu0 0.0
    %2043 = vmatpush.msra.mxu0 0.0
    %v2044 = vand.u32 %v1129, 4294901760
    %2045 = vmatpush.msra.mxu0 %v2044
    %v2046 = vand.u32 %v2027, 4294901760
    %v2047 = vsub.f32 %v2027, %v2046
    %v2048 = vand.u32 %v2047, 4294901760
    %v2049 = vsub.f32 %v2047, %v2048
    %v2050 = vand.u32 %v2049, 4294901760
    %2051 = vmatmul.f32.gmra.mxu0 %v2050
    %v2052 = vpop.f32.mrf.mxu0
    %v2053 = vadd.f32 0.0, %v2052
    %2054 = vdwg.mxu0
    %2055 = vmatpush.msra.mxu0 0.0
    %2056 = vmatpush.msra.mxu0 0.0
    %2057 = vmatpush.msra.mxu0 0.0
    %2058 = vmatpush.msra.mxu0 0.0
    %2059 = vmatpush.msra.mxu0 0.0
    %2060 = vmatpush.msra.mxu0 0.0
    %2061 = vmatpush.msra.mxu0 0.0
    %2062 = vmatpush.msra.mxu0 0.0
    %2063 = vmatpush.msra.mxu0 0.0
    %2064 = vmatpush.msra.mxu0 0.0
    %2065 = vmatpush.msra.mxu0 0.0
    %2066 = vmatpush.msra.mxu0 0.0
    %2067 = vmatpush.msra.mxu0 0.0
    %2068 = vmatpush.msra.mxu0 0.0
    %2069 = vmatpush.msra.mxu0 0.0
    %v2070 = vand.u32 %v1129, 4294901760
    %v2071 = vsub.f32 %v1129, %v2070
    %v2072 = vand.u32 %v2071, 4294901760
    %v2073 = vsub.f32 %v2071, %v2072
    %v2074 = vand.u32 %v2073, 4294901760
    %2075 = vmatpush.msra.mxu0 %v2074
    %v2076 = vand.u32 %v2027, 4294901760
    %2077 = vmatmul.f32.gmra.mxu0 %v2076
    %v2078 = vpop.f32.mrf.mxu0
    %v2079 = vadd.f32 %v2053, %v2078
    %2080 = vdwg.mxu0
    %2081 = vmatpush.msra.mxu0 0.0
    %2082 = vmatpush.msra.mxu0 0.0
    %2083 = vmatpush.msra.mxu0 0.0
    %2084 = vmatpush.msra.mxu0 0.0
    %2085 = vmatpush.msra.mxu0 0.0
    %2086 = vmatpush.msra.mxu0 0.0
    %2087 = vmatpush.msra.mxu0 0.0
    %2088 = vmatpush.msra.mxu0 0.0
    %2089 = vmatpush.msra.mxu0 0.0
    %2090 = vmatpush.msra.mxu0 0.0
    %2091 = vmatpush.msra.mxu0 0.0
    %2092 = vmatpush.msra.mxu0 0.0
    %2093 = vmatpush.msra.mxu0 0.0
    %2094 = vmatpush.msra.mxu0 0.0
    %2095 = vmatpush.msra.mxu0 0.0
    %v2096 = vand.u32 %v1129, 4294901760
    %v2097 = vsub.f32 %v1129, %v2096
    %2098 = vmatpush.msra.mxu0 %v2097
    %v2099 = vand.u32 %v2027, 4294901760
    %v2100 = vsub.f32 %v2027, %v2099
    %2101 = vmatmul.f32.gmra.mxu0 %v2100
    %v2102 = vpop.f32.mrf.mxu0
    %v2103 = vadd.f32 %v2079, %v2102
    %2104 = vdwg.mxu0
    %2105 = vmatpush.msra.mxu0 0.0
    %2106 = vmatpush.msra.mxu0 0.0
    %2107 = vmatpush.msra.mxu0 0.0
    %2108 = vmatpush.msra.mxu0 0.0
    %2109 = vmatpush.msra.mxu0 0.0
    %2110 = vmatpush.msra.mxu0 0.0
    %2111 = vmatpush.msra.mxu0 0.0
    %2112 = vmatpush.msra.mxu0 0.0
    %2113 = vmatpush.msra.mxu0 0.0
    %2114 = vmatpush.msra.mxu0 0.0
    %2115 = vmatpush.msra.mxu0 0.0
    %2116 = vmatpush.msra.mxu0 0.0
    %2117 = vmatpush.msra.mxu0 0.0
    %2118 = vmatpush.msra.mxu0 0.0
    %2119 = vmatpush.msra.mxu0 0.0
    %v2120 = vand.u32 %v1129, 4294901760
    %2121 = vmatpush.msra.mxu0 %v2120
    %v2122 = vand.u32 %v2027, 4294901760
    %v2123 = vsub.f32 %v2027, %v2122
    %v2124 = vand.u32 %v2123, 4294901760
    %2125 = vmatmul.f32.gmra.mxu0 %v2124
    %v2126 = vpop.f32.mrf.mxu0
    %v2127 = vadd.f32 %v2103, %v2126
    %2128 = vdwg.mxu0
    %2129 = vmatpush.msra.mxu0 0.0
    %2130 = vmatpush.msra.mxu0 0.0
    %2131 = vmatpush.msra.mxu0 0.0
    %2132 = vmatpush.msra.mxu0 0.0
    %2133 = vmatpush.msra.mxu0 0.0
    %2134 = vmatpush.msra.mxu0 0.0
    %2135 = vmatpush.msra.mxu0 0.0
    %2136 = vmatpush.msra.mxu0 0.0
    %2137 = vmatpush.msra.mxu0 0.0
    %2138 = vmatpush.msra.mxu0 0.0
    %2139 = vmatpush.msra.mxu0 0.0
    %2140 = vmatpush.msra.mxu0 0.0
    %2141 = vmatpush.msra.mxu0 0.0
    %2142 = vmatpush.msra.mxu0 0.0
    %2143 = vmatpush.msra.mxu0 0.0
    %v2144 = vand.u32 %v1129, 4294901760
    %v2145 = vsub.f32 %v1129, %v2144
    %v2146 = vand.u32 %v2145, 4294901760
    %2147 = vmatpush.msra.mxu0 %v2146
    %v2148 = vand.u32 %v2027, 4294901760
    %2149 = vmatmul.f32.gmra.mxu0 %v2148
    %v2150 = vpop.f32.mrf.mxu0
    %v2151 = vadd.f32 %v2127, %v2150
    %2152 = vdwg.mxu0
    %2153 = vmatpush.msra.mxu0 0.0
    %2154 = vmatpush.msra.mxu0 0.0
    %2155 = vmatpush.msra.mxu0 0.0
    %2156 = vmatpush.msra.mxu0 0.0
    %2157 = vmatpush.msra.mxu0 0.0
    %2158 = vmatpush.msra.mxu0 0.0
    %2159 = vmatpush.msra.mxu0 0.0
    %2160 = vmatpush.msra.mxu0 0.0
    %2161 = vmatpush.msra.mxu0 0.0
    %2162 = vmatpush.msra.mxu0 0.0
    %2163 = vmatpush.msra.mxu0 0.0
    %2164 = vmatpush.msra.mxu0 0.0
    %2165 = vmatpush.msra.mxu0 0.0
    %2166 = vmatpush.msra.mxu0 0.0
    %2167 = vmatpush.msra.mxu0 0.0
    %v2168 = vand.u32 %v1129, 4294901760
    %2169 = vmatpush.msra.mxu0 %v2168
    %v2170 = vand.u32 %v2027, 4294901760
    %2171 = vmatmul.f32.gmra.mxu0 %v2170
    %v2172 = vpop.f32.mrf.mxu0
    %v2173 = vadd.f32 %v2151, %v2172
    %2174 = vdwg.mxu0
    %v2176 = vsel %vm1168, %v1875, 0
    %2178 = vmatpush.msra.mxu0 0.0
    %2179 = vmatpush.msra.mxu0 0.0
    %2180 = vmatpush.msra.mxu0 0.0
    %2181 = vmatpush.msra.mxu0 0.0
    %2182 = vmatpush.msra.mxu0 0.0
    %2183 = vmatpush.msra.mxu0 0.0
    %2184 = vmatpush.msra.mxu0 0.0
    %2185 = vmatpush.msra.mxu0 0.0
    %2186 = vmatpush.msra.mxu0 0.0
    %2187 = vmatpush.msra.mxu0 0.0
    %2188 = vmatpush.msra.mxu0 0.0
    %2189 = vmatpush.msra.mxu0 0.0
    %2190 = vmatpush.msra.mxu0 0.0
    %2191 = vmatpush.msra.mxu0 0.0
    %2192 = vmatpush.msra.mxu0 0.0
    %v2193 = vand.u32 %v1165, 4294901760
    %2194 = vmatpush.msra.mxu0 %v2193
    %v2195 = vand.u32 %v2176, 4294901760
    %v2196 = vsub.f32 %v2176, %v2195
    %v2197 = vand.u32 %v2196, 4294901760
    %v2198 = vsub.f32 %v2196, %v2197
    %v2199 = vand.u32 %v2198, 4294901760
    %2200 = vmatmul.f32.gmra.mxu0 %v2199
    %v2201 = vpop.f32.mrf.mxu0
    %v2202 = vadd.f32 0.0, %v2201
    %2203 = vdwg.mxu0
    %2204 = vmatpush.msra.mxu0 0.0
    %2205 = vmatpush.msra.mxu0 0.0
    %2206 = vmatpush.msra.mxu0 0.0
    %2207 = vmatpush.msra.mxu0 0.0
    %2208 = vmatpush.msra.mxu0 0.0
    %2209 = vmatpush.msra.mxu0 0.0
    %2210 = vmatpush.msra.mxu0 0.0
    %2211 = vmatpush.msra.mxu0 0.0
    %2212 = vmatpush.msra.mxu0 0.0
    %2213 = vmatpush.msra.mxu0 0.0
    %2214 = vmatpush.msra.mxu0 0.0
    %2215 = vmatpush.msra.mxu0 0.0
    %2216 = vmatpush.msra.mxu0 0.0
    %2217 = vmatpush.msra.mxu0 0.0
    %2218 = vmatpush.msra.mxu0 0.0
    %v2219 = vand.u32 %v1165, 4294901760
    %v2220 = vsub.f32 %v1165, %v2219
    %v2221 = vand.u32 %v2220, 4294901760
    %v2222 = vsub.f32 %v2220, %v2221
    %v2223 = vand.u32 %v2222, 4294901760
    %2224 = vmatpush.msra.mxu0 %v2223
    %v2225 = vand.u32 %v2176, 4294901760
    %2226 = vmatmul.f32.gmra.mxu0 %v2225
    %v2227 = vpop.f32.mrf.mxu0
    %v2228 = vadd.f32 %v2202, %v2227
    %2229 = vdwg.mxu0
    %2230 = vmatpush.msra.mxu0 0.0
    %2231 = vmatpush.msra.mxu0 0.0
    %2232 = vmatpush.msra.mxu0 0.0
    %2233 = vmatpush.msra.mxu0 0.0
    %2234 = vmatpush.msra.mxu0 0.0
    %2235 = vmatpush.msra.mxu0 0.0
    %2236 = vmatpush.msra.mxu0 0.0
    %2237 = vmatpush.msra.mxu0 0.0
    %2238 = vmatpush.msra.mxu0 0.0
    %2239 = vmatpush.msra.mxu0 0.0
    %2240 = vmatpush.msra.mxu0 0.0
    %2241 = vmatpush.msra.mxu0 0.0
    %2242 = vmatpush.msra.mxu0 0.0
    %2243 = vmatpush.msra.mxu0 0.0
    %2244 = vmatpush.msra.mxu0 0.0
    %v2245 = vand.u32 %v1165, 4294901760
    %v2246 = vsub.f32 %v1165, %v2245
    %2247 = vmatpush.msra.mxu0 %v2246
    %v2248 = vand.u32 %v2176, 4294901760
    %v2249 = vsub.f32 %v2176, %v2248
    %2250 = vmatmul.f32.gmra.mxu0 %v2249
    %v2251 = vpop.f32.mrf.mxu0
    %v2252 = vadd.f32 %v2228, %v2251
    %2253 = vdwg.mxu0
    %2254 = vmatpush.msra.mxu0 0.0
    %2255 = vmatpush.msra.mxu0 0.0
    %2256 = vmatpush.msra.mxu0 0.0
    %2257 = vmatpush.msra.mxu0 0.0
    %2258 = vmatpush.msra.mxu0 0.0
    %2259 = vmatpush.msra.mxu0 0.0
    %2260 = vmatpush.msra.mxu0 0.0
    %2261 = vmatpush.msra.mxu0 0.0
    %2262 = vmatpush.msra.mxu0 0.0
    %2263 = vmatpush.msra.mxu0 0.0
    %2264 = vmatpush.msra.mxu0 0.0
    %2265 = vmatpush.msra.mxu0 0.0
    %2266 = vmatpush.msra.mxu0 0.0
    %2267 = vmatpush.msra.mxu0 0.0
    %2268 = vmatpush.msra.mxu0 0.0
    %v2269 = vand.u32 %v1165, 4294901760
    %2270 = vmatpush.msra.mxu0 %v2269
    %v2271 = vand.u32 %v2176, 4294901760
    %v2272 = vsub.f32 %v2176, %v2271
    %v2273 = vand.u32 %v2272, 4294901760
    %2274 = vmatmul.f32.gmra.mxu0 %v2273
    %v2275 = vpop.f32.mrf.mxu0
    %v2276 = vadd.f32 %v2252, %v2275
    %2277 = vdwg.mxu0
    %2278 = vmatpush.msra.mxu0 0.0
    %2279 = vmatpush.msra.mxu0 0.0
    %2280 = vmatpush.msra.mxu0 0.0
    %2281 = vmatpush.msra.mxu0 0.0
    %2282 = vmatpush.msra.mxu0 0.0
    %2283 = vmatpush.msra.mxu0 0.0
    %2284 = vmatpush.msra.mxu0 0.0
    %2285 = vmatpush.msra.mxu0 0.0
    %2286 = vmatpush.msra.mxu0 0.0
    %2287 = vmatpush.msra.mxu0 0.0
    %2288 = vmatpush.msra.mxu0 0.0
    %2289 = vmatpush.msra.mxu0 0.0
    %2290 = vmatpush.msra.mxu0 0.0
    %2291 = vmatpush.msra.mxu0 0.0
    %2292 = vmatpush.msra.mxu0 0.0
    %v2293 = vand.u32 %v1165, 4294901760
    %v2294 = vsub.f32 %v1165, %v2293
    %v2295 = vand.u32 %v2294, 4294901760
    %2296 = vmatpush.msra.mxu0 %v2295
    %v2297 = vand.u32 %v2176, 4294901760
    %2298 = vmatmul.f32.gmra.mxu0 %v2297
    %v2299 = vpop.f32.mrf.mxu0
    %v2300 = vadd.f32 %v2276, %v2299
    %2301 = vdwg.mxu0
    %2302 = vmatpush.msra.mxu0 0.0
    %2303 = vmatpush.msra.mxu0 0.0
    %2304 = vmatpush.msra.mxu0 0.0
    %2305 = vmatpush.msra.mxu0 0.0
    %2306 = vmatpush.msra.mxu0 0.0
    %2307 = vmatpush.msra.mxu0 0.0
    %2308 = vmatpush.msra.mxu0 0.0
    %2309 = vmatpush.msra.mxu0 0.0
    %2310 = vmatpush.msra.mxu0 0.0
    %2311 = vmatpush.msra.mxu0 0.0
    %2312 = vmatpush.msra.mxu0 0.0
    %2313 = vmatpush.msra.mxu0 0.0
    %2314 = vmatpush.msra.mxu0 0.0
    %2315 = vmatpush.msra.mxu0 0.0
    %2316 = vmatpush.msra.mxu0 0.0
    %v2317 = vand.u32 %v1165, 4294901760
    %2318 = vmatpush.msra.mxu0 %v2317
    %v2319 = vand.u32 %v2176, 4294901760
    %2320 = vmatmul.f32.gmra.mxu0 %v2319
    %v2321 = vpop.f32.mrf.mxu0
    %v2322 = vadd.f32 %v2300, %v2321
    %2323 = vdwg.mxu0
    %v2325 = vsel %vm1168, %v1876, 0
    %2327 = vmatpush.msra.mxu0 0.0
    %2328 = vmatpush.msra.mxu0 0.0
    %2329 = vmatpush.msra.mxu0 0.0
    %2330 = vmatpush.msra.mxu0 0.0
    %2331 = vmatpush.msra.mxu0 0.0
    %2332 = vmatpush.msra.mxu0 0.0
    %2333 = vmatpush.msra.mxu0 0.0
    %2334 = vmatpush.msra.mxu0 0.0
    %2335 = vmatpush.msra.mxu0 0.0
    %2336 = vmatpush.msra.mxu0 0.0
    %2337 = vmatpush.msra.mxu0 0.0
    %2338 = vmatpush.msra.mxu0 0.0
    %2339 = vmatpush.msra.mxu0 0.0
    %2340 = vmatpush.msra.mxu0 0.0
    %2341 = vmatpush.msra.mxu0 0.0
    %v2342 = vand.u32 %v1167, 4294901760
    %2343 = vmatpush.msra.mxu0 %v2342
    %v2344 = vand.u32 %v2325, 4294901760
    %v2345 = vsub.f32 %v2325, %v2344
    %v2346 = vand.u32 %v2345, 4294901760
    %v2347 = vsub.f32 %v2345, %v2346
    %v2348 = vand.u32 %v2347, 4294901760
    %2349 = vmatmul.f32.gmra.mxu0 %v2348
    %v2350 = vpop.f32.mrf.mxu0
    %v2351 = vadd.f32 0.0, %v2350
    %2352 = vdwg.mxu0
    %2353 = vmatpush.msra.mxu0 0.0
    %2354 = vmatpush.msra.mxu0 0.0
    %2355 = vmatpush.msra.mxu0 0.0
    %2356 = vmatpush.msra.mxu0 0.0
    %2357 = vmatpush.msra.mxu0 0.0
    %2358 = vmatpush.msra.mxu0 0.0
    %2359 = vmatpush.msra.mxu0 0.0
    %2360 = vmatpush.msra.mxu0 0.0
    %2361 = vmatpush.msra.mxu0 0.0
    %2362 = vmatpush.msra.mxu0 0.0
    %2363 = vmatpush.msra.mxu0 0.0
    %2364 = vmatpush.msra.mxu0 0.0
    %2365 = vmatpush.msra.mxu0 0.0
    %2366 = vmatpush.msra.mxu0 0.0
    %2367 = vmatpush.msra.mxu0 0.0
    %v2368 = vand.u32 %v1167, 4294901760
    %v2369 = vsub.f32 %v1167, %v2368
    %v2370 = vand.u32 %v2369, 4294901760
    %v2371 = vsub.f32 %v2369, %v2370
    %v2372 = vand.u32 %v2371, 4294901760
    %2373 = vmatpush.msra.mxu0 %v2372
    %v2374 = vand.u32 %v2325, 4294901760
    %2375 = vmatmul.f32.gmra.mxu0 %v2374
    %v2376 = vpop.f32.mrf.mxu0
    %v2377 = vadd.f32 %v2351, %v2376
    %2378 = vdwg.mxu0
    %2379 = vmatpush.msra.mxu0 0.0
    %2380 = vmatpush.msra.mxu0 0.0
    %2381 = vmatpush.msra.mxu0 0.0
    %2382 = vmatpush.msra.mxu0 0.0
    %2383 = vmatpush.msra.mxu0 0.0
    %2384 = vmatpush.msra.mxu0 0.0
    %2385 = vmatpush.msra.mxu0 0.0
    %2386 = vmatpush.msra.mxu0 0.0
    %2387 = vmatpush.msra.mxu0 0.0
    %2388 = vmatpush.msra.mxu0 0.0
    %2389 = vmatpush.msra.mxu0 0.0
    %2390 = vmatpush.msra.mxu0 0.0
    %2391 = vmatpush.msra.mxu0 0.0
    %2392 = vmatpush.msra.mxu0 0.0
    %2393 = vmatpush.msra.mxu0 0.0
    %v2394 = vand.u32 %v1167, 4294901760
    %v2395 = vsub.f32 %v1167, %v2394
    %2396 = vmatpush.msra.mxu0 %v2395
    %v2397 = vand.u32 %v2325, 4294901760
    %v2398 = vsub.f32 %v2325, %v2397
    %2399 = vmatmul.f32.gmra.mxu0 %v2398
    %v2400 = vpop.f32.mrf.mxu0
    %v2401 = vadd.f32 %v2377, %v2400
    %2402 = vdwg.mxu0
    %2403 = vmatpush.msra.mxu0 0.0
    %2404 = vmatpush.msra.mxu0 0.0
    %2405 = vmatpush.msra.mxu0 0.0
    %2406 = vmatpush.msra.mxu0 0.0
    %2407 = vmatpush.msra.mxu0 0.0
    %2408 = vmatpush.msra.mxu0 0.0
    %2409 = vmatpush.msra.mxu0 0.0
    %2410 = vmatpush.msra.mxu0 0.0
    %2411 = vmatpush.msra.mxu0 0.0
    %2412 = vmatpush.msra.mxu0 0.0
    %2413 = vmatpush.msra.mxu0 0.0
    %2414 = vmatpush.msra.mxu0 0.0
    %2415 = vmatpush.msra.mxu0 0.0
    %2416 = vmatpush.msra.mxu0 0.0
    %2417 = vmatpush.msra.mxu0 0.0
    %v2418 = vand.u32 %v1167, 4294901760
    %2419 = vmatpush.msra.mxu0 %v2418
    %v2420 = vand.u32 %v2325, 4294901760
    %v2421 = vsub.f32 %v2325, %v2420
    %v2422 = vand.u32 %v2421, 4294901760
    %2423 = vmatmul.f32.gmra.mxu0 %v2422
    %v2424 = vpop.f32.mrf.mxu0
    %v2425 = vadd.f32 %v2401, %v2424
    %2426 = vdwg.mxu0
    %2427 = vmatpush.msra.mxu0 0.0
    %2428 = vmatpush.msra.mxu0 0.0
    %2429 = vmatpush.msra.mxu0 0.0
    %2430 = vmatpush.msra.mxu0 0.0
    %2431 = vmatpush.msra.mxu0 0.0
    %2432 = vmatpush.msra.mxu0 0.0
    %2433 = vmatpush.msra.mxu0 0.0
    %2434 = vmatpush.msra.mxu0 0.0
    %2435 = vmatpush.msra.mxu0 0.0
    %2436 = vmatpush.msra.mxu0 0.0
    %2437 = vmatpush.msra.mxu0 0.0
    %2438 = vmatpush.msra.mxu0 0.0
    %2439 = vmatpush.msra.mxu0 0.0
    %2440 = vmatpush.msra.mxu0 0.0
    %2441 = vmatpush.msra.mxu0 0.0
    %v2442 = vand.u32 %v1167, 4294901760
    %v2443 = vsub.f32 %v1167, %v2442
    %v2444 = vand.u32 %v2443, 4294901760
    %2445 = vmatpush.msra.mxu0 %v2444
    %v2446 = vand.u32 %v2325, 4294901760
    %2447 = vmatmul.f32.gmra.mxu0 %v2446
    %v2448 = vpop.f32.mrf.mxu0
    %v2449 = vadd.f32 %v2425, %v2448
    %2450 = vdwg.mxu0
    %2451 = vmatpush.msra.mxu0 0.0
    %2452 = vmatpush.msra.mxu0 0.0
    %2453 = vmatpush.msra.mxu0 0.0
    %2454 = vmatpush.msra.mxu0 0.0
    %2455 = vmatpush.msra.mxu0 0.0
    %2456 = vmatpush.msra.mxu0 0.0
    %2457 = vmatpush.msra.mxu0 0.0
    %2458 = vmatpush.msra.mxu0 0.0
    %2459 = vmatpush.msra.mxu0 0.0
    %2460 = vmatpush.msra.mxu0 0.0
    %2461 = vmatpush.msra.mxu0 0.0
    %2462 = vmatpush.msra.mxu0 0.0
    %2463 = vmatpush.msra.mxu0 0.0
    %2464 = vmatpush.msra.mxu0 0.0
    %2465 = vmatpush.msra.mxu0 0.0
    %v2466 = vand.u32 %v1167, 4294901760
    %2467 = vmatpush.msra.mxu0 %v2466
    %v2468 = vand.u32 %v2325, 4294901760
    %2469 = vmatmul.f32.gmra.mxu0 %v2468
    %v2470 = vpop.f32.mrf.mxu0
    %v2471 = vadd.f32 %v2449, %v2470
    %2472 = vdwg.mxu0
    %v2473 = vrot.slane %v2024, 4
    %v2474 = vsel %vm604, 0.0, %v2473
    %v2476 = vunpack.c.l.s4 1983009808
    %v2477 = vunpack.c.0.s8 %v2476
    %v2478 = vperm.slane %v2024, %v2477
    %v2480 = vunpack.c.l.s4 1983009808
    %v2481 = vunpack.c.0.s8 %v2480
    %v2482 = vperm.slane %v2474, %v2481
    %v2483 = vrot.slane %v2173, 4
    %v2484 = vsel %vm604, 0.0, %v2483
    %v2486 = vunpack.c.l.s4 1983009808
    %v2487 = vunpack.c.0.s8 %v2486
    %v2488 = vperm.slane %v2173, %v2487
    %v2490 = vunpack.c.l.s4 1983009808
    %v2491 = vunpack.c.0.s8 %v2490
    %v2492 = vperm.slane %v2484, %v2491
    %v2493 = vrot.slane %v2488, 4
    %v2494 = vsel %vm604, %v2493, %v2478
    %v2495 = vrot.slane %v2478, 4
    %v2496 = vsel %vm604, %v2488, %v2495
    %v2498 = vunpack.c.l.s4 1934713408
    %v2499 = vunpack.c.0.s8 %v2498
    %v2500 = vperm.slane %v2494, %v2499
    %v2502 = vunpack.c.l.s4 1934713408
    %v2503 = vunpack.c.0.s8 %v2502
    %v2504 = vperm.slane %v2496, %v2503
    %v2505 = vrot.slane %v2492, 4
    %v2506 = vsel %vm604, %v2505, %v2482
    %v2507 = vrot.slane %v2482, 4
    %v2508 = vsel %vm604, %v2492, %v2507
    %v2510 = vunpack.c.l.s4 1934713408
    %v2511 = vunpack.c.0.s8 %v2510
    %v2512 = vperm.slane %v2506, %v2511
    %v2514 = vunpack.c.l.s4 1934713408
    %v2515 = vunpack.c.0.s8 %v2514
    %v2516 = vperm.slane %v2508, %v2515
    %v2517 = vrot.slane %v2500, 4
    %v2518 = vsel %vm604, 0.0, %v2517
    %v2519 = vrot.slane %v2504, 4
    %v2520 = vsel %vm604, 0.0, %v2519
    %v2521 = vrot.slane %v2512, 4
    %v2522 = vsel %vm604, 0.0, %v2521
    %v2523 = vrot.slane %v2516, 4
    %v2524 = vsel %vm604, 0.0, %v2523
    %v2525 = vrot.slane %v2322, 4
    %v2526 = vsel %vm604, 0.0, %v2525
    %v2528 = vunpack.c.l.s4 1983009808
    %v2529 = vunpack.c.0.s8 %v2528
    %v2530 = vperm.slane %v2322, %v2529
    %v2532 = vunpack.c.l.s4 1983009808
    %v2533 = vunpack.c.0.s8 %v2532
    %v2534 = vperm.slane %v2526, %v2533
    %v2535 = vrot.slane %v2471, 4
    %v2536 = vsel %vm604, 0.0, %v2535
    %v2538 = vunpack.c.l.s4 1983009808
    %v2539 = vunpack.c.0.s8 %v2538
    %v2540 = vperm.slane %v2471, %v2539
    %v2542 = vunpack.c.l.s4 1983009808
    %v2543 = vunpack.c.0.s8 %v2542
    %v2544 = vperm.slane %v2536, %v2543
    %v2545 = vrot.slane %v2540, 4
    %v2546 = vsel %vm604, %v2545, %v2530
    %v2547 = vrot.slane %v2530, 4
    %v2548 = vsel %vm604, %v2540, %v2547
    %v2550 = vunpack.c.l.s4 1934713408
    %v2551 = vunpack.c.0.s8 %v2550
    %v2552 = vperm.slane %v2546, %v2551
    %v2554 = vunpack.c.l.s4 1934713408
    %v2555 = vunpack.c.0.s8 %v2554
    %v2556 = vperm.slane %v2548, %v2555
    %v2557 = vrot.slane %v2544, 4
    %v2558 = vsel %vm604, %v2557, %v2534
    %v2559 = vrot.slane %v2534, 4
    %v2560 = vsel %vm604, %v2544, %v2559
    %v2562 = vunpack.c.l.s4 1934713408
    %v2563 = vunpack.c.0.s8 %v2562
    %v2564 = vperm.slane %v2558, %v2563
    %v2566 = vunpack.c.l.s4 1934713408
    %v2567 = vunpack.c.0.s8 %v2566
    %v2568 = vperm.slane %v2560, %v2567
    %v2569 = vrot.slane %v2552, 4
    %v2570 = vsel %vm604, 0.0, %v2569
    %v2571 = vrot.slane %v2556, 4
    %v2572 = vsel %vm604, 0.0, %v2571
    %v2573 = vrot.slane %v2564, 4
    %v2574 = vsel %vm604, 0.0, %v2573
    %v2575 = vrot.slane %v2568, 4
    %v2576 = vsel %vm604, 0.0, %v2575
    %v2577 = vsel %vm604, %v2519, %v2500
    %v2579 = vunpack.c.l.s4 1983009808
    %v2580 = vunpack.c.0.s8 %v2579
    %v2581 = vperm.slane %v2577, %v2580
    %v2582 = vrot.slane %v2520, 4
    %v2583 = vsel %vm604, %v2582, %v2518
    %v2585 = vunpack.c.l.s4 1983009808
    %v2586 = vunpack.c.0.s8 %v2585
    %v2587 = vperm.slane %v2583, %v2586
    %v2588 = vsel %vm604, %v2523, %v2512
    %v2590 = vunpack.c.l.s4 1983009808
    %v2591 = vunpack.c.0.s8 %v2590
    %v2592 = vperm.slane %v2588, %v2591
    %v2593 = vrot.slane %v2524, 4
    %v2594 = vsel %vm604, %v2593, %v2522
    %v2596 = vunpack.c.l.s4 1983009808
    %v2597 = vunpack.c.0.s8 %v2596
    %v2598 = vperm.slane %v2594, %v2597
    %v2599 = vrot.slane %v2587, 4
    %v2600 = vsel %vm604, %v2599, %v2581
    %v2602 = vunpack.c.l.s4 1934713408
    %v2603 = vunpack.c.0.s8 %v2602
    %v2604 = vperm.slane %v2600, %v2603
    %v2605 = vrot.slane %v2598, 4
    %v2606 = vsel %vm604, %v2605, %v2592
    %v2608 = vunpack.c.l.s4 1934713408
    %v2609 = vunpack.c.0.s8 %v2608
    %v2610 = vperm.slane %v2606, %v2609
    %v2611 = vrot.slane %v2610, 4
    %v2612 = vsel %vm604, %v2611, %v2604
    %v2613 = vrot.slane %v2604, 4
    %v2614 = vsel %vm604, %v2610, %v2613
    %v2615 = vsel %vm604, %v2571, %v2552
    %v2617 = vunpack.c.l.s4 1983009808
    %v2618 = vunpack.c.0.s8 %v2617
    %v2619 = vperm.slane %v2615, %v2618
    %v2620 = vrot.slane %v2572, 4
    %v2621 = vsel %vm604, %v2620, %v2570
    %v2623 = vunpack.c.l.s4 1983009808
    %v2624 = vunpack.c.0.s8 %v2623
    %v2625 = vperm.slane %v2621, %v2624
    %v2626 = vsel %vm604, %v2575, %v2564
    %v2628 = vunpack.c.l.s4 1983009808
    %v2629 = vunpack.c.0.s8 %v2628
    %v2630 = vperm.slane %v2626, %v2629
    %v2631 = vrot.slane %v2576, 4
    %v2632 = vsel %vm604, %v2631, %v2574
    %v2634 = vunpack.c.l.s4 1983009808
    %v2635 = vunpack.c.0.s8 %v2634
    %v2636 = vperm.slane %v2632, %v2635
    %v2637 = vrot.slane %v2625, 4
    %v2638 = vsel %vm604, %v2637, %v2619
    %v2640 = vunpack.c.l.s4 1934713408
    %v2641 = vunpack.c.0.s8 %v2640
    %v2642 = vperm.slane %v2638, %v2641
    %v2643 = vrot.slane %v2636, 4
    %v2644 = vsel %vm604, %v2643, %v2630
    %v2646 = vunpack.c.l.s4 1934713408
    %v2647 = vunpack.c.0.s8 %v2646
    %v2648 = vperm.slane %v2644, %v2647
    %v2649 = vrot.slane %v2648, 4
    %v2650 = vsel %vm604, %v2649, %v2642
    %v2651 = vrot.slane %v2642, 4
    %v2652 = vsel %vm604, %v2648, %v2651
    %2655 = vrot.lane.b32.xlu0 %v2614, 8
    %v2656 = vpop.permute.xlu0 %2655
    %2657 = vrot.lane.b32.xlu0 %v2652, 8
    %v2658 = vpop.permute.xlu0 %2657
    %v2661 = vsel %vm1168, %v2612, %v2656
    %v2662 = vsel %vm1168, %v2650, %v2658
    %v2663 = vld [vmem:[#allocation11] sm:$0xff]
    %v2664 = vld [vmem:[#allocation11 + $0x8] sm:$0xff]
    %2665 = vrot.lane.b32.xlu0 %v363, 112
    %v2666 = vpop.permute.xlu0 %2665
    %2667 = vrot.lane.b32.xlu0 %v367, 112
    %v2668 = vpop.permute.xlu0 %2667
    %2669 = vrot.lane.b32.xlu0 %v598, 112
    %v2670 = vpop.permute.xlu0 %2669
    %2671 = vrot.lane.b32.xlu0 %v600, 112
    %v2672 = vpop.permute.xlu0 %2671
    %v2677 = vrot.slane %v2666, 4
    %v2678 = vsel %vm604, 0.0, %v2677
    %v2680 = vunpack.c.l.s4 1983009808
    %v2681 = vunpack.c.0.s8 %v2680
    %v2682 = vperm.slane %v2666, %v2681
    %v2684 = vunpack.c.l.s4 1983009808
    %v2685 = vunpack.c.0.s8 %v2684
    %v2686 = vperm.slane %v2678, %v2685
    %v2687 = vrot.slane %v2670, 4
    %v2688 = vsel %vm604, 0.0, %v2687
    %v2690 = vunpack.c.l.s4 1983009808
    %v2691 = vunpack.c.0.s8 %v2690
    %v2692 = vperm.slane %v2670, %v2691
    %v2694 = vunpack.c.l.s4 1983009808
    %v2695 = vunpack.c.0.s8 %v2694
    %v2696 = vperm.slane %v2688, %v2695
    %v2697 = vrot.slane %v2692, 4
    %v2698 = vsel %vm604, %v2697, %v2682
    %v2699 = vrot.slane %v2682, 4
    %v2700 = vsel %vm604, %v2692, %v2699
    %v2702 = vunpack.c.l.s4 1934713408
    %v2703 = vunpack.c.0.s8 %v2702
    %v2704 = vperm.slane %v2698, %v2703
    %v2706 = vunpack.c.l.s4 1934713408
    %v2707 = vunpack.c.0.s8 %v2706
    %v2708 = vperm.slane %v2700, %v2707
    %v2709 = vrot.slane %v2696, 4
    %v2710 = vsel %vm604, %v2709, %v2686
    %v2711 = vrot.slane %v2686, 4
    %v2712 = vsel %vm604, %v2696, %v2711
    %v2714 = vunpack.c.l.s4 1934713408
    %v2715 = vunpack.c.0.s8 %v2714
    %v2716 = vperm.slane %v2710, %v2715
    %v2718 = vunpack.c.l.s4 1934713408
    %v2719 = vunpack.c.0.s8 %v2718
    %v2720 = vperm.slane %v2712, %v2719
    %v2721 = vrot.slane %v2704, 4
    %v2722 = vsel %vm604, 0.0, %v2721
    %v2723 = vrot.slane %v2708, 4
    %v2724 = vsel %vm604, 0.0, %v2723
    %v2725 = vrot.slane %v2716, 4
    %v2726 = vsel %vm604, 0.0, %v2725
    %v2727 = vrot.slane %v2720, 4
    %v2728 = vsel %vm604, 0.0, %v2727
    %v2729 = vrot.slane %v2668, 4
    %v2730 = vsel %vm604, 0.0, %v2729
    %v2732 = vunpack.c.l.s4 1983009808
    %v2733 = vunpack.c.0.s8 %v2732
    %v2734 = vperm.slane %v2668, %v2733
    %v2736 = vunpack.c.l.s4 1983009808
    %v2737 = vunpack.c.0.s8 %v2736
    %v2738 = vperm.slane %v2730, %v2737
    %v2739 = vrot.slane %v2672, 4
    %v2740 = vsel %vm604, 0.0, %v2739
    %v2742 = vunpack.c.l.s4 1983009808
    %v2743 = vunpack.c.0.s8 %v2742
    %v2744 = vperm.slane %v2672, %v2743
    %v2746 = vunpack.c.l.s4 1983009808
    %v2747 = vunpack.c.0.s8 %v2746
    %v2748 = vperm.slane %v2740, %v2747
    %v2749 = vrot.slane %v2744, 4
    %v2750 = vsel %vm604, %v2749, %v2734
    %v2751 = vrot.slane %v2734, 4
    %v2752 = vsel %vm604, %v2744, %v2751
    %v2754 = vunpack.c.l.s4 1934713408
    %v2755 = vunpack.c.0.s8 %v2754
    %v2756 = vperm.slane %v2750, %v2755
    %v2758 = vunpack.c.l.s4 1934713408
    %v2759 = vunpack.c.0.s8 %v2758
    %v2760 = vperm.slane %v2752, %v2759
    %v2761 = vrot.slane %v2748, 4
    %v2762 = vsel %vm604, %v2761, %v2738
    %v2763 = vrot.slane %v2738, 4
    %v2764 = vsel %vm604, %v2748, %v2763
    %v2766 = vunpack.c.l.s4 1934713408
    %v2767 = vunpack.c.0.s8 %v2766
    %v2768 = vperm.slane %v2762, %v2767
    %v2770 = vunpack.c.l.s4 1934713408
    %v2771 = vunpack.c.0.s8 %v2770
    %v2772 = vperm.slane %v2764, %v2771
    %v2773 = vrot.slane %v2756, 4
    %v2774 = vsel %vm604, 0.0, %v2773
    %v2775 = vrot.slane %v2760, 4
    %v2776 = vsel %vm604, 0.0, %v2775
    %v2777 = vrot.slane %v2768, 4
    %v2778 = vsel %vm604, 0.0, %v2777
    %v2779 = vrot.slane %v2772, 4
    %v2780 = vsel %vm604, 0.0, %v2779
    %v2781 = vsel %vm604, %v2723, %v2704
    %v2783 = vunpack.c.l.s4 1983009808
    %v2784 = vunpack.c.0.s8 %v2783
    %v2785 = vperm.slane %v2781, %v2784
    %v2786 = vrot.slane %v2724, 4
    %v2787 = vsel %vm604, %v2786, %v2722
    %v2789 = vunpack.c.l.s4 1983009808
    %v2790 = vunpack.c.0.s8 %v2789
    %v2791 = vperm.slane %v2787, %v2790
    %v2792 = vsel %vm604, %v2727, %v2716
    %v2794 = vunpack.c.l.s4 1983009808
    %v2795 = vunpack.c.0.s8 %v2794
    %v2796 = vperm.slane %v2792, %v2795
    %v2797 = vrot.slane %v2728, 4
    %v2798 = vsel %vm604, %v2797, %v2726
    %v2800 = vunpack.c.l.s4 1983009808
    %v2801 = vunpack.c.0.s8 %v2800
    %v2802 = vperm.slane %v2798, %v2801
    %v2803 = vrot.slane %v2791, 4
    %v2804 = vsel %vm604, %v2803, %v2785
    %v2806 = vunpack.c.l.s4 1934713408
    %v2807 = vunpack.c.0.s8 %v2806
    %v2808 = vperm.slane %v2804, %v2807
    %v2809 = vrot.slane %v2802, 4
    %v2810 = vsel %vm604, %v2809, %v2796
    %v2812 = vunpack.c.l.s4 1934713408
    %v2813 = vunpack.c.0.s8 %v2812
    %v2814 = vperm.slane %v2810, %v2813
    %v2815 = vrot.slane %v2814, 4
    %v2816 = vsel %vm604, %v2815, %v2808
    %v2817 = vrot.slane %v2808, 4
    %v2818 = vsel %vm604, %v2814, %v2817
    %v2819 = vsel %vm604, %v2775, %v2756
    %v2821 = vunpack.c.l.s4 1983009808
    %v2822 = vunpack.c.0.s8 %v2821
    %v2823 = vperm.slane %v2819, %v2822
    %v2824 = vrot.slane %v2776, 4
    %v2825 = vsel %vm604, %v2824, %v2774
    %v2827 = vunpack.c.l.s4 1983009808
    %v2828 = vunpack.c.0.s8 %v2827
    %v2829 = vperm.slane %v2825, %v2828
    %v2830 = vsel %vm604, %v2779, %v2768
    %v2832 = vunpack.c.l.s4 1983009808
    %v2833 = vunpack.c.0.s8 %v2832
    %v2834 = vperm.slane %v2830, %v2833
    %v2835 = vrot.slane %v2780, 4
    %v2836 = vsel %vm604, %v2835, %v2778
    %v2838 = vunpack.c.l.s4 1983009808
    %v2839 = vunpack.c.0.s8 %v2838
    %v2840 = vperm.slane %v2836, %v2839
    %v2841 = vrot.slane %v2829, 4
    %v2842 = vsel %vm604, %v2841, %v2823
    %v2844 = vunpack.c.l.s4 1934713408
    %v2845 = vunpack.c.0.s8 %v2844
    %v2846 = vperm.slane %v2842, %v2845
    %v2847 = vrot.slane %v2840, 4
    %v2848 = vsel %vm604, %v2847, %v2834
    %v2850 = vunpack.c.l.s4 1934713408
    %v2851 = vunpack.c.0.s8 %v2850
    %v2852 = vperm.slane %v2848, %v2851
    %v2853 = vrot.slane %v2852, 4
    %v2854 = vsel %vm604, %v2853, %v2846
    %v2855 = vrot.slane %v2846, 4
    %v2856 = vsel %vm604, %v2852, %v2855
    %2859 = vrot.lane.b32.xlu0 %v589, 120
    %v2860 = vpop.permute.xlu0 %2859
    %2861 = vrot.lane.b32.xlu0 %v593, 120
    %v2862 = vpop.permute.xlu0 %2861
    %v2865 = vrot.slane %v589, 4
    %v2866 = vsel %vm604, 0.0, %v2865
    %v2868 = vunpack.c.l.s4 1983009808
    %v2869 = vunpack.c.0.s8 %v2868
    %v2870 = vperm.slane %v589, %v2869
    %v2872 = vunpack.c.l.s4 1983009808
    %v2873 = vunpack.c.0.s8 %v2872
    %v2874 = vperm.slane %v2866, %v2873
    %v2875 = vrot.slane %v2860, 4
    %v2876 = vsel %vm604, 0.0, %v2875
    %v2878 = vunpack.c.l.s4 1983009808
    %v2879 = vunpack.c.0.s8 %v2878
    %v2880 = vperm.slane %v2860, %v2879
    %v2882 = vunpack.c.l.s4 1983009808
    %v2883 = vunpack.c.0.s8 %v2882
    %v2884 = vperm.slane %v2876, %v2883
    %v2885 = vrot.slane %v2880, 4
    %v2886 = vsel %vm604, %v2885, %v2870
    %v2887 = vrot.slane %v2870, 4
    %v2888 = vsel %vm604, %v2880, %v2887
    %v2890 = vunpack.c.l.s4 1934713408
    %v2891 = vunpack.c.0.s8 %v2890
    %v2892 = vperm.slane %v2886, %v2891
    %v2894 = vunpack.c.l.s4 1934713408
    %v2895 = vunpack.c.0.s8 %v2894
    %v2896 = vperm.slane %v2888, %v2895
    %v2897 = vrot.slane %v2884, 4
    %v2898 = vsel %vm604, %v2897, %v2874
    %v2899 = vrot.slane %v2874, 4
    %v2900 = vsel %vm604, %v2884, %v2899
    %v2902 = vunpack.c.l.s4 1934713408
    %v2903 = vunpack.c.0.s8 %v2902
    %v2904 = vperm.slane %v2898, %v2903
    %v2906 = vunpack.c.l.s4 1934713408
    %v2907 = vunpack.c.0.s8 %v2906
    %v2908 = vperm.slane %v2900, %v2907
    %v2909 = vrot.slane %v2892, 4
    %v2910 = vsel %vm604, 0.0, %v2909
    %v2911 = vrot.slane %v2896, 4
    %v2912 = vsel %vm604, 0.0, %v2911
    %v2913 = vrot.slane %v2904, 4
    %v2914 = vsel %vm604, 0.0, %v2913
    %v2915 = vrot.slane %v2908, 4
    %v2916 = vsel %vm604, 0.0, %v2915
    %v2917 = vrot.slane %v593, 4
    %v2918 = vsel %vm604, 0.0, %v2917
    %v2920 = vunpack.c.l.s4 1983009808
    %v2921 = vunpack.c.0.s8 %v2920
    %v2922 = vperm.slane %v593, %v2921
    %v2924 = vunpack.c.l.s4 1983009808
    %v2925 = vunpack.c.0.s8 %v2924
    %v2926 = vperm.slane %v2918, %v2925
    %v2927 = vrot.slane %v2862, 4
    %v2928 = vsel %vm604, 0.0, %v2927
    %v2930 = vunpack.c.l.s4 1983009808
    %v2931 = vunpack.c.0.s8 %v2930
    %v2932 = vperm.slane %v2862, %v2931
    %v2934 = vunpack.c.l.s4 1983009808
    %v2935 = vunpack.c.0.s8 %v2934
    %v2936 = vperm.slane %v2928, %v2935
    %v2937 = vrot.slane %v2932, 4
    %v2938 = vsel %vm604, %v2937, %v2922
    %v2939 = vrot.slane %v2922, 4
    %v2940 = vsel %vm604, %v2932, %v2939
    %v2942 = vunpack.c.l.s4 1934713408
    %v2943 = vunpack.c.0.s8 %v2942
    %v2944 = vperm.slane %v2938, %v2943
    %v2946 = vunpack.c.l.s4 1934713408
    %v2947 = vunpack.c.0.s8 %v2946
    %v2948 = vperm.slane %v2940, %v2947
    %v2949 = vrot.slane %v2936, 4
    %v2950 = vsel %vm604, %v2949, %v2926
    %v2951 = vrot.slane %v2926, 4
    %v2952 = vsel %vm604, %v2936, %v2951
    %v2954 = vunpack.c.l.s4 1934713408
    %v2955 = vunpack.c.0.s8 %v2954
    %v2956 = vperm.slane %v2950, %v2955
    %v2958 = vunpack.c.l.s4 1934713408
    %v2959 = vunpack.c.0.s8 %v2958
    %v2960 = vperm.slane %v2952, %v2959
    %v2961 = vrot.slane %v2944, 4
    %v2962 = vsel %vm604, 0.0, %v2961
    %v2963 = vrot.slane %v2948, 4
    %v2964 = vsel %vm604, 0.0, %v2963
    %v2965 = vrot.slane %v2956, 4
    %v2966 = vsel %vm604, 0.0, %v2965
    %v2967 = vrot.slane %v2960, 4
    %v2968 = vsel %vm604, 0.0, %v2967
    %v2969 = vsel %vm604, %v2911, %v2892
    %v2971 = vunpack.c.l.s4 1983009808
    %v2972 = vunpack.c.0.s8 %v2971
    %v2973 = vperm.slane %v2969, %v2972
    %v2974 = vrot.slane %v2912, 4
    %v2975 = vsel %vm604, %v2974, %v2910
    %v2977 = vunpack.c.l.s4 1983009808
    %v2978 = vunpack.c.0.s8 %v2977
    %v2979 = vperm.slane %v2975, %v2978
    %v2980 = vsel %vm604, %v2915, %v2904
    %v2982 = vunpack.c.l.s4 1983009808
    %v2983 = vunpack.c.0.s8 %v2982
    %v2984 = vperm.slane %v2980, %v2983
    %v2985 = vrot.slane %v2916, 4
    %v2986 = vsel %vm604, %v2985, %v2914
    %v2988 = vunpack.c.l.s4 1983009808
    %v2989 = vunpack.c.0.s8 %v2988
    %v2990 = vperm.slane %v2986, %v2989
    %v2991 = vrot.slane %v2979, 4
    %v2992 = vsel %vm604, %v2991, %v2973
    %v2994 = vunpack.c.l.s4 1934713408
    %v2995 = vunpack.c.0.s8 %v2994
    %v2996 = vperm.slane %v2992, %v2995
    %v2997 = vrot.slane %v2990, 4
    %v2998 = vsel %vm604, %v2997, %v2984
    %v3000 = vunpack.c.l.s4 1934713408
    %v3001 = vunpack.c.0.s8 %v3000
    %v3002 = vperm.slane %v2998, %v3001
    %v3003 = vrot.slane %v3002, 4
    %v3004 = vsel %vm604, %v3003, %v2996
    %v3005 = vrot.slane %v2996, 4
    %v3006 = vsel %vm604, %v3002, %v3005
    %v3007 = vsel %vm604, %v2963, %v2944
    %v3009 = vunpack.c.l.s4 1983009808
    %v3010 = vunpack.c.0.s8 %v3009
    %v3011 = vperm.slane %v3007, %v3010
    %v3012 = vrot.slane %v2964, 4
    %v3013 = vsel %vm604, %v3012, %v2962
    %v3015 = vunpack.c.l.s4 1983009808
    %v3016 = vunpack.c.0.s8 %v3015
    %v3017 = vperm.slane %v3013, %v3016
    %v3018 = vsel %vm604, %v2967, %v2956
    %v3020 = vunpack.c.l.s4 1983009808
    %v3021 = vunpack.c.0.s8 %v3020
    %v3022 = vperm.slane %v3018, %v3021
    %v3023 = vrot.slane %v2968, 4
    %v3024 = vsel %vm604, %v3023, %v2966
    %v3026 = vunpack.c.l.s4 1983009808
    %v3027 = vunpack.c.0.s8 %v3026
    %v3028 = vperm.slane %v3024, %v3027
    %v3029 = vrot.slane %v3017, 4
    %v3030 = vsel %vm604, %v3029, %v3011
    %v3032 = vunpack.c.l.s4 1934713408
    %v3033 = vunpack.c.0.s8 %v3032
    %v3034 = vperm.slane %v3030, %v3033
    %v3035 = vrot.slane %v3028, 4
    %v3036 = vsel %vm604, %v3035, %v3022
    %v3038 = vunpack.c.l.s4 1934713408
    %v3039 = vunpack.c.0.s8 %v3038
    %v3040 = vperm.slane %v3036, %v3039
    %v3041 = vrot.slane %v3040, 4
    %v3042 = vsel %vm604, %v3041, %v3034
    %v3043 = vrot.slane %v3034, 4
    %v3044 = vsel %vm604, %v3040, %v3043
    %3045 = vrot.lane.b32.xlu0 %v589, 112
    %v3046 = vpop.permute.xlu0 %3045
    %3047 = vrot.lane.b32.xlu0 %v593, 112
    %v3048 = vpop.permute.xlu0 %3047
    %3049 = vrot.lane.b32.xlu0 %v2860, 112
    %v3050 = vpop.permute.xlu0 %3049
    %3051 = vrot.lane.b32.xlu0 %v2862, 112
    %v3052 = vpop.permute.xlu0 %3051
    %v3057 = vrot.slane %v3046, 4
    %v3058 = vsel %vm604, 0.0, %v3057
    %v3060 = vunpack.c.l.s4 1983009808
    %v3061 = vunpack.c.0.s8 %v3060
    %v3062 = vperm.slane %v3046, %v3061
    %v3064 = vunpack.c.l.s4 1983009808
    %v3065 = vunpack.c.0.s8 %v3064
    %v3066 = vperm.slane %v3058, %v3065
    %v3067 = vrot.slane %v3050, 4
    %v3068 = vsel %vm604, 0.0, %v3067
    %v3070 = vunpack.c.l.s4 1983009808
    %v3071 = vunpack.c.0.s8 %v3070
    %v3072 = vperm.slane %v3050, %v3071
    %v3074 = vunpack.c.l.s4 1983009808
    %v3075 = vunpack.c.0.s8 %v3074
    %v3076 = vperm.slane %v3068, %v3075
    %v3077 = vrot.slane %v3072, 4
    %v3078 = vsel %vm604, %v3077, %v3062
    %v3079 = vrot.slane %v3062, 4
    %v3080 = vsel %vm604, %v3072, %v3079
    %v3082 = vunpack.c.l.s4 1934713408
    %v3083 = vunpack.c.0.s8 %v3082
    %v3084 = vperm.slane %v3078, %v3083
    %v3086 = vunpack.c.l.s4 1934713408
    %v3087 = vunpack.c.0.s8 %v3086
    %v3088 = vperm.slane %v3080, %v3087
    %v3089 = vrot.slane %v3076, 4
    %v3090 = vsel %vm604, %v3089, %v3066
    %v3091 = vrot.slane %v3066, 4
    %v3092 = vsel %vm604, %v3076, %v3091
    %v3094 = vunpack.c.l.s4 1934713408
    %v3095 = vunpack.c.0.s8 %v3094
    %v3096 = vperm.slane %v3090, %v3095
    %v3098 = vunpack.c.l.s4 1934713408
    %v3099 = vunpack.c.0.s8 %v3098
    %v3100 = vperm.slane %v3092, %v3099
    %v3101 = vrot.slane %v3084, 4
    %v3102 = vsel %vm604, 0.0, %v3101
    %v3103 = vrot.slane %v3088, 4
    %v3104 = vsel %vm604, 0.0, %v3103
    %v3105 = vrot.slane %v3096, 4
    %v3106 = vsel %vm604, 0.0, %v3105
    %v3107 = vrot.slane %v3100, 4
    %v3108 = vsel %vm604, 0.0, %v3107
    %v3109 = vrot.slane %v3048, 4
    %v3110 = vsel %vm604, 0.0, %v3109
    %v3112 = vunpack.c.l.s4 1983009808
    %v3113 = vunpack.c.0.s8 %v3112
    %v3114 = vperm.slane %v3048, %v3113
    %v3116 = vunpack.c.l.s4 1983009808
    %v3117 = vunpack.c.0.s8 %v3116
    %v3118 = vperm.slane %v3110, %v3117
    %v3119 = vrot.slane %v3052, 4
    %v3120 = vsel %vm604, 0.0, %v3119
    %v3122 = vunpack.c.l.s4 1983009808
    %v3123 = vunpack.c.0.s8 %v3122
    %v3124 = vperm.slane %v3052, %v3123
    %v3126 = vunpack.c.l.s4 1983009808
    %v3127 = vunpack.c.0.s8 %v3126
    %v3128 = vperm.slane %v3120, %v3127
    %v3129 = vrot.slane %v3124, 4
    %v3130 = vsel %vm604, %v3129, %v3114
    %v3131 = vrot.slane %v3114, 4
    %v3132 = vsel %vm604, %v3124, %v3131
    %v3134 = vunpack.c.l.s4 1934713408
    %v3135 = vunpack.c.0.s8 %v3134
    %v3136 = vperm.slane %v3130, %v3135
    %v3138 = vunpack.c.l.s4 1934713408
    %v3139 = vunpack.c.0.s8 %v3138
    %v3140 = vperm.slane %v3132, %v3139
    %v3141 = vrot.slane %v3128, 4
    %v3142 = vsel %vm604, %v3141, %v3118
    %v3143 = vrot.slane %v3118, 4
    %v3144 = vsel %vm604, %v3128, %v3143
    %v3146 = vunpack.c.l.s4 1934713408
    %v3147 = vunpack.c.0.s8 %v3146
    %v3148 = vperm.slane %v3142, %v3147
    %v3150 = vunpack.c.l.s4 1934713408
    %v3151 = vunpack.c.0.s8 %v3150
    %v3152 = vperm.slane %v3144, %v3151
    %v3153 = vrot.slane %v3136, 4
    %v3154 = vsel %vm604, 0.0, %v3153
    %v3155 = vrot.slane %v3140, 4
    %v3156 = vsel %vm604, 0.0, %v3155
    %v3157 = vrot.slane %v3148, 4
    %v3158 = vsel %vm604, 0.0, %v3157
    %v3159 = vrot.slane %v3152, 4
    %v3160 = vsel %vm604, 0.0, %v3159
    %v3161 = vsel %vm604, %v3103, %v3084
    %v3163 = vunpack.c.l.s4 1983009808
    %v3164 = vunpack.c.0.s8 %v3163
    %v3165 = vperm.slane %v3161, %v3164
    %v3166 = vrot.slane %v3104, 4
    %v3167 = vsel %vm604, %v3166, %v3102
    %v3169 = vunpack.c.l.s4 1983009808
    %v3170 = vunpack.c.0.s8 %v3169
    %v3171 = vperm.slane %v3167, %v3170
    %v3172 = vsel %vm604, %v3107, %v3096
    %v3174 = vunpack.c.l.s4 1983009808
    %v3175 = vunpack.c.0.s8 %v3174
    %v3176 = vperm.slane %v3172, %v3175
    %v3177 = vrot.slane %v3108, 4
    %v3178 = vsel %vm604, %v3177, %v3106
    %v3180 = vunpack.c.l.s4 1983009808
    %v3181 = vunpack.c.0.s8 %v3180
    %v3182 = vperm.slane %v3178, %v3181
    %v3183 = vrot.slane %v3171, 4
    %v3184 = vsel %vm604, %v3183, %v3165
    %v3186 = vunpack.c.l.s4 1934713408
    %v3187 = vunpack.c.0.s8 %v3186
    %v3188 = vperm.slane %v3184, %v3187
    %v3189 = vrot.slane %v3182, 4
    %v3190 = vsel %vm604, %v3189, %v3176
    %v3192 = vunpack.c.l.s4 1934713408
    %v3193 = vunpack.c.0.s8 %v3192
    %v3194 = vperm.slane %v3190, %v3193
    %v3195 = vrot.slane %v3194, 4
    %v3196 = vsel %vm604, %v3195, %v3188
    %v3197 = vrot.slane %v3188, 4
    %v3198 = vsel %vm604, %v3194, %v3197
    %v3199 = vsel %vm604, %v3155, %v3136
    %v3201 = vunpack.c.l.s4 1983009808
    %v3202 = vunpack.c.0.s8 %v3201
    %v3203 = vperm.slane %v3199, %v3202
    %v3204 = vrot.slane %v3156, 4
    %v3205 = vsel %vm604, %v3204, %v3154
    %v3207 = vunpack.c.l.s4 1983009808
    %v3208 = vunpack.c.0.s8 %v3207
    %v3209 = vperm.slane %v3205, %v3208
    %v3210 = vsel %vm604, %v3159, %v3148
    %v3212 = vunpack.c.l.s4 1983009808
    %v3213 = vunpack.c.0.s8 %v3212
    %v3214 = vperm.slane %v3210, %v3213
    %v3215 = vrot.slane %v3160, 4
    %v3216 = vsel %vm604, %v3215, %v3158
    %v3218 = vunpack.c.l.s4 1983009808
    %v3219 = vunpack.c.0.s8 %v3218
    %v3220 = vperm.slane %v3216, %v3219
    %v3221 = vrot.slane %v3209, 4
    %v3222 = vsel %vm604, %v3221, %v3203
    %v3224 = vunpack.c.l.s4 1934713408
    %v3225 = vunpack.c.0.s8 %v3224
    %v3226 = vperm.slane %v3222, %v3225
    %v3227 = vrot.slane %v3220, 4
    %v3228 = vsel %vm604, %v3227, %v3214
    %v3230 = vunpack.c.l.s4 1934713408
    %v3231 = vunpack.c.0.s8 %v3230
    %v3232 = vperm.slane %v3228, %v3231
    %v3233 = vrot.slane %v3232, 4
    %v3234 = vsel %vm604, %v3233, %v3226
    %v3235 = vrot.slane %v3226, 4
    %v3236 = vsel %vm604, %v3232, %v3235
    %v3238 = vsel %vm1168, %v2816, 0
    %v3241 = vsel %vm1168, %v3004, 0
    %3243 = vmatpush.xpose.msra.mxu0 0.0
    %3244 = vmatpush.xpose.msra.mxu0 0.0
    %3245 = vmatpush.xpose.msra.mxu0 0.0
    %3246 = vmatpush.xpose.msra.mxu0 0.0
    %3247 = vmatpush.xpose.msra.mxu0 0.0
    %3248 = vmatpush.xpose.msra.mxu0 0.0
    %3249 = vmatpush.xpose.msra.mxu0 0.0
    %3250 = vmatpush.xpose.msra.mxu0 0.0
    %3251 = vmatpush.xpose.msra.mxu0 0.0
    %3252 = vmatpush.xpose.msra.mxu0 0.0
    %3253 = vmatpush.xpose.msra.mxu0 0.0
    %3254 = vmatpush.xpose.msra.mxu0 0.0
    %3255 = vmatpush.xpose.msra.mxu0 0.0
    %3256 = vmatpush.xpose.msra.mxu0 0.0
    %3257 = vmatpush.xpose.msra.mxu0 0.0
    %v3258 = vand.u32 %v3241, 4294901760
    %3259 = vmatpush.xpose.msra.mxu0 %v3258
    %v3260 = vand.u32 %v3238, 4294901760
    %v3261 = vsub.f32 %v3238, %v3260
    %v3262 = vand.u32 %v3261, 4294901760
    %v3263 = vsub.f32 %v3261, %v3262
    %v3264 = vand.u32 %v3263, 4294901760
    %3265 = vmatmul.f32.gmra.mxu0 %v3264
    %v3266 = vpop.f32.mrf.mxu0
    %v3267 = vadd.f32 0.0, %v3266
    %3268 = vdwg.mxu0
    %3269 = vmatpush.xpose.msra.mxu0 0.0
    %3270 = vmatpush.xpose.msra.mxu0 0.0
    %3271 = vmatpush.xpose.msra.mxu0 0.0
    %3272 = vmatpush.xpose.msra.mxu0 0.0
    %3273 = vmatpush.xpose.msra.mxu0 0.0
    %3274 = vmatpush.xpose.msra.mxu0 0.0
    %3275 = vmatpush.xpose.msra.mxu0 0.0
    %3276 = vmatpush.xpose.msra.mxu0 0.0
    %3277 = vmatpush.xpose.msra.mxu0 0.0
    %3278 = vmatpush.xpose.msra.mxu0 0.0
    %3279 = vmatpush.xpose.msra.mxu0 0.0
    %3280 = vmatpush.xpose.msra.mxu0 0.0
    %3281 = vmatpush.xpose.msra.mxu0 0.0
    %3282 = vmatpush.xpose.msra.mxu0 0.0
    %3283 = vmatpush.xpose.msra.mxu0 0.0
    %v3284 = vand.u32 %v3241, 4294901760
    %v3285 = vsub.f32 %v3241, %v3284
    %v3286 = vand.u32 %v3285, 4294901760
    %v3287 = vsub.f32 %v3285, %v3286
    %v3288 = vand.u32 %v3287, 4294901760
    %3289 = vmatpush.xpose.msra.mxu0 %v3288
    %v3290 = vand.u32 %v3238, 4294901760
    %3291 = vmatmul.f32.gmra.mxu0 %v3290
    %v3292 = vpop.f32.mrf.mxu0
    %v3293 = vadd.f32 %v3267, %v3292
    %3294 = vdwg.mxu0
    %3295 = vmatpush.xpose.msra.mxu0 0.0
    %3296 = vmatpush.xpose.msra.mxu0 0.0
    %3297 = vmatpush.xpose.msra.mxu0 0.0
    %3298 = vmatpush.xpose.msra.mxu0 0.0
    %3299 = vmatpush.xpose.msra.mxu0 0.0
    %3300 = vmatpush.xpose.msra.mxu0 0.0
    %3301 = vmatpush.xpose.msra.mxu0 0.0
    %3302 = vmatpush.xpose.msra.mxu0 0.0
    %3303 = vmatpush.xpose.msra.mxu0 0.0
    %3304 = vmatpush.xpose.msra.mxu0 0.0
    %3305 = vmatpush.xpose.msra.mxu0 0.0
    %3306 = vmatpush.xpose.msra.mxu0 0.0
    %3307 = vmatpush.xpose.msra.mxu0 0.0
    %3308 = vmatpush.xpose.msra.mxu0 0.0
    %3309 = vmatpush.xpose.msra.mxu0 0.0
    %v3310 = vand.u32 %v3241, 4294901760
    %v3311 = vsub.f32 %v3241, %v3310
    %3312 = vmatpush.xpose.msra.mxu0 %v3311
    %v3313 = vand.u32 %v3238, 4294901760
    %v3314 = vsub.f32 %v3238, %v3313
    %3315 = vmatmul.f32.gmra.mxu0 %v3314
    %v3316 = vpop.f32.mrf.mxu0
    %v3317 = vadd.f32 %v3293, %v3316
    %3318 = vdwg.mxu0
    %3319 = vmatpush.xpose.msra.mxu0 0.0
    %3320 = vmatpush.xpose.msra.mxu0 0.0
    %3321 = vmatpush.xpose.msra.mxu0 0.0
    %3322 = vmatpush.xpose.msra.mxu0 0.0
    %3323 = vmatpush.xpose.msra.mxu0 0.0
    %3324 = vmatpush.xpose.msra.mxu0 0.0
    %3325 = vmatpush.xpose.msra.mxu0 0.0
    %3326 = vmatpush.xpose.msra.mxu0 0.0
    %3327 = vmatpush.xpose.msra.mxu0 0.0
    %3328 = vmatpush.xpose.msra.mxu0 0.0
    %3329 = vmatpush.xpose.msra.mxu0 0.0
    %3330 = vmatpush.xpose.msra.mxu0 0.0
    %3331 = vmatpush.xpose.msra.mxu0 0.0
    %3332 = vmatpush.xpose.msra.mxu0 0.0
    %3333 = vmatpush.xpose.msra.mxu0 0.0
    %v3334 = vand.u32 %v3241, 4294901760
    %3335 = vmatpush.xpose.msra.mxu0 %v3334
    %v3336 = vand.u32 %v3238, 4294901760
    %v3337 = vsub.f32 %v3238, %v3336
    %v3338 = vand.u32 %v3337, 4294901760
    %3339 = vmatmul.f32.gmra.mxu0 %v3338
    %v3340 = vpop.f32.mrf.mxu0
    %v3341 = vadd.f32 %v3317, %v3340
    %3342 = vdwg.mxu0
    %3343 = vmatpush.xpose.msra.mxu0 0.0
    %3344 = vmatpush.xpose.msra.mxu0 0.0
    %3345 = vmatpush.xpose.msra.mxu0 0.0
    %3346 = vmatpush.xpose.msra.mxu0 0.0
    %3347 = vmatpush.xpose.msra.mxu0 0.0
    %3348 = vmatpush.xpose.msra.mxu0 0.0
    %3349 = vmatpush.xpose.msra.mxu0 0.0
    %3350 = vmatpush.xpose.msra.mxu0 0.0
    %3351 = vmatpush.xpose.msra.mxu0 0.0
    %3352 = vmatpush.xpose.msra.mxu0 0.0
    %3353 = vmatpush.xpose.msra.mxu0 0.0
    %3354 = vmatpush.xpose.msra.mxu0 0.0
    %3355 = vmatpush.xpose.msra.mxu0 0.0
    %3356 = vmatpush.xpose.msra.mxu0 0.0
    %3357 = vmatpush.xpose.msra.mxu0 0.0
    %v3358 = vand.u32 %v3241, 4294901760
    %v3359 = vsub.f32 %v3241, %v3358
    %v3360 = vand.u32 %v3359, 4294901760
    %3361 = vmatpush.xpose.msra.mxu0 %v3360
    %v3362 = vand.u32 %v3238, 4294901760
    %3363 = vmatmul.f32.gmra.mxu0 %v3362
    %v3364 = vpop.f32.mrf.mxu0
    %v3365 = vadd.f32 %v3341, %v3364
    %3366 = vdwg.mxu0
    %3367 = vmatpush.xpose.msra.mxu0 0.0
    %3368 = vmatpush.xpose.msra.mxu0 0.0
    %3369 = vmatpush.xpose.msra.mxu0 0.0
    %3370 = vmatpush.xpose.msra.mxu0 0.0
    %3371 = vmatpush.xpose.msra.mxu0 0.0
    %3372 = vmatpush.xpose.msra.mxu0 0.0
    %3373 = vmatpush.xpose.msra.mxu0 0.0
    %3374 = vmatpush.xpose.msra.mxu0 0.0
    %3375 = vmatpush.xpose.msra.mxu0 0.0
    %3376 = vmatpush.xpose.msra.mxu0 0.0
    %3377 = vmatpush.xpose.msra.mxu0 0.0
    %3378 = vmatpush.xpose.msra.mxu0 0.0
    %3379 = vmatpush.xpose.msra.mxu0 0.0
    %3380 = vmatpush.xpose.msra.mxu0 0.0
    %3381 = vmatpush.xpose.msra.mxu0 0.0
    %v3382 = vand.u32 %v3241, 4294901760
    %3383 = vmatpush.xpose.msra.mxu0 %v3382
    %v3384 = vand.u32 %v3238, 4294901760
    %3385 = vmatmul.f32.gmra.mxu0 %v3384
    %v3386 = vpop.f32.mrf.mxu0
    %v3387 = vadd.f32 %v3365, %v3386
    %3388 = vdwg.mxu0
    %v3390 = vsel %vm1168, %v2818, 0
    %v3393 = vsel %vm1168, %v3006, 0
    %3395 = vmatpush.xpose.msra.mxu0 0.0
    %3396 = vmatpush.xpose.msra.mxu0 0.0
    %3397 = vmatpush.xpose.msra.mxu0 0.0
    %3398 = vmatpush.xpose.msra.mxu0 0.0
    %3399 = vmatpush.xpose.msra.mxu0 0.0
    %3400 = vmatpush.xpose.msra.mxu0 0.0
    %3401 = vmatpush.xpose.msra.mxu0 0.0
    %3402 = vmatpush.xpose.msra.mxu0 0.0
    %3403 = vmatpush.xpose.msra.mxu0 0.0
    %3404 = vmatpush.xpose.msra.mxu0 0.0
    %3405 = vmatpush.xpose.msra.mxu0 0.0
    %3406 = vmatpush.xpose.msra.mxu0 0.0
    %3407 = vmatpush.xpose.msra.mxu0 0.0
    %3408 = vmatpush.xpose.msra.mxu0 0.0
    %3409 = vmatpush.xpose.msra.mxu0 0.0
    %v3410 = vand.u32 %v3393, 4294901760
    %3411 = vmatpush.xpose.msra.mxu0 %v3410
    %v3412 = vand.u32 %v3390, 4294901760
    %v3413 = vsub.f32 %v3390, %v3412
    %v3414 = vand.u32 %v3413, 4294901760
    %v3415 = vsub.f32 %v3413, %v3414
    %v3416 = vand.u32 %v3415, 4294901760
    %3417 = vmatmul.f32.gmra.mxu0 %v3416
    %v3418 = vpop.f32.mrf.mxu0
    %v3419 = vadd.f32 0.0, %v3418
    %3420 = vdwg.mxu0
    %3421 = vmatpush.xpose.msra.mxu0 0.0
    %3422 = vmatpush.xpose.msra.mxu0 0.0
    %3423 = vmatpush.xpose.msra.mxu0 0.0
    %3424 = vmatpush.xpose.msra.mxu0 0.0
    %3425 = vmatpush.xpose.msra.mxu0 0.0
    %3426 = vmatpush.xpose.msra.mxu0 0.0
    %3427 = vmatpush.xpose.msra.mxu0 0.0
    %3428 = vmatpush.xpose.msra.mxu0 0.0
    %3429 = vmatpush.xpose.msra.mxu0 0.0
    %3430 = vmatpush.xpose.msra.mxu0 0.0
    %3431 = vmatpush.xpose.msra.mxu0 0.0
    %3432 = vmatpush.xpose.msra.mxu0 0.0
    %3433 = vmatpush.xpose.msra.mxu0 0.0
    %3434 = vmatpush.xpose.msra.mxu0 0.0
    %3435 = vmatpush.xpose.msra.mxu0 0.0
    %v3436 = vand.u32 %v3393, 4294901760
    %v3437 = vsub.f32 %v3393, %v3436
    %v3438 = vand.u32 %v3437, 4294901760
    %v3439 = vsub.f32 %v3437, %v3438
    %v3440 = vand.u32 %v3439, 4294901760
    %3441 = vmatpush.xpose.msra.mxu0 %v3440
    %v3442 = vand.u32 %v3390, 4294901760
    %3443 = vmatmul.f32.gmra.mxu0 %v3442
    %v3444 = vpop.f32.mrf.mxu0
    %v3445 = vadd.f32 %v3419, %v3444
    %3446 = vdwg.mxu0
    %3447 = vmatpush.xpose.msra.mxu0 0.0
    %3448 = vmatpush.xpose.msra.mxu0 0.0
    %3449 = vmatpush.xpose.msra.mxu0 0.0
    %3450 = vmatpush.xpose.msra.mxu0 0.0
    %3451 = vmatpush.xpose.msra.mxu0 0.0
    %3452 = vmatpush.xpose.msra.mxu0 0.0
    %3453 = vmatpush.xpose.msra.mxu0 0.0
    %3454 = vmatpush.xpose.msra.mxu0 0.0
    %3455 = vmatpush.xpose.msra.mxu0 0.0
    %3456 = vmatpush.xpose.msra.mxu0 0.0
    %3457 = vmatpush.xpose.msra.mxu0 0.0
    %3458 = vmatpush.xpose.msra.mxu0 0.0
    %3459 = vmatpush.xpose.msra.mxu0 0.0
    %3460 = vmatpush.xpose.msra.mxu0 0.0
    %3461 = vmatpush.xpose.msra.mxu0 0.0
    %v3462 = vand.u32 %v3393, 4294901760
    %v3463 = vsub.f32 %v3393, %v3462
    %3464 = vmatpush.xpose.msra.mxu0 %v3463
    %v3465 = vand.u32 %v3390, 4294901760
    %v3466 = vsub.f32 %v3390, %v3465
    %3467 = vmatmul.f32.gmra.mxu0 %v3466
    %v3468 = vpop.f32.mrf.mxu0
    %v3469 = vadd.f32 %v3445, %v3468
    %3470 = vdwg.mxu0
    %3471 = vmatpush.xpose.msra.mxu0 0.0
    %3472 = vmatpush.xpose.msra.mxu0 0.0
    %3473 = vmatpush.xpose.msra.mxu0 0.0
    %3474 = vmatpush.xpose.msra.mxu0 0.0
    %3475 = vmatpush.xpose.msra.mxu0 0.0
    %3476 = vmatpush.xpose.msra.mxu0 0.0
    %3477 = vmatpush.xpose.msra.mxu0 0.0
    %3478 = vmatpush.xpose.msra.mxu0 0.0
    %3479 = vmatpush.xpose.msra.mxu0 0.0
    %3480 = vmatpush.xpose.msra.mxu0 0.0
    %3481 = vmatpush.xpose.msra.mxu0 0.0
    %3482 = vmatpush.xpose.msra.mxu0 0.0
    %3483 = vmatpush.xpose.msra.mxu0 0.0
    %3484 = vmatpush.xpose.msra.mxu0 0.0
    %3485 = vmatpush.xpose.msra.mxu0 0.0
    %v3486 = vand.u32 %v3393, 4294901760
    %3487 = vmatpush.xpose.msra.mxu0 %v3486
    %v3488 = vand.u32 %v3390, 4294901760
    %v3489 = vsub.f32 %v3390, %v3488
    %v3490 = vand.u32 %v3489, 4294901760
    %3491 = vmatmul.f32.gmra.mxu0 %v3490
    %v3492 = vpop.f32.mrf.mxu0
    %v3493 = vadd.f32 %v3469, %v3492
    %3494 = vdwg.mxu0
    %3495 = vmatpush.xpose.msra.mxu0 0.0
    %3496 = vmatpush.xpose.msra.mxu0 0.0
    %3497 = vmatpush.xpose.msra.mxu0 0.0
    %3498 = vmatpush.xpose.msra.mxu0 0.0
    %3499 = vmatpush.xpose.msra.mxu0 0.0
    %3500 = vmatpush.xpose.msra.mxu0 0.0
    %3501 = vmatpush.xpose.msra.mxu0 0.0
    %3502 = vmatpush.xpose.msra.mxu0 0.0
    %3503 = vmatpush.xpose.msra.mxu0 0.0
    %3504 = vmatpush.xpose.msra.mxu0 0.0
    %3505 = vmatpush.xpose.msra.mxu0 0.0
    %3506 = vmatpush.xpose.msra.mxu0 0.0
    %3507 = vmatpush.xpose.msra.mxu0 0.0
    %3508 = vmatpush.xpose.msra.mxu0 0.0
    %3509 = vmatpush.xpose.msra.mxu0 0.0
    %v3510 = vand.u32 %v3393, 4294901760
    %v3511 = vsub.f32 %v3393, %v3510
    %v3512 = vand.u32 %v3511, 4294901760
    %3513 = vmatpush.xpose.msra.mxu0 %v3512
    %v3514 = vand.u32 %v3390, 4294901760
    %3515 = vmatmul.f32.gmra.mxu0 %v3514
    %v3516 = vpop.f32.mrf.mxu0
    %v3517 = vadd.f32 %v3493, %v3516
    %3518 = vdwg.mxu0
    %3519 = vmatpush.xpose.msra.mxu0 0.0
    %3520 = vmatpush.xpose.msra.mxu0 0.0
    %3521 = vmatpush.xpose.msra.mxu0 0.0
    %3522 = vmatpush.xpose.msra.mxu0 0.0
    %3523 = vmatpush.xpose.msra.mxu0 0.0
    %3524 = vmatpush.xpose.msra.mxu0 0.0
    %3525 = vmatpush.xpose.msra.mxu0 0.0
    %3526 = vmatpush.xpose.msra.mxu0 0.0
    %3527 = vmatpush.xpose.msra.mxu0 0.0
    %3528 = vmatpush.xpose.msra.mxu0 0.0
    %3529 = vmatpush.xpose.msra.mxu0 0.0
    %3530 = vmatpush.xpose.msra.mxu0 0.0
    %3531 = vmatpush.xpose.msra.mxu0 0.0
    %3532 = vmatpush.xpose.msra.mxu0 0.0
    %3533 = vmatpush.xpose.msra.mxu0 0.0
    %v3534 = vand.u32 %v3393, 4294901760
    %3535 = vmatpush.xpose.msra.mxu0 %v3534
    %v3536 = vand.u32 %v3390, 4294901760
    %3537 = vmatmul.f32.gmra.mxu0 %v3536
    %v3538 = vpop.f32.mrf.mxu0
    %v3539 = vadd.f32 %v3517, %v3538
    %3540 = vdwg.mxu0
    %v3542 = vsel %vm1168, %v2854, 0
    %v3545 = vsel %vm1168, %v3042, 0
    %3547 = vmatpush.xpose.msra.mxu0 0.0
    %3548 = vmatpush.xpose.msra.mxu0 0.0
    %3549 = vmatpush.xpose.msra.mxu0 0.0
    %3550 = vmatpush.xpose.msra.mxu0 0.0
    %3551 = vmatpush.xpose.msra.mxu0 0.0
    %3552 = vmatpush.xpose.msra.mxu0 0.0
    %3553 = vmatpush.xpose.msra.mxu0 0.0
    %3554 = vmatpush.xpose.msra.mxu0 0.0
    %3555 = vmatpush.xpose.msra.mxu0 0.0
    %3556 = vmatpush.xpose.msra.mxu0 0.0
    %3557 = vmatpush.xpose.msra.mxu0 0.0
    %3558 = vmatpush.xpose.msra.mxu0 0.0
    %3559 = vmatpush.xpose.msra.mxu0 0.0
    %3560 = vmatpush.xpose.msra.mxu0 0.0
    %3561 = vmatpush.xpose.msra.mxu0 0.0
    %v3562 = vand.u32 %v3545, 4294901760
    %3563 = vmatpush.xpose.msra.mxu0 %v3562
    %v3564 = vand.u32 %v3542, 4294901760
    %v3565 = vsub.f32 %v3542, %v3564
    %v3566 = vand.u32 %v3565, 4294901760
    %v3567 = vsub.f32 %v3565, %v3566
    %v3568 = vand.u32 %v3567, 4294901760
    %3569 = vmatmul.f32.gmra.mxu0 %v3568
    %v3570 = vpop.f32.mrf.mxu0
    %v3571 = vadd.f32 0.0, %v3570
    %3572 = vdwg.mxu0
    %3573 = vmatpush.xpose.msra.mxu0 0.0
    %3574 = vmatpush.xpose.msra.mxu0 0.0
    %3575 = vmatpush.xpose.msra.mxu0 0.0
    %3576 = vmatpush.xpose.msra.mxu0 0.0
    %3577 = vmatpush.xpose.msra.mxu0 0.0
    %3578 = vmatpush.xpose.msra.mxu0 0.0
    %3579 = vmatpush.xpose.msra.mxu0 0.0
    %3580 = vmatpush.xpose.msra.mxu0 0.0
    %3581 = vmatpush.xpose.msra.mxu0 0.0
    %3582 = vmatpush.xpose.msra.mxu0 0.0
    %3583 = vmatpush.xpose.msra.mxu0 0.0
    %3584 = vmatpush.xpose.msra.mxu0 0.0
    %3585 = vmatpush.xpose.msra.mxu0 0.0
    %3586 = vmatpush.xpose.msra.mxu0 0.0
    %3587 = vmatpush.xpose.msra.mxu0 0.0
    %v3588 = vand.u32 %v3545, 4294901760
    %v3589 = vsub.f32 %v3545, %v3588
    %v3590 = vand.u32 %v3589, 4294901760
    %v3591 = vsub.f32 %v3589, %v3590
    %v3592 = vand.u32 %v3591, 4294901760
    %3593 = vmatpush.xpose.msra.mxu0 %v3592
    %v3594 = vand.u32 %v3542, 4294901760
    %3595 = vmatmul.f32.gmra.mxu0 %v3594
    %v3596 = vpop.f32.mrf.mxu0
    %v3597 = vadd.f32 %v3571, %v3596
    %3598 = vdwg.mxu0
    %3599 = vmatpush.xpose.msra.mxu0 0.0
    %3600 = vmatpush.xpose.msra.mxu0 0.0
    %3601 = vmatpush.xpose.msra.mxu0 0.0
    %3602 = vmatpush.xpose.msra.mxu0 0.0
    %3603 = vmatpush.xpose.msra.mxu0 0.0
    %3604 = vmatpush.xpose.msra.mxu0 0.0
    %3605 = vmatpush.xpose.msra.mxu0 0.0
    %3606 = vmatpush.xpose.msra.mxu0 0.0
    %3607 = vmatpush.xpose.msra.mxu0 0.0
    %3608 = vmatpush.xpose.msra.mxu0 0.0
    %3609 = vmatpush.xpose.msra.mxu0 0.0
    %3610 = vmatpush.xpose.msra.mxu0 0.0
    %3611 = vmatpush.xpose.msra.mxu0 0.0
    %3612 = vmatpush.xpose.msra.mxu0 0.0
    %3613 = vmatpush.xpose.msra.mxu0 0.0
    %v3614 = vand.u32 %v3545, 4294901760
    %v3615 = vsub.f32 %v3545, %v3614
    %3616 = vmatpush.xpose.msra.mxu0 %v3615
    %v3617 = vand.u32 %v3542, 4294901760
    %v3618 = vsub.f32 %v3542, %v3617
    %3619 = vmatmul.f32.gmra.mxu0 %v3618
    %v3620 = vpop.f32.mrf.mxu0
    %v3621 = vadd.f32 %v3597, %v3620
    %3622 = vdwg.mxu0
    %3623 = vmatpush.xpose.msra.mxu0 0.0
    %3624 = vmatpush.xpose.msra.mxu0 0.0
    %3625 = vmatpush.xpose.msra.mxu0 0.0
    %3626 = vmatpush.xpose.msra.mxu0 0.0
    %3627 = vmatpush.xpose.msra.mxu0 0.0
    %3628 = vmatpush.xpose.msra.mxu0 0.0
    %3629 = vmatpush.xpose.msra.mxu0 0.0
    %3630 = vmatpush.xpose.msra.mxu0 0.0
    %3631 = vmatpush.xpose.msra.mxu0 0.0
    %3632 = vmatpush.xpose.msra.mxu0 0.0
    %3633 = vmatpush.xpose.msra.mxu0 0.0
    %3634 = vmatpush.xpose.msra.mxu0 0.0
    %3635 = vmatpush.xpose.msra.mxu0 0.0
    %3636 = vmatpush.xpose.msra.mxu0 0.0
    %3637 = vmatpush.xpose.msra.mxu0 0.0
    %v3638 = vand.u32 %v3545, 4294901760
    %3639 = vmatpush.xpose.msra.mxu0 %v3638
    %v3640 = vand.u32 %v3542, 4294901760
    %v3641 = vsub.f32 %v3542, %v3640
    %v3642 = vand.u32 %v3641, 4294901760
    %3643 = vmatmul.f32.gmra.mxu0 %v3642
    %v3644 = vpop.f32.mrf.mxu0
    %v3645 = vadd.f32 %v3621, %v3644
    %3646 = vdwg.mxu0
    %3647 = vmatpush.xpose.msra.mxu0 0.0
    %3648 = vmatpush.xpose.msra.mxu0 0.0
    %3649 = vmatpush.xpose.msra.mxu0 0.0
    %3650 = vmatpush.xpose.msra.mxu0 0.0
    %3651 = vmatpush.xpose.msra.mxu0 0.0
    %3652 = vmatpush.xpose.msra.mxu0 0.0
    %3653 = vmatpush.xpose.msra.mxu0 0.0
    %3654 = vmatpush.xpose.msra.mxu0 0.0
    %3655 = vmatpush.xpose.msra.mxu0 0.0
    %3656 = vmatpush.xpose.msra.mxu0 0.0
    %3657 = vmatpush.xpose.msra.mxu0 0.0
    %3658 = vmatpush.xpose.msra.mxu0 0.0
    %3659 = vmatpush.xpose.msra.mxu0 0.0
    %3660 = vmatpush.xpose.msra.mxu0 0.0
    %3661 = vmatpush.xpose.msra.mxu0 0.0
    %v3662 = vand.u32 %v3545, 4294901760
    %v3663 = vsub.f32 %v3545, %v3662
    %v3664 = vand.u32 %v3663, 4294901760
    %3665 = vmatpush.xpose.msra.mxu0 %v3664
    %v3666 = vand.u32 %v3542, 4294901760
    %3667 = vmatmul.f32.gmra.mxu0 %v3666
    %v3668 = vpop.f32.mrf.mxu0
    %v3669 = vadd.f32 %v3645, %v3668
    %3670 = vdwg.mxu0
    %3671 = vmatpush.xpose.msra.mxu0 0.0
    %3672 = vmatpush.xpose.msra.mxu0 0.0
    %3673 = vmatpush.xpose.msra.mxu0 0.0
    %3674 = vmatpush.xpose.msra.mxu0 0.0
    %3675 = vmatpush.xpose.msra.mxu0 0.0
    %3676 = vmatpush.xpose.msra.mxu0 0.0
    %3677 = vmatpush.xpose.msra.mxu0 0.0
    %3678 = vmatpush.xpose.msra.mxu0 0.0
    %3679 = vmatpush.xpose.msra.mxu0 0.0
    %3680 = vmatpush.xpose.msra.mxu0 0.0
    %3681 = vmatpush.xpose.msra.mxu0 0.0
    %3682 = vmatpush.xpose.msra.mxu0 0.0
    %3683 = vmatpush.xpose.msra.mxu0 0.0
    %3684 = vmatpush.xpose.msra.mxu0 0.0
    %3685 = vmatpush.xpose.msra.mxu0 0.0
    %v3686 = vand.u32 %v3545, 4294901760
    %3687 = vmatpush.xpose.msra.mxu0 %v3686
    %v3688 = vand.u32 %v3542, 4294901760
    %3689 = vmatmul.f32.gmra.mxu0 %v3688
    %v3690 = vpop.f32.mrf.mxu0
    %v3691 = vadd.f32 %v3669, %v3690
    %3692 = vdwg.mxu0
    %v3694 = vsel %vm1168, %v2856, 0
    %v3697 = vsel %vm1168, %v3044, 0
    %3699 = vmatpush.xpose.msra.mxu0 0.0
    %3700 = vmatpush.xpose.msra.mxu0 0.0
    %3701 = vmatpush.xpose.msra.mxu0 0.0
    %3702 = vmatpush.xpose.msra.mxu0 0.0
    %3703 = vmatpush.xpose.msra.mxu0 0.0
    %3704 = vmatpush.xpose.msra.mxu0 0.0
    %3705 = vmatpush.xpose.msra.mxu0 0.0
    %3706 = vmatpush.xpose.msra.mxu0 0.0
    %3707 = vmatpush.xpose.msra.mxu0 0.0
    %3708 = vmatpush.xpose.msra.mxu0 0.0
    %3709 = vmatpush.xpose.msra.mxu0 0.0
    %3710 = vmatpush.xpose.msra.mxu0 0.0
    %3711 = vmatpush.xpose.msra.mxu0 0.0
    %3712 = vmatpush.xpose.msra.mxu0 0.0
    %3713 = vmatpush.xpose.msra.mxu0 0.0
    %v3714 = vand.u32 %v3697, 4294901760
    %3715 = vmatpush.xpose.msra.mxu0 %v3714
    %v3716 = vand.u32 %v3694, 4294901760
    %v3717 = vsub.f32 %v3694, %v3716
    %v3718 = vand.u32 %v3717, 4294901760
    %v3719 = vsub.f32 %v3717, %v3718
    %v3720 = vand.u32 %v3719, 4294901760
    %3721 = vmatmul.f32.gmra.mxu0 %v3720
    %v3722 = vpop.f32.mrf.mxu0
    %v3723 = vadd.f32 0.0, %v3722
    %3724 = vdwg.mxu0
    %3725 = vmatpush.xpose.msra.mxu0 0.0
    %3726 = vmatpush.xpose.msra.mxu0 0.0
    %3727 = vmatpush.xpose.msra.mxu0 0.0
    %3728 = vmatpush.xpose.msra.mxu0 0.0
    %3729 = vmatpush.xpose.msra.mxu0 0.0
    %3730 = vmatpush.xpose.msra.mxu0 0.0
    %3731 = vmatpush.xpose.msra.mxu0 0.0
    %3732 = vmatpush.xpose.msra.mxu0 0.0
    %3733 = vmatpush.xpose.msra.mxu0 0.0
    %3734 = vmatpush.xpose.msra.mxu0 0.0
    %3735 = vmatpush.xpose.msra.mxu0 0.0
    %3736 = vmatpush.xpose.msra.mxu0 0.0
    %3737 = vmatpush.xpose.msra.mxu0 0.0
    %3738 = vmatpush.xpose.msra.mxu0 0.0
    %3739 = vmatpush.xpose.msra.mxu0 0.0
    %v3740 = vand.u32 %v3697, 4294901760
    %v3741 = vsub.f32 %v3697, %v3740
    %v3742 = vand.u32 %v3741, 4294901760
    %v3743 = vsub.f32 %v3741, %v3742
    %v3744 = vand.u32 %v3743, 4294901760
    %3745 = vmatpush.xpose.msra.mxu0 %v3744
    %v3746 = vand.u32 %v3694, 4294901760
    %3747 = vmatmul.f32.gmra.mxu0 %v3746
    %v3748 = vpop.f32.mrf.mxu0
    %v3749 = vadd.f32 %v3723, %v3748
    %3750 = vdwg.mxu0
    %3751 = vmatpush.xpose.msra.mxu0 0.0
    %3752 = vmatpush.xpose.msra.mxu0 0.0
    %3753 = vmatpush.xpose.msra.mxu0 0.0
    %3754 = vmatpush.xpose.msra.mxu0 0.0
    %3755 = vmatpush.xpose.msra.mxu0 0.0
    %3756 = vmatpush.xpose.msra.mxu0 0.0
    %3757 = vmatpush.xpose.msra.mxu0 0.0
    %3758 = vmatpush.xpose.msra.mxu0 0.0
    %3759 = vmatpush.xpose.msra.mxu0 0.0
    %3760 = vmatpush.xpose.msra.mxu0 0.0
    %3761 = vmatpush.xpose.msra.mxu0 0.0
    %3762 = vmatpush.xpose.msra.mxu0 0.0
    %3763 = vmatpush.xpose.msra.mxu0 0.0
    %3764 = vmatpush.xpose.msra.mxu0 0.0
    %3765 = vmatpush.xpose.msra.mxu0 0.0
    %v3766 = vand.u32 %v3697, 4294901760
    %v3767 = vsub.f32 %v3697, %v3766
    %3768 = vmatpush.xpose.msra.mxu0 %v3767
    %v3769 = vand.u32 %v3694, 4294901760
    %v3770 = vsub.f32 %v3694, %v3769
    %3771 = vmatmul.f32.gmra.mxu0 %v3770
    %v3772 = vpop.f32.mrf.mxu0
    %v3773 = vadd.f32 %v3749, %v3772
    %3774 = vdwg.mxu0
    %3775 = vmatpush.xpose.msra.mxu0 0.0
    %3776 = vmatpush.xpose.msra.mxu0 0.0
    %3777 = vmatpush.xpose.msra.mxu0 0.0
    %3778 = vmatpush.xpose.msra.mxu0 0.0
    %3779 = vmatpush.xpose.msra.mxu0 0.0
    %3780 = vmatpush.xpose.msra.mxu0 0.0
    %3781 = vmatpush.xpose.msra.mxu0 0.0
    %3782 = vmatpush.xpose.msra.mxu0 0.0
    %3783 = vmatpush.xpose.msra.mxu0 0.0
    %3784 = vmatpush.xpose.msra.mxu0 0.0
    %3785 = vmatpush.xpose.msra.mxu0 0.0
    %3786 = vmatpush.xpose.msra.mxu0 0.0
    %3787 = vmatpush.xpose.msra.mxu0 0.0
    %3788 = vmatpush.xpose.msra.mxu0 0.0
    %3789 = vmatpush.xpose.msra.mxu0 0.0
    %v3790 = vand.u32 %v3697, 4294901760
    %3791 = vmatpush.xpose.msra.mxu0 %v3790
    %v3792 = vand.u32 %v3694, 4294901760
    %v3793 = vsub.f32 %v3694, %v3792
    %v3794 = vand.u32 %v3793, 4294901760
    %3795 = vmatmul.f32.gmra.mxu0 %v3794
    %v3796 = vpop.f32.mrf.mxu0
    %v3797 = vadd.f32 %v3773, %v3796
    %3798 = vdwg.mxu0
    %3799 = vmatpush.xpose.msra.mxu0 0.0
    %3800 = vmatpush.xpose.msra.mxu0 0.0
    %3801 = vmatpush.xpose.msra.mxu0 0.0
    %3802 = vmatpush.xpose.msra.mxu0 0.0
    %3803 = vmatpush.xpose.msra.mxu0 0.0
    %3804 = vmatpush.xpose.msra.mxu0 0.0
    %3805 = vmatpush.xpose.msra.mxu0 0.0
    %3806 = vmatpush.xpose.msra.mxu0 0.0
    %3807 = vmatpush.xpose.msra.mxu0 0.0
    %3808 = vmatpush.xpose.msra.mxu0 0.0
    %3809 = vmatpush.xpose.msra.mxu0 0.0
    %3810 = vmatpush.xpose.msra.mxu0 0.0
    %3811 = vmatpush.xpose.msra.mxu0 0.0
    %3812 = vmatpush.xpose.msra.mxu0 0.0
    %3813 = vmatpush.xpose.msra.mxu0 0.0
    %v3814 = vand.u32 %v3697, 4294901760
    %v3815 = vsub.f32 %v3697, %v3814
    %v3816 = vand.u32 %v3815, 4294901760
    %3817 = vmatpush.xpose.msra.mxu0 %v3816
    %v3818 = vand.u32 %v3694, 4294901760
    %3819 = vmatmul.f32.gmra.mxu0 %v3818
    %v3820 = vpop.f32.mrf.mxu0
    %v3821 = vadd.f32 %v3797, %v3820
    %3822 = vdwg.mxu0
    %3823 = vmatpush.xpose.msra.mxu0 0.0
    %3824 = vmatpush.xpose.msra.mxu0 0.0
    %3825 = vmatpush.xpose.msra.mxu0 0.0
    %3826 = vmatpush.xpose.msra.mxu0 0.0
    %3827 = vmatpush.xpose.msra.mxu0 0.0
    %3828 = vmatpush.xpose.msra.mxu0 0.0
    %3829 = vmatpush.xpose.msra.mxu0 0.0
    %3830 = vmatpush.xpose.msra.mxu0 0.0
    %3831 = vmatpush.xpose.msra.mxu0 0.0
    %3832 = vmatpush.xpose.msra.mxu0 0.0
    %3833 = vmatpush.xpose.msra.mxu0 0.0
    %3834 = vmatpush.xpose.msra.mxu0 0.0
    %3835 = vmatpush.xpose.msra.mxu0 0.0
    %3836 = vmatpush.xpose.msra.mxu0 0.0
    %3837 = vmatpush.xpose.msra.mxu0 0.0
    %v3838 = vand.u32 %v3697, 4294901760
    %3839 = vmatpush.xpose.msra.mxu0 %v3838
    %v3840 = vand.u32 %v3694, 4294901760
    %3841 = vmatmul.f32.gmra.mxu0 %v3840
    %v3842 = vpop.f32.mrf.mxu0
    %v3843 = vadd.f32 %v3821, %v3842
    %3844 = vdwg.mxu0
    %v3845 = vadd.f32 %v3387, %v140
    %v3846 = vadd.f32 %v3539, %v140
    %v3847 = vadd.f32 %v3691, %v141
    %v3848 = vadd.f32 %v3843, %v141
    %v3849 = vsel %vm1168, %v3845, -inf
    %3850 = vmax.xlane.f32.xlu0 %v3849
    %v3851 = vpop.xlane.xlu0 %3850
    %v3852 = vsel %vm1168, %v3846, -inf
    %3853 = vmax.xlane.f32.xlu0 %v3852
    %v3854 = vpop.xlane.xlu0 %3853
    %v3855 = vsel %vm1168, %v3847, -inf
    %3856 = vmax.xlane.f32.xlu0 %v3855
    %v3857 = vpop.xlane.xlu0 %3856
    %v3858 = vsel %vm1168, %v3848, -inf
    %3859 = vmax.xlane.f32.xlu0 %v3858
    %v3860 = vpop.xlane.xlu0 %3859
    %v3861 = vsub.f32 %v3845, %v3851
    %v3862 = vsub.f32 %v3846, %v3854
    %v3863 = vsub.f32 %v3847, %v3857
    %v3864 = vsub.f32 %v3848, %v3860
    %v3865 = vmul.f32 %v3861, 1.442695
    %v3866 = vpow.pop %v3865
    %v3867 = vmul.f32 %v3862, 1.442695
    %v3868 = vpow.pop %v3867
    %v3869 = vmul.f32 %v3863, 1.442695
    %v3870 = vpow.pop %v3869
    %v3871 = vmul.f32 %v3864, 1.442695
    %v3872 = vpow.pop %v3871
    %v3873 = vsel %vm1168, %v3866, 0.0
    %3874 = vadd.xlane.f32.xlu0 %v3873
    %v3875 = vpop.xlane.xlu0 %3874
    %v3876 = vsel %vm1168, %v3868, 0.0
    %3877 = vadd.xlane.f32.xlu0 %v3876
    %v3878 = vpop.xlane.xlu0 %3877
    %v3879 = vsel %vm1168, %v3870, 0.0
    %3880 = vadd.xlane.f32.xlu0 %v3879
    %v3881 = vpop.xlane.xlu0 %3880
    %v3882 = vsel %vm1168, %v3872, 0.0
    %3883 = vadd.xlane.f32.xlu0 %v3882
    %v3884 = vpop.xlane.xlu0 %3883
    %v3885 = vrcp.pop %v3875
    %v3886 = vmul.f32 %v3875, %v3885
    %v3887 = vsub.f32 1.0, %v3886
    %v3888 = vmul.f32 %v3885, %v3887
    %v3889 = vadd.f32 %v3885, %v3888
    %vm3890 = vweird.f32 %v3875
    %vm3891 = vweird.f32 %v3885
    %vm3892 = vmor %vm3890, %vm3891
    %v3893 = vsel %vm3892, %v3885, %v3889
    %v3894 = vand.u32 2147483647, %v3875
    %vm3895 = vcmp.eq.f32.partialorder %v3894, 8.507059e+37
    %v3896 = vand.u32 %v3875, 2147483648
    %v3897 = vor.u32 1.1754944e-38, %v3896
    %v3898 = vsel %vm3895, %v3897, %v3893
    %v3899 = vrcp.pop %v3878
    %v3900 = vmul.f32 %v3878, %v3899
    %v3901 = vsub.f32 1.0, %v3900
    %v3902 = vmul.f32 %v3899, %v3901
    %v3903 = vadd.f32 %v3899, %v3902
    %vm3904 = vweird.f32 %v3878
    %vm3905 = vweird.f32 %v3899
    %vm3906 = vmor %vm3904, %vm3905
    %v3907 = vsel %vm3906, %v3899, %v3903
    %v3908 = vand.u32 2147483647, %v3878
    %vm3909 = vcmp.eq.f32.partialorder %v3908, 8.507059e+37
    %v3910 = vand.u32 %v3878, 2147483648
    %v3911 = vor.u32 1.1754944e-38, %v3910
    %v3912 = vsel %vm3909, %v3911, %v3907
    %v3913 = vrcp.pop %v3881
    %v3914 = vmul.f32 %v3881, %v3913
    %v3915 = vsub.f32 1.0, %v3914
    %v3916 = vmul.f32 %v3913, %v3915
    %v3917 = vadd.f32 %v3913, %v3916
    %vm3918 = vweird.f32 %v3881
    %vm3919 = vweird.f32 %v3913
    %vm3920 = vmor %vm3918, %vm3919
    %v3921 = vsel %vm3920, %v3913, %v3917
    %v3922 = vand.u32 2147483647, %v3881
    %vm3923 = vcmp.eq.f32.partialorder %v3922, 8.507059e+37
    %v3924 = vand.u32 %v3881, 2147483648
    %v3925 = vor.u32 1.1754944e-38, %v3924
    %v3926 = vsel %vm3923, %v3925, %v3921
    %v3927 = vrcp.pop %v3884
    %v3928 = vmul.f32 %v3884, %v3927
    %v3929 = vsub.f32 1.0, %v3928
    %v3930 = vmul.f32 %v3927, %v3929
    %v3931 = vadd.f32 %v3927, %v3930
    %vm3932 = vweird.f32 %v3884
    %vm3933 = vweird.f32 %v3927
    %vm3934 = vmor %vm3932, %vm3933
    %v3935 = vsel %vm3934, %v3927, %v3931
    %v3936 = vand.u32 2147483647, %v3884
    %vm3937 = vcmp.eq.f32.partialorder %v3936, 8.507059e+37
    %v3938 = vand.u32 %v3884, 2147483648
    %v3939 = vor.u32 1.1754944e-38, %v3938
    %v3940 = vsel %vm3937, %v3939, %v3935
    %v3941 = vmul.f32 %v3866, %v3898
    %v3942 = vmul.f32 %v3868, %v3912
    %v3943 = vmul.f32 %v3870, %v3926
    %v3944 = vmul.f32 %v3872, %v3940
    %v3946 = vsel %vm1168, %v3941, 0
    %3948 = vmatpush.msra.mxu0 0.0
    %3949 = vmatpush.msra.mxu0 0.0
    %3950 = vmatpush.msra.mxu0 0.0
    %3951 = vmatpush.msra.mxu0 0.0
    %3952 = vmatpush.msra.mxu0 0.0
    %3953 = vmatpush.msra.mxu0 0.0
    %3954 = vmatpush.msra.mxu0 0.0
    %3955 = vmatpush.msra.mxu0 0.0
    %3956 = vmatpush.msra.mxu0 0.0
    %3957 = vmatpush.msra.mxu0 0.0
    %3958 = vmatpush.msra.mxu0 0.0
    %3959 = vmatpush.msra.mxu0 0.0
    %3960 = vmatpush.msra.mxu0 0.0
    %3961 = vmatpush.msra.mxu0 0.0
    %3962 = vmatpush.msra.mxu0 0.0
    %v3963 = vand.u32 %v3196, 4294901760
    %3964 = vmatpush.msra.mxu0 %v3963
    %v3965 = vand.u32 %v3946, 4294901760
    %v3966 = vsub.f32 %v3946, %v3965
    %v3967 = vand.u32 %v3966, 4294901760
    %v3968 = vsub.f32 %v3966, %v3967
    %v3969 = vand.u32 %v3968, 4294901760
    %3970 = vmatmul.f32.gmra.mxu0 %v3969
    %v3971 = vpop.f32.mrf.mxu0
    %v3972 = vadd.f32 0.0, %v3971
    %3973 = vdwg.mxu0
    %3974 = vmatpush.msra.mxu0 0.0
    %3975 = vmatpush.msra.mxu0 0.0
    %3976 = vmatpush.msra.mxu0 0.0
    %3977 = vmatpush.msra.mxu0 0.0
    %3978 = vmatpush.msra.mxu0 0.0
    %3979 = vmatpush.msra.mxu0 0.0
    %3980 = vmatpush.msra.mxu0 0.0
    %3981 = vmatpush.msra.mxu0 0.0
    %3982 = vmatpush.msra.mxu0 0.0
    %3983 = vmatpush.msra.mxu0 0.0
    %3984 = vmatpush.msra.mxu0 0.0
    %3985 = vmatpush.msra.mxu0 0.0
    %3986 = vmatpush.msra.mxu0 0.0
    %3987 = vmatpush.msra.mxu0 0.0
    %3988 = vmatpush.msra.mxu0 0.0
    %v3989 = vand.u32 %v3196, 4294901760
    %v3990 = vsub.f32 %v3196, %v3989
    %v3991 = vand.u32 %v3990, 4294901760
    %v3992 = vsub.f32 %v3990, %v3991
    %v3993 = vand.u32 %v3992, 4294901760
    %3994 = vmatpush.msra.mxu0 %v3993
    %v3995 = vand.u32 %v3946, 4294901760
    %3996 = vmatmul.f32.gmra.mxu0 %v3995
    %v3997 = vpop.f32.mrf.mxu0
    %v3998 = vadd.f32 %v3972, %v3997
    %3999 = vdwg.mxu0
    %4000 = vmatpush.msra.mxu0 0.0
    %4001 = vmatpush.msra.mxu0 0.0
    %4002 = vmatpush.msra.mxu0 0.0
    %4003 = vmatpush.msra.mxu0 0.0
    %4004 = vmatpush.msra.mxu0 0.0
    %4005 = vmatpush.msra.mxu0 0.0
    %4006 = vmatpush.msra.mxu0 0.0
    %4007 = vmatpush.msra.mxu0 0.0
    %4008 = vmatpush.msra.mxu0 0.0
    %4009 = vmatpush.msra.mxu0 0.0
    %4010 = vmatpush.msra.mxu0 0.0
    %4011 = vmatpush.msra.mxu0 0.0
    %4012 = vmatpush.msra.mxu0 0.0
    %4013 = vmatpush.msra.mxu0 0.0
    %4014 = vmatpush.msra.mxu0 0.0
    %v4015 = vand.u32 %v3196, 4294901760
    %v4016 = vsub.f32 %v3196, %v4015
    %4017 = vmatpush.msra.mxu0 %v4016
    %v4018 = vand.u32 %v3946, 4294901760
    %v4019 = vsub.f32 %v3946, %v4018
    %4020 = vmatmul.f32.gmra.mxu0 %v4019
    %v4021 = vpop.f32.mrf.mxu0
    %v4022 = vadd.f32 %v3998, %v4021
    %4023 = vdwg.mxu0
    %4024 = vmatpush.msra.mxu0 0.0
    %4025 = vmatpush.msra.mxu0 0.0
    %4026 = vmatpush.msra.mxu0 0.0
    %4027 = vmatpush.msra.mxu0 0.0
    %4028 = vmatpush.msra.mxu0 0.0
    %4029 = vmatpush.msra.mxu0 0.0
    %4030 = vmatpush.msra.mxu0 0.0
    %4031 = vmatpush.msra.mxu0 0.0
    %4032 = vmatpush.msra.mxu0 0.0
    %4033 = vmatpush.msra.mxu0 0.0
    %4034 = vmatpush.msra.mxu0 0.0
    %4035 = vmatpush.msra.mxu0 0.0
    %4036 = vmatpush.msra.mxu0 0.0
    %4037 = vmatpush.msra.mxu0 0.0
    %4038 = vmatpush.msra.mxu0 0.0
    %v4039 = vand.u32 %v3196, 4294901760
    %4040 = vmatpush.msra.mxu0 %v4039
    %v4041 = vand.u32 %v3946, 4294901760
    %v4042 = vsub.f32 %v3946, %v4041
    %v4043 = vand.u32 %v4042, 4294901760
    %4044 = vmatmul.f32.gmra.mxu0 %v4043
    %v4045 = vpop.f32.mrf.mxu0
    %v4046 = vadd.f32 %v4022, %v4045
    %4047 = vdwg.mxu0
    %4048 = vmatpush.msra.mxu0 0.0
    %4049 = vmatpush.msra.mxu0 0.0
    %4050 = vmatpush.msra.mxu0 0.0
    %4051 = vmatpush.msra.mxu0 0.0
    %4052 = vmatpush.msra.mxu0 0.0
    %4053 = vmatpush.msra.mxu0 0.0
    %4054 = vmatpush.msra.mxu0 0.0
    %4055 = vmatpush.msra.mxu0 0.0
    %4056 = vmatpush.msra.mxu0 0.0
    %4057 = vmatpush.msra.mxu0 0.0
    %4058 = vmatpush.msra.mxu0 0.0
    %4059 = vmatpush.msra.mxu0 0.0
    %4060 = vmatpush.msra.mxu0 0.0
    %4061 = vmatpush.msra.mxu0 0.0
    %4062 = vmatpush.msra.mxu0 0.0
    %v4063 = vand.u32 %v3196, 4294901760
    %v4064 = vsub.f32 %v3196, %v4063
    %v4065 = vand.u32 %v4064, 4294901760
    %4066 = vmatpush.msra.mxu0 %v4065
    %v4067 = vand.u32 %v3946, 4294901760
    %4068 = vmatmul.f32.gmra.mxu0 %v4067
    %v4069 = vpop.f32.mrf.mxu0
    %v4070 = vadd.f32 %v4046, %v4069
    %4071 = vdwg.mxu0
    %4072 = vmatpush.msra.mxu0 0.0
    %4073 = vmatpush.msra.mxu0 0.0
    %4074 = vmatpush.msra.mxu0 0.0
    %4075 = vmatpush.msra.mxu0 0.0
    %4076 = vmatpush.msra.mxu0 0.0
    %4077 = vmatpush.msra.mxu0 0.0
    %4078 = vmatpush.msra.mxu0 0.0
    %4079 = vmatpush.msra.mxu0 0.0
    %4080 = vmatpush.msra.mxu0 0.0
    %4081 = vmatpush.msra.mxu0 0.0
    %4082 = vmatpush.msra.mxu0 0.0
    %4083 = vmatpush.msra.mxu0 0.0
    %4084 = vmatpush.msra.mxu0 0.0
    %4085 = vmatpush.msra.mxu0 0.0
    %4086 = vmatpush.msra.mxu0 0.0
    %v4087 = vand.u32 %v3196, 4294901760
    %4088 = vmatpush.msra.mxu0 %v4087
    %v4089 = vand.u32 %v3946, 4294901760
    %4090 = vmatmul.f32.gmra.mxu0 %v4089
    %v4091 = vpop.f32.mrf.mxu0
    %v4092 = vadd.f32 %v4070, %v4091
    %4093 = vdwg.mxu0
    %v4095 = vsel %vm1168, %v3942, 0
    %4097 = vmatpush.msra.mxu0 0.0
    %4098 = vmatpush.msra.mxu0 0.0
    %4099 = vmatpush.msra.mxu0 0.0
    %4100 = vmatpush.msra.mxu0 0.0
    %4101 = vmatpush.msra.mxu0 0.0
    %4102 = vmatpush.msra.mxu0 0.0
    %4103 = vmatpush.msra.mxu0 0.0
    %4104 = vmatpush.msra.mxu0 0.0
    %4105 = vmatpush.msra.mxu0 0.0
    %4106 = vmatpush.msra.mxu0 0.0
    %4107 = vmatpush.msra.mxu0 0.0
    %4108 = vmatpush.msra.mxu0 0.0
    %4109 = vmatpush.msra.mxu0 0.0
    %4110 = vmatpush.msra.mxu0 0.0
    %4111 = vmatpush.msra.mxu0 0.0
    %v4112 = vand.u32 %v3198, 4294901760
    %4113 = vmatpush.msra.mxu0 %v4112
    %v4114 = vand.u32 %v4095, 4294901760
    %v4115 = vsub.f32 %v4095, %v4114
    %v4116 = vand.u32 %v4115, 4294901760
    %v4117 = vsub.f32 %v4115, %v4116
    %v4118 = vand.u32 %v4117, 4294901760
    %4119 = vmatmul.f32.gmra.mxu0 %v4118
    %v4120 = vpop.f32.mrf.mxu0
    %v4121 = vadd.f32 0.0, %v4120
    %4122 = vdwg.mxu0
    %4123 = vmatpush.msra.mxu0 0.0
    %4124 = vmatpush.msra.mxu0 0.0
    %4125 = vmatpush.msra.mxu0 0.0
    %4126 = vmatpush.msra.mxu0 0.0
    %4127 = vmatpush.msra.mxu0 0.0
    %4128 = vmatpush.msra.mxu0 0.0
    %4129 = vmatpush.msra.mxu0 0.0
    %4130 = vmatpush.msra.mxu0 0.0
    %4131 = vmatpush.msra.mxu0 0.0
    %4132 = vmatpush.msra.mxu0 0.0
    %4133 = vmatpush.msra.mxu0 0.0
    %4134 = vmatpush.msra.mxu0 0.0
    %4135 = vmatpush.msra.mxu0 0.0
    %4136 = vmatpush.msra.mxu0 0.0
    %4137 = vmatpush.msra.mxu0 0.0
    %v4138 = vand.u32 %v3198, 4294901760
    %v4139 = vsub.f32 %v3198, %v4138
    %v4140 = vand.u32 %v4139, 4294901760
    %v4141 = vsub.f32 %v4139, %v4140
    %v4142 = vand.u32 %v4141, 4294901760
    %4143 = vmatpush.msra.mxu0 %v4142
    %v4144 = vand.u32 %v4095, 4294901760
    %4145 = vmatmul.f32.gmra.mxu0 %v4144
    %v4146 = vpop.f32.mrf.mxu0
    %v4147 = vadd.f32 %v4121, %v4146
    %4148 = vdwg.mxu0
    %4149 = vmatpush.msra.mxu0 0.0
    %4150 = vmatpush.msra.mxu0 0.0
    %4151 = vmatpush.msra.mxu0 0.0
    %4152 = vmatpush.msra.mxu0 0.0
    %4153 = vmatpush.msra.mxu0 0.0
    %4154 = vmatpush.msra.mxu0 0.0
    %4155 = vmatpush.msra.mxu0 0.0
    %4156 = vmatpush.msra.mxu0 0.0
    %4157 = vmatpush.msra.mxu0 0.0
    %4158 = vmatpush.msra.mxu0 0.0
    %4159 = vmatpush.msra.mxu0 0.0
    %4160 = vmatpush.msra.mxu0 0.0
    %4161 = vmatpush.msra.mxu0 0.0
    %4162 = vmatpush.msra.mxu0 0.0
    %4163 = vmatpush.msra.mxu0 0.0
    %v4164 = vand.u32 %v3198, 4294901760
    %v4165 = vsub.f32 %v3198, %v4164
    %4166 = vmatpush.msra.mxu0 %v4165
    %v4167 = vand.u32 %v4095, 4294901760
    %v4168 = vsub.f32 %v4095, %v4167
    %4169 = vmatmul.f32.gmra.mxu0 %v4168
    %v4170 = vpop.f32.mrf.mxu0
    %v4171 = vadd.f32 %v4147, %v4170
    %4172 = vdwg.mxu0
    %4173 = vmatpush.msra.mxu0 0.0
    %4174 = vmatpush.msra.mxu0 0.0
    %4175 = vmatpush.msra.mxu0 0.0
    %4176 = vmatpush.msra.mxu0 0.0
    %4177 = vmatpush.msra.mxu0 0.0
    %4178 = vmatpush.msra.mxu0 0.0
    %4179 = vmatpush.msra.mxu0 0.0
    %4180 = vmatpush.msra.mxu0 0.0
    %4181 = vmatpush.msra.mxu0 0.0
    %4182 = vmatpush.msra.mxu0 0.0
    %4183 = vmatpush.msra.mxu0 0.0
    %4184 = vmatpush.msra.mxu0 0.0
    %4185 = vmatpush.msra.mxu0 0.0
    %4186 = vmatpush.msra.mxu0 0.0
    %4187 = vmatpush.msra.mxu0 0.0
    %v4188 = vand.u32 %v3198, 4294901760
    %4189 = vmatpush.msra.mxu0 %v4188
    %v4190 = vand.u32 %v4095, 4294901760
    %v4191 = vsub.f32 %v4095, %v4190
    %v4192 = vand.u32 %v4191, 4294901760
    %4193 = vmatmul.f32.gmra.mxu0 %v4192
    %v4194 = vpop.f32.mrf.mxu0
    %v4195 = vadd.f32 %v4171, %v4194
    %4196 = vdwg.mxu0
    %4197 = vmatpush.msra.mxu0 0.0
    %4198 = vmatpush.msra.mxu0 0.0
    %4199 = vmatpush.msra.mxu0 0.0
    %4200 = vmatpush.msra.mxu0 0.0
    %4201 = vmatpush.msra.mxu0 0.0
    %4202 = vmatpush.msra.mxu0 0.0
    %4203 = vmatpush.msra.mxu0 0.0
    %4204 = vmatpush.msra.mxu0 0.0
    %4205 = vmatpush.msra.mxu0 0.0
    %4206 = vmatpush.msra.mxu0 0.0
    %4207 = vmatpush.msra.mxu0 0.0
    %4208 = vmatpush.msra.mxu0 0.0
    %4209 = vmatpush.msra.mxu0 0.0
    %4210 = vmatpush.msra.mxu0 0.0
    %4211 = vmatpush.msra.mxu0 0.0
    %v4212 = vand.u32 %v3198, 4294901760
    %v4213 = vsub.f32 %v3198, %v4212
    %v4214 = vand.u32 %v4213, 4294901760
    %4215 = vmatpush.msra.mxu0 %v4214
    %v4216 = vand.u32 %v4095, 4294901760
    %4217 = vmatmul.f32.gmra.mxu0 %v4216
    %v4218 = vpop.f32.mrf.mxu0
    %v4219 = vadd.f32 %v4195, %v4218
    %4220 = vdwg.mxu0
    %4221 = vmatpush.msra.mxu0 0.0
    %4222 = vmatpush.msra.mxu0 0.0
    %4223 = vmatpush.msra.mxu0 0.0
    %4224 = vmatpush.msra.mxu0 0.0
    %4225 = vmatpush.msra.mxu0 0.0
    %4226 = vmatpush.msra.mxu0 0.0
    %4227 = vmatpush.msra.mxu0 0.0
    %4228 = vmatpush.msra.mxu0 0.0
    %4229 = vmatpush.msra.mxu0 0.0
    %4230 = vmatpush.msra.mxu0 0.0
    %4231 = vmatpush.msra.mxu0 0.0
    %4232 = vmatpush.msra.mxu0 0.0
    %4233 = vmatpush.msra.mxu0 0.0
    %4234 = vmatpush.msra.mxu0 0.0
    %4235 = vmatpush.msra.mxu0 0.0
    %v4236 = vand.u32 %v3198, 4294901760
    %4237 = vmatpush.msra.mxu0 %v4236
    %v4238 = vand.u32 %v4095, 4294901760
    %4239 = vmatmul.f32.gmra.mxu0 %v4238
    %v4240 = vpop.f32.mrf.mxu0
    %v4241 = vadd.f32 %v4219, %v4240
    %4242 = vdwg.mxu0
    %v4244 = vsel %vm1168, %v3943, 0
    %4246 = vmatpush.msra.mxu0 0.0
    %4247 = vmatpush.msra.mxu0 0.0
    %4248 = vmatpush.msra.mxu0 0.0
    %4249 = vmatpush.msra.mxu0 0.0
    %4250 = vmatpush.msra.mxu0 0.0
    %4251 = vmatpush.msra.mxu0 0.0
    %4252 = vmatpush.msra.mxu0 0.0
    %4253 = vmatpush.msra.mxu0 0.0
    %4254 = vmatpush.msra.mxu0 0.0
    %4255 = vmatpush.msra.mxu0 0.0
    %4256 = vmatpush.msra.mxu0 0.0
    %4257 = vmatpush.msra.mxu0 0.0
    %4258 = vmatpush.msra.mxu0 0.0
    %4259 = vmatpush.msra.mxu0 0.0
    %4260 = vmatpush.msra.mxu0 0.0
    %v4261 = vand.u32 %v3234, 4294901760
    %4262 = vmatpush.msra.mxu0 %v4261
    %v4263 = vand.u32 %v4244, 4294901760
    %v4264 = vsub.f32 %v4244, %v4263
    %v4265 = vand.u32 %v4264, 4294901760
    %v4266 = vsub.f32 %v4264, %v4265
    %v4267 = vand.u32 %v4266, 4294901760
    %4268 = vmatmul.f32.gmra.mxu0 %v4267
    %v4269 = vpop.f32.mrf.mxu0
    %v4270 = vadd.f32 0.0, %v4269
    %4271 = vdwg.mxu0
    %4272 = vmatpush.msra.mxu0 0.0
    %4273 = vmatpush.msra.mxu0 0.0
    %4274 = vmatpush.msra.mxu0 0.0
    %4275 = vmatpush.msra.mxu0 0.0
    %4276 = vmatpush.msra.mxu0 0.0
    %4277 = vmatpush.msra.mxu0 0.0
    %4278 = vmatpush.msra.mxu0 0.0
    %4279 = vmatpush.msra.mxu0 0.0
    %4280 = vmatpush.msra.mxu0 0.0
    %4281 = vmatpush.msra.mxu0 0.0
    %4282 = vmatpush.msra.mxu0 0.0
    %4283 = vmatpush.msra.mxu0 0.0
    %4284 = vmatpush.msra.mxu0 0.0
    %4285 = vmatpush.msra.mxu0 0.0
    %4286 = vmatpush.msra.mxu0 0.0
    %v4287 = vand.u32 %v3234, 4294901760
    %v4288 = vsub.f32 %v3234, %v4287
    %v4289 = vand.u32 %v4288, 4294901760
    %v4290 = vsub.f32 %v4288, %v4289
    %v4291 = vand.u32 %v4290, 4294901760
    %4292 = vmatpush.msra.mxu0 %v4291
    %v4293 = vand.u32 %v4244, 4294901760
    %4294 = vmatmul.f32.gmra.mxu0 %v4293
    %v4295 = vpop.f32.mrf.mxu0
    %v4296 = vadd.f32 %v4270, %v4295
    %4297 = vdwg.mxu0
    %4298 = vmatpush.msra.mxu0 0.0
    %4299 = vmatpush.msra.mxu0 0.0
    %4300 = vmatpush.msra.mxu0 0.0
    %4301 = vmatpush.msra.mxu0 0.0
    %4302 = vmatpush.msra.mxu0 0.0
    %4303 = vmatpush.msra.mxu0 0.0
    %4304 = vmatpush.msra.mxu0 0.0
    %4305 = vmatpush.msra.mxu0 0.0
    %4306 = vmatpush.msra.mxu0 0.0
    %4307 = vmatpush.msra.mxu0 0.0
    %4308 = vmatpush.msra.mxu0 0.0
    %4309 = vmatpush.msra.mxu0 0.0
    %4310 = vmatpush.msra.mxu0 0.0
    %4311 = vmatpush.msra.mxu0 0.0
    %4312 = vmatpush.msra.mxu0 0.0
    %v4313 = vand.u32 %v3234, 4294901760
    %v4314 = vsub.f32 %v3234, %v4313
    %4315 = vmatpush.msra.mxu0 %v4314
    %v4316 = vand.u32 %v4244, 4294901760
    %v4317 = vsub.f32 %v4244, %v4316
    %4318 = vmatmul.f32.gmra.mxu0 %v4317
    %v4319 = vpop.f32.mrf.mxu0
    %v4320 = vadd.f32 %v4296, %v4319
    %4321 = vdwg.mxu0
    %4322 = vmatpush.msra.mxu0 0.0
    %4323 = vmatpush.msra.mxu0 0.0
    %4324 = vmatpush.msra.mxu0 0.0
    %4325 = vmatpush.msra.mxu0 0.0
    %4326 = vmatpush.msra.mxu0 0.0
    %4327 = vmatpush.msra.mxu0 0.0
    %4328 = vmatpush.msra.mxu0 0.0
    %4329 = vmatpush.msra.mxu0 0.0
    %4330 = vmatpush.msra.mxu0 0.0
    %4331 = vmatpush.msra.mxu0 0.0
    %4332 = vmatpush.msra.mxu0 0.0
    %4333 = vmatpush.msra.mxu0 0.0
    %4334 = vmatpush.msra.mxu0 0.0
    %4335 = vmatpush.msra.mxu0 0.0
    %4336 = vmatpush.msra.mxu0 0.0
    %v4337 = vand.u32 %v3234, 4294901760
    %4338 = vmatpush.msra.mxu0 %v4337
    %v4339 = vand.u32 %v4244, 4294901760
    %v4340 = vsub.f32 %v4244, %v4339
    %v4341 = vand.u32 %v4340, 4294901760
    %4342 = vmatmul.f32.gmra.mxu0 %v4341
    %v4343 = vpop.f32.mrf.mxu0
    %v4344 = vadd.f32 %v4320, %v4343
    %4345 = vdwg.mxu0
    %4346 = vmatpush.msra.mxu0 0.0
    %4347 = vmatpush.msra.mxu0 0.0
    %4348 = vmatpush.msra.mxu0 0.0
    %4349 = vmatpush.msra.mxu0 0.0
    %4350 = vmatpush.msra.mxu0 0.0
    %4351 = vmatpush.msra.mxu0 0.0
    %4352 = vmatpush.msra.mxu0 0.0
    %4353 = vmatpush.msra.mxu0 0.0
    %4354 = vmatpush.msra.mxu0 0.0
    %4355 = vmatpush.msra.mxu0 0.0
    %4356 = vmatpush.msra.mxu0 0.0
    %4357 = vmatpush.msra.mxu0 0.0
    %4358 = vmatpush.msra.mxu0 0.0
    %4359 = vmatpush.msra.mxu0 0.0
    %4360 = vmatpush.msra.mxu0 0.0
    %v4361 = vand.u32 %v3234, 4294901760
    %v4362 = vsub.f32 %v3234, %v4361
    %v4363 = vand.u32 %v4362, 4294901760
    %4364 = vmatpush.msra.mxu0 %v4363
    %v4365 = vand.u32 %v4244, 4294901760
    %4366 = vmatmul.f32.gmra.mxu0 %v4365
    %v4367 = vpop.f32.mrf.mxu0
    %v4368 = vadd.f32 %v4344, %v4367
    %4369 = vdwg.mxu0
    %4370 = vmatpush.msra.mxu0 0.0
    %4371 = vmatpush.msra.mxu0 0.0
    %4372 = vmatpush.msra.mxu0 0.0
    %4373 = vmatpush.msra.mxu0 0.0
    %4374 = vmatpush.msra.mxu0 0.0
    %4375 = vmatpush.msra.mxu0 0.0
    %4376 = vmatpush.msra.mxu0 0.0
    %4377 = vmatpush.msra.mxu0 0.0
    %4378 = vmatpush.msra.mxu0 0.0
    %4379 = vmatpush.msra.mxu0 0.0
    %4380 = vmatpush.msra.mxu0 0.0
    %4381 = vmatpush.msra.mxu0 0.0
    %4382 = vmatpush.msra.mxu0 0.0
    %4383 = vmatpush.msra.mxu0 0.0
    %4384 = vmatpush.msra.mxu0 0.0
    %v4385 = vand.u32 %v3234, 4294901760
    %4386 = vmatpush.msra.mxu0 %v4385
    %v4387 = vand.u32 %v4244, 4294901760
    %4388 = vmatmul.f32.gmra.mxu0 %v4387
    %v4389 = vpop.f32.mrf.mxu0
    %v4390 = vadd.f32 %v4368, %v4389
    %4391 = vdwg.mxu0
    %v4393 = vsel %vm1168, %v3944, 0
    %4395 = vmatpush.msra.mxu0 0.0
    %4396 = vmatpush.msra.mxu0 0.0
    %4397 = vmatpush.msra.mxu0 0.0
    %4398 = vmatpush.msra.mxu0 0.0
    %4399 = vmatpush.msra.mxu0 0.0
    %4400 = vmatpush.msra.mxu0 0.0
    %4401 = vmatpush.msra.mxu0 0.0
    %4402 = vmatpush.msra.mxu0 0.0
    %4403 = vmatpush.msra.mxu0 0.0
    %4404 = vmatpush.msra.mxu0 0.0
    %4405 = vmatpush.msra.mxu0 0.0
    %4406 = vmatpush.msra.mxu0 0.0
    %4407 = vmatpush.msra.mxu0 0.0
    %4408 = vmatpush.msra.mxu0 0.0
    %4409 = vmatpush.msra.mxu0 0.0
    %v4410 = vand.u32 %v3236, 4294901760
    %4411 = vmatpush.msra.mxu0 %v4410
    %v4412 = vand.u32 %v4393, 4294901760
    %v4413 = vsub.f32 %v4393, %v4412
    %v4414 = vand.u32 %v4413, 4294901760
    %v4415 = vsub.f32 %v4413, %v4414
    %v4416 = vand.u32 %v4415, 4294901760
    %4417 = vmatmul.f32.gmra.mxu0 %v4416
    %v4418 = vpop.f32.mrf.mxu0
    %v4419 = vadd.f32 0.0, %v4418
    %4420 = vdwg.mxu0
    %4421 = vmatpush.msra.mxu0 0.0
    %4422 = vmatpush.msra.mxu0 0.0
    %4423 = vmatpush.msra.mxu0 0.0
    %4424 = vmatpush.msra.mxu0 0.0
    %4425 = vmatpush.msra.mxu0 0.0
    %4426 = vmatpush.msra.mxu0 0.0
    %4427 = vmatpush.msra.mxu0 0.0
    %4428 = vmatpush.msra.mxu0 0.0
    %4429 = vmatpush.msra.mxu0 0.0
    %4430 = vmatpush.msra.mxu0 0.0
    %4431 = vmatpush.msra.mxu0 0.0
    %4432 = vmatpush.msra.mxu0 0.0
    %4433 = vmatpush.msra.mxu0 0.0
    %4434 = vmatpush.msra.mxu0 0.0
    %4435 = vmatpush.msra.mxu0 0.0
    %v4436 = vand.u32 %v3236, 4294901760
    %v4437 = vsub.f32 %v3236, %v4436
    %v4438 = vand.u32 %v4437, 4294901760
    %v4439 = vsub.f32 %v4437, %v4438
    %v4440 = vand.u32 %v4439, 4294901760
    %4441 = vmatpush.msra.mxu0 %v4440
    %v4442 = vand.u32 %v4393, 4294901760
    %4443 = vmatmul.f32.gmra.mxu0 %v4442
    %v4444 = vpop.f32.mrf.mxu0
    %v4445 = vadd.f32 %v4419, %v4444
    %4446 = vdwg.mxu0
    %4447 = vmatpush.msra.mxu0 0.0
    %4448 = vmatpush.msra.mxu0 0.0
    %4449 = vmatpush.msra.mxu0 0.0
    %4450 = vmatpush.msra.mxu0 0.0
    %4451 = vmatpush.msra.mxu0 0.0
    %4452 = vmatpush.msra.mxu0 0.0
    %4453 = vmatpush.msra.mxu0 0.0
    %4454 = vmatpush.msra.mxu0 0.0
    %4455 = vmatpush.msra.mxu0 0.0
    %4456 = vmatpush.msra.mxu0 0.0
    %4457 = vmatpush.msra.mxu0 0.0
    %4458 = vmatpush.msra.mxu0 0.0
    %4459 = vmatpush.msra.mxu0 0.0
    %4460 = vmatpush.msra.mxu0 0.0
    %4461 = vmatpush.msra.mxu0 0.0
    %v4462 = vand.u32 %v3236, 4294901760
    %v4463 = vsub.f32 %v3236, %v4462
    %4464 = vmatpush.msra.mxu0 %v4463
    %v4465 = vand.u32 %v4393, 4294901760
    %v4466 = vsub.f32 %v4393, %v4465
    %4467 = vmatmul.f32.gmra.mxu0 %v4466
    %v4468 = vpop.f32.mrf.mxu0
    %v4469 = vadd.f32 %v4445, %v4468
    %4470 = vdwg.mxu0
    %4471 = vmatpush.msra.mxu0 0.0
    %4472 = vmatpush.msra.mxu0 0.0
    %4473 = vmatpush.msra.mxu0 0.0
    %4474 = vmatpush.msra.mxu0 0.0
    %4475 = vmatpush.msra.mxu0 0.0
    %4476 = vmatpush.msra.mxu0 0.0
    %4477 = vmatpush.msra.mxu0 0.0
    %4478 = vmatpush.msra.mxu0 0.0
    %4479 = vmatpush.msra.mxu0 0.0
    %4480 = vmatpush.msra.mxu0 0.0
    %4481 = vmatpush.msra.mxu0 0.0
    %4482 = vmatpush.msra.mxu0 0.0
    %4483 = vmatpush.msra.mxu0 0.0
    %4484 = vmatpush.msra.mxu0 0.0
    %4485 = vmatpush.msra.mxu0 0.0
    %v4486 = vand.u32 %v3236, 4294901760
    %4487 = vmatpush.msra.mxu0 %v4486
    %v4488 = vand.u32 %v4393, 4294901760
    %v4489 = vsub.f32 %v4393, %v4488
    %v4490 = vand.u32 %v4489, 4294901760
    %4491 = vmatmul.f32.gmra.mxu0 %v4490
    %v4492 = vpop.f32.mrf.mxu0
    %v4493 = vadd.f32 %v4469, %v4492
    %4494 = vdwg.mxu0
    %4495 = vmatpush.msra.mxu0 0.0
    %4496 = vmatpush.msra.mxu0 0.0
    %4497 = vmatpush.msra.mxu0 0.0
    %4498 = vmatpush.msra.mxu0 0.0
    %4499 = vmatpush.msra.mxu0 0.0
    %4500 = vmatpush.msra.mxu0 0.0
    %4501 = vmatpush.msra.mxu0 0.0
    %4502 = vmatpush.msra.mxu0 0.0
    %4503 = vmatpush.msra.mxu0 0.0
    %4504 = vmatpush.msra.mxu0 0.0
    %4505 = vmatpush.msra.mxu0 0.0
    %4506 = vmatpush.msra.mxu0 0.0
    %4507 = vmatpush.msra.mxu0 0.0
    %4508 = vmatpush.msra.mxu0 0.0
    %4509 = vmatpush.msra.mxu0 0.0
    %v4510 = vand.u32 %v3236, 4294901760
    %v4511 = vsub.f32 %v3236, %v4510
    %v4512 = vand.u32 %v4511, 4294901760
    %4513 = vmatpush.msra.mxu0 %v4512
    %v4514 = vand.u32 %v4393, 4294901760
    %4515 = vmatmul.f32.gmra.mxu0 %v4514
    %v4516 = vpop.f32.mrf.mxu0
    %v4517 = vadd.f32 %v4493, %v4516
    %4518 = vdwg.mxu0
    %4519 = vmatpush.msra.mxu0 0.0
    %4520 = vmatpush.msra.mxu0 0.0
    %4521 = vmatpush.msra.mxu0 0.0
    %4522 = vmatpush.msra.mxu0 0.0
    %4523 = vmatpush.msra.mxu0 0.0
    %4524 = vmatpush.msra.mxu0 0.0
    %4525 = vmatpush.msra.mxu0 0.0
    %4526 = vmatpush.msra.mxu0 0.0
    %4527 = vmatpush.msra.mxu0 0.0
    %4528 = vmatpush.msra.mxu0 0.0
    %4529 = vmatpush.msra.mxu0 0.0
    %4530 = vmatpush.msra.mxu0 0.0
    %4531 = vmatpush.msra.mxu0 0.0
    %4532 = vmatpush.msra.mxu0 0.0
    %4533 = vmatpush.msra.mxu0 0.0
    %v4534 = vand.u32 %v3236, 4294901760
    %4535 = vmatpush.msra.mxu0 %v4534
    %v4536 = vand.u32 %v4393, 4294901760
    %4537 = vmatmul.f32.gmra.mxu0 %v4536
    %v4538 = vpop.f32.mrf.mxu0
    %v4539 = vadd.f32 %v4517, %v4538
    %4540 = vdwg.mxu0
    %v4541 = vrot.slane %v4092, 4
    %v4542 = vsel %vm604, 0.0, %v4541
    %v4544 = vunpack.c.l.s4 1983009808
    %v4545 = vunpack.c.0.s8 %v4544
    %v4546 = vperm.slane %v4092, %v4545
    %v4548 = vunpack.c.l.s4 1983009808
    %v4549 = vunpack.c.0.s8 %v4548
    %v4550 = vperm.slane %v4542, %v4549
    %v4551 = vrot.slane %v4241, 4
    %v4552 = vsel %vm604, 0.0, %v4551
    %v4554 = vunpack.c.l.s4 1983009808
    %v4555 = vunpack.c.0.s8 %v4554
    %v4556 = vperm.slane %v4241, %v4555
    %v4558 = vunpack.c.l.s4 1983009808
    %v4559 = vunpack.c.0.s8 %v4558
    %v4560 = vperm.slane %v4552, %v4559
    %v4561 = vrot.slane %v4556, 4
    %v4562 = vsel %vm604, %v4561, %v4546
    %v4563 = vrot.slane %v4546, 4
    %v4564 = vsel %vm604, %v4556, %v4563
    %v4566 = vunpack.c.l.s4 1934713408
    %v4567 = vunpack.c.0.s8 %v4566
    %v4568 = vperm.slane %v4562, %v4567
    %v4570 = vunpack.c.l.s4 1934713408
    %v4571 = vunpack.c.0.s8 %v4570
    %v4572 = vperm.slane %v4564, %v4571
    %v4573 = vrot.slane %v4560, 4
    %v4574 = vsel %vm604, %v4573, %v4550
    %v4575 = vrot.slane %v4550, 4
    %v4576 = vsel %vm604, %v4560, %v4575
    %v4578 = vunpack.c.l.s4 1934713408
    %v4579 = vunpack.c.0.s8 %v4578
    %v4580 = vperm.slane %v4574, %v4579
    %v4582 = vunpack.c.l.s4 1934713408
    %v4583 = vunpack.c.0.s8 %v4582
    %v4584 = vperm.slane %v4576, %v4583
    %v4585 = vrot.slane %v4568, 4
    %v4586 = vsel %vm604, 0.0, %v4585
    %v4587 = vrot.slane %v4572, 4
    %v4588 = vsel %vm604, 0.0, %v4587
    %v4589 = vrot.slane %v4580, 4
    %v4590 = vsel %vm604, 0.0, %v4589
    %v4591 = vrot.slane %v4584, 4
    %v4592 = vsel %vm604, 0.0, %v4591
    %v4593 = vrot.slane %v4390, 4
    %v4594 = vsel %vm604, 0.0, %v4593
    %v4596 = vunpack.c.l.s4 1983009808
    %v4597 = vunpack.c.0.s8 %v4596
    %v4598 = vperm.slane %v4390, %v4597
    %v4600 = vunpack.c.l.s4 1983009808
    %v4601 = vunpack.c.0.s8 %v4600
    %v4602 = vperm.slane %v4594, %v4601
    %v4603 = vrot.slane %v4539, 4
    %v4604 = vsel %vm604, 0.0, %v4603
    %v4606 = vunpack.c.l.s4 1983009808
    %v4607 = vunpack.c.0.s8 %v4606
    %v4608 = vperm.slane %v4539, %v4607
    %v4610 = vunpack.c.l.s4 1983009808
    %v4611 = vunpack.c.0.s8 %v4610
    %v4612 = vperm.slane %v4604, %v4611
    %v4613 = vrot.slane %v4608, 4
    %v4614 = vsel %vm604, %v4613, %v4598
    %v4615 = vrot.slane %v4598, 4
    %v4616 = vsel %vm604, %v4608, %v4615
    %v4618 = vunpack.c.l.s4 1934713408
    %v4619 = vunpack.c.0.s8 %v4618
    %v4620 = vperm.slane %v4614, %v4619
    %v4622 = vunpack.c.l.s4 1934713408
    %v4623 = vunpack.c.0.s8 %v4622
    %v4624 = vperm.slane %v4616, %v4623
    %v4625 = vrot.slane %v4612, 4
    %v4626 = vsel %vm604, %v4625, %v4602
    %v4627 = vrot.slane %v4602, 4
    %v4628 = vsel %vm604, %v4612, %v4627
    %v4630 = vunpack.c.l.s4 1934713408
    %v4631 = vunpack.c.0.s8 %v4630
    %v4632 = vperm.slane %v4626, %v4631
    %v4634 = vunpack.c.l.s4 1934713408
    %v4635 = vunpack.c.0.s8 %v4634
    %v4636 = vperm.slane %v4628, %v4635
    %v4637 = vrot.slane %v4620, 4
    %v4638 = vsel %vm604, 0.0, %v4637
    %v4639 = vrot.slane %v4624, 4
    %v4640 = vsel %vm604, 0.0, %v4639
    %v4641 = vrot.slane %v4632, 4
    %v4642 = vsel %vm604, 0.0, %v4641
    %v4643 = vrot.slane %v4636, 4
    %v4644 = vsel %vm604, 0.0, %v4643
    %v4645 = vsel %vm604, %v4587, %v4568
    %v4647 = vunpack.c.l.s4 1983009808
    %v4648 = vunpack.c.0.s8 %v4647
    %v4649 = vperm.slane %v4645, %v4648
    %v4650 = vrot.slane %v4588, 4
    %v4651 = vsel %vm604, %v4650, %v4586
    %v4653 = vunpack.c.l.s4 1983009808
    %v4654 = vunpack.c.0.s8 %v4653
    %v4655 = vperm.slane %v4651, %v4654
    %v4656 = vsel %vm604, %v4591, %v4580
    %v4658 = vunpack.c.l.s4 1983009808
    %v4659 = vunpack.c.0.s8 %v4658
    %v4660 = vperm.slane %v4656, %v4659
    %v4661 = vrot.slane %v4592, 4
    %v4662 = vsel %vm604, %v4661, %v4590
    %v4664 = vunpack.c.l.s4 1983009808
    %v4665 = vunpack.c.0.s8 %v4664
    %v4666 = vperm.slane %v4662, %v4665
    %v4667 = vrot.slane %v4655, 4
    %v4668 = vsel %vm604, %v4667, %v4649
    %v4670 = vunpack.c.l.s4 1934713408
    %v4671 = vunpack.c.0.s8 %v4670
    %v4672 = vperm.slane %v4668, %v4671
    %v4673 = vrot.slane %v4666, 4
    %v4674 = vsel %vm604, %v4673, %v4660
    %v4676 = vunpack.c.l.s4 1934713408
    %v4677 = vunpack.c.0.s8 %v4676
    %v4678 = vperm.slane %v4674, %v4677
    %v4679 = vrot.slane %v4678, 4
    %v4680 = vsel %vm604, %v4679, %v4672
    %v4681 = vrot.slane %v4672, 4
    %v4682 = vsel %vm604, %v4678, %v4681
    %v4683 = vsel %vm604, %v4639, %v4620
    %v4685 = vunpack.c.l.s4 1983009808
    %v4686 = vunpack.c.0.s8 %v4685
    %v4687 = vperm.slane %v4683, %v4686
    %v4688 = vrot.slane %v4640, 4
    %v4689 = vsel %vm604, %v4688, %v4638
    %v4691 = vunpack.c.l.s4 1983009808
    %v4692 = vunpack.c.0.s8 %v4691
    %v4693 = vperm.slane %v4689, %v4692
    %v4694 = vsel %vm604, %v4643, %v4632
    %v4696 = vunpack.c.l.s4 1983009808
    %v4697 = vunpack.c.0.s8 %v4696
    %v4698 = vperm.slane %v4694, %v4697
    %v4699 = vrot.slane %v4644, 4
    %v4700 = vsel %vm604, %v4699, %v4642
    %v4702 = vunpack.c.l.s4 1983009808
    %v4703 = vunpack.c.0.s8 %v4702
    %v4704 = vperm.slane %v4700, %v4703
    %v4705 = vrot.slane %v4693, 4
    %v4706 = vsel %vm604, %v4705, %v4687
    %v4708 = vunpack.c.l.s4 1934713408
    %v4709 = vunpack.c.0.s8 %v4708
    %v4710 = vperm.slane %v4706, %v4709
    %v4711 = vrot.slane %v4704, 4
    %v4712 = vsel %vm604, %v4711, %v4698
    %v4714 = vunpack.c.l.s4 1934713408
    %v4715 = vunpack.c.0.s8 %v4714
    %v4716 = vperm.slane %v4712, %v4715
    %v4717 = vrot.slane %v4716, 4
    %v4718 = vsel %vm604, %v4717, %v4710
    %v4719 = vrot.slane %v4710, 4
    %v4720 = vsel %vm604, %v4716, %v4719
    %4723 = vrot.lane.b32.xlu0 %v4682, 8
    %v4724 = vpop.permute.xlu0 %4723
    %4725 = vrot.lane.b32.xlu0 %v4720, 8
    %v4726 = vpop.permute.xlu0 %4725
    %v4729 = vsel %vm1168, %v4680, %v4724
    %v4730 = vsel %vm1168, %v4718, %v4726
    %v4731 = vld [vmem:[#allocation13] sm:$0xff]
    %v4732 = vld [vmem:[#allocation13 + $0x8] sm:$0xff]
    %vm4733 = vcmask 130048
    %v4735 = vsel %vm4733, %v4729, 0
    %v4738 = vsel %vm4733, %v4730, 0
    %4740 = vmatpush.msra.mxu0 0.0
    %4741 = vmatpush.msra.mxu0 0.0
    %4742 = vmatpush.msra.mxu0 0.0
    %4743 = vmatpush.msra.mxu0 0.0
    %4744 = vmatpush.msra.mxu0 0.0
    %4745 = vmatpush.msra.mxu0 0.0
    %4746 = vmatpush.msra.mxu0 0.0
    %4747 = vmatpush.msra.mxu0 0.0
    %4748 = vmatpush.msra.mxu0 0.0
    %4749 = vmatpush.msra.mxu0 0.0
    %4750 = vmatpush.msra.mxu0 0.0
    %4751 = vmatpush.msra.mxu0 0.0
    %4752 = vmatpush.msra.mxu0 0.0
    %4753 = vmatpush.msra.mxu0 0.0
    %v4754 = vand.u32 %v4732, 4294901760
    %4755 = vmatpush.msra.mxu0 %v4754
    %v4756 = vand.u32 %v4731, 4294901760
    %4757 = vmatpush.msra.mxu0 %v4756
    %v4758 = vand.u32 %v4735, 4294901760
    %v4759 = vsub.f32 %v4735, %v4758
    %v4760 = vand.u32 %v4759, 4294901760
    %v4761 = vsub.f32 %v4759, %v4760
    %v4762 = vand.u32 %v4761, 4294901760
    %4763 = vmatmul.f32.gmra.mxu0 %v4762
    %v4764 = vpop.f32.mrf.mxu0
    %v4765 = vadd.f32 0.0, %v4764
    %v4766 = vand.u32 %v4738, 4294901760
    %v4767 = vsub.f32 %v4738, %v4766
    %v4768 = vand.u32 %v4767, 4294901760
    %v4769 = vsub.f32 %v4767, %v4768
    %v4770 = vand.u32 %v4769, 4294901760
    %4771 = vmatmul.f32.gmra.mxu0 %v4770
    %v4772 = vpop.f32.mrf.mxu0
    %v4773 = vadd.f32 0.0, %v4772
    %4774 = vdwg.mxu0
    %4775 = vmatpush.msra.mxu0 0.0
    %4776 = vmatpush.msra.mxu0 0.0
    %4777 = vmatpush.msra.mxu0 0.0
    %4778 = vmatpush.msra.mxu0 0.0
    %4779 = vmatpush.msra.mxu0 0.0
    %4780 = vmatpush.msra.mxu0 0.0
    %4781 = vmatpush.msra.mxu0 0.0
    %4782 = vmatpush.msra.mxu0 0.0
    %4783 = vmatpush.msra.mxu0 0.0
    %4784 = vmatpush.msra.mxu0 0.0
    %4785 = vmatpush.msra.mxu0 0.0
    %4786 = vmatpush.msra.mxu0 0.0
    %4787 = vmatpush.msra.mxu0 0.0
    %4788 = vmatpush.msra.mxu0 0.0
    %v4789 = vand.u32 %v4732, 4294901760
    %v4790 = vsub.f32 %v4732, %v4789
    %v4791 = vand.u32 %v4790, 4294901760
    %v4792 = vsub.f32 %v4790, %v4791
    %v4793 = vand.u32 %v4792, 4294901760
    %4794 = vmatpush.msra.mxu0 %v4793
    %v4795 = vand.u32 %v4731, 4294901760
    %v4796 = vsub.f32 %v4731, %v4795
    %v4797 = vand.u32 %v4796, 4294901760
    %v4798 = vsub.f32 %v4796, %v4797
    %v4799 = vand.u32 %v4798, 4294901760
    %4800 = vmatpush.msra.mxu0 %v4799
    %v4801 = vand.u32 %v4735, 4294901760
    %4802 = vmatmul.f32.gmra.mxu0 %v4801
    %v4803 = vpop.f32.mrf.mxu0
    %v4804 = vadd.f32 %v4765, %v4803
    %v4805 = vand.u32 %v4738, 4294901760
    %4806 = vmatmul.f32.gmra.mxu0 %v4805
    %v4807 = vpop.f32.mrf.mxu0
    %v4808 = vadd.f32 %v4773, %v4807
    %4809 = vdwg.mxu0
    %4810 = vmatpush.msra.mxu0 0.0
    %4811 = vmatpush.msra.mxu0 0.0
    %4812 = vmatpush.msra.mxu0 0.0
    %4813 = vmatpush.msra.mxu0 0.0
    %4814 = vmatpush.msra.mxu0 0.0
    %4815 = vmatpush.msra.mxu0 0.0
    %4816 = vmatpush.msra.mxu0 0.0
    %4817 = vmatpush.msra.mxu0 0.0
    %4818 = vmatpush.msra.mxu0 0.0
    %4819 = vmatpush.msra.mxu0 0.0
    %4820 = vmatpush.msra.mxu0 0.0
    %4821 = vmatpush.msra.mxu0 0.0
    %4822 = vmatpush.msra.mxu0 0.0
    %4823 = vmatpush.msra.mxu0 0.0
    %v4824 = vand.u32 %v4732, 4294901760
    %v4825 = vsub.f32 %v4732, %v4824
    %4826 = vmatpush.msra.mxu0 %v4825
    %v4827 = vand.u32 %v4731, 4294901760
    %v4828 = vsub.f32 %v4731, %v4827
    %4829 = vmatpush.msra.mxu0 %v4828
    %v4830 = vand.u32 %v4735, 4294901760
    %v4831 = vsub.f32 %v4735, %v4830
    %4832 = vmatmul.f32.gmra.mxu0 %v4831
    %v4833 = vpop.f32.mrf.mxu0
    %v4834 = vadd.f32 %v4804, %v4833
    %v4835 = vand.u32 %v4738, 4294901760
    %v4836 = vsub.f32 %v4738, %v4835
    %4837 = vmatmul.f32.gmra.mxu0 %v4836
    %v4838 = vpop.f32.mrf.mxu0
    %v4839 = vadd.f32 %v4808, %v4838
    %4840 = vdwg.mxu0
    %4841 = vmatpush.msra.mxu0 0.0
    %4842 = vmatpush.msra.mxu0 0.0
    %4843 = vmatpush.msra.mxu0 0.0
    %4844 = vmatpush.msra.mxu0 0.0
    %4845 = vmatpush.msra.mxu0 0.0
    %4846 = vmatpush.msra.mxu0 0.0
    %4847 = vmatpush.msra.mxu0 0.0
    %4848 = vmatpush.msra.mxu0 0.0
    %4849 = vmatpush.msra.mxu0 0.0
    %4850 = vmatpush.msra.mxu0 0.0
    %4851 = vmatpush.msra.mxu0 0.0
    %4852 = vmatpush.msra.mxu0 0.0
    %4853 = vmatpush.msra.mxu0 0.0
    %4854 = vmatpush.msra.mxu0 0.0
    %v4855 = vand.u32 %v4732, 4294901760
    %4856 = vmatpush.msra.mxu0 %v4855
    %v4857 = vand.u32 %v4731, 4294901760
    %4858 = vmatpush.msra.mxu0 %v4857
    %v4859 = vand.u32 %v4735, 4294901760
    %v4860 = vsub.f32 %v4735, %v4859
    %v4861 = vand.u32 %v4860, 4294901760
    %4862 = vmatmul.f32.gmra.mxu0 %v4861
    %v4863 = vpop.f32.mrf.mxu0
    %v4864 = vadd.f32 %v4834, %v4863
    %v4865 = vand.u32 %v4738, 4294901760
    %v4866 = vsub.f32 %v4738, %v4865
    %v4867 = vand.u32 %v4866, 4294901760
    %4868 = vmatmul.f32.gmra.mxu0 %v4867
    %v4869 = vpop.f32.mrf.mxu0
    %v4870 = vadd.f32 %v4839, %v4869
    %4871 = vdwg.mxu0
    %4872 = vmatpush.msra.mxu0 0.0
    %4873 = vmatpush.msra.mxu0 0.0
    %4874 = vmatpush.msra.mxu0 0.0
    %4875 = vmatpush.msra.mxu0 0.0
    %4876 = vmatpush.msra.mxu0 0.0
    %4877 = vmatpush.msra.mxu0 0.0
    %4878 = vmatpush.msra.mxu0 0.0
    %4879 = vmatpush.msra.mxu0 0.0
    %4880 = vmatpush.msra.mxu0 0.0
    %4881 = vmatpush.msra.mxu0 0.0
    %4882 = vmatpush.msra.mxu0 0.0
    %4883 = vmatpush.msra.mxu0 0.0
    %4884 = vmatpush.msra.mxu0 0.0
    %4885 = vmatpush.msra.mxu0 0.0
    %v4886 = vand.u32 %v4732, 4294901760
    %v4887 = vsub.f32 %v4732, %v4886
    %v4888 = vand.u32 %v4887, 4294901760
    %4889 = vmatpush.msra.mxu0 %v4888
    %v4890 = vand.u32 %v4731, 4294901760
    %v4891 = vsub.f32 %v4731, %v4890
    %v4892 = vand.u32 %v4891, 4294901760
    %4893 = vmatpush.msra.mxu0 %v4892
    %v4894 = vand.u32 %v4735, 4294901760
    %4895 = vmatmul.f32.gmra.mxu0 %v4894
    %v4896 = vpop.f32.mrf.mxu0
    %v4897 = vadd.f32 %v4864, %v4896
    %v4898 = vand.u32 %v4738, 4294901760
    %4899 = vmatmul.f32.gmra.mxu0 %v4898
    %v4900 = vpop.f32.mrf.mxu0
    %v4901 = vadd.f32 %v4870, %v4900
    %4902 = vdwg.mxu0
    %4903 = vmatpush.msra.mxu0 0.0
    %4904 = vmatpush.msra.mxu0 0.0
    %4905 = vmatpush.msra.mxu0 0.0
    %4906 = vmatpush.msra.mxu0 0.0
    %4907 = vmatpush.msra.mxu0 0.0
    %4908 = vmatpush.msra.mxu0 0.0
    %4909 = vmatpush.msra.mxu0 0.0
    %4910 = vmatpush.msra.mxu0 0.0
    %4911 = vmatpush.msra.mxu0 0.0
    %4912 = vmatpush.msra.mxu0 0.0
    %4913 = vmatpush.msra.mxu0 0.0
    %4914 = vmatpush.msra.mxu0 0.0
    %4915 = vmatpush.msra.mxu0 0.0
    %4916 = vmatpush.msra.mxu0 0.0
    %v4917 = vand.u32 %v4732, 4294901760
    %4918 = vmatpush.msra.mxu0 %v4917
    %v4919 = vand.u32 %v4731, 4294901760
    %4920 = vmatpush.msra.mxu0 %v4919
    %v4921 = vand.u32 %v4735, 4294901760
    %4922 = vmatmul.f32.gmra.mxu0 %v4921
    %v4923 = vpop.f32.mrf.mxu0
    %v4924 = vadd.f32 %v4897, %v4923
    %v4925 = vand.u32 %v4738, 4294901760
    %4926 = vmatmul.f32.gmra.mxu0 %v4925
    %v4927 = vpop.f32.mrf.mxu0
    %v4928 = vadd.f32 %v4901, %v4927
    %4929 = vdwg.mxu0
    %v4931 = vsel %vm4733, %v2661, 0
    %v4934 = vsel %vm4733, %v2662, 0
    %4936 = vmatpush.msra.mxu0 0.0
    %4937 = vmatpush.msra.mxu0 0.0
    %4938 = vmatpush.msra.mxu0 0.0
    %4939 = vmatpush.msra.mxu0 0.0
    %4940 = vmatpush.msra.mxu0 0.0
    %4941 = vmatpush.msra.mxu0 0.0
    %4942 = vmatpush.msra.mxu0 0.0
    %4943 = vmatpush.msra.mxu0 0.0
    %4944 = vmatpush.msra.mxu0 0.0
    %4945 = vmatpush.msra.mxu0 0.0
    %4946 = vmatpush.msra.mxu0 0.0
    %4947 = vmatpush.msra.mxu0 0.0
    %4948 = vmatpush.msra.mxu0 0.0
    %4949 = vmatpush.msra.mxu0 0.0
    %v4950 = vand.u32 %v2664, 4294901760
    %4951 = vmatpush.msra.mxu0 %v4950
    %v4952 = vand.u32 %v2663, 4294901760
    %4953 = vmatpush.msra.mxu0 %v4952
    %v4954 = vand.u32 %v4931, 4294901760
    %v4955 = vsub.f32 %v4931, %v4954
    %v4956 = vand.u32 %v4955, 4294901760
    %v4957 = vsub.f32 %v4955, %v4956
    %v4958 = vand.u32 %v4957, 4294901760
    %4959 = vmatmul.f32.gmra.mxu0 %v4958
    %v4960 = vpop.f32.mrf.mxu0
    %v4961 = vadd.f32 %v4924, %v4960
    %v4962 = vand.u32 %v4934, 4294901760
    %v4963 = vsub.f32 %v4934, %v4962
    %v4964 = vand.u32 %v4963, 4294901760
    %v4965 = vsub.f32 %v4963, %v4964
    %v4966 = vand.u32 %v4965, 4294901760
    %4967 = vmatmul.f32.gmra.mxu0 %v4966
    %v4968 = vpop.f32.mrf.mxu0
    %v4969 = vadd.f32 %v4928, %v4968
    %4970 = vdwg.mxu0
    %4971 = vmatpush.msra.mxu0 0.0
    %4972 = vmatpush.msra.mxu0 0.0
    %4973 = vmatpush.msra.mxu0 0.0
    %4974 = vmatpush.msra.mxu0 0.0
    %4975 = vmatpush.msra.mxu0 0.0
    %4976 = vmatpush.msra.mxu0 0.0
    %4977 = vmatpush.msra.mxu0 0.0
    %4978 = vmatpush.msra.mxu0 0.0
    %4979 = vmatpush.msra.mxu0 0.0
    %4980 = vmatpush.msra.mxu0 0.0
    %4981 = vmatpush.msra.mxu0 0.0
    %4982 = vmatpush.msra.mxu0 0.0
    %4983 = vmatpush.msra.mxu0 0.0
    %4984 = vmatpush.msra.mxu0 0.0
    %v4985 = vand.u32 %v2664, 4294901760
    %v4986 = vsub.f32 %v2664, %v4985
    %v4987 = vand.u32 %v4986, 4294901760
    %v4988 = vsub.f32 %v4986, %v4987
    %v4989 = vand.u32 %v4988, 4294901760
    %4990 = vmatpush.msra.mxu0 %v4989
    %v4991 = vand.u32 %v2663, 4294901760
    %v4992 = vsub.f32 %v2663, %v4991
    %v4993 = vand.u32 %v4992, 4294901760
    %v4994 = vsub.f32 %v4992, %v4993
    %v4995 = vand.u32 %v4994, 4294901760
    %4996 = vmatpush.msra.mxu0 %v4995
    %v4997 = vand.u32 %v4931, 4294901760
    %4998 = vmatmul.f32.gmra.mxu0 %v4997
    %v4999 = vpop.f32.mrf.mxu0
    %v5000 = vadd.f32 %v4961, %v4999
    %v5001 = vand.u32 %v4934, 4294901760
    %5002 = vmatmul.f32.gmra.mxu0 %v5001
    %v5003 = vpop.f32.mrf.mxu0
    %v5004 = vadd.f32 %v4969, %v5003
    %5005 = vdwg.mxu0
    %5006 = vmatpush.msra.mxu0 0.0
    %5007 = vmatpush.msra.mxu0 0.0
    %5008 = vmatpush.msra.mxu0 0.0
    %5009 = vmatpush.msra.mxu0 0.0
    %5010 = vmatpush.msra.mxu0 0.0
    %5011 = vmatpush.msra.mxu0 0.0
    %5012 = vmatpush.msra.mxu0 0.0
    %5013 = vmatpush.msra.mxu0 0.0
    %5014 = vmatpush.msra.mxu0 0.0
    %5015 = vmatpush.msra.mxu0 0.0
    %5016 = vmatpush.msra.mxu0 0.0
    %5017 = vmatpush.msra.mxu0 0.0
    %5018 = vmatpush.msra.mxu0 0.0
    %5019 = vmatpush.msra.mxu0 0.0
    %v5020 = vand.u32 %v2664, 4294901760
    %v5021 = vsub.f32 %v2664, %v5020
    %5022 = vmatpush.msra.mxu0 %v5021
    %v5023 = vand.u32 %v2663, 4294901760
    %v5024 = vsub.f32 %v2663, %v5023
    %5025 = vmatpush.msra.mxu0 %v5024
    %v5026 = vand.u32 %v4931, 4294901760
    %v5027 = vsub.f32 %v4931, %v5026
    %5028 = vmatmul.f32.gmra.mxu0 %v5027
    %v5029 = vpop.f32.mrf.mxu0
    %v5030 = vadd.f32 %v5000, %v5029
    %v5031 = vand.u32 %v4934, 4294901760
    %v5032 = vsub.f32 %v4934, %v5031
    %5033 = vmatmul.f32.gmra.mxu0 %v5032
    %v5034 = vpop.f32.mrf.mxu0
    %v5035 = vadd.f32 %v5004, %v5034
    %5036 = vdwg.mxu0
    %5037 = vmatpush.msra.mxu0 0.0
    %5038 = vmatpush.msra.mxu0 0.0
    %5039 = vmatpush.msra.mxu0 0.0
    %5040 = vmatpush.msra.mxu0 0.0
    %5041 = vmatpush.msra.mxu0 0.0
    %5042 = vmatpush.msra.mxu0 0.0
    %5043 = vmatpush.msra.mxu0 0.0
    %5044 = vmatpush.msra.mxu0 0.0
    %5045 = vmatpush.msra.mxu0 0.0
    %5046 = vmatpush.msra.mxu0 0.0
    %5047 = vmatpush.msra.mxu0 0.0
    %5048 = vmatpush.msra.mxu0 0.0
    %5049 = vmatpush.msra.mxu0 0.0
    %5050 = vmatpush.msra.mxu0 0.0
    %v5051 = vand.u32 %v2664, 4294901760
    %5052 = vmatpush.msra.mxu0 %v5051
    %v5053 = vand.u32 %v2663, 4294901760
    %5054 = vmatpush.msra.mxu0 %v5053
    %v5055 = vand.u32 %v4931, 4294901760
    %v5056 = vsub.f32 %v4931, %v5055
    %v5057 = vand.u32 %v5056, 4294901760
    %5058 = vmatmul.f32.gmra.mxu0 %v5057
    %v5059 = vpop.f32.mrf.mxu0
    %v5060 = vadd.f32 %v5030, %v5059
    %v5061 = vand.u32 %v4934, 4294901760
    %v5062 = vsub.f32 %v4934, %v5061
    %v5063 = vand.u32 %v5062, 4294901760
    %5064 = vmatmul.f32.gmra.mxu0 %v5063
    %v5065 = vpop.f32.mrf.mxu0
    %v5066 = vadd.f32 %v5035, %v5065
    %5067 = vdwg.mxu0
    %5068 = vmatpush.msra.mxu0 0.0
    %5069 = vmatpush.msra.mxu0 0.0
    %5070 = vmatpush.msra.mxu0 0.0
    %5071 = vmatpush.msra.mxu0 0.0
    %5072 = vmatpush.msra.mxu0 0.0
    %5073 = vmatpush.msra.mxu0 0.0
    %5074 = vmatpush.msra.mxu0 0.0
    %5075 = vmatpush.msra.mxu0 0.0
    %5076 = vmatpush.msra.mxu0 0.0
    %5077 = vmatpush.msra.mxu0 0.0
    %5078 = vmatpush.msra.mxu0 0.0
    %5079 = vmatpush.msra.mxu0 0.0
    %5080 = vmatpush.msra.mxu0 0.0
    %5081 = vmatpush.msra.mxu0 0.0
    %v5082 = vand.u32 %v2664, 4294901760
    %v5083 = vsub.f32 %v2664, %v5082
    %v5084 = vand.u32 %v5083, 4294901760
    %5085 = vmatpush.msra.mxu0 %v5084
    %v5086 = vand.u32 %v2663, 4294901760
    %v5087 = vsub.f32 %v2663, %v5086
    %v5088 = vand.u32 %v5087, 4294901760
    %5089 = vmatpush.msra.mxu0 %v5088
    %v5090 = vand.u32 %v4931, 4294901760
    %5091 = vmatmul.f32.gmra.mxu0 %v5090
    %v5092 = vpop.f32.mrf.mxu0
    %v5093 = vadd.f32 %v5060, %v5092
    %v5094 = vand.u32 %v4934, 4294901760
    %5095 = vmatmul.f32.gmra.mxu0 %v5094
    %v5096 = vpop.f32.mrf.mxu0
    %v5097 = vadd.f32 %v5066, %v5096
    %5098 = vdwg.mxu0
    %5099 = vmatpush.msra.mxu0 0.0
    %5100 = vmatpush.msra.mxu0 0.0
    %5101 = vmatpush.msra.mxu0 0.0
    %5102 = vmatpush.msra.mxu0 0.0
    %5103 = vmatpush.msra.mxu0 0.0
    %5104 = vmatpush.msra.mxu0 0.0
    %5105 = vmatpush.msra.mxu0 0.0
    %5106 = vmatpush.msra.mxu0 0.0
    %5107 = vmatpush.msra.mxu0 0.0
    %5108 = vmatpush.msra.mxu0 0.0
    %5109 = vmatpush.msra.mxu0 0.0
    %5110 = vmatpush.msra.mxu0 0.0
    %5111 = vmatpush.msra.mxu0 0.0
    %5112 = vmatpush.msra.mxu0 0.0
    %v5113 = vand.u32 %v2664, 4294901760
    %5114 = vmatpush.msra.mxu0 %v5113
    %v5115 = vand.u32 %v2663, 4294901760
    %5116 = vmatpush.msra.mxu0 %v5115
    %v5117 = vand.u32 %v4931, 4294901760
    %5118 = vmatmul.f32.gmra.mxu0 %v5117
    %v5119 = vpop.f32.mrf.mxu0
    %v5120 = vadd.f32 %v5093, %v5119
    %v5121 = vand.u32 %v4934, 4294901760
    %5122 = vmatmul.f32.gmra.mxu0 %v5121
    %v5123 = vpop.f32.mrf.mxu0
    %v5124 = vadd.f32 %v5097, %v5123
    %5125 = vdwg.mxu0
    %5126 = vst.msk [vmem:[#allocation14] sm:$0xff] %vm146, %v5120
    %5127 = vst.msk [vmem:[#allocation14 + $0x8] sm:$0xff] %vm146, %v5124
    // Predicated region
    $region58: #{tpu_custom_call.1} parent=1 // pred_check
      _
    $region59: #{tpu_custom_call.1} parent=1 // pred_check_branch
      %5129 = sbr.rel (0) target = $region61
    $region60: #{tpu_custom_call.1} parent=1 // pred_region
      %5131 = vsyncadd [#allocation4], 0
      %s5132 = sshll.u32 [#allocation14], 4
      %s5133 = int_to_ptr.vmem [resolvable:$true] %s5132
      %s5134 = sshll.u32 %s7, 4
      %s5135 = int_to_ptr.hbm [resolvable:$true] %s5134
      %5140 = dma.vmem_to_hbm [thread:$0]  %s5133, 256, %s5135, [#allocation4], 128, 128, 8
    $region61: #{tpu_custom_call.1} parent=1 // pred_fallthru
      _
    // Predicated region
    $region62: #{tpu_custom_call.1} parent=1 // pred_check
      _
    $region63: #{tpu_custom_call.1} parent=1 // pred_check_branch
      %5142 = sbr.rel (0) target = $region65
    $region64: #{tpu_custom_call.1} parent=1 // pred_region
      %5144 = dma.done [#allocation4], 256
    $region65: #{tpu_custom_call.1} parent=1 // pred_fallthru
      _
    %5145 = vsyncpa [#allocation3], 1
    %5146 = vsyncpa [#allocation6], 1
    %5147 = vsyncpa [#allocation9], 1
    %5148 = vsyncpa [#allocation12], 1
    %5149 = vsyncpa [#allocation4], 1

</llo_original>
